<compile_context>
chip_gen: v7x
topology: tpu7x:2x2x1
jax: 0.10.0
libtpu: 0.0.40
codegen_flags: <defaults>
</compile_context>

<pallas_src>
import jax
import jax.numpy as jnp
from jax.experimental import pallas as pl
from jax.experimental.pallas import tpu as pltpu


_WOFF = 8  # sublane-aligned column offset of the interior inside the padded scratch


def _basic_block_kernel(x_ref, w1_ref, b1_ref, w2_ref, b2_ref, out_ref,
                        xpad_scr, hpad_scr, patches_scr):
    """One batch element: out = relu(bn2(conv2(relu(bn1(conv1(x))))) + x).

    x_ref       : (H, W, C)          NHWC tile (batch dim squeezed by BlockSpec)
    w*_ref      : (9*C, C)  bf16     folded conv+BN taps, (dy, dx, ci)-major rows
    b*_ref      : (1, C)    f32      folded BN bias
    out_ref     : (H, W, C)
    xpad_scr    : (H+2, W+_WOFF+1, C) bf16  zero-padded input, interior at col _WOFF
    hpad_scr    : (H+2, W+_WOFF+1, C) bf16  zero-padded intermediate activation
    patches_scr : (H*W, 9*C) bf16    im2col buffer (reused by both convs)
    """
    H, W, C = x_ref.shape

    def zero_halo(pad_scr):
        # Only the strips the taps can read: rows 0 / H+1 and the two halo
        # columns.  The interior is fully overwritten below every step.
        wp = pad_scr.shape[1]
        z_row = jnp.zeros((1, wp, C), pad_scr.dtype)
        pad_scr[0:1, :, :] = z_row
        pad_scr[H + 1:H + 2, :, :] = z_row
        z_col = jnp.zeros((H + 2, 1, C), pad_scr.dtype)
        pad_scr[:, _WOFF - 1:_WOFF, :] = z_col
        pad_scr[:, _WOFF + W:_WOFF + W + 1, :] = z_col

    def conv3x3(pad_scr, w_ref):
        # im2col: pack the 9 shifted (H*W, C) taps into one (H*W, 9*C) buffer,
        # then a single bf16 matmul with K = 9*C (f32 accumulation on the MXU).
        k = 0
        for dy in range(3):
            for dx in range(3):
                tap = pad_scr[dy:dy + H, _WOFF - 1 + dx:_WOFF - 1 + dx + W, :]
                patches_scr[:, k * C:(k + 1) * C] = tap.reshape(H * W, C)
                k += 1
        return jnp.dot(patches_scr[...], w_ref[...],
                       preferred_element_type=jnp.float32)       # (H*W, C) f32

    zero_halo(xpad_scr)
    zero_halo(hpad_scr)

    x = x_ref[...]                                               # (H, W, C)
    xpad_scr[1:H + 1, _WOFF:_WOFF + W, :] = x.astype(xpad_scr.dtype)

    # ---- conv1 + folded BN1 + ReLU (intermediate never leaves VMEM) ----
    h = jnp.maximum(conv3x3(xpad_scr, w1_ref) + b1_ref[...], 0.0)
    hpad_scr[1:H + 1, _WOFF:_WOFF + W, :] = (
        h.reshape(H, W, C).astype(hpad_scr.dtype))

    # ---- conv2 + folded BN2 + residual add + ReLU, single output store ----
    out = conv3x3(hpad_scr, w2_ref) + b2_ref[...]
    out = out + x.reshape(H * W, C).astype(jnp.float32)
    out_ref[...] = jnp.maximum(out, 0.0).reshape(H, W, C).astype(out_ref.dtype)


def _fold_conv_bn(w_oihw, gamma, beta, mean, var, eps=1e-5):
    """Fold eval-mode BN into the conv: bf16 taps (9*Cin, Cout) + f32 bias."""
    scale = gamma / jnp.sqrt(var + eps)                          # (Cout,)
    bias = beta - mean * scale                                   # (Cout,)
    cout, cin = w_oihw.shape[0], w_oihw.shape[1]
    # (Cout, Cin, 3, 3) -> (dy, dx, Cin, Cout), BN scale folded per out chan,
    # then flattened so row index = (dy*3 + dx)*Cin + ci  (matches the kernel's
    # im2col column ordering).
    w = jnp.transpose(w_oihw, (2, 3, 1, 0)) * scale
    return (w.reshape(9 * cin, cout).astype(jnp.bfloat16),
            bias.reshape(1, cout).astype(jnp.float32))


@jax.jit
def basic_block_forward_nhwc(x, params):
    """BasicBlock forward on NHWC activations (stride=1, downsample=None)."""
    N, H, W, Cin = x.shape
    Cout = params["conv1_w"].shape[0]
    assert Cin == Cout, "residual path requires in_channels == out_channels"
    C = Cout

    w1, b1 = _fold_conv_bn(params["conv1_w"], params["bn1_g"], params["bn1_b"],
                           params["bn1_m"], params["bn1_v"])
    w2, b2 = _fold_conv_bn(params["conv2_w"], params["bn2_g"], params["bn2_b"],
                           params["bn2_m"], params["bn2_v"])

    flops = 2 * 2 * N * H * W * 9 * C * C                       # two 3x3 convs
    bytes_accessed = (x.size * x.dtype.itemsize                  # input
                      + N * H * W * C * x.dtype.itemsize         # output
                      + w1.size * 2 + w2.size * 2                # bf16 weights
                      + (b1.size + b2.size) * 4)                 # f32 biases

    return pl.pallas_call(
        _basic_block_kernel,
        out_shape=jax.ShapeDtypeStruct((N, H, W, C), x.dtype),
        grid=(N,),
        in_specs=[
            pl.BlockSpec((None, H, W, Cin), lambda n: (n, 0, 0, 0)),
            # Weights / biases are tiny and grid-invariant: full blocks with a
            # constant index_map -> DMA'd once and kept resident.
            pl.BlockSpec((9 * Cin, C), lambda n: (0, 0)),
            pl.BlockSpec((1, C), lambda n: (0, 0)),
            pl.BlockSpec((9 * C, C), lambda n: (0, 0)),
            pl.BlockSpec((1, C), lambda n: (0, 0)),
        ],
        out_specs=pl.BlockSpec((None, H, W, C), lambda n: (n, 0, 0, 0)),
        scratch_shapes=[
            pltpu.VMEM((H + 2, W + _WOFF + 1, Cin), jnp.bfloat16),  # padded x
            pltpu.VMEM((H + 2, W + _WOFF + 1, C), jnp.bfloat16),    # padded h
            pltpu.VMEM((H * W, 9 * C), jnp.bfloat16),               # im2col
        ],
        compiler_params=pltpu.CompilerParams(
            dimension_semantics=("parallel",)),
        cost_estimate=pl.CostEstimate(flops=flops, transcendentals=0,
                                      bytes_accessed=bytes_accessed),
    )(x, w1, b1, w2, b2)


def basic_block_forward(x_nchw, params):
    """NCHW wrapper matching the PyTorch module's layout.

    TODO(synk): keep activations NHWC end-to-end in the calling model and use
    basic_block_forward_nhwc directly; these two full-tensor HBM transposes
    dominate the wall clock of this memory-bound block.
    """
    x = jnp.transpose(x_nchw, (0, 2, 3, 1))                      # NCHW -> NHWC
    out = basic_block_forward_nhwc(x, params)
    return jnp.transpose(out, (0, 3, 1, 2))                      # NHWC -> NCHW


def _reference(x, params, eps=1e-5):
    """Pure-JAX (f32) reference matching PyTorch eval-mode BasicBlock."""
    def conv(x, w):
        return jax.lax.conv_general_dilated(
            x, w, (1, 1), ((1, 1), (1, 1)),
            dimension_numbers=("NCHW", "OIHW", "NCHW"))

    def bn(x, g, b, m, v):
        g, b, m, v = (a[None, :, None, None] for a in (g, b, m, v))
        return (x - m) / jnp.sqrt(v + eps) * g + b

    out = jax.nn.relu(bn(conv(x, params["conv1_w"]),
                         params["bn1_g"], params["bn1_b"],
                         params["bn1_m"], params["bn1_v"]))
    out = bn(conv(out, params["conv2_w"]),
             params["bn2_g"], params["bn2_b"],
             params["bn2_m"], params["bn2_v"])
    return jax.nn.relu(out + x)


if __name__ == "__main__":
    # Small shapes: batch=2, channels=4, spatial=16 (in==out channels, stride=1).
    N, C, H, W = 2, 4, 16, 16
    keys = jax.random.split(jax.random.PRNGKey(0), 9)

    fan_in = C * 3 * 3
    params = {
        "conv1_w": jax.random.normal(keys[0], (C, C, 3, 3), jnp.float32)
                   * (2.0 / fan_in) ** 0.5,
        "conv2_w": jax.random.normal(keys[1], (C, C, 3, 3), jnp.float32)
                   * (2.0 / fan_in) ** 0.5,
        "bn1_g": 1.0 + 0.1 * jax.random.normal(keys[2], (C,), jnp.float32),
        "bn1_b": 0.1 * jax.random.normal(keys[3], (C,), jnp.float32),
        "bn1_m": 0.1 * jax.random.normal(keys[4], (C,), jnp.float32),
        "bn1_v": jnp.abs(1.0 + 0.1 * jax.random.normal(keys[5], (C,), jnp.float32)),
        "bn2_g": 1.0 + 0.1 * jax.random.normal(keys[6], (C,), jnp.float32),
        "bn2_b": 0.1 * jax.random.normal(keys[7], (C,), jnp.float32),
        "bn2_m": jnp.zeros((C,), jnp.float32),
        "bn2_v": jnp.ones((C,), jnp.float32),
    }

    x = jax.random.normal(keys[8], (N, C, H, W), jnp.float32)

    out = jax.block_until_ready(basic_block_forward(x, params))
    ref = _reference(x, params)

    assert out.shape == (N, C, H, W)
    # Tolerance accounts for bf16 matmul inputs (f32 accumulation): ~2% relative
    # is well above the expected bf16 rounding noise for two 3x3 convs here.
    err = float(jnp.max(jnp.abs(out - ref)))
    tol = 2e-2 * float(jnp.max(jnp.abs(ref))) + 1e-2
    assert err < tol, f"mismatch vs reference: err={err:.4e} tol={tol:.4e}"

    print("KERNEL_OK")
</pallas_src>

<mosaic_0001>
module attributes {stable_mosaic.version = 11 : i64} {
  func.func @_basic_block_kernel(%arg0: i32, %arg1: memref<1x16x16x4xf32, #tpu.memory_space<vmem>>, %arg2: memref<36x4xbf16, #tpu.memory_space<vmem>>, %arg3: memref<1x4xf32, #tpu.memory_space<vmem>>, %arg4: memref<36x4xbf16, #tpu.memory_space<vmem>>, %arg5: memref<1x4xf32, #tpu.memory_space<vmem>>, %arg6: memref<1x16x16x4xf32, #tpu.memory_space<vmem>>, %arg7: memref<18x25x4xbf16, #tpu.memory_space<vmem>>, %arg8: memref<18x25x4xbf16, #tpu.memory_space<vmem>>, %arg9: memref<256x36xbf16, #tpu.memory_space<vmem>>) attributes {dimension_semantics = [#tpu.dimension_semantics<parallel>], iteration_bounds = array<i64: 2>, scalar_prefetch = 0 : i64, scratch_operands = 3 : i64, tpu.core_type = #tpu.core_type<tc>, window_params = [{transform_indices = @transform_0, window_bounds = array<i64: 1, 16, 16, 4>}, {pipeline_mode = #tpu.pipeline_mode<synchronous>, transform_indices = @transform_1, window_bounds = array<i64: 36, 4>}, {pipeline_mode = #tpu.pipeline_mode<synchronous>, transform_indices = @transform_2, window_bounds = array<i64: 1, 4>}, {pipeline_mode = #tpu.pipeline_mode<synchronous>, transform_indices = @transform_3, window_bounds = array<i64: 36, 4>}, {pipeline_mode = #tpu.pipeline_mode<synchronous>, transform_indices = @transform_4, window_bounds = array<i64: 1, 4>}, {transform_indices = @transform_5, window_bounds = array<i64: 1, 16, 16, 4>}]} {
    %cst = arith.constant 0.000000e+00 : bf16
    %0 = vector.broadcast %cst : bf16 to vector<1x25x4xbf16>
    %c0 = arith.constant 0 : index
    %c0_0 = arith.constant 0 : index
    %c0_1 = arith.constant 0 : index
    %1 = vector.load %arg7[%c0, %c0_0, %c0_1] : memref<18x25x4xbf16, #tpu.memory_space<vmem>>, vector<1x25x4xbf16>
    tpu.vector_store %arg7[%c0, %c0_0, %c0_1], %0 {strides = array<i32>} : memref<18x25x4xbf16, #tpu.memory_space<vmem>>, vector<1x25x4xbf16>,
    %c17 = arith.constant 17 : index
    %c0_2 = arith.constant 0 : index
    %c0_3 = arith.constant 0 : index
    %2 = vector.load %arg7[%c17, %c0_2, %c0_3] : memref<18x25x4xbf16, #tpu.memory_space<vmem>>, vector<1x25x4xbf16>
    tpu.vector_store %arg7[%c17, %c0_2, %c0_3], %0 {strides = array<i32>} : memref<18x25x4xbf16, #tpu.memory_space<vmem>>, vector<1x25x4xbf16>,
    %cst_4 = arith.constant 0.000000e+00 : bf16
    %3 = vector.broadcast %cst_4 : bf16 to vector<18x1x4xbf16>
    %c0_5 = arith.constant 0 : index
    %c7 = arith.constant 7 : index
    %c0_6 = arith.constant 0 : index
    %4 = vector.load %arg7[%c0_5, %c7, %c0_6] : memref<18x25x4xbf16, #tpu.memory_space<vmem>>, vector<18x1x4xbf16>
    tpu.vector_store %arg7[%c0_5, %c7, %c0_6], %3 {strides = array<i32>} : memref<18x25x4xbf16, #tpu.memory_space<vmem>>, vector<18x1x4xbf16>,
    %c0_7 = arith.constant 0 : index
    %c24 = arith.constant 24 : index
    %c0_8 = arith.constant 0 : index
    %5 = vector.load %arg7[%c0_7, %c24, %c0_8] : memref<18x25x4xbf16, #tpu.memory_space<vmem>>, vector<18x1x4xbf16>
    tpu.vector_store %arg7[%c0_7, %c24, %c0_8], %3 {strides = array<i32>} : memref<18x25x4xbf16, #tpu.memory_space<vmem>>, vector<18x1x4xbf16>,
    %cst_9 = arith.constant 0.000000e+00 : bf16
    %6 = vector.broadcast %cst_9 : bf16 to vector<1x25x4xbf16>
    %c0_10 = arith.constant 0 : index
    %c0_11 = arith.constant 0 : index
    %c0_12 = arith.constant 0 : index
    %7 = vector.load %arg8[%c0_10, %c0_11, %c0_12] : memref<18x25x4xbf16, #tpu.memory_space<vmem>>, vector<1x25x4xbf16>
    tpu.vector_store %arg8[%c0_10, %c0_11, %c0_12], %6 {strides = array<i32>} : memref<18x25x4xbf16, #tpu.memory_space<vmem>>, vector<1x25x4xbf16>,
    %c17_13 = arith.constant 17 : index
    %c0_14 = arith.constant 0 : index
    %c0_15 = arith.constant 0 : index
    %8 = vector.load %arg8[%c17_13, %c0_14, %c0_15] : memref<18x25x4xbf16, #tpu.memory_space<vmem>>, vector<1x25x4xbf16>
    tpu.vector_store %arg8[%c17_13, %c0_14, %c0_15], %6 {strides = array<i32>} : memref<18x25x4xbf16, #tpu.memory_space<vmem>>, vector<1x25x4xbf16>,
    %cst_16 = arith.constant 0.000000e+00 : bf16
    %9 = vector.broadcast %cst_16 : bf16 to vector<18x1x4xbf16>
    %c0_17 = arith.constant 0 : index
    %c7_18 = arith.constant 7 : index
    %c0_19 = arith.constant 0 : index
    %10 = vector.load %arg8[%c0_17, %c7_18, %c0_19] : memref<18x25x4xbf16, #tpu.memory_space<vmem>>, vector<18x1x4xbf16>
    tpu.vector_store %arg8[%c0_17, %c7_18, %c0_19], %9 {strides = array<i32>} : memref<18x25x4xbf16, #tpu.memory_space<vmem>>, vector<18x1x4xbf16>,
    %c0_20 = arith.constant 0 : index
    %c24_21 = arith.constant 24 : index
    %c0_22 = arith.constant 0 : index
    %11 = vector.load %arg8[%c0_20, %c24_21, %c0_22] : memref<18x25x4xbf16, #tpu.memory_space<vmem>>, vector<18x1x4xbf16>
    tpu.vector_store %arg8[%c0_20, %c24_21, %c0_22], %9 {strides = array<i32>} : memref<18x25x4xbf16, #tpu.memory_space<vmem>>, vector<18x1x4xbf16>,
    %c0_23 = arith.constant 0 : index
    %c0_24 = arith.constant 0 : index
    %c0_25 = arith.constant 0 : index
    %c0_26 = arith.constant 0 : index
    %12 = vector.load %arg1[%c0_23, %c0_24, %c0_25, %c0_26] : memref<1x16x16x4xf32, #tpu.memory_space<vmem>>, vector<1x16x16x4xf32>
    %13 = vector.shape_cast %12 : vector<1x16x16x4xf32> to vector<16x16x4xf32>
    %14 = arith.truncf %13 : vector<16x16x4xf32> to vector<16x16x4xbf16>
    %c1 = arith.constant 1 : index
    %c8 = arith.constant 8 : index
    %c0_27 = arith.constant 0 : index
    %15 = vector.load %arg7[%c1, %c8, %c0_27] : memref<18x25x4xbf16, #tpu.memory_space<vmem>>, vector<16x16x4xbf16>
    tpu.vector_store %arg7[%c1, %c8, %c0_27], %14 {strides = array<i32>} : memref<18x25x4xbf16, #tpu.memory_space<vmem>>, vector<16x16x4xbf16>,
    %c0_28 = arith.constant 0 : index
    %c7_29 = arith.constant 7 : index
    %c0_30 = arith.constant 0 : index
    %16 = vector.load %arg7[%c0_28, %c7_29, %c0_30] : memref<18x25x4xbf16, #tpu.memory_space<vmem>>, vector<16x16x4xbf16>
    %17 = vector.shape_cast %16 : vector<16x16x4xbf16> to vector<256x4xbf16>
    %c0_31 = arith.constant 0 : index
    %c0_32 = arith.constant 0 : index
    %18 = vector.load %arg9[%c0_31, %c0_32] : memref<256x36xbf16, #tpu.memory_space<vmem>>, vector<256x4xbf16>
    tpu.vector_store %arg9[%c0_31, %c0_32], %17 {strides = array<i32>} : memref<256x36xbf16, #tpu.memory_space<vmem>>, vector<256x4xbf16>,
    %c0_33 = arith.constant 0 : index
    %c8_34 = arith.constant 8 : index
    %c0_35 = arith.constant 0 : index
    %19 = vector.load %arg7[%c0_33, %c8_34, %c0_35] : memref<18x25x4xbf16, #tpu.memory_space<vmem>>, vector<16x16x4xbf16>
    %20 = vector.shape_cast %19 : vector<16x16x4xbf16> to vector<256x4xbf16>
    %c0_36 = arith.constant 0 : index
    %c4 = arith.constant 4 : index
    %21 = vector.load %arg9[%c0_36, %c4] : memref<256x36xbf16, #tpu.memory_space<vmem>>, vector<256x4xbf16>
    tpu.vector_store %arg9[%c0_36, %c4], %20 {strides = array<i32>} : memref<256x36xbf16, #tpu.memory_space<vmem>>, vector<256x4xbf16>,
    %c0_37 = arith.constant 0 : index
    %c9 = arith.constant 9 : index
    %c0_38 = arith.constant 0 : index
    %22 = vector.load %arg7[%c0_37, %c9, %c0_38] : memref<18x25x4xbf16, #tpu.memory_space<vmem>>, vector<16x16x4xbf16>
    %23 = vector.shape_cast %22 : vector<16x16x4xbf16> to vector<256x4xbf16>
    %c0_39 = arith.constant 0 : index
    %c8_40 = arith.constant 8 : index
    %24 = vector.load %arg9[%c0_39, %c8_40] : memref<256x36xbf16, #tpu.memory_space<vmem>>, vector<256x4xbf16>
    tpu.vector_store %arg9[%c0_39, %c8_40], %23 {strides = array<i32>} : memref<256x36xbf16, #tpu.memory_space<vmem>>, vector<256x4xbf16>,
    %c1_41 = arith.constant 1 : index
    %c7_42 = arith.constant 7 : index
    %c0_43 = arith.constant 0 : index
    %25 = vector.load %arg7[%c1_41, %c7_42, %c0_43] : memref<18x25x4xbf16, #tpu.memory_space<vmem>>, vector<16x16x4xbf16>
    %26 = vector.shape_cast %25 : vector<16x16x4xbf16> to vector<256x4xbf16>
    %c0_44 = arith.constant 0 : index
    %c12 = arith.constant 12 : index
    %27 = vector.load %arg9[%c0_44, %c12] : memref<256x36xbf16, #tpu.memory_space<vmem>>, vector<256x4xbf16>
    tpu.vector_store %arg9[%c0_44, %c12], %26 {strides = array<i32>} : memref<256x36xbf16, #tpu.memory_space<vmem>>, vector<256x4xbf16>,
    %c1_45 = arith.constant 1 : index
    %c8_46 = arith.constant 8 : index
    %c0_47 = arith.constant 0 : index
    %28 = vector.load %arg7[%c1_45, %c8_46, %c0_47] : memref<18x25x4xbf16, #tpu.memory_space<vmem>>, vector<16x16x4xbf16>
    %29 = vector.shape_cast %28 : vector<16x16x4xbf16> to vector<256x4xbf16>
    %c0_48 = arith.constant 0 : index
    %c16 = arith.constant 16 : index
    %30 = vector.load %arg9[%c0_48, %c16] : memref<256x36xbf16, #tpu.memory_space<vmem>>, vector<256x4xbf16>
    tpu.vector_store %arg9[%c0_48, %c16], %29 {strides = array<i32>} : memref<256x36xbf16, #tpu.memory_space<vmem>>, vector<256x4xbf16>,
    %c1_49 = arith.constant 1 : index
    %c9_50 = arith.constant 9 : index
    %c0_51 = arith.constant 0 : index
    %31 = vector.load %arg7[%c1_49, %c9_50, %c0_51] : memref<18x25x4xbf16, #tpu.memory_space<vmem>>, vector<16x16x4xbf16>
    %32 = vector.shape_cast %31 : vector<16x16x4xbf16> to vector<256x4xbf16>
    %c0_52 = arith.constant 0 : index
    %c20 = arith.constant 20 : index
    %33 = vector.load %arg9[%c0_52, %c20] : memref<256x36xbf16, #tpu.memory_space<vmem>>, vector<256x4xbf16>
    tpu.vector_store %arg9[%c0_52, %c20], %32 {strides = array<i32>} : memref<256x36xbf16, #tpu.memory_space<vmem>>, vector<256x4xbf16>,
    %c2 = arith.constant 2 : index
    %c7_53 = arith.constant 7 : index
    %c0_54 = arith.constant 0 : index
    %34 = vector.load %arg7[%c2, %c7_53, %c0_54] : memref<18x25x4xbf16, #tpu.memory_space<vmem>>, vector<16x16x4xbf16>
    %35 = vector.shape_cast %34 : vector<16x16x4xbf16> to vector<256x4xbf16>
    %c0_55 = arith.constant 0 : index
    %c24_56 = arith.constant 24 : index
    %36 = vector.load %arg9[%c0_55, %c24_56] : memref<256x36xbf16, #tpu.memory_space<vmem>>, vector<256x4xbf16>
    tpu.vector_store %arg9[%c0_55, %c24_56], %35 {strides = array<i32>} : memref<256x36xbf16, #tpu.memory_space<vmem>>, vector<256x4xbf16>,
    %c2_57 = arith.constant 2 : index
    %c8_58 = arith.constant 8 : index
    %c0_59 = arith.constant 0 : index
    %37 = vector.load %arg7[%c2_57, %c8_58, %c0_59] : memref<18x25x4xbf16, #tpu.memory_space<vmem>>, vector<16x16x4xbf16>
    %38 = vector.shape_cast %37 : vector<16x16x4xbf16> to vector<256x4xbf16>
    %c0_60 = arith.constant 0 : index
    %c28 = arith.constant 28 : index
    %39 = vector.load %arg9[%c0_60, %c28] : memref<256x36xbf16, #tpu.memory_space<vmem>>, vector<256x4xbf16>
    tpu.vector_store %arg9[%c0_60, %c28], %38 {strides = array<i32>} : memref<256x36xbf16, #tpu.memory_space<vmem>>, vector<256x4xbf16>,
    %c2_61 = arith.constant 2 : index
    %c9_62 = arith.constant 9 : index
    %c0_63 = arith.constant 0 : index
    %40 = vector.load %arg7[%c2_61, %c9_62, %c0_63] : memref<18x25x4xbf16, #tpu.memory_space<vmem>>, vector<16x16x4xbf16>
    %41 = vector.shape_cast %40 : vector<16x16x4xbf16> to vector<256x4xbf16>
    %c0_64 = arith.constant 0 : index
    %c32 = arith.constant 32 : index
    %42 = vector.load %arg9[%c0_64, %c32] : memref<256x36xbf16, #tpu.memory_space<vmem>>, vector<256x4xbf16>
    tpu.vector_store %arg9[%c0_64, %c32], %41 {strides = array<i32>} : memref<256x36xbf16, #tpu.memory_space<vmem>>, vector<256x4xbf16>,
    %c0_65 = arith.constant 0 : index
    %c0_66 = arith.constant 0 : index
    %43 = vector.load %arg9[%c0_65, %c0_66] : memref<256x36xbf16, #tpu.memory_space<vmem>>, vector<256x36xbf16>
    %c0_67 = arith.constant 0 : index
    %c0_68 = arith.constant 0 : index
    %44 = vector.load %arg2[%c0_67, %c0_68] : memref<36x4xbf16, #tpu.memory_space<vmem>>, vector<36x4xbf16>
    %cst_69 = arith.constant dense<0.000000e+00> : vector<256x4xf32>
    %45 = tpu.matmul %43, %44, %cst_69 {dimension_numbers = #tpu.dot_dimension_numbers<[1], [0], [0], [1], [0, 0, 1, 1], [], []>} : vector<256x36xbf16>, vector<36x4xbf16>, vector<256x4xf32> -> vector<256x4xf32>
    %c0_70 = arith.constant 0 : index
    %c0_71 = arith.constant 0 : index
    %46 = vector.load %arg3[%c0_70, %c0_71] : memref<1x4xf32, #tpu.memory_space<vmem>>, vector<1x4xf32>
    %47 = vector.broadcast %46 : vector<1x4xf32> to vector<256x4xf32>
    %48 = arith.addf %45, %47 : vector<256x4xf32>
    %cst_72 = arith.constant 0.000000e+00 : f32
    %49 = vector.broadcast %cst_72 : f32 to vector<256x4xf32>
    %50 = arith.maximumf %48, %49 : vector<256x4xf32>
    %51 = vector.shape_cast %50 : vector<256x4xf32> to vector<16x16x4xf32>
    %52 = arith.truncf %51 : vector<16x16x4xf32> to vector<16x16x4xbf16>
    %c1_73 = arith.constant 1 : index
    %c8_74 = arith.constant 8 : index
    %c0_75 = arith.constant 0 : index
    %53 = vector.load %arg8[%c1_73, %c8_74, %c0_75] : memref<18x25x4xbf16, #tpu.memory_space<vmem>>, vector<16x16x4xbf16>
    tpu.vector_store %arg8[%c1_73, %c8_74, %c0_75], %52 {strides = array<i32>} : memref<18x25x4xbf16, #tpu.memory_space<vmem>>, vector<16x16x4xbf16>,
    %c0_76 = arith.constant 0 : index
    %c7_77 = arith.constant 7 : index
    %c0_78 = arith.constant 0 : index
    %54 = vector.load %arg8[%c0_76, %c7_77, %c0_78] : memref<18x25x4xbf16, #tpu.memory_space<vmem>>, vector<16x16x4xbf16>
    %55 = vector.shape_cast %54 : vector<16x16x4xbf16> to vector<256x4xbf16>
    %c0_79 = arith.constant 0 : index
    %c0_80 = arith.constant 0 : index
    %56 = vector.load %arg9[%c0_79, %c0_80] : memref<256x36xbf16, #tpu.memory_space<vmem>>, vector<256x4xbf16>
    tpu.vector_store %arg9[%c0_79, %c0_80], %55 {strides = array<i32>} : memref<256x36xbf16, #tpu.memory_space<vmem>>, vector<256x4xbf16>,
    %c0_81 = arith.constant 0 : index
    %c8_82 = arith.constant 8 : index
    %c0_83 = arith.constant 0 : index
    %57 = vector.load %arg8[%c0_81, %c8_82, %c0_83] : memref<18x25x4xbf16, #tpu.memory_space<vmem>>, vector<16x16x4xbf16>
    %58 = vector.shape_cast %57 : vector<16x16x4xbf16> to vector<256x4xbf16>
    %c0_84 = arith.constant 0 : index
    %c4_85 = arith.constant 4 : index
    %59 = vector.load %arg9[%c0_84, %c4_85] : memref<256x36xbf16, #tpu.memory_space<vmem>>, vector<256x4xbf16>
    tpu.vector_store %arg9[%c0_84, %c4_85], %58 {strides = array<i32>} : memref<256x36xbf16, #tpu.memory_space<vmem>>, vector<256x4xbf16>,
    %c0_86 = arith.constant 0 : index
    %c9_87 = arith.constant 9 : index
    %c0_88 = arith.constant 0 : index
    %60 = vector.load %arg8[%c0_86, %c9_87, %c0_88] : memref<18x25x4xbf16, #tpu.memory_space<vmem>>, vector<16x16x4xbf16>
    %61 = vector.shape_cast %60 : vector<16x16x4xbf16> to vector<256x4xbf16>
    %c0_89 = arith.constant 0 : index
    %c8_90 = arith.constant 8 : index
    %62 = vector.load %arg9[%c0_89, %c8_90] : memref<256x36xbf16, #tpu.memory_space<vmem>>, vector<256x4xbf16>
    tpu.vector_store %arg9[%c0_89, %c8_90], %61 {strides = array<i32>} : memref<256x36xbf16, #tpu.memory_space<vmem>>, vector<256x4xbf16>,
    %c1_91 = arith.constant 1 : index
    %c7_92 = arith.constant 7 : index
    %c0_93 = arith.constant 0 : index
    %63 = vector.load %arg8[%c1_91, %c7_92, %c0_93] : memref<18x25x4xbf16, #tpu.memory_space<vmem>>, vector<16x16x4xbf16>
    %64 = vector.shape_cast %63 : vector<16x16x4xbf16> to vector<256x4xbf16>
    %c0_94 = arith.constant 0 : index
    %c12_95 = arith.constant 12 : index
    %65 = vector.load %arg9[%c0_94, %c12_95] : memref<256x36xbf16, #tpu.memory_space<vmem>>, vector<256x4xbf16>
    tpu.vector_store %arg9[%c0_94, %c12_95], %64 {strides = array<i32>} : memref<256x36xbf16, #tpu.memory_space<vmem>>, vector<256x4xbf16>,
    %c1_96 = arith.constant 1 : index
    %c8_97 = arith.constant 8 : index
    %c0_98 = arith.constant 0 : index
    %66 = vector.load %arg8[%c1_96, %c8_97, %c0_98] : memref<18x25x4xbf16, #tpu.memory_space<vmem>>, vector<16x16x4xbf16>
    %67 = vector.shape_cast %66 : vector<16x16x4xbf16> to vector<256x4xbf16>
    %c0_99 = arith.constant 0 : index
    %c16_100 = arith.constant 16 : index
    %68 = vector.load %arg9[%c0_99, %c16_100] : memref<256x36xbf16, #tpu.memory_space<vmem>>, vector<256x4xbf16>
    tpu.vector_store %arg9[%c0_99, %c16_100], %67 {strides = array<i32>} : memref<256x36xbf16, #tpu.memory_space<vmem>>, vector<256x4xbf16>,
    %c1_101 = arith.constant 1 : index
    %c9_102 = arith.constant 9 : index
    %c0_103 = arith.constant 0 : index
    %69 = vector.load %arg8[%c1_101, %c9_102, %c0_103] : memref<18x25x4xbf16, #tpu.memory_space<vmem>>, vector<16x16x4xbf16>
    %70 = vector.shape_cast %69 : vector<16x16x4xbf16> to vector<256x4xbf16>
    %c0_104 = arith.constant 0 : index
    %c20_105 = arith.constant 20 : index
    %71 = vector.load %arg9[%c0_104, %c20_105] : memref<256x36xbf16, #tpu.memory_space<vmem>>, vector<256x4xbf16>
    tpu.vector_store %arg9[%c0_104, %c20_105], %70 {strides = array<i32>} : memref<256x36xbf16, #tpu.memory_space<vmem>>, vector<256x4xbf16>,
    %c2_106 = arith.constant 2 : index
    %c7_107 = arith.constant 7 : index
    %c0_108 = arith.constant 0 : index
    %72 = vector.load %arg8[%c2_106, %c7_107, %c0_108] : memref<18x25x4xbf16, #tpu.memory_space<vmem>>, vector<16x16x4xbf16>
    %73 = vector.shape_cast %72 : vector<16x16x4xbf16> to vector<256x4xbf16>
    %c0_109 = arith.constant 0 : index
    %c24_110 = arith.constant 24 : index
    %74 = vector.load %arg9[%c0_109, %c24_110] : memref<256x36xbf16, #tpu.memory_space<vmem>>, vector<256x4xbf16>
    tpu.vector_store %arg9[%c0_109, %c24_110], %73 {strides = array<i32>} : memref<256x36xbf16, #tpu.memory_space<vmem>>, vector<256x4xbf16>,
    %c2_111 = arith.constant 2 : index
    %c8_112 = arith.constant 8 : index
    %c0_113 = arith.constant 0 : index
    %75 = vector.load %arg8[%c2_111, %c8_112, %c0_113] : memref<18x25x4xbf16, #tpu.memory_space<vmem>>, vector<16x16x4xbf16>
    %76 = vector.shape_cast %75 : vector<16x16x4xbf16> to vector<256x4xbf16>
    %c0_114 = arith.constant 0 : index
    %c28_115 = arith.constant 28 : index
    %77 = vector.load %arg9[%c0_114, %c28_115] : memref<256x36xbf16, #tpu.memory_space<vmem>>, vector<256x4xbf16>
    tpu.vector_store %arg9[%c0_114, %c28_115], %76 {strides = array<i32>} : memref<256x36xbf16, #tpu.memory_space<vmem>>, vector<256x4xbf16>,
    %c2_116 = arith.constant 2 : index
    %c9_117 = arith.constant 9 : index
    %c0_118 = arith.constant 0 : index
    %78 = vector.load %arg8[%c2_116, %c9_117, %c0_118] : memref<18x25x4xbf16, #tpu.memory_space<vmem>>, vector<16x16x4xbf16>
    %79 = vector.shape_cast %78 : vector<16x16x4xbf16> to vector<256x4xbf16>
    %c0_119 = arith.constant 0 : index
    %c32_120 = arith.constant 32 : index
    %80 = vector.load %arg9[%c0_119, %c32_120] : memref<256x36xbf16, #tpu.memory_space<vmem>>, vector<256x4xbf16>
    tpu.vector_store %arg9[%c0_119, %c32_120], %79 {strides = array<i32>} : memref<256x36xbf16, #tpu.memory_space<vmem>>, vector<256x4xbf16>,
    %c0_121 = arith.constant 0 : index
    %c0_122 = arith.constant 0 : index
    %81 = vector.load %arg9[%c0_121, %c0_122] : memref<256x36xbf16, #tpu.memory_space<vmem>>, vector<256x36xbf16>
    %c0_123 = arith.constant 0 : index
    %c0_124 = arith.constant 0 : index
    %82 = vector.load %arg4[%c0_123, %c0_124] : memref<36x4xbf16, #tpu.memory_space<vmem>>, vector<36x4xbf16>
    %cst_125 = arith.constant dense<0.000000e+00> : vector<256x4xf32>
    %83 = tpu.matmul %81, %82, %cst_125 {dimension_numbers = #tpu.dot_dimension_numbers<[1], [0], [0], [1], [0, 0, 1, 1], [], []>} : vector<256x36xbf16>, vector<36x4xbf16>, vector<256x4xf32> -> vector<256x4xf32>
    %c0_126 = arith.constant 0 : index
    %c0_127 = arith.constant 0 : index
    %84 = vector.load %arg5[%c0_126, %c0_127] : memref<1x4xf32, #tpu.memory_space<vmem>>, vector<1x4xf32>
    %85 = vector.broadcast %84 : vector<1x4xf32> to vector<256x4xf32>
    %86 = arith.addf %83, %85 : vector<256x4xf32>
    %87 = vector.shape_cast %13 : vector<16x16x4xf32> to vector<256x4xf32>
    %88 = arith.addf %86, %87 : vector<256x4xf32>
    %cst_128 = arith.constant 0.000000e+00 : f32
    %89 = vector.broadcast %cst_128 : f32 to vector<256x4xf32>
    %90 = arith.maximumf %88, %89 : vector<256x4xf32>
    %91 = vector.shape_cast %90 : vector<256x4xf32> to vector<16x16x4xf32>
    %c0_129 = arith.constant 0 : index
    %c0_130 = arith.constant 0 : index
    %c0_131 = arith.constant 0 : index
    %c0_132 = arith.constant 0 : index
    %92 = vector.load %arg6[%c0_129, %c0_130, %c0_131, %c0_132] : memref<1x16x16x4xf32, #tpu.memory_space<vmem>>, vector<1x16x16x4xf32>
    %93 = vector.shape_cast %92 : vector<1x16x16x4xf32> to vector<16x16x4xf32>
    %94 = vector.shape_cast %91 : vector<16x16x4xf32> to vector<1x16x16x4xf32>
    tpu.vector_store %arg6[%c0_129, %c0_130, %c0_131, %c0_132], %94 {strides = array<i32>} : memref<1x16x16x4xf32, #tpu.memory_space<vmem>>, vector<1x16x16x4xf32>,
    return
  }
  func.func @transform_0(%arg0: i32) -> (i32, i32, i32, i32) {
    %c0_i32 = arith.constant 0 : i32
    %c0_i32_0 = arith.constant 0 : i32
    %c0_i32_1 = arith.constant 0 : i32
    %c0_i32_2 = arith.constant 0 : i32
    return %arg0, %c0_i32, %c0_i32_0, %c0_i32_1 : i32, i32, i32, i32
  }
  func.func @transform_1(%arg0: i32) -> (i32, i32) {
    %c0_i32 = arith.constant 0 : i32
    %c0_i32_0 = arith.constant 0 : i32
    %c0_i32_1 = arith.constant 0 : i32
    return %c0_i32, %c0_i32_0 : i32, i32
  }
  func.func @transform_2(%arg0: i32) -> (i32, i32) {
    %c0_i32 = arith.constant 0 : i32
    %c0_i32_0 = arith.constant 0 : i32
    %c0_i32_1 = arith.constant 0 : i32
    return %c0_i32, %c0_i32_0 : i32, i32
  }
  func.func @transform_3(%arg0: i32) -> (i32, i32) {
    %c0_i32 = arith.constant 0 : i32
    %c0_i32_0 = arith.constant 0 : i32
    %c0_i32_1 = arith.constant 0 : i32
    return %c0_i32, %c0_i32_0 : i32, i32
  }
  func.func @transform_4(%arg0: i32) -> (i32, i32) {
    %c0_i32 = arith.constant 0 : i32
    %c0_i32_0 = arith.constant 0 : i32
    %c0_i32_1 = arith.constant 0 : i32
    return %c0_i32, %c0_i32_0 : i32, i32
  }
  func.func @transform_5(%arg0: i32) -> (i32, i32, i32, i32) {
    %c0_i32 = arith.constant 0 : i32
    %c0_i32_0 = arith.constant 0 : i32
    %c0_i32_1 = arith.constant 0 : i32
    %c0_i32_2 = arith.constant 0 : i32
    return %arg0, %c0_i32, %c0_i32_0, %c0_i32_1 : i32, i32, i32, i32
  }
}

</mosaic_0001>

<llo_original>
// kernel: basic_block_forward_nhwc.1
$region0: #{basic_block_forward_nhwc.1}
  #allocation0 [shape = 'u32[]', space=smem, size = 0x4, offset = 0x4, fixed_abs, tag = 'smem constant byte address 0x4 - core index']
  #allocation1 [shape = 'u32[144,128]{1,0:T(1,128)}', space=vmem, size = 0x12000, scoped, tag = 'internal scratch']
  #allocation2 [shape = 'bf16[18,25,4]{2,1,0:T(8,128)(2,1)}', space=vmem, size = 0x24000, scoped, tag = 'scratch operand']
  #allocation3 [shape = 'bf16[18,25,4]{2,1,0:T(8,128)(2,1)}', space=vmem, size = 0x24000, scoped, tag = 'scratch operand']
  #allocation4 [shape = 'bf16[256,36]{1,0:T(16,128)(2,1)}', space=vmem, size = 0x10000, scoped, tag = 'scratch operand']
  %s0 = inlined_call_operand.vmem [shape: f32[2,16,16,4], index: 0, kind: input, shape index: {}]
  %s1 = inlined_call_operand.vmem [shape: bf16[36,4], index: 1, kind: input, shape index: {}]
  %s2 = inlined_call_operand.vmem [shape: f32[1,4], index: 2, kind: input, shape index: {}]
  %s3 = inlined_call_operand.vmem [shape: bf16[36,4], index: 3, kind: input, shape index: {}]
  %s4 = inlined_call_operand.vmem [shape: f32[1,4], index: 4, kind: input, shape index: {}]
  %s5 = inlined_call_operand.vmem [shape: f32[2,16,16,4], index: 5, kind: output, shape index: {}]
  %s6 = sld [smem:[#allocation0]]
  $region53: #{basic_block_forward_nhwc.1} parent=0
    _
  %s8 = ssub.s32 1, %s6
  %s9 = scalar_select 0, %s8, %s6
  loop: start=0, step=1, limit=4
  $region2: #{basic_block_forward_nhwc.1} parent=0 // loop_pre_header
    _
  $region3: #{basic_block_forward_nhwc.1} parent=0 // loop_header
    %s11 = sphi 0, %s15
    %p12 = scmp.ge.s32.totalorder %s11, 4
    %s21 = sphi 0, %s23
    %s24 = sphi 0, %s21
    %s25 = sphi 0, %s24
    %s41 = sphi 0, %s25
    %s45 = sphi 0, %s45
    %s47 = sphi 0, %s45
    %s48 = sphi 0, %s47
    %s62 = sphi 0, %s48
    %s66 = sphi 0, %s66
    %s68 = sphi 0, %s66
    %s69 = sphi 0, %s68
    %s83 = sphi 0, %s69
    %s87 = sphi 0, %s87
    %s89 = sphi 0, %s87
    %s90 = sphi 0, %s89
    %s104 = sphi 0, %s90
    %s108 = sphi 0, %s108
    %s110 = sphi 0, %s108
    %s111 = sphi 0, %s110
    %s125 = sphi 0, %s111
    %s131 = sphi 0, %s133
    %s134 = sphi 0, %s131
    %s135 = sphi 0, %s134
    %s151 = sphi 0, %s135
  $region4: #{basic_block_forward_nhwc.1} parent=0 // loop_header_branch
    %14 = sbr.rel (%p12) target = $region8
  $region5: #{basic_block_forward_nhwc.1} parent=0 // loop_body
    %s16 = ssub.s32 %s11, 1
    %s17 = ssub.s32 %s11, 2
    %s18 = sadd.s32 %s11, 1
    %s19 = ssub.s32 %s11, %s18
    %p20 = scmp.eq.s32.totalorder %s19, 0
    %s22 = sadd.s32 %s21, 1
    %s23 = scalar_select %p20, %s21, %s22
    %p26 = pneg %p20
    %p27 = scmp.eq.s32.totalorder %s11, 1
    %p28 = por %p26, %p27
    %p29 = scmp.ne.s32.totalorder %s21, %s24
    %p30 = scmp.eq.s32.totalorder %s11, 0
    %p31 = por %p29, %p30
    %p32 = scmp.ne.s32.totalorder %s21, %s24
    %p33 = scmp.eq.s32.totalorder %s16, 1
    %p34 = por %p32, %p33
    %p35 = scmp.ne.s32.totalorder %s24, %s25
    %p36 = scmp.eq.s32.totalorder %s16, 0
    %p37 = por %p35, %p36
    %p38 = scmp.ne.s32.totalorder %s24, %s25
    %p39 = scmp.eq.s32.totalorder %s17, 1
    %p40 = por %p38, %p39
    %p42 = scmp.ne.s32.totalorder %s25, %s41
    %p43 = scmp.eq.s32.totalorder %s17, 0
    %p44 = por %p42, %p43
    %s46 = sadd.s32 %s45, 1
    %p49 = scmp.eq.s32.totalorder %s11, 1
    %p50 = scmp.ne.s32.totalorder %s45, %s47
    %p51 = scmp.eq.s32.totalorder %s11, 0
    %p52 = por %p50, %p51
    %p53 = scmp.ne.s32.totalorder %s45, %s47
    %p54 = scmp.eq.s32.totalorder %s16, 1
    %p55 = por %p53, %p54
    %p56 = scmp.ne.s32.totalorder %s47, %s48
    %p57 = scmp.eq.s32.totalorder %s16, 0
    %p58 = por %p56, %p57
    %p59 = scmp.ne.s32.totalorder %s47, %s48
    %p60 = scmp.eq.s32.totalorder %s17, 1
    %p61 = por %p59, %p60
    %p63 = scmp.ne.s32.totalorder %s48, %s62
    %p64 = scmp.eq.s32.totalorder %s17, 0
    %p65 = por %p63, %p64
    %s67 = sadd.s32 %s66, 1
    %p70 = scmp.eq.s32.totalorder %s11, 1
    %p71 = scmp.ne.s32.totalorder %s66, %s68
    %p72 = scmp.eq.s32.totalorder %s11, 0
    %p73 = por %p71, %p72
    %p74 = scmp.ne.s32.totalorder %s66, %s68
    %p75 = scmp.eq.s32.totalorder %s16, 1
    %p76 = por %p74, %p75
    %p77 = scmp.ne.s32.totalorder %s68, %s69
    %p78 = scmp.eq.s32.totalorder %s16, 0
    %p79 = por %p77, %p78
    %p80 = scmp.ne.s32.totalorder %s68, %s69
    %p81 = scmp.eq.s32.totalorder %s17, 1
    %p82 = por %p80, %p81
    %p84 = scmp.ne.s32.totalorder %s69, %s83
    %p85 = scmp.eq.s32.totalorder %s17, 0
    %p86 = por %p84, %p85
    %s88 = sadd.s32 %s87, 1
    %p91 = scmp.eq.s32.totalorder %s11, 1
    %p92 = scmp.ne.s32.totalorder %s87, %s89
    %p93 = scmp.eq.s32.totalorder %s11, 0
    %p94 = por %p92, %p93
    %p95 = scmp.ne.s32.totalorder %s87, %s89
    %p96 = scmp.eq.s32.totalorder %s16, 1
    %p97 = por %p95, %p96
    %p98 = scmp.ne.s32.totalorder %s89, %s90
    %p99 = scmp.eq.s32.totalorder %s16, 0
    %p100 = por %p98, %p99
    %p101 = scmp.ne.s32.totalorder %s89, %s90
    %p102 = scmp.eq.s32.totalorder %s17, 1
    %p103 = por %p101, %p102
    %p105 = scmp.ne.s32.totalorder %s90, %s104
    %p106 = scmp.eq.s32.totalorder %s17, 0
    %p107 = por %p105, %p106
    %s109 = sadd.s32 %s108, 1
    %p112 = scmp.eq.s32.totalorder %s11, 1
    %p113 = scmp.ne.s32.totalorder %s108, %s110
    %p114 = scmp.eq.s32.totalorder %s11, 0
    %p115 = por %p113, %p114
    %p116 = scmp.ne.s32.totalorder %s108, %s110
    %p117 = scmp.eq.s32.totalorder %s16, 1
    %p118 = por %p116, %p117
    %p119 = scmp.ne.s32.totalorder %s110, %s111
    %p120 = scmp.eq.s32.totalorder %s16, 0
    %p121 = por %p119, %p120
    %p122 = scmp.ne.s32.totalorder %s110, %s111
    %p123 = scmp.eq.s32.totalorder %s17, 1
    %p124 = por %p122, %p123
    %p126 = scmp.ne.s32.totalorder %s111, %s125
    %p127 = scmp.eq.s32.totalorder %s17, 0
    %p128 = por %p126, %p127
    %s129 = ssub.s32 %s11, %s18
    %p130 = scmp.eq.s32.totalorder %s129, 0
    %s132 = sadd.s32 %s131, 1
    %s133 = scalar_select %p130, %s131, %s132
    %p136 = pneg %p130
    %p137 = scmp.eq.s32.totalorder %s11, 1
    %p138 = por %p136, %p137
    %p139 = scmp.ne.s32.totalorder %s131, %s134
    %p140 = scmp.eq.s32.totalorder %s11, 0
    %p141 = por %p139, %p140
    %p142 = scmp.ne.s32.totalorder %s131, %s134
    %p143 = scmp.eq.s32.totalorder %s16, 1
    %p144 = por %p142, %p143
    %p145 = scmp.ne.s32.totalorder %s134, %s135
    %p146 = scmp.eq.s32.totalorder %s16, 0
    %p147 = por %p145, %p146
    %p148 = scmp.ne.s32.totalorder %s134, %s135
    %p149 = scmp.eq.s32.totalorder %s17, 1
    %p150 = por %p148, %p149
    %p152 = scmp.ne.s32.totalorder %s135, %s151
    %p153 = scmp.eq.s32.totalorder %s17, 0
    %p154 = por %p152, %p153
    %p155 = scmp.le.s32.totalorder 1, %s11
    %p156 = scmp.lt.s32.totalorder %s11, 3
    %p157 = pnand %p155, %p156
    %p158 = pneg %p157
    // Predicated region
    $region9: #{basic_block_forward_nhwc.1} parent=5 // pred_check
      _
    $region10: #{basic_block_forward_nhwc.1} parent=5 // pred_check_branch
      %160 = sbr.rel (%p157) target = $region12
    $region11: #{basic_block_forward_nhwc.1} parent=5 // pred_region
      %s161 = ssub.s32 %s11, 1
      // Predicated region
      $region13: #{basic_block_forward_nhwc.1} parent=11 // pred_check
        %p162 = pneg %p58
      $region14: #{basic_block_forward_nhwc.1} parent=11 // pred_check_branch
        %164 = sbr.rel (%p162) target = $region16
      $region15: #{basic_block_forward_nhwc.1} parent=11 // pred_region
        _
      $region16: #{basic_block_forward_nhwc.1} parent=11 // pred_fallthru
        _
      // Predicated region
      $region17: #{basic_block_forward_nhwc.1} parent=11 // pred_check
        %p165 = pneg %p79
      $region18: #{basic_block_forward_nhwc.1} parent=11 // pred_check_branch
        %167 = sbr.rel (%p165) target = $region20
      $region19: #{basic_block_forward_nhwc.1} parent=11 // pred_region
        _
      $region20: #{basic_block_forward_nhwc.1} parent=11 // pred_fallthru
        _
      // Predicated region
      $region21: #{basic_block_forward_nhwc.1} parent=11 // pred_check
        %p168 = pneg %p100
      $region22: #{basic_block_forward_nhwc.1} parent=11 // pred_check_branch
        %170 = sbr.rel (%p168) target = $region24
      $region23: #{basic_block_forward_nhwc.1} parent=11 // pred_region
        _
      $region24: #{basic_block_forward_nhwc.1} parent=11 // pred_fallthru
        _
      // Predicated region
      $region25: #{basic_block_forward_nhwc.1} parent=11 // pred_check
        %p171 = pneg %p121
      $region26: #{basic_block_forward_nhwc.1} parent=11 // pred_check_branch
        %173 = sbr.rel (%p171) target = $region28
      $region27: #{basic_block_forward_nhwc.1} parent=11 // pred_region
        _
      $region28: #{basic_block_forward_nhwc.1} parent=11 // pred_fallthru
        _
    $region12: #{basic_block_forward_nhwc.1} parent=5 // pred_fallthru
      _
    %p174 = scmp.lt.s32.totalorder %s11, 2
    // Predicated region
    $region29: #{basic_block_forward_nhwc.1} parent=5 // pred_check
      %p175 = pneg %p174
    $region30: #{basic_block_forward_nhwc.1} parent=5 // pred_check_branch
      %177 = sbr.rel (%p175) target = $region32
    $region31: #{basic_block_forward_nhwc.1} parent=5 // pred_region
      // Predicated region
      $region33: #{basic_block_forward_nhwc.1} parent=31 // pred_check
        %p178 = pneg %p31
      $region34: #{basic_block_forward_nhwc.1} parent=31 // pred_check_branch
        %180 = sbr.rel (%p178) target = $region36
      $region35: #{basic_block_forward_nhwc.1} parent=31 // pred_region
        %p181 = scmp.lt.s32.totalorder %s11, 1
        %s182 = scalar_select %p181, %s11, 1
        %s183 = smul.addr %s182, 32
        %s184 = smul.addr %s183, 8
        %s185 = scalar_lea.vmem %s0, %s184
      $region36: #{basic_block_forward_nhwc.1} parent=31 // pred_fallthru
        _
    $region32: #{basic_block_forward_nhwc.1} parent=5 // pred_fallthru
      _
    %p186 = scmp.le.s32.totalorder 1, %s11
    %p187 = scmp.lt.s32.totalorder %s11, 3
    %p188 = pnand %p186, %p187
    %p189 = pneg %p188
    // Predicated region
    $region37: #{basic_block_forward_nhwc.1} parent=5 // pred_check
      _
    $region38: #{basic_block_forward_nhwc.1} parent=5 // pred_check_branch
      %191 = sbr.rel (%p188) target = $region40
    $region39: #{basic_block_forward_nhwc.1} parent=5 // pred_region
      %s192 = ssub.s32 %s11, 1
      %p193 = scmp.lt.s32.totalorder %s16, 1
      %s194 = scalar_select %p193, %s16, 1
      %s195 = smul.addr %s194, 32
      %s196 = smul.addr %s195, 8
      %s197 = scalar_lea.vmem %s0, %s196
      %p198 = pneg %p37
      %p199 = pneg %p34
      %p200 = pneg %p58
      %p201 = pneg %p55
      %p202 = pneg %p79
      %p203 = pneg %p76
      %p204 = pneg %p100
      %p205 = pneg %p97
      %p206 = pneg %p121
      %p207 = pneg %p118
      %p208 = pneg %p147
      %p209 = pneg %p144
      %p210 = scmp.lt.s32.totalorder %s16, 1
      %s211 = scalar_select %p210, %s16, 1
      %s212 = smul.addr %s211, 32
      %s213 = smul.addr %s212, 8
      %s214 = scalar_lea.vmem %s5, %s213
      %p215 = scmp.lt.s32.totalorder %s16, 1
      %s216 = scalar_select %p215, %s16, 1
      %s217 = smul.addr %s216, 32
      %s218 = smul.addr %s217, 8
      %s219 = scalar_lea.vmem %s0, %s218
      %p220 = scmp.lt.s32.totalorder %s16, 1
      %s221 = scalar_select %p220, %s16, 1
      %s222 = smul.addr %s221, 32
      %s223 = smul.addr %s222, 8
      %s224 = scalar_lea.vmem %s5, %s223
      %vm226 = vcmask 27648
      %227 = vst.msk [vmem:[#allocation2] sm:$0xf] %vm226, 0
      %228 = vst.msk [vmem:[#allocation2 + $0x4] sm:$0xf] %vm226, 0
      %229 = vst.msk [vmem:[#allocation2 + $0x8] sm:$0xf] %vm226, 0
      %vm230 = vcmask 24576
      %vm231 = vsmask.f32 256
      %vm232 = vmand %vm230, %vm231
      %v233 = vld [vmem:[#allocation2 + $0xc] sm:$0x1]
      %v234 = vsel %vm232, 0, %v233
      %235 = vst [vmem:[#allocation2 + $0xc] sm:$0x1] %v234
      %s236 = scalar_lea.vmem [#allocation2], 272
      %237 = vst.msk [vmem:[%s236] sm:$0xf] %vm226, 0
      %238 = vst.msk [vmem:[%s236 + $0x4] sm:$0xf] %vm226, 0
      %239 = vst.msk [vmem:[%s236 + $0x8] sm:$0xf] %vm226, 0
      %v240 = vld [vmem:[%s236 + $0xc] sm:$0x1]
      %v241 = vsel %vm232, 0, %v240
      %242 = vst [vmem:[%s236 + $0xc] sm:$0x1] %v241
      %vm243 = vcmask 27651
      %vm244 = vsmask.f32 7950
      %vm245 = vmand %vm243, %vm244
      %v246 = vld [vmem:[#allocation2] sm:$0x8]
      %v247 = vsel %vm245, 0, %v246
      %248 = vst [vmem:[#allocation2] sm:$0x8] %v247
      %v249 = vld [vmem:[#allocation2 + $0x10] sm:$0x8]
      %v250 = vsel %vm245, 0, %v249
      %251 = vst [vmem:[#allocation2 + $0x10] sm:$0x8] %v250
      %v252 = vld [vmem:[#allocation2 + $0x20] sm:$0x8]
      %v253 = vsel %vm245, 0, %v252
      %254 = vst [vmem:[#allocation2 + $0x20] sm:$0x8] %v253
      %v255 = vld [vmem:[#allocation2 + $0x30] sm:$0x8]
      %v256 = vsel %vm245, 0, %v255
      %257 = vst [vmem:[#allocation2 + $0x30] sm:$0x8] %v256
      %v258 = vld [vmem:[#allocation2 + $0x40] sm:$0x8]
      %v259 = vsel %vm245, 0, %v258
      %260 = vst [vmem:[#allocation2 + $0x40] sm:$0x8] %v259
      %v261 = vld [vmem:[#allocation2 + $0x50] sm:$0x8]
      %v262 = vsel %vm245, 0, %v261
      %263 = vst [vmem:[#allocation2 + $0x50] sm:$0x8] %v262
      %v264 = vld [vmem:[#allocation2 + $0x60] sm:$0x8]
      %v265 = vsel %vm245, 0, %v264
      %266 = vst [vmem:[#allocation2 + $0x60] sm:$0x8] %v265
      %v267 = vld [vmem:[#allocation2 + $0x70] sm:$0x8]
      %v268 = vsel %vm245, 0, %v267
      %269 = vst [vmem:[#allocation2 + $0x70] sm:$0x8] %v268
      %v270 = vld [vmem:[#allocation2 + $0x80] sm:$0x8]
      %v271 = vsel %vm245, 0, %v270
      %272 = vst [vmem:[#allocation2 + $0x80] sm:$0x8] %v271
      %v273 = vld [vmem:[#allocation2 + $0x90] sm:$0x8]
      %v274 = vsel %vm245, 0, %v273
      %275 = vst [vmem:[#allocation2 + $0x90] sm:$0x8] %v274
      %v276 = vld [vmem:[#allocation2 + $0xa0] sm:$0x8]
      %v277 = vsel %vm245, 0, %v276
      %278 = vst [vmem:[#allocation2 + $0xa0] sm:$0x8] %v277
      %v279 = vld [vmem:[#allocation2 + $0xb0] sm:$0x8]
      %v280 = vsel %vm245, 0, %v279
      %281 = vst [vmem:[#allocation2 + $0xb0] sm:$0x8] %v280
      %v282 = vld [vmem:[#allocation2 + $0xc0] sm:$0x8]
      %v283 = vsel %vm245, 0, %v282
      %284 = vst [vmem:[#allocation2 + $0xc0] sm:$0x8] %v283
      %v285 = vld [vmem:[#allocation2 + $0xd0] sm:$0x8]
      %v286 = vsel %vm245, 0, %v285
      %287 = vst [vmem:[#allocation2 + $0xd0] sm:$0x8] %v286
      %v288 = vld [vmem:[#allocation2 + $0xe0] sm:$0x8]
      %v289 = vsel %vm245, 0, %v288
      %290 = vst [vmem:[#allocation2 + $0xe0] sm:$0x8] %v289
      %v291 = vld [vmem:[#allocation2 + $0xf0] sm:$0x8]
      %v292 = vsel %vm245, 0, %v291
      %293 = vst [vmem:[#allocation2 + $0xf0] sm:$0x8] %v292
      %v294 = vld [vmem:[#allocation2 + $0x100] sm:$0x8]
      %v295 = vsel %vm245, 0, %v294
      %296 = vst [vmem:[#allocation2 + $0x100] sm:$0x8] %v295
      %v297 = vld [vmem:[#allocation2 + $0x110] sm:$0x8]
      %v298 = vsel %vm245, 0, %v297
      %299 = vst [vmem:[#allocation2 + $0x110] sm:$0x8] %v298
      %v300 = vld [vmem:[#allocation2 + $0xc] sm:$0x1]
      %v301 = vsel %vm232, 0, %v300
      %302 = vst [vmem:[#allocation2 + $0xc] sm:$0x1] %v301
      %v303 = vld [vmem:[#allocation2 + $0x1c] sm:$0x1]
      %v304 = vsel %vm232, 0, %v303
      %305 = vst [vmem:[#allocation2 + $0x1c] sm:$0x1] %v304
      %v306 = vld [vmem:[#allocation2 + $0x2c] sm:$0x1]
      %v307 = vsel %vm232, 0, %v306
      %308 = vst [vmem:[#allocation2 + $0x2c] sm:$0x1] %v307
      %v309 = vld [vmem:[#allocation2 + $0x3c] sm:$0x1]
      %v310 = vsel %vm232, 0, %v309
      %311 = vst [vmem:[#allocation2 + $0x3c] sm:$0x1] %v310
      %v312 = vld [vmem:[#allocation2 + $0x4c] sm:$0x1]
      %v313 = vsel %vm232, 0, %v312
      %314 = vst [vmem:[#allocation2 + $0x4c] sm:$0x1] %v313
      %v315 = vld [vmem:[#allocation2 + $0x5c] sm:$0x1]
      %v316 = vsel %vm232, 0, %v315
      %317 = vst [vmem:[#allocation2 + $0x5c] sm:$0x1] %v316
      %v318 = vld [vmem:[#allocation2 + $0x6c] sm:$0x1]
      %v319 = vsel %vm232, 0, %v318
      %320 = vst [vmem:[#allocation2 + $0x6c] sm:$0x1] %v319
      %v321 = vld [vmem:[#allocation2 + $0x7c] sm:$0x1]
      %v322 = vsel %vm232, 0, %v321
      %323 = vst [vmem:[#allocation2 + $0x7c] sm:$0x1] %v322
      %v324 = vld [vmem:[#allocation2 + $0x8c] sm:$0x1]
      %v325 = vsel %vm232, 0, %v324
      %326 = vst [vmem:[#allocation2 + $0x8c] sm:$0x1] %v325
      %v327 = vld [vmem:[#allocation2 + $0x9c] sm:$0x1]
      %v328 = vsel %vm232, 0, %v327
      %329 = vst [vmem:[#allocation2 + $0x9c] sm:$0x1] %v328
      %v330 = vld [vmem:[#allocation2 + $0xac] sm:$0x1]
      %v331 = vsel %vm232, 0, %v330
      %332 = vst [vmem:[#allocation2 + $0xac] sm:$0x1] %v331
      %v333 = vld [vmem:[#allocation2 + $0xbc] sm:$0x1]
      %v334 = vsel %vm232, 0, %v333
      %335 = vst [vmem:[#allocation2 + $0xbc] sm:$0x1] %v334
      %v336 = vld [vmem:[#allocation2 + $0xcc] sm:$0x1]
      %v337 = vsel %vm232, 0, %v336
      %338 = vst [vmem:[#allocation2 + $0xcc] sm:$0x1] %v337
      %v339 = vld [vmem:[#allocation2 + $0xdc] sm:$0x1]
      %v340 = vsel %vm232, 0, %v339
      %341 = vst [vmem:[#allocation2 + $0xdc] sm:$0x1] %v340
      %v342 = vld [vmem:[#allocation2 + $0xec] sm:$0x1]
      %v343 = vsel %vm232, 0, %v342
      %344 = vst [vmem:[#allocation2 + $0xec] sm:$0x1] %v343
      %v345 = vld [vmem:[#allocation2 + $0xfc] sm:$0x1]
      %v346 = vsel %vm232, 0, %v345
      %347 = vst [vmem:[#allocation2 + $0xfc] sm:$0x1] %v346
      %v348 = vld [vmem:[#allocation2 + $0x10c] sm:$0x1]
      %v349 = vsel %vm232, 0, %v348
      %350 = vst [vmem:[#allocation2 + $0x10c] sm:$0x1] %v349
      %v351 = vld [vmem:[#allocation2 + $0x11c] sm:$0x1]
      %v352 = vsel %vm232, 0, %v351
      %353 = vst [vmem:[#allocation2 + $0x11c] sm:$0x1] %v352
      %354 = vst.msk [vmem:[#allocation3] sm:$0xf] %vm226, 0
      %355 = vst.msk [vmem:[#allocation3 + $0x4] sm:$0xf] %vm226, 0
      %356 = vst.msk [vmem:[#allocation3 + $0x8] sm:$0xf] %vm226, 0
      %v357 = vld [vmem:[#allocation3 + $0xc] sm:$0x1]
      %v358 = vsel %vm232, 0, %v357
      %359 = vst [vmem:[#allocation3 + $0xc] sm:$0x1] %v358
      %s360 = scalar_lea.vmem [#allocation3], 272
      %361 = vst.msk [vmem:[%s360] sm:$0xf] %vm226, 0
      %362 = vst.msk [vmem:[%s360 + $0x4] sm:$0xf] %vm226, 0
      %363 = vst.msk [vmem:[%s360 + $0x8] sm:$0xf] %vm226, 0
      %v364 = vld [vmem:[%s360 + $0xc] sm:$0x1]
      %v365 = vsel %vm232, 0, %v364
      %366 = vst [vmem:[%s360 + $0xc] sm:$0x1] %v365
      %v367 = vld [vmem:[#allocation3] sm:$0x8]
      %v368 = vsel %vm245, 0, %v367
      %369 = vst [vmem:[#allocation3] sm:$0x8] %v368
      %v370 = vld [vmem:[#allocation3 + $0x10] sm:$0x8]
      %v371 = vsel %vm245, 0, %v370
      %372 = vst [vmem:[#allocation3 + $0x10] sm:$0x8] %v371
      %v373 = vld [vmem:[#allocation3 + $0x20] sm:$0x8]
      %v374 = vsel %vm245, 0, %v373
      %375 = vst [vmem:[#allocation3 + $0x20] sm:$0x8] %v374
      %v376 = vld [vmem:[#allocation3 + $0x30] sm:$0x8]
      %v377 = vsel %vm245, 0, %v376
      %378 = vst [vmem:[#allocation3 + $0x30] sm:$0x8] %v377
      %v379 = vld [vmem:[#allocation3 + $0x40] sm:$0x8]
      %v380 = vsel %vm245, 0, %v379
      %381 = vst [vmem:[#allocation3 + $0x40] sm:$0x8] %v380
      %v382 = vld [vmem:[#allocation3 + $0x50] sm:$0x8]
      %v383 = vsel %vm245, 0, %v382
      %384 = vst [vmem:[#allocation3 + $0x50] sm:$0x8] %v383
      %v385 = vld [vmem:[#allocation3 + $0x60] sm:$0x8]
      %v386 = vsel %vm245, 0, %v385
      %387 = vst [vmem:[#allocation3 + $0x60] sm:$0x8] %v386
      %v388 = vld [vmem:[#allocation3 + $0x70] sm:$0x8]
      %v389 = vsel %vm245, 0, %v388
      %390 = vst [vmem:[#allocation3 + $0x70] sm:$0x8] %v389
      %v391 = vld [vmem:[#allocation3 + $0x80] sm:$0x8]
      %v392 = vsel %vm245, 0, %v391
      %393 = vst [vmem:[#allocation3 + $0x80] sm:$0x8] %v392
      %v394 = vld [vmem:[#allocation3 + $0x90] sm:$0x8]
      %v395 = vsel %vm245, 0, %v394
      %396 = vst [vmem:[#allocation3 + $0x90] sm:$0x8] %v395
      %v397 = vld [vmem:[#allocation3 + $0xa0] sm:$0x8]
      %v398 = vsel %vm245, 0, %v397
      %399 = vst [vmem:[#allocation3 + $0xa0] sm:$0x8] %v398
      %v400 = vld [vmem:[#allocation3 + $0xb0] sm:$0x8]
      %v401 = vsel %vm245, 0, %v400
      %402 = vst [vmem:[#allocation3 + $0xb0] sm:$0x8] %v401
      %v403 = vld [vmem:[#allocation3 + $0xc0] sm:$0x8]
      %v404 = vsel %vm245, 0, %v403
      %405 = vst [vmem:[#allocation3 + $0xc0] sm:$0x8] %v404
      %v406 = vld [vmem:[#allocation3 + $0xd0] sm:$0x8]
      %v407 = vsel %vm245, 0, %v406
      %408 = vst [vmem:[#allocation3 + $0xd0] sm:$0x8] %v407
      %v409 = vld [vmem:[#allocation3 + $0xe0] sm:$0x8]
      %v410 = vsel %vm245, 0, %v409
      %411 = vst [vmem:[#allocation3 + $0xe0] sm:$0x8] %v410
      %v412 = vld [vmem:[#allocation3 + $0xf0] sm:$0x8]
      %v413 = vsel %vm245, 0, %v412
      %414 = vst [vmem:[#allocation3 + $0xf0] sm:$0x8] %v413
      %v415 = vld [vmem:[#allocation3 + $0x100] sm:$0x8]
      %v416 = vsel %vm245, 0, %v415
      %417 = vst [vmem:[#allocation3 + $0x100] sm:$0x8] %v416
      %v418 = vld [vmem:[#allocation3 + $0x110] sm:$0x8]
      %v419 = vsel %vm245, 0, %v418
      %420 = vst [vmem:[#allocation3 + $0x110] sm:$0x8] %v419
      %v421 = vld [vmem:[#allocation3 + $0xc] sm:$0x1]
      %v422 = vsel %vm232, 0, %v421
      %423 = vst [vmem:[#allocation3 + $0xc] sm:$0x1] %v422
      %v424 = vld [vmem:[#allocation3 + $0x1c] sm:$0x1]
      %v425 = vsel %vm232, 0, %v424
      %426 = vst [vmem:[#allocation3 + $0x1c] sm:$0x1] %v425
      %v427 = vld [vmem:[#allocation3 + $0x2c] sm:$0x1]
      %v428 = vsel %vm232, 0, %v427
      %429 = vst [vmem:[#allocation3 + $0x2c] sm:$0x1] %v428
      %v430 = vld [vmem:[#allocation3 + $0x3c] sm:$0x1]
      %v431 = vsel %vm232, 0, %v430
      %432 = vst [vmem:[#allocation3 + $0x3c] sm:$0x1] %v431
      %v433 = vld [vmem:[#allocation3 + $0x4c] sm:$0x1]
      %v434 = vsel %vm232, 0, %v433
      %435 = vst [vmem:[#allocation3 + $0x4c] sm:$0x1] %v434
      %v436 = vld [vmem:[#allocation3 + $0x5c] sm:$0x1]
      %v437 = vsel %vm232, 0, %v436
      %438 = vst [vmem:[#allocation3 + $0x5c] sm:$0x1] %v437
      %v439 = vld [vmem:[#allocation3 + $0x6c] sm:$0x1]
      %v440 = vsel %vm232, 0, %v439
      %441 = vst [vmem:[#allocation3 + $0x6c] sm:$0x1] %v440
      %v442 = vld [vmem:[#allocation3 + $0x7c] sm:$0x1]
      %v443 = vsel %vm232, 0, %v442
      %444 = vst [vmem:[#allocation3 + $0x7c] sm:$0x1] %v443
      %v445 = vld [vmem:[#allocation3 + $0x8c] sm:$0x1]
      %v446 = vsel %vm232, 0, %v445
      %447 = vst [vmem:[#allocation3 + $0x8c] sm:$0x1] %v446
      %v448 = vld [vmem:[#allocation3 + $0x9c] sm:$0x1]
      %v449 = vsel %vm232, 0, %v448
      %450 = vst [vmem:[#allocation3 + $0x9c] sm:$0x1] %v449
      %v451 = vld [vmem:[#allocation3 + $0xac] sm:$0x1]
      %v452 = vsel %vm232, 0, %v451
      %453 = vst [vmem:[#allocation3 + $0xac] sm:$0x1] %v452
      %v454 = vld [vmem:[#allocation3 + $0xbc] sm:$0x1]
      %v455 = vsel %vm232, 0, %v454
      %456 = vst [vmem:[#allocation3 + $0xbc] sm:$0x1] %v455
      %v457 = vld [vmem:[#allocation3 + $0xcc] sm:$0x1]
      %v458 = vsel %vm232, 0, %v457
      %459 = vst [vmem:[#allocation3 + $0xcc] sm:$0x1] %v458
      %v460 = vld [vmem:[#allocation3 + $0xdc] sm:$0x1]
      %v461 = vsel %vm232, 0, %v460
      %462 = vst [vmem:[#allocation3 + $0xdc] sm:$0x1] %v461
      %v463 = vld [vmem:[#allocation3 + $0xec] sm:$0x1]
      %v464 = vsel %vm232, 0, %v463
      %465 = vst [vmem:[#allocation3 + $0xec] sm:$0x1] %v464
      %v466 = vld [vmem:[#allocation3 + $0xfc] sm:$0x1]
      %v467 = vsel %vm232, 0, %v466
      %468 = vst [vmem:[#allocation3 + $0xfc] sm:$0x1] %v467
      %v469 = vld [vmem:[#allocation3 + $0x10c] sm:$0x1]
      %v470 = vsel %vm232, 0, %v469
      %471 = vst [vmem:[#allocation3 + $0x10c] sm:$0x1] %v470
      %v472 = vld [vmem:[#allocation3 + $0x11c] sm:$0x1]
      %v473 = vsel %vm232, 0, %v472
      %474 = vst [vmem:[#allocation3 + $0x11c] sm:$0x1] %v473
      %v475 = vld [vmem:[%s219] sm:$0xff]
      %v476 = vld [vmem:[%s219 + $0x8] sm:$0xff]
      %v477 = vld [vmem:[%s219 + $0x10] sm:$0xff]
      %v478 = vld [vmem:[%s219 + $0x18] sm:$0xff]
      %v479 = vld [vmem:[%s219 + $0x20] sm:$0xff]
      %v480 = vld [vmem:[%s219 + $0x28] sm:$0xff]
      %v481 = vld [vmem:[%s219 + $0x30] sm:$0xff]
      %v482 = vld [vmem:[%s219 + $0x38] sm:$0xff]
      %v483 = vld [vmem:[%s219 + $0x40] sm:$0xff]
      %v484 = vld [vmem:[%s219 + $0x48] sm:$0xff]
      %v485 = vld [vmem:[%s219 + $0x50] sm:$0xff]
      %v486 = vld [vmem:[%s219 + $0x58] sm:$0xff]
      %v487 = vld [vmem:[%s219 + $0x60] sm:$0xff]
      %v488 = vld [vmem:[%s219 + $0x68] sm:$0xff]
      %v489 = vld [vmem:[%s219 + $0x70] sm:$0xff]
      %v490 = vld [vmem:[%s219 + $0x78] sm:$0xff]
      %v491 = vld [vmem:[%s219 + $0x80] sm:$0xff]
      %v492 = vld [vmem:[%s219 + $0x88] sm:$0xff]
      %v493 = vld [vmem:[%s219 + $0x90] sm:$0xff]
      %v494 = vld [vmem:[%s219 + $0x98] sm:$0xff]
      %v495 = vld [vmem:[%s219 + $0xa0] sm:$0xff]
      %v496 = vld [vmem:[%s219 + $0xa8] sm:$0xff]
      %v497 = vld [vmem:[%s219 + $0xb0] sm:$0xff]
      %v498 = vld [vmem:[%s219 + $0xb8] sm:$0xff]
      %v499 = vld [vmem:[%s219 + $0xc0] sm:$0xff]
      %v500 = vld [vmem:[%s219 + $0xc8] sm:$0xff]
      %v501 = vld [vmem:[%s219 + $0xd0] sm:$0xff]
      %v502 = vld [vmem:[%s219 + $0xd8] sm:$0xff]
      %v503 = vld [vmem:[%s219 + $0xe0] sm:$0xff]
      %v504 = vld [vmem:[%s219 + $0xe8] sm:$0xff]
      %v505 = vld [vmem:[%s219 + $0xf0] sm:$0xff]
      %v506 = vld [vmem:[%s219 + $0xf8] sm:$0xff]
      %v507 = vpack.c.bf16 %v476, %v475
      %v508 = vpack.c.bf16 %v478, %v477
      %v509 = vpack.c.bf16 %v480, %v479
      %v510 = vpack.c.bf16 %v482, %v481
      %v511 = vpack.c.bf16 %v484, %v483
      %v512 = vpack.c.bf16 %v486, %v485
      %v513 = vpack.c.bf16 %v488, %v487
      %v514 = vpack.c.bf16 %v490, %v489
      %v515 = vpack.c.bf16 %v492, %v491
      %v516 = vpack.c.bf16 %v494, %v493
      %v517 = vpack.c.bf16 %v496, %v495
      %v518 = vpack.c.bf16 %v498, %v497
      %v519 = vpack.c.bf16 %v500, %v499
      %v520 = vpack.c.bf16 %v502, %v501
      %v521 = vpack.c.bf16 %v504, %v503
      %v522 = vpack.c.bf16 %v506, %v505
      %v539 = vunpack.c.l.b16 %v507
      %v540 = vunpack.c.h.b16 %v507
      %v541 = vunpack.c.l.b16 %v508
      %v542 = vunpack.c.h.b16 %v508
      %v543 = vunpack.c.l.b16 %v509
      %v544 = vunpack.c.h.b16 %v509
      %v545 = vunpack.c.l.b16 %v510
      %v546 = vunpack.c.h.b16 %v510
      %v547 = vunpack.c.l.b16 %v511
      %v548 = vunpack.c.h.b16 %v511
      %v549 = vunpack.c.l.b16 %v512
      %v550 = vunpack.c.h.b16 %v512
      %v551 = vunpack.c.l.b16 %v513
      %v552 = vunpack.c.h.b16 %v513
      %v553 = vunpack.c.l.b16 %v514
      %v554 = vunpack.c.h.b16 %v514
      %v555 = vunpack.c.l.b16 %v515
      %v556 = vunpack.c.h.b16 %v515
      %v557 = vunpack.c.l.b16 %v516
      %v558 = vunpack.c.h.b16 %v516
      %v559 = vunpack.c.l.b16 %v517
      %v560 = vunpack.c.h.b16 %v517
      %v561 = vunpack.c.l.b16 %v518
      %v562 = vunpack.c.h.b16 %v518
      %v563 = vunpack.c.l.b16 %v519
      %v564 = vunpack.c.h.b16 %v519
      %v565 = vunpack.c.l.b16 %v520
      %v566 = vunpack.c.h.b16 %v520
      %v567 = vunpack.c.l.b16 %v521
      %v568 = vunpack.c.h.b16 %v521
      %v569 = vunpack.c.l.b16 %v522
      %v570 = vunpack.c.h.b16 %v522
      %v571 = vpack.c.b16 %v539, %v539
      %v572 = vpack.c.b16 %v540, %v540
      %v573 = vpack.c.b16 %v541, %v541
      %v574 = vpack.c.b16 %v542, %v542
      %v575 = vpack.c.b16 %v543, %v543
      %v576 = vpack.c.b16 %v544, %v544
      %v577 = vpack.c.b16 %v545, %v545
      %v578 = vpack.c.b16 %v546, %v546
      %v579 = vpack.c.b16 %v547, %v547
      %v580 = vpack.c.b16 %v548, %v548
      %v581 = vpack.c.b16 %v549, %v549
      %v582 = vpack.c.b16 %v550, %v550
      %v583 = vpack.c.b16 %v551, %v551
      %v584 = vpack.c.b16 %v552, %v552
      %v585 = vpack.c.b16 %v553, %v553
      %v586 = vpack.c.b16 %v554, %v554
      %v587 = vpack.c.b16 %v555, %v555
      %v588 = vpack.c.b16 %v556, %v556
      %v589 = vpack.c.b16 %v557, %v557
      %v590 = vpack.c.b16 %v558, %v558
      %v591 = vpack.c.b16 %v559, %v559
      %v592 = vpack.c.b16 %v560, %v560
      %v593 = vpack.c.b16 %v561, %v561
      %v594 = vpack.c.b16 %v562, %v562
      %v595 = vpack.c.b16 %v563, %v563
      %v596 = vpack.c.b16 %v564, %v564
      %v597 = vpack.c.b16 %v565, %v565
      %v598 = vpack.c.b16 %v566, %v566
      %v599 = vpack.c.b16 %v567, %v567
      %v600 = vpack.c.b16 %v568, %v568
      %v601 = vpack.c.b16 %v569, %v569
      %v602 = vpack.c.b16 %v570, %v570
      %s635 = scalar_lea.vmem [#allocation2], 16
      %636 = vst.msk [vmem:[%s635 + $0x4] sm:$0xf] %vm226, %v571
      %637 = vst.msk [vmem:[%s635 + $0x8] sm:$0xf] %vm226, %v572
      %638 = vst.msk [vmem:[%s635 + $0x14] sm:$0xf] %vm226, %v573
      %639 = vst.msk [vmem:[%s635 + $0x18] sm:$0xf] %vm226, %v574
      %640 = vst.msk [vmem:[%s635 + $0x24] sm:$0xf] %vm226, %v575
      %641 = vst.msk [vmem:[%s635 + $0x28] sm:$0xf] %vm226, %v576
      %642 = vst.msk [vmem:[%s635 + $0x34] sm:$0xf] %vm226, %v577
      %643 = vst.msk [vmem:[%s635 + $0x38] sm:$0xf] %vm226, %v578
      %644 = vst.msk [vmem:[%s635 + $0x44] sm:$0xf] %vm226, %v579
      %645 = vst.msk [vmem:[%s635 + $0x48] sm:$0xf] %vm226, %v580
      %646 = vst.msk [vmem:[%s635 + $0x54] sm:$0xf] %vm226, %v581
      %647 = vst.msk [vmem:[%s635 + $0x58] sm:$0xf] %vm226, %v582
      %648 = vst.msk [vmem:[%s635 + $0x64] sm:$0xf] %vm226, %v583
      %649 = vst.msk [vmem:[%s635 + $0x68] sm:$0xf] %vm226, %v584
      %650 = vst.msk [vmem:[%s635 + $0x74] sm:$0xf] %vm226, %v585
      %651 = vst.msk [vmem:[%s635 + $0x78] sm:$0xf] %vm226, %v586
      %652 = vst.msk [vmem:[%s635 + $0x84] sm:$0xf] %vm226, %v587
      %653 = vst.msk [vmem:[%s635 + $0x88] sm:$0xf] %vm226, %v588
      %654 = vst.msk [vmem:[%s635 + $0x94] sm:$0xf] %vm226, %v589
      %655 = vst.msk [vmem:[%s635 + $0x98] sm:$0xf] %vm226, %v590
      %656 = vst.msk [vmem:[%s635 + $0xa4] sm:$0xf] %vm226, %v591
      %657 = vst.msk [vmem:[%s635 + $0xa8] sm:$0xf] %vm226, %v592
      %658 = vst.msk [vmem:[%s635 + $0xb4] sm:$0xf] %vm226, %v593
      %659 = vst.msk [vmem:[%s635 + $0xb8] sm:$0xf] %vm226, %v594
      %660 = vst.msk [vmem:[%s635 + $0xc4] sm:$0xf] %vm226, %v595
      %661 = vst.msk [vmem:[%s635 + $0xc8] sm:$0xf] %vm226, %v596
      %662 = vst.msk [vmem:[%s635 + $0xd4] sm:$0xf] %vm226, %v597
      %663 = vst.msk [vmem:[%s635 + $0xd8] sm:$0xf] %vm226, %v598
      %664 = vst.msk [vmem:[%s635 + $0xe4] sm:$0xf] %vm226, %v599
      %665 = vst.msk [vmem:[%s635 + $0xe8] sm:$0xf] %vm226, %v600
      %666 = vst.msk [vmem:[%s635 + $0xf4] sm:$0xf] %vm226, %v601
      %667 = vst.msk [vmem:[%s635 + $0xf8] sm:$0xf] %vm226, %v602
      %v668 = vld [vmem:[#allocation2] sm:$0x8]
      %v669 = vld [vmem:[#allocation2 + $0x4] sm:$0xf]
      %v670 = vld [vmem:[#allocation2 + $0x8] sm:$0xf]
      %v671 = vld [vmem:[#allocation2 + $0x10] sm:$0x8]
      %v672 = vld [vmem:[#allocation2 + $0x14] sm:$0xf]
      %v673 = vld [vmem:[#allocation2 + $0x18] sm:$0xf]
      %v674 = vld [vmem:[#allocation2 + $0x20] sm:$0x8]
      %v675 = vld [vmem:[#allocation2 + $0x24] sm:$0xf]
      %v676 = vld [vmem:[#allocation2 + $0x28] sm:$0xf]
      %v677 = vld [vmem:[#allocation2 + $0x30] sm:$0x8]
      %v678 = vld [vmem:[#allocation2 + $0x34] sm:$0xf]
      %v679 = vld [vmem:[#allocation2 + $0x38] sm:$0xf]
      %v680 = vld [vmem:[#allocation2 + $0x40] sm:$0x8]
      %v681 = vld [vmem:[#allocation2 + $0x44] sm:$0xf]
      %v682 = vld [vmem:[#allocation2 + $0x48] sm:$0xf]
      %v683 = vld [vmem:[#allocation2 + $0x50] sm:$0x8]
      %v684 = vld [vmem:[#allocation2 + $0x54] sm:$0xf]
      %v685 = vld [vmem:[#allocation2 + $0x58] sm:$0xf]
      %v686 = vld [vmem:[#allocation2 + $0x60] sm:$0x8]
      %v687 = vld [vmem:[#allocation2 + $0x64] sm:$0xf]
      %v688 = vld [vmem:[#allocation2 + $0x68] sm:$0xf]
      %v689 = vld [vmem:[#allocation2 + $0x70] sm:$0x8]
      %v690 = vld [vmem:[#allocation2 + $0x74] sm:$0xf]
      %v691 = vld [vmem:[#allocation2 + $0x78] sm:$0xf]
      %v692 = vld [vmem:[#allocation2 + $0x80] sm:$0x8]
      %v693 = vld [vmem:[#allocation2 + $0x84] sm:$0xf]
      %v694 = vld [vmem:[#allocation2 + $0x88] sm:$0xf]
      %v695 = vld [vmem:[#allocation2 + $0x90] sm:$0x8]
      %v696 = vld [vmem:[#allocation2 + $0x94] sm:$0xf]
      %v697 = vld [vmem:[#allocation2 + $0x98] sm:$0xf]
      %v698 = vld [vmem:[#allocation2 + $0xa0] sm:$0x8]
      %v699 = vld [vmem:[#allocation2 + $0xa4] sm:$0xf]
      %v700 = vld [vmem:[#allocation2 + $0xa8] sm:$0xf]
      %v701 = vld [vmem:[#allocation2 + $0xb0] sm:$0x8]
      %v702 = vld [vmem:[#allocation2 + $0xb4] sm:$0xf]
      %v703 = vld [vmem:[#allocation2 + $0xb8] sm:$0xf]
      %v704 = vld [vmem:[#allocation2 + $0xc0] sm:$0x8]
      %v705 = vld [vmem:[#allocation2 + $0xc4] sm:$0xf]
      %v706 = vld [vmem:[#allocation2 + $0xc8] sm:$0xf]
      %v707 = vld [vmem:[#allocation2 + $0xd0] sm:$0x8]
      %v708 = vld [vmem:[#allocation2 + $0xd4] sm:$0xf]
      %v709 = vld [vmem:[#allocation2 + $0xd8] sm:$0xf]
      %v710 = vld [vmem:[#allocation2 + $0xe0] sm:$0x8]
      %v711 = vld [vmem:[#allocation2 + $0xe4] sm:$0xf]
      %v712 = vld [vmem:[#allocation2 + $0xe8] sm:$0xf]
      %v713 = vld [vmem:[#allocation2 + $0xf0] sm:$0x8]
      %v714 = vld [vmem:[#allocation2 + $0xf4] sm:$0xf]
      %v715 = vld [vmem:[#allocation2 + $0xf8] sm:$0xf]
      %vm716 = vsmask.f32 4368
      %vm717 = vmor %vm231, %vm716
      %v719 = vshrl.u32 %v668, 16
      %v721 = vrot.slane %v719, 7
      %v722 = vrot.slane %v721, 4
      %v724 = vshrl.u32 %v669, 16
      %v726 = vrot.slane %v724, 7
      %v727 = vshll.u32 %v669, 16
      %v729 = vor.u32 %v726, %v727
      %v730 = vsel %vm717, %v722, %v729
      %v731 = vrot.slane %v726, 4
      %v733 = vshrl.u32 %v670, 16
      %v735 = vrot.slane %v733, 7
      %v736 = vshll.u32 %v670, 16
      %v738 = vor.u32 %v735, %v736
      %v739 = vsel %vm717, %v731, %v738
      %v741 = vshrl.u32 %v671, 16
      %v743 = vrot.slane %v741, 7
      %v744 = vrot.slane %v743, 4
      %v746 = vshrl.u32 %v672, 16
      %v748 = vrot.slane %v746, 7
      %v749 = vshll.u32 %v672, 16
      %v751 = vor.u32 %v748, %v749
      %v752 = vsel %vm717, %v744, %v751
      %v753 = vrot.slane %v748, 4
      %v755 = vshrl.u32 %v673, 16
      %v757 = vrot.slane %v755, 7
      %v758 = vshll.u32 %v673, 16
      %v760 = vor.u32 %v757, %v758
      %v761 = vsel %vm717, %v753, %v760
      %v763 = vshrl.u32 %v674, 16
      %v765 = vrot.slane %v763, 7
      %v766 = vrot.slane %v765, 4
      %v768 = vshrl.u32 %v675, 16
      %v770 = vrot.slane %v768, 7
      %v771 = vshll.u32 %v675, 16
      %v773 = vor.u32 %v770, %v771
      %v774 = vsel %vm717, %v766, %v773
      %v775 = vrot.slane %v770, 4
      %v777 = vshrl.u32 %v676, 16
      %v779 = vrot.slane %v777, 7
      %v780 = vshll.u32 %v676, 16
      %v782 = vor.u32 %v779, %v780
      %v783 = vsel %vm717, %v775, %v782
      %v785 = vshrl.u32 %v677, 16
      %v787 = vrot.slane %v785, 7
      %v788 = vrot.slane %v787, 4
      %v790 = vshrl.u32 %v678, 16
      %v792 = vrot.slane %v790, 7
      %v793 = vshll.u32 %v678, 16
      %v795 = vor.u32 %v792, %v793
      %v796 = vsel %vm717, %v788, %v795
      %v797 = vrot.slane %v792, 4
      %v799 = vshrl.u32 %v679, 16
      %v801 = vrot.slane %v799, 7
      %v802 = vshll.u32 %v679, 16
      %v804 = vor.u32 %v801, %v802
      %v805 = vsel %vm717, %v797, %v804
      %v807 = vshrl.u32 %v680, 16
      %v809 = vrot.slane %v807, 7
      %v810 = vrot.slane %v809, 4
      %v812 = vshrl.u32 %v681, 16
      %v814 = vrot.slane %v812, 7
      %v815 = vshll.u32 %v681, 16
      %v817 = vor.u32 %v814, %v815
      %v818 = vsel %vm717, %v810, %v817
      %v819 = vrot.slane %v814, 4
      %v821 = vshrl.u32 %v682, 16
      %v823 = vrot.slane %v821, 7
      %v824 = vshll.u32 %v682, 16
      %v826 = vor.u32 %v823, %v824
      %v827 = vsel %vm717, %v819, %v826
      %v829 = vshrl.u32 %v683, 16
      %v831 = vrot.slane %v829, 7
      %v832 = vrot.slane %v831, 4
      %v834 = vshrl.u32 %v684, 16
      %v836 = vrot.slane %v834, 7
      %v837 = vshll.u32 %v684, 16
      %v839 = vor.u32 %v836, %v837
      %v840 = vsel %vm717, %v832, %v839
      %v841 = vrot.slane %v836, 4
      %v843 = vshrl.u32 %v685, 16
      %v845 = vrot.slane %v843, 7
      %v846 = vshll.u32 %v685, 16
      %v848 = vor.u32 %v845, %v846
      %v849 = vsel %vm717, %v841, %v848
      %v851 = vshrl.u32 %v686, 16
      %v853 = vrot.slane %v851, 7
      %v854 = vrot.slane %v853, 4
      %v856 = vshrl.u32 %v687, 16
      %v858 = vrot.slane %v856, 7
      %v859 = vshll.u32 %v687, 16
      %v861 = vor.u32 %v858, %v859
      %v862 = vsel %vm717, %v854, %v861
      %v863 = vrot.slane %v858, 4
      %v865 = vshrl.u32 %v688, 16
      %v867 = vrot.slane %v865, 7
      %v868 = vshll.u32 %v688, 16
      %v870 = vor.u32 %v867, %v868
      %v871 = vsel %vm717, %v863, %v870
      %v873 = vshrl.u32 %v689, 16
      %v875 = vrot.slane %v873, 7
      %v876 = vrot.slane %v875, 4
      %v878 = vshrl.u32 %v690, 16
      %v880 = vrot.slane %v878, 7
      %v881 = vshll.u32 %v690, 16
      %v883 = vor.u32 %v880, %v881
      %v884 = vsel %vm717, %v876, %v883
      %v885 = vrot.slane %v880, 4
      %v887 = vshrl.u32 %v691, 16
      %v889 = vrot.slane %v887, 7
      %v890 = vshll.u32 %v691, 16
      %v892 = vor.u32 %v889, %v890
      %v893 = vsel %vm717, %v885, %v892
      %v895 = vshrl.u32 %v692, 16
      %v897 = vrot.slane %v895, 7
      %v898 = vrot.slane %v897, 4
      %v900 = vshrl.u32 %v693, 16
      %v902 = vrot.slane %v900, 7
      %v903 = vshll.u32 %v693, 16
      %v905 = vor.u32 %v902, %v903
      %v906 = vsel %vm717, %v898, %v905
      %v907 = vrot.slane %v902, 4
      %v909 = vshrl.u32 %v694, 16
      %v911 = vrot.slane %v909, 7
      %v912 = vshll.u32 %v694, 16
      %v914 = vor.u32 %v911, %v912
      %v915 = vsel %vm717, %v907, %v914
      %v917 = vshrl.u32 %v695, 16
      %v919 = vrot.slane %v917, 7
      %v920 = vrot.slane %v919, 4
      %v922 = vshrl.u32 %v696, 16
      %v924 = vrot.slane %v922, 7
      %v925 = vshll.u32 %v696, 16
      %v927 = vor.u32 %v924, %v925
      %v928 = vsel %vm717, %v920, %v927
      %v929 = vrot.slane %v924, 4
      %v931 = vshrl.u32 %v697, 16
      %v933 = vrot.slane %v931, 7
      %v934 = vshll.u32 %v697, 16
      %v936 = vor.u32 %v933, %v934
      %v937 = vsel %vm717, %v929, %v936
      %v939 = vshrl.u32 %v698, 16
      %v941 = vrot.slane %v939, 7
      %v942 = vrot.slane %v941, 4
      %v944 = vshrl.u32 %v699, 16
      %v946 = vrot.slane %v944, 7
      %v947 = vshll.u32 %v699, 16
      %v949 = vor.u32 %v946, %v947
      %v950 = vsel %vm717, %v942, %v949
      %v951 = vrot.slane %v946, 4
      %v953 = vshrl.u32 %v700, 16
      %v955 = vrot.slane %v953, 7
      %v956 = vshll.u32 %v700, 16
      %v958 = vor.u32 %v955, %v956
      %v959 = vsel %vm717, %v951, %v958
      %v961 = vshrl.u32 %v701, 16
      %v963 = vrot.slane %v961, 7
      %v964 = vrot.slane %v963, 4
      %v966 = vshrl.u32 %v702, 16
      %v968 = vrot.slane %v966, 7
      %v969 = vshll.u32 %v702, 16
      %v971 = vor.u32 %v968, %v969
      %v972 = vsel %vm717, %v964, %v971
      %v973 = vrot.slane %v968, 4
      %v975 = vshrl.u32 %v703, 16
      %v977 = vrot.slane %v975, 7
      %v978 = vshll.u32 %v703, 16
      %v980 = vor.u32 %v977, %v978
      %v981 = vsel %vm717, %v973, %v980
      %v983 = vshrl.u32 %v704, 16
      %v985 = vrot.slane %v983, 7
      %v986 = vrot.slane %v985, 4
      %v988 = vshrl.u32 %v705, 16
      %v990 = vrot.slane %v988, 7
      %v991 = vshll.u32 %v705, 16
      %v993 = vor.u32 %v990, %v991
      %v994 = vsel %vm717, %v986, %v993
      %v995 = vrot.slane %v990, 4
      %v997 = vshrl.u32 %v706, 16
      %v999 = vrot.slane %v997, 7
      %v1000 = vshll.u32 %v706, 16
      %v1002 = vor.u32 %v999, %v1000
      %v1003 = vsel %vm717, %v995, %v1002
      %v1005 = vshrl.u32 %v707, 16
      %v1007 = vrot.slane %v1005, 7
      %v1008 = vrot.slane %v1007, 4
      %v1010 = vshrl.u32 %v708, 16
      %v1012 = vrot.slane %v1010, 7
      %v1013 = vshll.u32 %v708, 16
      %v1015 = vor.u32 %v1012, %v1013
      %v1016 = vsel %vm717, %v1008, %v1015
      %v1017 = vrot.slane %v1012, 4
      %v1019 = vshrl.u32 %v709, 16
      %v1021 = vrot.slane %v1019, 7
      %v1022 = vshll.u32 %v709, 16
      %v1024 = vor.u32 %v1021, %v1022
      %v1025 = vsel %vm717, %v1017, %v1024
      %v1027 = vshrl.u32 %v710, 16
      %v1029 = vrot.slane %v1027, 7
      %v1030 = vrot.slane %v1029, 4
      %v1032 = vshrl.u32 %v711, 16
      %v1034 = vrot.slane %v1032, 7
      %v1035 = vshll.u32 %v711, 16
      %v1037 = vor.u32 %v1034, %v1035
      %v1038 = vsel %vm717, %v1030, %v1037
      %v1039 = vrot.slane %v1034, 4
      %v1041 = vshrl.u32 %v712, 16
      %v1043 = vrot.slane %v1041, 7
      %v1044 = vshll.u32 %v712, 16
      %v1046 = vor.u32 %v1043, %v1044
      %v1047 = vsel %vm717, %v1039, %v1046
      %v1049 = vshrl.u32 %v713, 16
      %v1051 = vrot.slane %v1049, 7
      %v1052 = vrot.slane %v1051, 4
      %v1054 = vshrl.u32 %v714, 16
      %v1056 = vrot.slane %v1054, 7
      %v1057 = vshll.u32 %v714, 16
      %v1059 = vor.u32 %v1056, %v1057
      %v1060 = vsel %vm717, %v1052, %v1059
      %v1061 = vrot.slane %v1056, 4
      %v1063 = vshrl.u32 %v715, 16
      %v1065 = vrot.slane %v1063, 7
      %v1066 = vshll.u32 %v715, 16
      %v1068 = vor.u32 %v1065, %v1066
      %v1069 = vsel %vm717, %v1061, %v1068
      %v1070 = vunpack.c.l.b16 %v730
      %v1071 = vunpack.c.l.b16 %v739
      %v1072 = vunpack.c.l.b16 %v752
      %v1073 = vunpack.c.l.b16 %v761
      %v1074 = vunpack.c.l.b16 %v774
      %v1075 = vunpack.c.l.b16 %v783
      %v1076 = vunpack.c.l.b16 %v796
      %v1077 = vunpack.c.l.b16 %v805
      %v1078 = vunpack.c.l.b16 %v818
      %v1079 = vunpack.c.l.b16 %v827
      %v1080 = vunpack.c.l.b16 %v840
      %v1081 = vunpack.c.l.b16 %v849
      %v1082 = vunpack.c.l.b16 %v862
      %v1083 = vunpack.c.l.b16 %v871
      %v1084 = vunpack.c.l.b16 %v884
      %v1085 = vunpack.c.l.b16 %v893
      %v1086 = vunpack.c.l.b16 %v906
      %v1087 = vunpack.c.l.b16 %v915
      %v1088 = vunpack.c.l.b16 %v928
      %v1089 = vunpack.c.l.b16 %v937
      %v1090 = vunpack.c.l.b16 %v950
      %v1091 = vunpack.c.l.b16 %v959
      %v1092 = vunpack.c.l.b16 %v972
      %v1093 = vunpack.c.l.b16 %v981
      %v1094 = vunpack.c.l.b16 %v994
      %v1095 = vunpack.c.l.b16 %v1003
      %v1096 = vunpack.c.l.b16 %v1016
      %v1097 = vunpack.c.l.b16 %v1025
      %v1098 = vunpack.c.l.b16 %v1038
      %v1099 = vunpack.c.l.b16 %v1047
      %v1100 = vunpack.c.l.b16 %v1060
      %v1101 = vunpack.c.l.b16 %v1069
      %v1102 = vpack.c.b16 %v1071, %v1070
      %v1103 = vpack.c.b16 %v1073, %v1072
      %v1104 = vpack.c.b16 %v1075, %v1074
      %v1105 = vpack.c.b16 %v1077, %v1076
      %v1106 = vpack.c.b16 %v1079, %v1078
      %v1107 = vpack.c.b16 %v1081, %v1080
      %v1108 = vpack.c.b16 %v1083, %v1082
      %v1109 = vpack.c.b16 %v1085, %v1084
      %v1110 = vpack.c.b16 %v1087, %v1086
      %v1111 = vpack.c.b16 %v1089, %v1088
      %v1112 = vpack.c.b16 %v1091, %v1090
      %v1113 = vpack.c.b16 %v1093, %v1092
      %v1114 = vpack.c.b16 %v1095, %v1094
      %v1115 = vpack.c.b16 %v1097, %v1096
      %v1116 = vpack.c.b16 %v1099, %v1098
      %v1117 = vpack.c.b16 %v1101, %v1100
      %vm1134 = vcmask 31744
      %1135 = vst.msk [vmem:[#allocation4] sm:$0xff] %vm1134, %v1102
      %1136 = vst.msk [vmem:[#allocation4 + $0x8] sm:$0xff] %vm1134, %v1103
      %1137 = vst.msk [vmem:[#allocation4 + $0x10] sm:$0xff] %vm1134, %v1104
      %1138 = vst.msk [vmem:[#allocation4 + $0x18] sm:$0xff] %vm1134, %v1105
      %1139 = vst.msk [vmem:[#allocation4 + $0x20] sm:$0xff] %vm1134, %v1106
      %1140 = vst.msk [vmem:[#allocation4 + $0x28] sm:$0xff] %vm1134, %v1107
      %1141 = vst.msk [vmem:[#allocation4 + $0x30] sm:$0xff] %vm1134, %v1108
      %1142 = vst.msk [vmem:[#allocation4 + $0x38] sm:$0xff] %vm1134, %v1109
      %1143 = vst.msk [vmem:[#allocation4 + $0x40] sm:$0xff] %vm1134, %v1110
      %1144 = vst.msk [vmem:[#allocation4 + $0x48] sm:$0xff] %vm1134, %v1111
      %1145 = vst.msk [vmem:[#allocation4 + $0x50] sm:$0xff] %vm1134, %v1112
      %1146 = vst.msk [vmem:[#allocation4 + $0x58] sm:$0xff] %vm1134, %v1113
      %1147 = vst.msk [vmem:[#allocation4 + $0x60] sm:$0xff] %vm1134, %v1114
      %1148 = vst.msk [vmem:[#allocation4 + $0x68] sm:$0xff] %vm1134, %v1115
      %1149 = vst.msk [vmem:[#allocation4 + $0x70] sm:$0xff] %vm1134, %v1116
      %1150 = vst.msk [vmem:[#allocation4 + $0x78] sm:$0xff] %vm1134, %v1117
      %v1151 = vld [vmem:[#allocation2 + $0x4] sm:$0xf]
      %v1152 = vld [vmem:[#allocation2 + $0x8] sm:$0xf]
      %v1153 = vld [vmem:[#allocation2 + $0x14] sm:$0xf]
      %v1154 = vld [vmem:[#allocation2 + $0x18] sm:$0xf]
      %v1155 = vld [vmem:[#allocation2 + $0x24] sm:$0xf]
      %v1156 = vld [vmem:[#allocation2 + $0x28] sm:$0xf]
      %v1157 = vld [vmem:[#allocation2 + $0x34] sm:$0xf]
      %v1158 = vld [vmem:[#allocation2 + $0x38] sm:$0xf]
      %v1159 = vld [vmem:[#allocation2 + $0x44] sm:$0xf]
      %v1160 = vld [vmem:[#allocation2 + $0x48] sm:$0xf]
      %v1161 = vld [vmem:[#allocation2 + $0x54] sm:$0xf]
      %v1162 = vld [vmem:[#allocation2 + $0x58] sm:$0xf]
      %v1163 = vld [vmem:[#allocation2 + $0x64] sm:$0xf]
      %v1164 = vld [vmem:[#allocation2 + $0x68] sm:$0xf]
      %v1165 = vld [vmem:[#allocation2 + $0x74] sm:$0xf]
      %v1166 = vld [vmem:[#allocation2 + $0x78] sm:$0xf]
      %v1167 = vld [vmem:[#allocation2 + $0x84] sm:$0xf]
      %v1168 = vld [vmem:[#allocation2 + $0x88] sm:$0xf]
      %v1169 = vld [vmem:[#allocation2 + $0x94] sm:$0xf]
      %v1170 = vld [vmem:[#allocation2 + $0x98] sm:$0xf]
      %v1171 = vld [vmem:[#allocation2 + $0xa4] sm:$0xf]
      %v1172 = vld [vmem:[#allocation2 + $0xa8] sm:$0xf]
      %v1173 = vld [vmem:[#allocation2 + $0xb4] sm:$0xf]
      %v1174 = vld [vmem:[#allocation2 + $0xb8] sm:$0xf]
      %v1175 = vld [vmem:[#allocation2 + $0xc4] sm:$0xf]
      %v1176 = vld [vmem:[#allocation2 + $0xc8] sm:$0xf]
      %v1177 = vld [vmem:[#allocation2 + $0xd4] sm:$0xf]
      %v1178 = vld [vmem:[#allocation2 + $0xd8] sm:$0xf]
      %v1179 = vld [vmem:[#allocation2 + $0xe4] sm:$0xf]
      %v1180 = vld [vmem:[#allocation2 + $0xe8] sm:$0xf]
      %v1181 = vld [vmem:[#allocation2 + $0xf4] sm:$0xf]
      %v1182 = vld [vmem:[#allocation2 + $0xf8] sm:$0xf]
      %v1215 = vunpack.c.l.b16 %v1151
      %v1216 = vunpack.c.l.b16 %v1152
      %v1217 = vunpack.c.l.b16 %v1153
      %v1218 = vunpack.c.l.b16 %v1154
      %v1219 = vunpack.c.l.b16 %v1155
      %v1220 = vunpack.c.l.b16 %v1156
      %v1221 = vunpack.c.l.b16 %v1157
      %v1222 = vunpack.c.l.b16 %v1158
      %v1223 = vunpack.c.l.b16 %v1159
      %v1224 = vunpack.c.l.b16 %v1160
      %v1225 = vunpack.c.l.b16 %v1161
      %v1226 = vunpack.c.l.b16 %v1162
      %v1227 = vunpack.c.l.b16 %v1163
      %v1228 = vunpack.c.l.b16 %v1164
      %v1229 = vunpack.c.l.b16 %v1165
      %v1230 = vunpack.c.l.b16 %v1166
      %v1231 = vunpack.c.l.b16 %v1167
      %v1232 = vunpack.c.l.b16 %v1168
      %v1233 = vunpack.c.l.b16 %v1169
      %v1234 = vunpack.c.l.b16 %v1170
      %v1235 = vunpack.c.l.b16 %v1171
      %v1236 = vunpack.c.l.b16 %v1172
      %v1237 = vunpack.c.l.b16 %v1173
      %v1238 = vunpack.c.l.b16 %v1174
      %v1239 = vunpack.c.l.b16 %v1175
      %v1240 = vunpack.c.l.b16 %v1176
      %v1241 = vunpack.c.l.b16 %v1177
      %v1242 = vunpack.c.l.b16 %v1178
      %v1243 = vunpack.c.l.b16 %v1179
      %v1244 = vunpack.c.l.b16 %v1180
      %v1245 = vunpack.c.l.b16 %v1181
      %v1246 = vunpack.c.l.b16 %v1182
      %v1247 = vpack.c.b16 %v1216, %v1215
      %v1248 = vpack.c.b16 %v1218, %v1217
      %v1249 = vpack.c.b16 %v1220, %v1219
      %v1250 = vpack.c.b16 %v1222, %v1221
      %v1251 = vpack.c.b16 %v1224, %v1223
      %v1252 = vpack.c.b16 %v1226, %v1225
      %v1253 = vpack.c.b16 %v1228, %v1227
      %v1254 = vpack.c.b16 %v1230, %v1229
      %v1255 = vpack.c.b16 %v1232, %v1231
      %v1256 = vpack.c.b16 %v1234, %v1233
      %v1257 = vpack.c.b16 %v1236, %v1235
      %v1258 = vpack.c.b16 %v1238, %v1237
      %v1259 = vpack.c.b16 %v1240, %v1239
      %v1260 = vpack.c.b16 %v1242, %v1241
      %v1261 = vpack.c.b16 %v1244, %v1243
      %v1262 = vpack.c.b16 %v1246, %v1245
      %1263 = vrot.lane.b32.xlu0 %v1247, 4
      %v1264 = vpop.permute.xlu0 %1263
      %1265 = vrot.lane.b32.xlu0 %v1248, 4
      %v1266 = vpop.permute.xlu0 %1265
      %1267 = vrot.lane.b32.xlu0 %v1249, 4
      %v1268 = vpop.permute.xlu0 %1267
      %1269 = vrot.lane.b32.xlu0 %v1250, 4
      %v1270 = vpop.permute.xlu0 %1269
      %1271 = vrot.lane.b32.xlu0 %v1251, 4
      %v1272 = vpop.permute.xlu0 %1271
      %1273 = vrot.lane.b32.xlu0 %v1252, 4
      %v1274 = vpop.permute.xlu0 %1273
      %1275 = vrot.lane.b32.xlu0 %v1253, 4
      %v1276 = vpop.permute.xlu0 %1275
      %1277 = vrot.lane.b32.xlu0 %v1254, 4
      %v1278 = vpop.permute.xlu0 %1277
      %1279 = vrot.lane.b32.xlu0 %v1255, 4
      %v1280 = vpop.permute.xlu0 %1279
      %1281 = vrot.lane.b32.xlu0 %v1256, 4
      %v1282 = vpop.permute.xlu0 %1281
      %1283 = vrot.lane.b32.xlu0 %v1257, 4
      %v1284 = vpop.permute.xlu0 %1283
      %1285 = vrot.lane.b32.xlu0 %v1258, 4
      %v1286 = vpop.permute.xlu0 %1285
      %1287 = vrot.lane.b32.xlu0 %v1259, 4
      %v1288 = vpop.permute.xlu0 %1287
      %1289 = vrot.lane.b32.xlu0 %v1260, 4
      %v1290 = vpop.permute.xlu0 %1289
      %1291 = vrot.lane.b32.xlu0 %v1261, 4
      %v1292 = vpop.permute.xlu0 %1291
      %1293 = vrot.lane.b32.xlu0 %v1262, 4
      %v1294 = vpop.permute.xlu0 %1293
      %vm1311 = vcmask 64544
      %1312 = vst.msk [vmem:[#allocation4] sm:$0xff] %vm1311, %v1264
      %1313 = vst.msk [vmem:[#allocation4 + $0x8] sm:$0xff] %vm1311, %v1266
      %1314 = vst.msk [vmem:[#allocation4 + $0x10] sm:$0xff] %vm1311, %v1268
      %1315 = vst.msk [vmem:[#allocation4 + $0x18] sm:$0xff] %vm1311, %v1270
      %1316 = vst.msk [vmem:[#allocation4 + $0x20] sm:$0xff] %vm1311, %v1272
      %1317 = vst.msk [vmem:[#allocation4 + $0x28] sm:$0xff] %vm1311, %v1274
      %1318 = vst.msk [vmem:[#allocation4 + $0x30] sm:$0xff] %vm1311, %v1276
      %1319 = vst.msk [vmem:[#allocation4 + $0x38] sm:$0xff] %vm1311, %v1278
      %1320 = vst.msk [vmem:[#allocation4 + $0x40] sm:$0xff] %vm1311, %v1280
      %1321 = vst.msk [vmem:[#allocation4 + $0x48] sm:$0xff] %vm1311, %v1282
      %1322 = vst.msk [vmem:[#allocation4 + $0x50] sm:$0xff] %vm1311, %v1284
      %1323 = vst.msk [vmem:[#allocation4 + $0x58] sm:$0xff] %vm1311, %v1286
      %1324 = vst.msk [vmem:[#allocation4 + $0x60] sm:$0xff] %vm1311, %v1288
      %1325 = vst.msk [vmem:[#allocation4 + $0x68] sm:$0xff] %vm1311, %v1290
      %1326 = vst.msk [vmem:[#allocation4 + $0x70] sm:$0xff] %vm1311, %v1292
      %1327 = vst.msk [vmem:[#allocation4 + $0x78] sm:$0xff] %vm1311, %v1294
      %v1328 = vld [vmem:[#allocation2 + $0x4] sm:$0xf]
      %v1329 = vld [vmem:[#allocation2 + $0x8] sm:$0xf]
      %v1330 = vld [vmem:[#allocation2 + $0xc] sm:$0x1]
      %v1331 = vld [vmem:[#allocation2 + $0x14] sm:$0xf]
      %v1332 = vld [vmem:[#allocation2 + $0x18] sm:$0xf]
      %v1333 = vld [vmem:[#allocation2 + $0x1c] sm:$0x1]
      %v1334 = vld [vmem:[#allocation2 + $0x24] sm:$0xf]
      %v1335 = vld [vmem:[#allocation2 + $0x28] sm:$0xf]
      %v1336 = vld [vmem:[#allocation2 + $0x2c] sm:$0x1]
      %v1337 = vld [vmem:[#allocation2 + $0x34] sm:$0xf]
      %v1338 = vld [vmem:[#allocation2 + $0x38] sm:$0xf]
      %v1339 = vld [vmem:[#allocation2 + $0x3c] sm:$0x1]
      %v1340 = vld [vmem:[#allocation2 + $0x44] sm:$0xf]
      %v1341 = vld [vmem:[#allocation2 + $0x48] sm:$0xf]
      %v1342 = vld [vmem:[#allocation2 + $0x4c] sm:$0x1]
      %v1343 = vld [vmem:[#allocation2 + $0x54] sm:$0xf]
      %v1344 = vld [vmem:[#allocation2 + $0x58] sm:$0xf]
      %v1345 = vld [vmem:[#allocation2 + $0x5c] sm:$0x1]
      %v1346 = vld [vmem:[#allocation2 + $0x64] sm:$0xf]
      %v1347 = vld [vmem:[#allocation2 + $0x68] sm:$0xf]
      %v1348 = vld [vmem:[#allocation2 + $0x6c] sm:$0x1]
      %v1349 = vld [vmem:[#allocation2 + $0x74] sm:$0xf]
      %v1350 = vld [vmem:[#allocation2 + $0x78] sm:$0xf]
      %v1351 = vld [vmem:[#allocation2 + $0x7c] sm:$0x1]
      %v1352 = vld [vmem:[#allocation2 + $0x84] sm:$0xf]
      %v1353 = vld [vmem:[#allocation2 + $0x88] sm:$0xf]
      %v1354 = vld [vmem:[#allocation2 + $0x8c] sm:$0x1]
      %v1355 = vld [vmem:[#allocation2 + $0x94] sm:$0xf]
      %v1356 = vld [vmem:[#allocation2 + $0x98] sm:$0xf]
      %v1357 = vld [vmem:[#allocation2 + $0x9c] sm:$0x1]
      %v1358 = vld [vmem:[#allocation2 + $0xa4] sm:$0xf]
      %v1359 = vld [vmem:[#allocation2 + $0xa8] sm:$0xf]
      %v1360 = vld [vmem:[#allocation2 + $0xac] sm:$0x1]
      %v1361 = vld [vmem:[#allocation2 + $0xb4] sm:$0xf]
      %v1362 = vld [vmem:[#allocation2 + $0xb8] sm:$0xf]
      %v1363 = vld [vmem:[#allocation2 + $0xbc] sm:$0x1]
      %v1364 = vld [vmem:[#allocation2 + $0xc4] sm:$0xf]
      %v1365 = vld [vmem:[#allocation2 + $0xc8] sm:$0xf]
      %v1366 = vld [vmem:[#allocation2 + $0xcc] sm:$0x1]
      %v1367 = vld [vmem:[#allocation2 + $0xd4] sm:$0xf]
      %v1368 = vld [vmem:[#allocation2 + $0xd8] sm:$0xf]
      %v1369 = vld [vmem:[#allocation2 + $0xdc] sm:$0x1]
      %v1370 = vld [vmem:[#allocation2 + $0xe4] sm:$0xf]
      %v1371 = vld [vmem:[#allocation2 + $0xe8] sm:$0xf]
      %v1372 = vld [vmem:[#allocation2 + $0xec] sm:$0x1]
      %v1373 = vld [vmem:[#allocation2 + $0xf4] sm:$0xf]
      %v1374 = vld [vmem:[#allocation2 + $0xf8] sm:$0xf]
      %v1375 = vld [vmem:[#allocation2 + $0xfc] sm:$0x1]
      %vm1376 = vsmask.f32 3328
      %vm1377 = vsmask.f32 7440
      %vm1378 = vmor %vm1376, %vm1377
      %v1380 = vshrl.u32 %v1328, 16
      %v1382 = vrot.slane %v1380, 4
      %v1383 = vshll.u32 %v1328, 16
      %v1385 = vrot.slane %v1383, 5
      %v1386 = vor.u32 %v1382, %v1385
      %v1387 = vrot.slane %v1386, 4
      %v1389 = vshll.u32 %v1329, 16
      %v1391 = vrot.slane %v1389, 5
      %v1392 = vsel %vm1378, %v1387, %v1391
      %v1393 = vshrl.u32 %v1329, 16
      %v1395 = vrot.slane %v1393, 4
      %v1396 = vor.u32 %v1395, %v1391
      %v1397 = vrot.slane %v1396, 4
      %v1399 = vshll.u32 %v1330, 16
      %v1401 = vrot.slane %v1399, 5
      %v1402 = vsel %vm1378, %v1397, %v1401
      %v1404 = vshrl.u32 %v1331, 16
      %v1406 = vrot.slane %v1404, 4
      %v1407 = vshll.u32 %v1331, 16
      %v1409 = vrot.slane %v1407, 5
      %v1410 = vor.u32 %v1406, %v1409
      %v1411 = vrot.slane %v1410, 4
      %v1413 = vshll.u32 %v1332, 16
      %v1415 = vrot.slane %v1413, 5
      %v1416 = vsel %vm1378, %v1411, %v1415
      %v1417 = vshrl.u32 %v1332, 16
      %v1419 = vrot.slane %v1417, 4
      %v1420 = vor.u32 %v1419, %v1415
      %v1421 = vrot.slane %v1420, 4
      %v1423 = vshll.u32 %v1333, 16
      %v1425 = vrot.slane %v1423, 5
      %v1426 = vsel %vm1378, %v1421, %v1425
      %v1428 = vshrl.u32 %v1334, 16
      %v1430 = vrot.slane %v1428, 4
      %v1431 = vshll.u32 %v1334, 16
      %v1433 = vrot.slane %v1431, 5
      %v1434 = vor.u32 %v1430, %v1433
      %v1435 = vrot.slane %v1434, 4
      %v1437 = vshll.u32 %v1335, 16
      %v1439 = vrot.slane %v1437, 5
      %v1440 = vsel %vm1378, %v1435, %v1439
      %v1441 = vshrl.u32 %v1335, 16
      %v1443 = vrot.slane %v1441, 4
      %v1444 = vor.u32 %v1443, %v1439
      %v1445 = vrot.slane %v1444, 4
      %v1447 = vshll.u32 %v1336, 16
      %v1449 = vrot.slane %v1447, 5
      %v1450 = vsel %vm1378, %v1445, %v1449
      %v1452 = vshrl.u32 %v1337, 16
      %v1454 = vrot.slane %v1452, 4
      %v1455 = vshll.u32 %v1337, 16
      %v1457 = vrot.slane %v1455, 5
      %v1458 = vor.u32 %v1454, %v1457
      %v1459 = vrot.slane %v1458, 4
      %v1461 = vshll.u32 %v1338, 16
      %v1463 = vrot.slane %v1461, 5
      %v1464 = vsel %vm1378, %v1459, %v1463
      %v1465 = vshrl.u32 %v1338, 16
      %v1467 = vrot.slane %v1465, 4
      %v1468 = vor.u32 %v1467, %v1463
      %v1469 = vrot.slane %v1468, 4
      %v1471 = vshll.u32 %v1339, 16
      %v1473 = vrot.slane %v1471, 5
      %v1474 = vsel %vm1378, %v1469, %v1473
      %v1476 = vshrl.u32 %v1340, 16
      %v1478 = vrot.slane %v1476, 4
      %v1479 = vshll.u32 %v1340, 16
      %v1481 = vrot.slane %v1479, 5
      %v1482 = vor.u32 %v1478, %v1481
      %v1483 = vrot.slane %v1482, 4
      %v1485 = vshll.u32 %v1341, 16
      %v1487 = vrot.slane %v1485, 5
      %v1488 = vsel %vm1378, %v1483, %v1487
      %v1489 = vshrl.u32 %v1341, 16
      %v1491 = vrot.slane %v1489, 4
      %v1492 = vor.u32 %v1491, %v1487
      %v1493 = vrot.slane %v1492, 4
      %v1495 = vshll.u32 %v1342, 16
      %v1497 = vrot.slane %v1495, 5
      %v1498 = vsel %vm1378, %v1493, %v1497
      %v1500 = vshrl.u32 %v1343, 16
      %v1502 = vrot.slane %v1500, 4
      %v1503 = vshll.u32 %v1343, 16
      %v1505 = vrot.slane %v1503, 5
      %v1506 = vor.u32 %v1502, %v1505
      %v1507 = vrot.slane %v1506, 4
      %v1509 = vshll.u32 %v1344, 16
      %v1511 = vrot.slane %v1509, 5
      %v1512 = vsel %vm1378, %v1507, %v1511
      %v1513 = vshrl.u32 %v1344, 16
      %v1515 = vrot.slane %v1513, 4
      %v1516 = vor.u32 %v1515, %v1511
      %v1517 = vrot.slane %v1516, 4
      %v1519 = vshll.u32 %v1345, 16
      %v1521 = vrot.slane %v1519, 5
      %v1522 = vsel %vm1378, %v1517, %v1521
      %v1524 = vshrl.u32 %v1346, 16
      %v1526 = vrot.slane %v1524, 4
      %v1527 = vshll.u32 %v1346, 16
      %v1529 = vrot.slane %v1527, 5
      %v1530 = vor.u32 %v1526, %v1529
      %v1531 = vrot.slane %v1530, 4
      %v1533 = vshll.u32 %v1347, 16
      %v1535 = vrot.slane %v1533, 5
      %v1536 = vsel %vm1378, %v1531, %v1535
      %v1537 = vshrl.u32 %v1347, 16
      %v1539 = vrot.slane %v1537, 4
      %v1540 = vor.u32 %v1539, %v1535
      %v1541 = vrot.slane %v1540, 4
      %v1543 = vshll.u32 %v1348, 16
      %v1545 = vrot.slane %v1543, 5
      %v1546 = vsel %vm1378, %v1541, %v1545
      %v1548 = vshrl.u32 %v1349, 16
      %v1550 = vrot.slane %v1548, 4
      %v1551 = vshll.u32 %v1349, 16
      %v1553 = vrot.slane %v1551, 5
      %v1554 = vor.u32 %v1550, %v1553
      %v1555 = vrot.slane %v1554, 4
      %v1557 = vshll.u32 %v1350, 16
      %v1559 = vrot.slane %v1557, 5
      %v1560 = vsel %vm1378, %v1555, %v1559
      %v1561 = vshrl.u32 %v1350, 16
      %v1563 = vrot.slane %v1561, 4
      %v1564 = vor.u32 %v1563, %v1559
      %v1565 = vrot.slane %v1564, 4
      %v1567 = vshll.u32 %v1351, 16
      %v1569 = vrot.slane %v1567, 5
      %v1570 = vsel %vm1378, %v1565, %v1569
      %v1572 = vshrl.u32 %v1352, 16
      %v1574 = vrot.slane %v1572, 4
      %v1575 = vshll.u32 %v1352, 16
      %v1577 = vrot.slane %v1575, 5
      %v1578 = vor.u32 %v1574, %v1577
      %v1579 = vrot.slane %v1578, 4
      %v1581 = vshll.u32 %v1353, 16
      %v1583 = vrot.slane %v1581, 5
      %v1584 = vsel %vm1378, %v1579, %v1583
      %v1585 = vshrl.u32 %v1353, 16
      %v1587 = vrot.slane %v1585, 4
      %v1588 = vor.u32 %v1587, %v1583
      %v1589 = vrot.slane %v1588, 4
      %v1591 = vshll.u32 %v1354, 16
      %v1593 = vrot.slane %v1591, 5
      %v1594 = vsel %vm1378, %v1589, %v1593
      %v1596 = vshrl.u32 %v1355, 16
      %v1598 = vrot.slane %v1596, 4
      %v1599 = vshll.u32 %v1355, 16
      %v1601 = vrot.slane %v1599, 5
      %v1602 = vor.u32 %v1598, %v1601
      %v1603 = vrot.slane %v1602, 4
      %v1605 = vshll.u32 %v1356, 16
      %v1607 = vrot.slane %v1605, 5
      %v1608 = vsel %vm1378, %v1603, %v1607
      %v1609 = vshrl.u32 %v1356, 16
      %v1611 = vrot.slane %v1609, 4
      %v1612 = vor.u32 %v1611, %v1607
      %v1613 = vrot.slane %v1612, 4
      %v1615 = vshll.u32 %v1357, 16
      %v1617 = vrot.slane %v1615, 5
      %v1618 = vsel %vm1378, %v1613, %v1617
      %v1620 = vshrl.u32 %v1358, 16
      %v1622 = vrot.slane %v1620, 4
      %v1623 = vshll.u32 %v1358, 16
      %v1625 = vrot.slane %v1623, 5
      %v1626 = vor.u32 %v1622, %v1625
      %v1627 = vrot.slane %v1626, 4
      %v1629 = vshll.u32 %v1359, 16
      %v1631 = vrot.slane %v1629, 5
      %v1632 = vsel %vm1378, %v1627, %v1631
      %v1633 = vshrl.u32 %v1359, 16
      %v1635 = vrot.slane %v1633, 4
      %v1636 = vor.u32 %v1635, %v1631
      %v1637 = vrot.slane %v1636, 4
      %v1639 = vshll.u32 %v1360, 16
      %v1641 = vrot.slane %v1639, 5
      %v1642 = vsel %vm1378, %v1637, %v1641
      %v1644 = vshrl.u32 %v1361, 16
      %v1646 = vrot.slane %v1644, 4
      %v1647 = vshll.u32 %v1361, 16
      %v1649 = vrot.slane %v1647, 5
      %v1650 = vor.u32 %v1646, %v1649
      %v1651 = vrot.slane %v1650, 4
      %v1653 = vshll.u32 %v1362, 16
      %v1655 = vrot.slane %v1653, 5
      %v1656 = vsel %vm1378, %v1651, %v1655
      %v1657 = vshrl.u32 %v1362, 16
      %v1659 = vrot.slane %v1657, 4
      %v1660 = vor.u32 %v1659, %v1655
      %v1661 = vrot.slane %v1660, 4
      %v1663 = vshll.u32 %v1363, 16
      %v1665 = vrot.slane %v1663, 5
      %v1666 = vsel %vm1378, %v1661, %v1665
      %v1668 = vshrl.u32 %v1364, 16
      %v1670 = vrot.slane %v1668, 4
      %v1671 = vshll.u32 %v1364, 16
      %v1673 = vrot.slane %v1671, 5
      %v1674 = vor.u32 %v1670, %v1673
      %v1675 = vrot.slane %v1674, 4
      %v1677 = vshll.u32 %v1365, 16
      %v1679 = vrot.slane %v1677, 5
      %v1680 = vsel %vm1378, %v1675, %v1679
      %v1681 = vshrl.u32 %v1365, 16
      %v1683 = vrot.slane %v1681, 4
      %v1684 = vor.u32 %v1683, %v1679
      %v1685 = vrot.slane %v1684, 4
      %v1687 = vshll.u32 %v1366, 16
      %v1689 = vrot.slane %v1687, 5
      %v1690 = vsel %vm1378, %v1685, %v1689
      %v1692 = vshrl.u32 %v1367, 16
      %v1694 = vrot.slane %v1692, 4
      %v1695 = vshll.u32 %v1367, 16
      %v1697 = vrot.slane %v1695, 5
      %v1698 = vor.u32 %v1694, %v1697
      %v1699 = vrot.slane %v1698, 4
      %v1701 = vshll.u32 %v1368, 16
      %v1703 = vrot.slane %v1701, 5
      %v1704 = vsel %vm1378, %v1699, %v1703
      %v1705 = vshrl.u32 %v1368, 16
      %v1707 = vrot.slane %v1705, 4
      %v1708 = vor.u32 %v1707, %v1703
      %v1709 = vrot.slane %v1708, 4
      %v1711 = vshll.u32 %v1369, 16
      %v1713 = vrot.slane %v1711, 5
      %v1714 = vsel %vm1378, %v1709, %v1713
      %v1716 = vshrl.u32 %v1370, 16
      %v1718 = vrot.slane %v1716, 4
      %v1719 = vshll.u32 %v1370, 16
      %v1721 = vrot.slane %v1719, 5
      %v1722 = vor.u32 %v1718, %v1721
      %v1723 = vrot.slane %v1722, 4
      %v1725 = vshll.u32 %v1371, 16
      %v1727 = vrot.slane %v1725, 5
      %v1728 = vsel %vm1378, %v1723, %v1727
      %v1729 = vshrl.u32 %v1371, 16
      %v1731 = vrot.slane %v1729, 4
      %v1732 = vor.u32 %v1731, %v1727
      %v1733 = vrot.slane %v1732, 4
      %v1735 = vshll.u32 %v1372, 16
      %v1737 = vrot.slane %v1735, 5
      %v1738 = vsel %vm1378, %v1733, %v1737
      %v1740 = vshrl.u32 %v1373, 16
      %v1742 = vrot.slane %v1740, 4
      %v1743 = vshll.u32 %v1373, 16
      %v1745 = vrot.slane %v1743, 5
      %v1746 = vor.u32 %v1742, %v1745
      %v1747 = vrot.slane %v1746, 4
      %v1749 = vshll.u32 %v1374, 16
      %v1751 = vrot.slane %v1749, 5
      %v1752 = vsel %vm1378, %v1747, %v1751
      %v1753 = vshrl.u32 %v1374, 16
      %v1755 = vrot.slane %v1753, 4
      %v1756 = vor.u32 %v1755, %v1751
      %v1757 = vrot.slane %v1756, 4
      %v1759 = vshll.u32 %v1375, 16
      %v1761 = vrot.slane %v1759, 5
      %v1762 = vsel %vm1378, %v1757, %v1761
      %v1763 = vunpack.c.l.b16 %v1392
      %v1764 = vunpack.c.l.b16 %v1402
      %v1765 = vunpack.c.l.b16 %v1416
      %v1766 = vunpack.c.l.b16 %v1426
      %v1767 = vunpack.c.l.b16 %v1440
      %v1768 = vunpack.c.l.b16 %v1450
      %v1769 = vunpack.c.l.b16 %v1464
      %v1770 = vunpack.c.l.b16 %v1474
      %v1771 = vunpack.c.l.b16 %v1488
      %v1772 = vunpack.c.l.b16 %v1498
      %v1773 = vunpack.c.l.b16 %v1512
      %v1774 = vunpack.c.l.b16 %v1522
      %v1775 = vunpack.c.l.b16 %v1536
      %v1776 = vunpack.c.l.b16 %v1546
      %v1777 = vunpack.c.l.b16 %v1560
      %v1778 = vunpack.c.l.b16 %v1570
      %v1779 = vunpack.c.l.b16 %v1584
      %v1780 = vunpack.c.l.b16 %v1594
      %v1781 = vunpack.c.l.b16 %v1608
      %v1782 = vunpack.c.l.b16 %v1618
      %v1783 = vunpack.c.l.b16 %v1632
      %v1784 = vunpack.c.l.b16 %v1642
      %v1785 = vunpack.c.l.b16 %v1656
      %v1786 = vunpack.c.l.b16 %v1666
      %v1787 = vunpack.c.l.b16 %v1680
      %v1788 = vunpack.c.l.b16 %v1690
      %v1789 = vunpack.c.l.b16 %v1704
      %v1790 = vunpack.c.l.b16 %v1714
      %v1791 = vunpack.c.l.b16 %v1728
      %v1792 = vunpack.c.l.b16 %v1738
      %v1793 = vunpack.c.l.b16 %v1752
      %v1794 = vunpack.c.l.b16 %v1762
      %v1795 = vpack.c.b16 %v1764, %v1763
      %v1796 = vpack.c.b16 %v1766, %v1765
      %v1797 = vpack.c.b16 %v1768, %v1767
      %v1798 = vpack.c.b16 %v1770, %v1769
      %v1799 = vpack.c.b16 %v1772, %v1771
      %v1800 = vpack.c.b16 %v1774, %v1773
      %v1801 = vpack.c.b16 %v1776, %v1775
      %v1802 = vpack.c.b16 %v1778, %v1777
      %v1803 = vpack.c.b16 %v1780, %v1779
      %v1804 = vpack.c.b16 %v1782, %v1781
      %v1805 = vpack.c.b16 %v1784, %v1783
      %v1806 = vpack.c.b16 %v1786, %v1785
      %v1807 = vpack.c.b16 %v1788, %v1787
      %v1808 = vpack.c.b16 %v1790, %v1789
      %v1809 = vpack.c.b16 %v1792, %v1791
      %v1810 = vpack.c.b16 %v1794, %v1793
      %1811 = vrot.lane.b32.xlu0 %v1795, 8
      %v1812 = vpop.permute.xlu0 %1811
      %1813 = vrot.lane.b32.xlu0 %v1796, 8
      %v1814 = vpop.permute.xlu0 %1813
      %1815 = vrot.lane.b32.xlu0 %v1797, 8
      %v1816 = vpop.permute.xlu0 %1815
      %1817 = vrot.lane.b32.xlu0 %v1798, 8
      %v1818 = vpop.permute.xlu0 %1817
      %1819 = vrot.lane.b32.xlu0 %v1799, 8
      %v1820 = vpop.permute.xlu0 %1819
      %1821 = vrot.lane.b32.xlu0 %v1800, 8
      %v1822 = vpop.permute.xlu0 %1821
      %1823 = vrot.lane.b32.xlu0 %v1801, 8
      %v1824 = vpop.permute.xlu0 %1823
      %1825 = vrot.lane.b32.xlu0 %v1802, 8
      %v1826 = vpop.permute.xlu0 %1825
      %1827 = vrot.lane.b32.xlu0 %v1803, 8
      %v1828 = vpop.permute.xlu0 %1827
      %1829 = vrot.lane.b32.xlu0 %v1804, 8
      %v1830 = vpop.permute.xlu0 %1829
      %1831 = vrot.lane.b32.xlu0 %v1805, 8
      %v1832 = vpop.permute.xlu0 %1831
      %1833 = vrot.lane.b32.xlu0 %v1806, 8
      %v1834 = vpop.permute.xlu0 %1833
      %1835 = vrot.lane.b32.xlu0 %v1807, 8
      %v1836 = vpop.permute.xlu0 %1835
      %1837 = vrot.lane.b32.xlu0 %v1808, 8
      %v1838 = vpop.permute.xlu0 %1837
      %1839 = vrot.lane.b32.xlu0 %v1809, 8
      %v1840 = vpop.permute.xlu0 %1839
      %1841 = vrot.lane.b32.xlu0 %v1810, 8
      %v1842 = vpop.permute.xlu0 %1841
      %vm1859 = vcmask 97344
      %1860 = vst.msk [vmem:[#allocation4] sm:$0xff] %vm1859, %v1812
      %1861 = vst.msk [vmem:[#allocation4 + $0x8] sm:$0xff] %vm1859, %v1814
      %1862 = vst.msk [vmem:[#allocation4 + $0x10] sm:$0xff] %vm1859, %v1816
      %1863 = vst.msk [vmem:[#allocation4 + $0x18] sm:$0xff] %vm1859, %v1818
      %1864 = vst.msk [vmem:[#allocation4 + $0x20] sm:$0xff] %vm1859, %v1820
      %1865 = vst.msk [vmem:[#allocation4 + $0x28] sm:$0xff] %vm1859, %v1822
      %1866 = vst.msk [vmem:[#allocation4 + $0x30] sm:$0xff] %vm1859, %v1824
      %1867 = vst.msk [vmem:[#allocation4 + $0x38] sm:$0xff] %vm1859, %v1826
      %1868 = vst.msk [vmem:[#allocation4 + $0x40] sm:$0xff] %vm1859, %v1828
      %1869 = vst.msk [vmem:[#allocation4 + $0x48] sm:$0xff] %vm1859, %v1830
      %1870 = vst.msk [vmem:[#allocation4 + $0x50] sm:$0xff] %vm1859, %v1832
      %1871 = vst.msk [vmem:[#allocation4 + $0x58] sm:$0xff] %vm1859, %v1834
      %1872 = vst.msk [vmem:[#allocation4 + $0x60] sm:$0xff] %vm1859, %v1836
      %1873 = vst.msk [vmem:[#allocation4 + $0x68] sm:$0xff] %vm1859, %v1838
      %1874 = vst.msk [vmem:[#allocation4 + $0x70] sm:$0xff] %vm1859, %v1840
      %1875 = vst.msk [vmem:[#allocation4 + $0x78] sm:$0xff] %vm1859, %v1842
      %v1876 = vld [vmem:[%s635] sm:$0x8]
      %v1877 = vld [vmem:[%s635 + $0x4] sm:$0xf]
      %v1878 = vld [vmem:[%s635 + $0x8] sm:$0xf]
      %v1879 = vld [vmem:[%s635 + $0x10] sm:$0x8]
      %v1880 = vld [vmem:[%s635 + $0x14] sm:$0xf]
      %v1881 = vld [vmem:[%s635 + $0x18] sm:$0xf]
      %v1882 = vld [vmem:[%s635 + $0x20] sm:$0x8]
      %v1883 = vld [vmem:[%s635 + $0x24] sm:$0xf]
      %v1884 = vld [vmem:[%s635 + $0x28] sm:$0xf]
      %v1885 = vld [vmem:[%s635 + $0x30] sm:$0x8]
      %v1886 = vld [vmem:[%s635 + $0x34] sm:$0xf]
      %v1887 = vld [vmem:[%s635 + $0x38] sm:$0xf]
      %v1888 = vld [vmem:[%s635 + $0x40] sm:$0x8]
      %v1889 = vld [vmem:[%s635 + $0x44] sm:$0xf]
      %v1890 = vld [vmem:[%s635 + $0x48] sm:$0xf]
      %v1891 = vld [vmem:[%s635 + $0x50] sm:$0x8]
      %v1892 = vld [vmem:[%s635 + $0x54] sm:$0xf]
      %v1893 = vld [vmem:[%s635 + $0x58] sm:$0xf]
      %v1894 = vld [vmem:[%s635 + $0x60] sm:$0x8]
      %v1895 = vld [vmem:[%s635 + $0x64] sm:$0xf]
      %v1896 = vld [vmem:[%s635 + $0x68] sm:$0xf]
      %v1897 = vld [vmem:[%s635 + $0x70] sm:$0x8]
      %v1898 = vld [vmem:[%s635 + $0x74] sm:$0xf]
      %v1899 = vld [vmem:[%s635 + $0x78] sm:$0xf]
      %v1900 = vld [vmem:[%s635 + $0x80] sm:$0x8]
      %v1901 = vld [vmem:[%s635 + $0x84] sm:$0xf]
      %v1902 = vld [vmem:[%s635 + $0x88] sm:$0xf]
      %v1903 = vld [vmem:[%s635 + $0x90] sm:$0x8]
      %v1904 = vld [vmem:[%s635 + $0x94] sm:$0xf]
      %v1905 = vld [vmem:[%s635 + $0x98] sm:$0xf]
      %v1906 = vld [vmem:[%s635 + $0xa0] sm:$0x8]
      %v1907 = vld [vmem:[%s635 + $0xa4] sm:$0xf]
      %v1908 = vld [vmem:[%s635 + $0xa8] sm:$0xf]
      %v1909 = vld [vmem:[%s635 + $0xb0] sm:$0x8]
      %v1910 = vld [vmem:[%s635 + $0xb4] sm:$0xf]
      %v1911 = vld [vmem:[%s635 + $0xb8] sm:$0xf]
      %v1912 = vld [vmem:[%s635 + $0xc0] sm:$0x8]
      %v1913 = vld [vmem:[%s635 + $0xc4] sm:$0xf]
      %v1914 = vld [vmem:[%s635 + $0xc8] sm:$0xf]
      %v1915 = vld [vmem:[%s635 + $0xd0] sm:$0x8]
      %v1916 = vld [vmem:[%s635 + $0xd4] sm:$0xf]
      %v1917 = vld [vmem:[%s635 + $0xd8] sm:$0xf]
      %v1918 = vld [vmem:[%s635 + $0xe0] sm:$0x8]
      %v1919 = vld [vmem:[%s635 + $0xe4] sm:$0xf]
      %v1920 = vld [vmem:[%s635 + $0xe8] sm:$0xf]
      %v1921 = vld [vmem:[%s635 + $0xf0] sm:$0x8]
      %v1922 = vld [vmem:[%s635 + $0xf4] sm:$0xf]
      %v1923 = vld [vmem:[%s635 + $0xf8] sm:$0xf]
      %v1925 = vshrl.u32 %v1876, 16
      %v1927 = vrot.slane %v1925, 7
      %v1928 = vrot.slane %v1927, 4
      %v1930 = vshrl.u32 %v1877, 16
      %v1932 = vrot.slane %v1930, 7
      %v1933 = vshll.u32 %v1877, 16
      %v1935 = vor.u32 %v1932, %v1933
      %v1936 = vsel %vm717, %v1928, %v1935
      %v1937 = vrot.slane %v1932, 4
      %v1939 = vshrl.u32 %v1878, 16
      %v1941 = vrot.slane %v1939, 7
      %v1942 = vshll.u32 %v1878, 16
      %v1944 = vor.u32 %v1941, %v1942
      %v1945 = vsel %vm717, %v1937, %v1944
      %v1947 = vshrl.u32 %v1879, 16
      %v1949 = vrot.slane %v1947, 7
      %v1950 = vrot.slane %v1949, 4
      %v1952 = vshrl.u32 %v1880, 16
      %v1954 = vrot.slane %v1952, 7
      %v1955 = vshll.u32 %v1880, 16
      %v1957 = vor.u32 %v1954, %v1955
      %v1958 = vsel %vm717, %v1950, %v1957
      %v1959 = vrot.slane %v1954, 4
      %v1961 = vshrl.u32 %v1881, 16
      %v1963 = vrot.slane %v1961, 7
      %v1964 = vshll.u32 %v1881, 16
      %v1966 = vor.u32 %v1963, %v1964
      %v1967 = vsel %vm717, %v1959, %v1966
      %v1969 = vshrl.u32 %v1882, 16
      %v1971 = vrot.slane %v1969, 7
      %v1972 = vrot.slane %v1971, 4
      %v1974 = vshrl.u32 %v1883, 16
      %v1976 = vrot.slane %v1974, 7
      %v1977 = vshll.u32 %v1883, 16
      %v1979 = vor.u32 %v1976, %v1977
      %v1980 = vsel %vm717, %v1972, %v1979
      %v1981 = vrot.slane %v1976, 4
      %v1983 = vshrl.u32 %v1884, 16
      %v1985 = vrot.slane %v1983, 7
      %v1986 = vshll.u32 %v1884, 16
      %v1988 = vor.u32 %v1985, %v1986
      %v1989 = vsel %vm717, %v1981, %v1988
      %v1991 = vshrl.u32 %v1885, 16
      %v1993 = vrot.slane %v1991, 7
      %v1994 = vrot.slane %v1993, 4
      %v1996 = vshrl.u32 %v1886, 16
      %v1998 = vrot.slane %v1996, 7
      %v1999 = vshll.u32 %v1886, 16
      %v2001 = vor.u32 %v1998, %v1999
      %v2002 = vsel %vm717, %v1994, %v2001
      %v2003 = vrot.slane %v1998, 4
      %v2005 = vshrl.u32 %v1887, 16
      %v2007 = vrot.slane %v2005, 7
      %v2008 = vshll.u32 %v1887, 16
      %v2010 = vor.u32 %v2007, %v2008
      %v2011 = vsel %vm717, %v2003, %v2010
      %v2013 = vshrl.u32 %v1888, 16
      %v2015 = vrot.slane %v2013, 7
      %v2016 = vrot.slane %v2015, 4
      %v2018 = vshrl.u32 %v1889, 16
      %v2020 = vrot.slane %v2018, 7
      %v2021 = vshll.u32 %v1889, 16
      %v2023 = vor.u32 %v2020, %v2021
      %v2024 = vsel %vm717, %v2016, %v2023
      %v2025 = vrot.slane %v2020, 4
      %v2027 = vshrl.u32 %v1890, 16
      %v2029 = vrot.slane %v2027, 7
      %v2030 = vshll.u32 %v1890, 16
      %v2032 = vor.u32 %v2029, %v2030
      %v2033 = vsel %vm717, %v2025, %v2032
      %v2035 = vshrl.u32 %v1891, 16
      %v2037 = vrot.slane %v2035, 7
      %v2038 = vrot.slane %v2037, 4
      %v2040 = vshrl.u32 %v1892, 16
      %v2042 = vrot.slane %v2040, 7
      %v2043 = vshll.u32 %v1892, 16
      %v2045 = vor.u32 %v2042, %v2043
      %v2046 = vsel %vm717, %v2038, %v2045
      %v2047 = vrot.slane %v2042, 4
      %v2049 = vshrl.u32 %v1893, 16
      %v2051 = vrot.slane %v2049, 7
      %v2052 = vshll.u32 %v1893, 16
      %v2054 = vor.u32 %v2051, %v2052
      %v2055 = vsel %vm717, %v2047, %v2054
      %v2057 = vshrl.u32 %v1894, 16
      %v2059 = vrot.slane %v2057, 7
      %v2060 = vrot.slane %v2059, 4
      %v2062 = vshrl.u32 %v1895, 16
      %v2064 = vrot.slane %v2062, 7
      %v2065 = vshll.u32 %v1895, 16
      %v2067 = vor.u32 %v2064, %v2065
      %v2068 = vsel %vm717, %v2060, %v2067
      %v2069 = vrot.slane %v2064, 4
      %v2071 = vshrl.u32 %v1896, 16
      %v2073 = vrot.slane %v2071, 7
      %v2074 = vshll.u32 %v1896, 16
      %v2076 = vor.u32 %v2073, %v2074
      %v2077 = vsel %vm717, %v2069, %v2076
      %v2079 = vshrl.u32 %v1897, 16
      %v2081 = vrot.slane %v2079, 7
      %v2082 = vrot.slane %v2081, 4
      %v2084 = vshrl.u32 %v1898, 16
      %v2086 = vrot.slane %v2084, 7
      %v2087 = vshll.u32 %v1898, 16
      %v2089 = vor.u32 %v2086, %v2087
      %v2090 = vsel %vm717, %v2082, %v2089
      %v2091 = vrot.slane %v2086, 4
      %v2093 = vshrl.u32 %v1899, 16
      %v2095 = vrot.slane %v2093, 7
      %v2096 = vshll.u32 %v1899, 16
      %v2098 = vor.u32 %v2095, %v2096
      %v2099 = vsel %vm717, %v2091, %v2098
      %v2101 = vshrl.u32 %v1900, 16
      %v2103 = vrot.slane %v2101, 7
      %v2104 = vrot.slane %v2103, 4
      %v2106 = vshrl.u32 %v1901, 16
      %v2108 = vrot.slane %v2106, 7
      %v2109 = vshll.u32 %v1901, 16
      %v2111 = vor.u32 %v2108, %v2109
      %v2112 = vsel %vm717, %v2104, %v2111
      %v2113 = vrot.slane %v2108, 4
      %v2115 = vshrl.u32 %v1902, 16
      %v2117 = vrot.slane %v2115, 7
      %v2118 = vshll.u32 %v1902, 16
      %v2120 = vor.u32 %v2117, %v2118
      %v2121 = vsel %vm717, %v2113, %v2120
      %v2123 = vshrl.u32 %v1903, 16
      %v2125 = vrot.slane %v2123, 7
      %v2126 = vrot.slane %v2125, 4
      %v2128 = vshrl.u32 %v1904, 16
      %v2130 = vrot.slane %v2128, 7
      %v2131 = vshll.u32 %v1904, 16
      %v2133 = vor.u32 %v2130, %v2131
      %v2134 = vsel %vm717, %v2126, %v2133
      %v2135 = vrot.slane %v2130, 4
      %v2137 = vshrl.u32 %v1905, 16
      %v2139 = vrot.slane %v2137, 7
      %v2140 = vshll.u32 %v1905, 16
      %v2142 = vor.u32 %v2139, %v2140
      %v2143 = vsel %vm717, %v2135, %v2142
      %v2145 = vshrl.u32 %v1906, 16
      %v2147 = vrot.slane %v2145, 7
      %v2148 = vrot.slane %v2147, 4
      %v2150 = vshrl.u32 %v1907, 16
      %v2152 = vrot.slane %v2150, 7
      %v2153 = vshll.u32 %v1907, 16
      %v2155 = vor.u32 %v2152, %v2153
      %v2156 = vsel %vm717, %v2148, %v2155
      %v2157 = vrot.slane %v2152, 4
      %v2159 = vshrl.u32 %v1908, 16
      %v2161 = vrot.slane %v2159, 7
      %v2162 = vshll.u32 %v1908, 16
      %v2164 = vor.u32 %v2161, %v2162
      %v2165 = vsel %vm717, %v2157, %v2164
      %v2167 = vshrl.u32 %v1909, 16
      %v2169 = vrot.slane %v2167, 7
      %v2170 = vrot.slane %v2169, 4
      %v2172 = vshrl.u32 %v1910, 16
      %v2174 = vrot.slane %v2172, 7
      %v2175 = vshll.u32 %v1910, 16
      %v2177 = vor.u32 %v2174, %v2175
      %v2178 = vsel %vm717, %v2170, %v2177
      %v2179 = vrot.slane %v2174, 4
      %v2181 = vshrl.u32 %v1911, 16
      %v2183 = vrot.slane %v2181, 7
      %v2184 = vshll.u32 %v1911, 16
      %v2186 = vor.u32 %v2183, %v2184
      %v2187 = vsel %vm717, %v2179, %v2186
      %v2189 = vshrl.u32 %v1912, 16
      %v2191 = vrot.slane %v2189, 7
      %v2192 = vrot.slane %v2191, 4
      %v2194 = vshrl.u32 %v1913, 16
      %v2196 = vrot.slane %v2194, 7
      %v2197 = vshll.u32 %v1913, 16
      %v2199 = vor.u32 %v2196, %v2197
      %v2200 = vsel %vm717, %v2192, %v2199
      %v2201 = vrot.slane %v2196, 4
      %v2203 = vshrl.u32 %v1914, 16
      %v2205 = vrot.slane %v2203, 7
      %v2206 = vshll.u32 %v1914, 16
      %v2208 = vor.u32 %v2205, %v2206
      %v2209 = vsel %vm717, %v2201, %v2208
      %v2211 = vshrl.u32 %v1915, 16
      %v2213 = vrot.slane %v2211, 7
      %v2214 = vrot.slane %v2213, 4
      %v2216 = vshrl.u32 %v1916, 16
      %v2218 = vrot.slane %v2216, 7
      %v2219 = vshll.u32 %v1916, 16
      %v2221 = vor.u32 %v2218, %v2219
      %v2222 = vsel %vm717, %v2214, %v2221
      %v2223 = vrot.slane %v2218, 4
      %v2225 = vshrl.u32 %v1917, 16
      %v2227 = vrot.slane %v2225, 7
      %v2228 = vshll.u32 %v1917, 16
      %v2230 = vor.u32 %v2227, %v2228
      %v2231 = vsel %vm717, %v2223, %v2230
      %v2233 = vshrl.u32 %v1918, 16
      %v2235 = vrot.slane %v2233, 7
      %v2236 = vrot.slane %v2235, 4
      %v2238 = vshrl.u32 %v1919, 16
      %v2240 = vrot.slane %v2238, 7
      %v2241 = vshll.u32 %v1919, 16
      %v2243 = vor.u32 %v2240, %v2241
      %v2244 = vsel %vm717, %v2236, %v2243
      %v2245 = vrot.slane %v2240, 4
      %v2247 = vshrl.u32 %v1920, 16
      %v2249 = vrot.slane %v2247, 7
      %v2250 = vshll.u32 %v1920, 16
      %v2252 = vor.u32 %v2249, %v2250
      %v2253 = vsel %vm717, %v2245, %v2252
      %v2255 = vshrl.u32 %v1921, 16
      %v2257 = vrot.slane %v2255, 7
      %v2258 = vrot.slane %v2257, 4
      %v2260 = vshrl.u32 %v1922, 16
      %v2262 = vrot.slane %v2260, 7
      %v2263 = vshll.u32 %v1922, 16
      %v2265 = vor.u32 %v2262, %v2263
      %v2266 = vsel %vm717, %v2258, %v2265
      %v2267 = vrot.slane %v2262, 4
      %v2269 = vshrl.u32 %v1923, 16
      %v2271 = vrot.slane %v2269, 7
      %v2272 = vshll.u32 %v1923, 16
      %v2274 = vor.u32 %v2271, %v2272
      %v2275 = vsel %vm717, %v2267, %v2274
      %v2276 = vunpack.c.l.b16 %v1936
      %v2277 = vunpack.c.l.b16 %v1945
      %v2278 = vunpack.c.l.b16 %v1958
      %v2279 = vunpack.c.l.b16 %v1967
      %v2280 = vunpack.c.l.b16 %v1980
      %v2281 = vunpack.c.l.b16 %v1989
      %v2282 = vunpack.c.l.b16 %v2002
      %v2283 = vunpack.c.l.b16 %v2011
      %v2284 = vunpack.c.l.b16 %v2024
      %v2285 = vunpack.c.l.b16 %v2033
      %v2286 = vunpack.c.l.b16 %v2046
      %v2287 = vunpack.c.l.b16 %v2055
      %v2288 = vunpack.c.l.b16 %v2068
      %v2289 = vunpack.c.l.b16 %v2077
      %v2290 = vunpack.c.l.b16 %v2090
      %v2291 = vunpack.c.l.b16 %v2099
      %v2292 = vunpack.c.l.b16 %v2112
      %v2293 = vunpack.c.l.b16 %v2121
      %v2294 = vunpack.c.l.b16 %v2134
      %v2295 = vunpack.c.l.b16 %v2143
      %v2296 = vunpack.c.l.b16 %v2156
      %v2297 = vunpack.c.l.b16 %v2165
      %v2298 = vunpack.c.l.b16 %v2178
      %v2299 = vunpack.c.l.b16 %v2187
      %v2300 = vunpack.c.l.b16 %v2200
      %v2301 = vunpack.c.l.b16 %v2209
      %v2302 = vunpack.c.l.b16 %v2222
      %v2303 = vunpack.c.l.b16 %v2231
      %v2304 = vunpack.c.l.b16 %v2244
      %v2305 = vunpack.c.l.b16 %v2253
      %v2306 = vunpack.c.l.b16 %v2266
      %v2307 = vunpack.c.l.b16 %v2275
      %v2308 = vpack.c.b16 %v2277, %v2276
      %v2309 = vpack.c.b16 %v2279, %v2278
      %v2310 = vpack.c.b16 %v2281, %v2280
      %v2311 = vpack.c.b16 %v2283, %v2282
      %v2312 = vpack.c.b16 %v2285, %v2284
      %v2313 = vpack.c.b16 %v2287, %v2286
      %v2314 = vpack.c.b16 %v2289, %v2288
      %v2315 = vpack.c.b16 %v2291, %v2290
      %v2316 = vpack.c.b16 %v2293, %v2292
      %v2317 = vpack.c.b16 %v2295, %v2294
      %v2318 = vpack.c.b16 %v2297, %v2296
      %v2319 = vpack.c.b16 %v2299, %v2298
      %v2320 = vpack.c.b16 %v2301, %v2300
      %v2321 = vpack.c.b16 %v2303, %v2302
      %v2322 = vpack.c.b16 %v2305, %v2304
      %v2323 = vpack.c.b16 %v2307, %v2306
      %2324 = vrot.lane.b32.xlu0 %v2308, 12
      %v2325 = vpop.permute.xlu0 %2324
      %2326 = vrot.lane.b32.xlu0 %v2309, 12
      %v2327 = vpop.permute.xlu0 %2326
      %2328 = vrot.lane.b32.xlu0 %v2310, 12
      %v2329 = vpop.permute.xlu0 %2328
      %2330 = vrot.lane.b32.xlu0 %v2311, 12
      %v2331 = vpop.permute.xlu0 %2330
      %2332 = vrot.lane.b32.xlu0 %v2312, 12
      %v2333 = vpop.permute.xlu0 %2332
      %2334 = vrot.lane.b32.xlu0 %v2313, 12
      %v2335 = vpop.permute.xlu0 %2334
      %2336 = vrot.lane.b32.xlu0 %v2314, 12
      %v2337 = vpop.permute.xlu0 %2336
      %2338 = vrot.lane.b32.xlu0 %v2315, 12
      %v2339 = vpop.permute.xlu0 %2338
      %2340 = vrot.lane.b32.xlu0 %v2316, 12
      %v2341 = vpop.permute.xlu0 %2340
      %2342 = vrot.lane.b32.xlu0 %v2317, 12
      %v2343 = vpop.permute.xlu0 %2342
      %2344 = vrot.lane.b32.xlu0 %v2318, 12
      %v2345 = vpop.permute.xlu0 %2344
      %2346 = vrot.lane.b32.xlu0 %v2319, 12
      %v2347 = vpop.permute.xlu0 %2346
      %2348 = vrot.lane.b32.xlu0 %v2320, 12
      %v2349 = vpop.permute.xlu0 %2348
      %2350 = vrot.lane.b32.xlu0 %v2321, 12
      %v2351 = vpop.permute.xlu0 %2350
      %2352 = vrot.lane.b32.xlu0 %v2322, 12
      %v2353 = vpop.permute.xlu0 %2352
      %2354 = vrot.lane.b32.xlu0 %v2323, 12
      %v2355 = vpop.permute.xlu0 %2354
      %vm2372 = vcmask 130144
      %2373 = vst.msk [vmem:[#allocation4] sm:$0xff] %vm2372, %v2325
      %2374 = vst.msk [vmem:[#allocation4 + $0x8] sm:$0xff] %vm2372, %v2327
      %2375 = vst.msk [vmem:[#allocation4 + $0x10] sm:$0xff] %vm2372, %v2329
      %2376 = vst.msk [vmem:[#allocation4 + $0x18] sm:$0xff] %vm2372, %v2331
      %2377 = vst.msk [vmem:[#allocation4 + $0x20] sm:$0xff] %vm2372, %v2333
      %2378 = vst.msk [vmem:[#allocation4 + $0x28] sm:$0xff] %vm2372, %v2335
      %2379 = vst.msk [vmem:[#allocation4 + $0x30] sm:$0xff] %vm2372, %v2337
      %2380 = vst.msk [vmem:[#allocation4 + $0x38] sm:$0xff] %vm2372, %v2339
      %2381 = vst.msk [vmem:[#allocation4 + $0x40] sm:$0xff] %vm2372, %v2341
      %2382 = vst.msk [vmem:[#allocation4 + $0x48] sm:$0xff] %vm2372, %v2343
      %2383 = vst.msk [vmem:[#allocation4 + $0x50] sm:$0xff] %vm2372, %v2345
      %2384 = vst.msk [vmem:[#allocation4 + $0x58] sm:$0xff] %vm2372, %v2347
      %2385 = vst.msk [vmem:[#allocation4 + $0x60] sm:$0xff] %vm2372, %v2349
      %2386 = vst.msk [vmem:[#allocation4 + $0x68] sm:$0xff] %vm2372, %v2351
      %2387 = vst.msk [vmem:[#allocation4 + $0x70] sm:$0xff] %vm2372, %v2353
      %2388 = vst.msk [vmem:[#allocation4 + $0x78] sm:$0xff] %vm2372, %v2355
      %v2389 = vld [vmem:[%s635 + $0x4] sm:$0xf]
      %v2390 = vld [vmem:[%s635 + $0x8] sm:$0xf]
      %v2391 = vld [vmem:[%s635 + $0x14] sm:$0xf]
      %v2392 = vld [vmem:[%s635 + $0x18] sm:$0xf]
      %v2393 = vld [vmem:[%s635 + $0x24] sm:$0xf]
      %v2394 = vld [vmem:[%s635 + $0x28] sm:$0xf]
      %v2395 = vld [vmem:[%s635 + $0x34] sm:$0xf]
      %v2396 = vld [vmem:[%s635 + $0x38] sm:$0xf]
      %v2397 = vld [vmem:[%s635 + $0x44] sm:$0xf]
      %v2398 = vld [vmem:[%s635 + $0x48] sm:$0xf]
      %v2399 = vld [vmem:[%s635 + $0x54] sm:$0xf]
      %v2400 = vld [vmem:[%s635 + $0x58] sm:$0xf]
      %v2401 = vld [vmem:[%s635 + $0x64] sm:$0xf]
      %v2402 = vld [vmem:[%s635 + $0x68] sm:$0xf]
      %v2403 = vld [vmem:[%s635 + $0x74] sm:$0xf]
      %v2404 = vld [vmem:[%s635 + $0x78] sm:$0xf]
      %v2405 = vld [vmem:[%s635 + $0x84] sm:$0xf]
      %v2406 = vld [vmem:[%s635 + $0x88] sm:$0xf]
      %v2407 = vld [vmem:[%s635 + $0x94] sm:$0xf]
      %v2408 = vld [vmem:[%s635 + $0x98] sm:$0xf]
      %v2409 = vld [vmem:[%s635 + $0xa4] sm:$0xf]
      %v2410 = vld [vmem:[%s635 + $0xa8] sm:$0xf]
      %v2411 = vld [vmem:[%s635 + $0xb4] sm:$0xf]
      %v2412 = vld [vmem:[%s635 + $0xb8] sm:$0xf]
      %v2413 = vld [vmem:[%s635 + $0xc4] sm:$0xf]
      %v2414 = vld [vmem:[%s635 + $0xc8] sm:$0xf]
      %v2415 = vld [vmem:[%s635 + $0xd4] sm:$0xf]
      %v2416 = vld [vmem:[%s635 + $0xd8] sm:$0xf]
      %v2417 = vld [vmem:[%s635 + $0xe4] sm:$0xf]
      %v2418 = vld [vmem:[%s635 + $0xe8] sm:$0xf]
      %v2419 = vld [vmem:[%s635 + $0xf4] sm:$0xf]
      %v2420 = vld [vmem:[%s635 + $0xf8] sm:$0xf]
      %v2453 = vunpack.c.l.b16 %v2389
      %v2454 = vunpack.c.l.b16 %v2390
      %v2455 = vunpack.c.l.b16 %v2391
      %v2456 = vunpack.c.l.b16 %v2392
      %v2457 = vunpack.c.l.b16 %v2393
      %v2458 = vunpack.c.l.b16 %v2394
      %v2459 = vunpack.c.l.b16 %v2395
      %v2460 = vunpack.c.l.b16 %v2396
      %v2461 = vunpack.c.l.b16 %v2397
      %v2462 = vunpack.c.l.b16 %v2398
      %v2463 = vunpack.c.l.b16 %v2399
      %v2464 = vunpack.c.l.b16 %v2400
      %v2465 = vunpack.c.l.b16 %v2401
      %v2466 = vunpack.c.l.b16 %v2402
      %v2467 = vunpack.c.l.b16 %v2403
      %v2468 = vunpack.c.l.b16 %v2404
      %v2469 = vunpack.c.l.b16 %v2405
      %v2470 = vunpack.c.l.b16 %v2406
      %v2471 = vunpack.c.l.b16 %v2407
      %v2472 = vunpack.c.l.b16 %v2408
      %v2473 = vunpack.c.l.b16 %v2409
      %v2474 = vunpack.c.l.b16 %v2410
      %v2475 = vunpack.c.l.b16 %v2411
      %v2476 = vunpack.c.l.b16 %v2412
      %v2477 = vunpack.c.l.b16 %v2413
      %v2478 = vunpack.c.l.b16 %v2414
      %v2479 = vunpack.c.l.b16 %v2415
      %v2480 = vunpack.c.l.b16 %v2416
      %v2481 = vunpack.c.l.b16 %v2417
      %v2482 = vunpack.c.l.b16 %v2418
      %v2483 = vunpack.c.l.b16 %v2419
      %v2484 = vunpack.c.l.b16 %v2420
      %v2485 = vpack.c.b16 %v2454, %v2453
      %v2486 = vpack.c.b16 %v2456, %v2455
      %v2487 = vpack.c.b16 %v2458, %v2457
      %v2488 = vpack.c.b16 %v2460, %v2459
      %v2489 = vpack.c.b16 %v2462, %v2461
      %v2490 = vpack.c.b16 %v2464, %v2463
      %v2491 = vpack.c.b16 %v2466, %v2465
      %v2492 = vpack.c.b16 %v2468, %v2467
      %v2493 = vpack.c.b16 %v2470, %v2469
      %v2494 = vpack.c.b16 %v2472, %v2471
      %v2495 = vpack.c.b16 %v2474, %v2473
      %v2496 = vpack.c.b16 %v2476, %v2475
      %v2497 = vpack.c.b16 %v2478, %v2477
      %v2498 = vpack.c.b16 %v2480, %v2479
      %v2499 = vpack.c.b16 %v2482, %v2481
      %v2500 = vpack.c.b16 %v2484, %v2483
      %2501 = vrot.lane.b32.xlu0 %v2485, 16
      %v2502 = vpop.permute.xlu0 %2501
      %2503 = vrot.lane.b32.xlu0 %v2486, 16
      %v2504 = vpop.permute.xlu0 %2503
      %2505 = vrot.lane.b32.xlu0 %v2487, 16
      %v2506 = vpop.permute.xlu0 %2505
      %2507 = vrot.lane.b32.xlu0 %v2488, 16
      %v2508 = vpop.permute.xlu0 %2507
      %2509 = vrot.lane.b32.xlu0 %v2489, 16
      %v2510 = vpop.permute.xlu0 %2509
      %2511 = vrot.lane.b32.xlu0 %v2490, 16
      %v2512 = vpop.permute.xlu0 %2511
      %2513 = vrot.lane.b32.xlu0 %v2491, 16
      %v2514 = vpop.permute.xlu0 %2513
      %2515 = vrot.lane.b32.xlu0 %v2492, 16
      %v2516 = vpop.permute.xlu0 %2515
      %2517 = vrot.lane.b32.xlu0 %v2493, 16
      %v2518 = vpop.permute.xlu0 %2517
      %2519 = vrot.lane.b32.xlu0 %v2494, 16
      %v2520 = vpop.permute.xlu0 %2519
      %2521 = vrot.lane.b32.xlu0 %v2495, 16
      %v2522 = vpop.permute.xlu0 %2521
      %2523 = vrot.lane.b32.xlu0 %v2496, 16
      %v2524 = vpop.permute.xlu0 %2523
      %2525 = vrot.lane.b32.xlu0 %v2497, 16
      %v2526 = vpop.permute.xlu0 %2525
      %2527 = vrot.lane.b32.xlu0 %v2498, 16
      %v2528 = vpop.permute.xlu0 %2527
      %2529 = vrot.lane.b32.xlu0 %v2499, 16
      %v2530 = vpop.permute.xlu0 %2529
      %2531 = vrot.lane.b32.xlu0 %v2500, 16
      %v2532 = vpop.permute.xlu0 %2531
      %vm2549 = vcmask 162944
      %2550 = vst.msk [vmem:[#allocation4] sm:$0xff] %vm2549, %v2502
      %2551 = vst.msk [vmem:[#allocation4 + $0x8] sm:$0xff] %vm2549, %v2504
      %2552 = vst.msk [vmem:[#allocation4 + $0x10] sm:$0xff] %vm2549, %v2506
      %2553 = vst.msk [vmem:[#allocation4 + $0x18] sm:$0xff] %vm2549, %v2508
      %2554 = vst.msk [vmem:[#allocation4 + $0x20] sm:$0xff] %vm2549, %v2510
      %2555 = vst.msk [vmem:[#allocation4 + $0x28] sm:$0xff] %vm2549, %v2512
      %2556 = vst.msk [vmem:[#allocation4 + $0x30] sm:$0xff] %vm2549, %v2514
      %2557 = vst.msk [vmem:[#allocation4 + $0x38] sm:$0xff] %vm2549, %v2516
      %2558 = vst.msk [vmem:[#allocation4 + $0x40] sm:$0xff] %vm2549, %v2518
      %2559 = vst.msk [vmem:[#allocation4 + $0x48] sm:$0xff] %vm2549, %v2520
      %2560 = vst.msk [vmem:[#allocation4 + $0x50] sm:$0xff] %vm2549, %v2522
      %2561 = vst.msk [vmem:[#allocation4 + $0x58] sm:$0xff] %vm2549, %v2524
      %2562 = vst.msk [vmem:[#allocation4 + $0x60] sm:$0xff] %vm2549, %v2526
      %2563 = vst.msk [vmem:[#allocation4 + $0x68] sm:$0xff] %vm2549, %v2528
      %2564 = vst.msk [vmem:[#allocation4 + $0x70] sm:$0xff] %vm2549, %v2530
      %2565 = vst.msk [vmem:[#allocation4 + $0x78] sm:$0xff] %vm2549, %v2532
      %v2566 = vld [vmem:[%s635 + $0x4] sm:$0xf]
      %v2567 = vld [vmem:[%s635 + $0x8] sm:$0xf]
      %v2568 = vld [vmem:[%s635 + $0xc] sm:$0x1]
      %v2569 = vld [vmem:[%s635 + $0x14] sm:$0xf]
      %v2570 = vld [vmem:[%s635 + $0x18] sm:$0xf]
      %v2571 = vld [vmem:[%s635 + $0x1c] sm:$0x1]
      %v2572 = vld [vmem:[%s635 + $0x24] sm:$0xf]
      %v2573 = vld [vmem:[%s635 + $0x28] sm:$0xf]
      %v2574 = vld [vmem:[%s635 + $0x2c] sm:$0x1]
      %v2575 = vld [vmem:[%s635 + $0x34] sm:$0xf]
      %v2576 = vld [vmem:[%s635 + $0x38] sm:$0xf]
      %v2577 = vld [vmem:[%s635 + $0x3c] sm:$0x1]
      %v2578 = vld [vmem:[%s635 + $0x44] sm:$0xf]
      %v2579 = vld [vmem:[%s635 + $0x48] sm:$0xf]
      %v2580 = vld [vmem:[%s635 + $0x4c] sm:$0x1]
      %v2581 = vld [vmem:[%s635 + $0x54] sm:$0xf]
      %v2582 = vld [vmem:[%s635 + $0x58] sm:$0xf]
      %v2583 = vld [vmem:[%s635 + $0x5c] sm:$0x1]
      %v2584 = vld [vmem:[%s635 + $0x64] sm:$0xf]
      %v2585 = vld [vmem:[%s635 + $0x68] sm:$0xf]
      %v2586 = vld [vmem:[%s635 + $0x6c] sm:$0x1]
      %v2587 = vld [vmem:[%s635 + $0x74] sm:$0xf]
      %v2588 = vld [vmem:[%s635 + $0x78] sm:$0xf]
      %v2589 = vld [vmem:[%s635 + $0x7c] sm:$0x1]
      %v2590 = vld [vmem:[%s635 + $0x84] sm:$0xf]
      %v2591 = vld [vmem:[%s635 + $0x88] sm:$0xf]
      %v2592 = vld [vmem:[%s635 + $0x8c] sm:$0x1]
      %v2593 = vld [vmem:[%s635 + $0x94] sm:$0xf]
      %v2594 = vld [vmem:[%s635 + $0x98] sm:$0xf]
      %v2595 = vld [vmem:[%s635 + $0x9c] sm:$0x1]
      %v2596 = vld [vmem:[%s635 + $0xa4] sm:$0xf]
      %v2597 = vld [vmem:[%s635 + $0xa8] sm:$0xf]
      %v2598 = vld [vmem:[%s635 + $0xac] sm:$0x1]
      %v2599 = vld [vmem:[%s635 + $0xb4] sm:$0xf]
      %v2600 = vld [vmem:[%s635 + $0xb8] sm:$0xf]
      %v2601 = vld [vmem:[%s635 + $0xbc] sm:$0x1]
      %v2602 = vld [vmem:[%s635 + $0xc4] sm:$0xf]
      %v2603 = vld [vmem:[%s635 + $0xc8] sm:$0xf]
      %v2604 = vld [vmem:[%s635 + $0xcc] sm:$0x1]
      %v2605 = vld [vmem:[%s635 + $0xd4] sm:$0xf]
      %v2606 = vld [vmem:[%s635 + $0xd8] sm:$0xf]
      %v2607 = vld [vmem:[%s635 + $0xdc] sm:$0x1]
      %v2608 = vld [vmem:[%s635 + $0xe4] sm:$0xf]
      %v2609 = vld [vmem:[%s635 + $0xe8] sm:$0xf]
      %v2610 = vld [vmem:[%s635 + $0xec] sm:$0x1]
      %v2611 = vld [vmem:[%s635 + $0xf4] sm:$0xf]
      %v2612 = vld [vmem:[%s635 + $0xf8] sm:$0xf]
      %v2613 = vld [vmem:[%s635 + $0xfc] sm:$0x1]
      %v2615 = vshrl.u32 %v2566, 16
      %v2617 = vrot.slane %v2615, 4
      %v2618 = vshll.u32 %v2566, 16
      %v2620 = vrot.slane %v2618, 5
      %v2621 = vor.u32 %v2617, %v2620
      %v2622 = vrot.slane %v2621, 4
      %v2624 = vshll.u32 %v2567, 16
      %v2626 = vrot.slane %v2624, 5
      %v2627 = vsel %vm1378, %v2622, %v2626
      %v2628 = vshrl.u32 %v2567, 16
      %v2630 = vrot.slane %v2628, 4
      %v2631 = vor.u32 %v2630, %v2626
      %v2632 = vrot.slane %v2631, 4
      %v2634 = vshll.u32 %v2568, 16
      %v2636 = vrot.slane %v2634, 5
      %v2637 = vsel %vm1378, %v2632, %v2636
      %v2639 = vshrl.u32 %v2569, 16
      %v2641 = vrot.slane %v2639, 4
      %v2642 = vshll.u32 %v2569, 16
      %v2644 = vrot.slane %v2642, 5
      %v2645 = vor.u32 %v2641, %v2644
      %v2646 = vrot.slane %v2645, 4
      %v2648 = vshll.u32 %v2570, 16
      %v2650 = vrot.slane %v2648, 5
      %v2651 = vsel %vm1378, %v2646, %v2650
      %v2652 = vshrl.u32 %v2570, 16
      %v2654 = vrot.slane %v2652, 4
      %v2655 = vor.u32 %v2654, %v2650
      %v2656 = vrot.slane %v2655, 4
      %v2658 = vshll.u32 %v2571, 16
      %v2660 = vrot.slane %v2658, 5
      %v2661 = vsel %vm1378, %v2656, %v2660
      %v2663 = vshrl.u32 %v2572, 16
      %v2665 = vrot.slane %v2663, 4
      %v2666 = vshll.u32 %v2572, 16
      %v2668 = vrot.slane %v2666, 5
      %v2669 = vor.u32 %v2665, %v2668
      %v2670 = vrot.slane %v2669, 4
      %v2672 = vshll.u32 %v2573, 16
      %v2674 = vrot.slane %v2672, 5
      %v2675 = vsel %vm1378, %v2670, %v2674
      %v2676 = vshrl.u32 %v2573, 16
      %v2678 = vrot.slane %v2676, 4
      %v2679 = vor.u32 %v2678, %v2674
      %v2680 = vrot.slane %v2679, 4
      %v2682 = vshll.u32 %v2574, 16
      %v2684 = vrot.slane %v2682, 5
      %v2685 = vsel %vm1378, %v2680, %v2684
      %v2687 = vshrl.u32 %v2575, 16
      %v2689 = vrot.slane %v2687, 4
      %v2690 = vshll.u32 %v2575, 16
      %v2692 = vrot.slane %v2690, 5
      %v2693 = vor.u32 %v2689, %v2692
      %v2694 = vrot.slane %v2693, 4
      %v2696 = vshll.u32 %v2576, 16
      %v2698 = vrot.slane %v2696, 5
      %v2699 = vsel %vm1378, %v2694, %v2698
      %v2700 = vshrl.u32 %v2576, 16
      %v2702 = vrot.slane %v2700, 4
      %v2703 = vor.u32 %v2702, %v2698
      %v2704 = vrot.slane %v2703, 4
      %v2706 = vshll.u32 %v2577, 16
      %v2708 = vrot.slane %v2706, 5
      %v2709 = vsel %vm1378, %v2704, %v2708
      %v2711 = vshrl.u32 %v2578, 16
      %v2713 = vrot.slane %v2711, 4
      %v2714 = vshll.u32 %v2578, 16
      %v2716 = vrot.slane %v2714, 5
      %v2717 = vor.u32 %v2713, %v2716
      %v2718 = vrot.slane %v2717, 4
      %v2720 = vshll.u32 %v2579, 16
      %v2722 = vrot.slane %v2720, 5
      %v2723 = vsel %vm1378, %v2718, %v2722
      %v2724 = vshrl.u32 %v2579, 16
      %v2726 = vrot.slane %v2724, 4
      %v2727 = vor.u32 %v2726, %v2722
      %v2728 = vrot.slane %v2727, 4
      %v2730 = vshll.u32 %v2580, 16
      %v2732 = vrot.slane %v2730, 5
      %v2733 = vsel %vm1378, %v2728, %v2732
      %v2735 = vshrl.u32 %v2581, 16
      %v2737 = vrot.slane %v2735, 4
      %v2738 = vshll.u32 %v2581, 16
      %v2740 = vrot.slane %v2738, 5
      %v2741 = vor.u32 %v2737, %v2740
      %v2742 = vrot.slane %v2741, 4
      %v2744 = vshll.u32 %v2582, 16
      %v2746 = vrot.slane %v2744, 5
      %v2747 = vsel %vm1378, %v2742, %v2746
      %v2748 = vshrl.u32 %v2582, 16
      %v2750 = vrot.slane %v2748, 4
      %v2751 = vor.u32 %v2750, %v2746
      %v2752 = vrot.slane %v2751, 4
      %v2754 = vshll.u32 %v2583, 16
      %v2756 = vrot.slane %v2754, 5
      %v2757 = vsel %vm1378, %v2752, %v2756
      %v2759 = vshrl.u32 %v2584, 16
      %v2761 = vrot.slane %v2759, 4
      %v2762 = vshll.u32 %v2584, 16
      %v2764 = vrot.slane %v2762, 5
      %v2765 = vor.u32 %v2761, %v2764
      %v2766 = vrot.slane %v2765, 4
      %v2768 = vshll.u32 %v2585, 16
      %v2770 = vrot.slane %v2768, 5
      %v2771 = vsel %vm1378, %v2766, %v2770
      %v2772 = vshrl.u32 %v2585, 16
      %v2774 = vrot.slane %v2772, 4
      %v2775 = vor.u32 %v2774, %v2770
      %v2776 = vrot.slane %v2775, 4
      %v2778 = vshll.u32 %v2586, 16
      %v2780 = vrot.slane %v2778, 5
      %v2781 = vsel %vm1378, %v2776, %v2780
      %v2783 = vshrl.u32 %v2587, 16
      %v2785 = vrot.slane %v2783, 4
      %v2786 = vshll.u32 %v2587, 16
      %v2788 = vrot.slane %v2786, 5
      %v2789 = vor.u32 %v2785, %v2788
      %v2790 = vrot.slane %v2789, 4
      %v2792 = vshll.u32 %v2588, 16
      %v2794 = vrot.slane %v2792, 5
      %v2795 = vsel %vm1378, %v2790, %v2794
      %v2796 = vshrl.u32 %v2588, 16
      %v2798 = vrot.slane %v2796, 4
      %v2799 = vor.u32 %v2798, %v2794
      %v2800 = vrot.slane %v2799, 4
      %v2802 = vshll.u32 %v2589, 16
      %v2804 = vrot.slane %v2802, 5
      %v2805 = vsel %vm1378, %v2800, %v2804
      %v2807 = vshrl.u32 %v2590, 16
      %v2809 = vrot.slane %v2807, 4
      %v2810 = vshll.u32 %v2590, 16
      %v2812 = vrot.slane %v2810, 5
      %v2813 = vor.u32 %v2809, %v2812
      %v2814 = vrot.slane %v2813, 4
      %v2816 = vshll.u32 %v2591, 16
      %v2818 = vrot.slane %v2816, 5
      %v2819 = vsel %vm1378, %v2814, %v2818
      %v2820 = vshrl.u32 %v2591, 16
      %v2822 = vrot.slane %v2820, 4
      %v2823 = vor.u32 %v2822, %v2818
      %v2824 = vrot.slane %v2823, 4
      %v2826 = vshll.u32 %v2592, 16
      %v2828 = vrot.slane %v2826, 5
      %v2829 = vsel %vm1378, %v2824, %v2828
      %v2831 = vshrl.u32 %v2593, 16
      %v2833 = vrot.slane %v2831, 4
      %v2834 = vshll.u32 %v2593, 16
      %v2836 = vrot.slane %v2834, 5
      %v2837 = vor.u32 %v2833, %v2836
      %v2838 = vrot.slane %v2837, 4
      %v2840 = vshll.u32 %v2594, 16
      %v2842 = vrot.slane %v2840, 5
      %v2843 = vsel %vm1378, %v2838, %v2842
      %v2844 = vshrl.u32 %v2594, 16
      %v2846 = vrot.slane %v2844, 4
      %v2847 = vor.u32 %v2846, %v2842
      %v2848 = vrot.slane %v2847, 4
      %v2850 = vshll.u32 %v2595, 16
      %v2852 = vrot.slane %v2850, 5
      %v2853 = vsel %vm1378, %v2848, %v2852
      %v2855 = vshrl.u32 %v2596, 16
      %v2857 = vrot.slane %v2855, 4
      %v2858 = vshll.u32 %v2596, 16
      %v2860 = vrot.slane %v2858, 5
      %v2861 = vor.u32 %v2857, %v2860
      %v2862 = vrot.slane %v2861, 4
      %v2864 = vshll.u32 %v2597, 16
      %v2866 = vrot.slane %v2864, 5
      %v2867 = vsel %vm1378, %v2862, %v2866
      %v2868 = vshrl.u32 %v2597, 16
      %v2870 = vrot.slane %v2868, 4
      %v2871 = vor.u32 %v2870, %v2866
      %v2872 = vrot.slane %v2871, 4
      %v2874 = vshll.u32 %v2598, 16
      %v2876 = vrot.slane %v2874, 5
      %v2877 = vsel %vm1378, %v2872, %v2876
      %v2879 = vshrl.u32 %v2599, 16
      %v2881 = vrot.slane %v2879, 4
      %v2882 = vshll.u32 %v2599, 16
      %v2884 = vrot.slane %v2882, 5
      %v2885 = vor.u32 %v2881, %v2884
      %v2886 = vrot.slane %v2885, 4
      %v2888 = vshll.u32 %v2600, 16
      %v2890 = vrot.slane %v2888, 5
      %v2891 = vsel %vm1378, %v2886, %v2890
      %v2892 = vshrl.u32 %v2600, 16
      %v2894 = vrot.slane %v2892, 4
      %v2895 = vor.u32 %v2894, %v2890
      %v2896 = vrot.slane %v2895, 4
      %v2898 = vshll.u32 %v2601, 16
      %v2900 = vrot.slane %v2898, 5
      %v2901 = vsel %vm1378, %v2896, %v2900
      %v2903 = vshrl.u32 %v2602, 16
      %v2905 = vrot.slane %v2903, 4
      %v2906 = vshll.u32 %v2602, 16
      %v2908 = vrot.slane %v2906, 5
      %v2909 = vor.u32 %v2905, %v2908
      %v2910 = vrot.slane %v2909, 4
      %v2912 = vshll.u32 %v2603, 16
      %v2914 = vrot.slane %v2912, 5
      %v2915 = vsel %vm1378, %v2910, %v2914
      %v2916 = vshrl.u32 %v2603, 16
      %v2918 = vrot.slane %v2916, 4
      %v2919 = vor.u32 %v2918, %v2914
      %v2920 = vrot.slane %v2919, 4
      %v2922 = vshll.u32 %v2604, 16
      %v2924 = vrot.slane %v2922, 5
      %v2925 = vsel %vm1378, %v2920, %v2924
      %v2927 = vshrl.u32 %v2605, 16
      %v2929 = vrot.slane %v2927, 4
      %v2930 = vshll.u32 %v2605, 16
      %v2932 = vrot.slane %v2930, 5
      %v2933 = vor.u32 %v2929, %v2932
      %v2934 = vrot.slane %v2933, 4
      %v2936 = vshll.u32 %v2606, 16
      %v2938 = vrot.slane %v2936, 5
      %v2939 = vsel %vm1378, %v2934, %v2938
      %v2940 = vshrl.u32 %v2606, 16
      %v2942 = vrot.slane %v2940, 4
      %v2943 = vor.u32 %v2942, %v2938
      %v2944 = vrot.slane %v2943, 4
      %v2946 = vshll.u32 %v2607, 16
      %v2948 = vrot.slane %v2946, 5
      %v2949 = vsel %vm1378, %v2944, %v2948
      %v2951 = vshrl.u32 %v2608, 16
      %v2953 = vrot.slane %v2951, 4
      %v2954 = vshll.u32 %v2608, 16
      %v2956 = vrot.slane %v2954, 5
      %v2957 = vor.u32 %v2953, %v2956
      %v2958 = vrot.slane %v2957, 4
      %v2960 = vshll.u32 %v2609, 16
      %v2962 = vrot.slane %v2960, 5
      %v2963 = vsel %vm1378, %v2958, %v2962
      %v2964 = vshrl.u32 %v2609, 16
      %v2966 = vrot.slane %v2964, 4
      %v2967 = vor.u32 %v2966, %v2962
      %v2968 = vrot.slane %v2967, 4
      %v2970 = vshll.u32 %v2610, 16
      %v2972 = vrot.slane %v2970, 5
      %v2973 = vsel %vm1378, %v2968, %v2972
      %v2975 = vshrl.u32 %v2611, 16
      %v2977 = vrot.slane %v2975, 4
      %v2978 = vshll.u32 %v2611, 16
      %v2980 = vrot.slane %v2978, 5
      %v2981 = vor.u32 %v2977, %v2980
      %v2982 = vrot.slane %v2981, 4
      %v2984 = vshll.u32 %v2612, 16
      %v2986 = vrot.slane %v2984, 5
      %v2987 = vsel %vm1378, %v2982, %v2986
      %v2988 = vshrl.u32 %v2612, 16
      %v2990 = vrot.slane %v2988, 4
      %v2991 = vor.u32 %v2990, %v2986
      %v2992 = vrot.slane %v2991, 4
      %v2994 = vshll.u32 %v2613, 16
      %v2996 = vrot.slane %v2994, 5
      %v2997 = vsel %vm1378, %v2992, %v2996
      %v2998 = vunpack.c.l.b16 %v2627
      %v2999 = vunpack.c.l.b16 %v2637
      %v3000 = vunpack.c.l.b16 %v2651
      %v3001 = vunpack.c.l.b16 %v2661
      %v3002 = vunpack.c.l.b16 %v2675
      %v3003 = vunpack.c.l.b16 %v2685
      %v3004 = vunpack.c.l.b16 %v2699
      %v3005 = vunpack.c.l.b16 %v2709
      %v3006 = vunpack.c.l.b16 %v2723
      %v3007 = vunpack.c.l.b16 %v2733
      %v3008 = vunpack.c.l.b16 %v2747
      %v3009 = vunpack.c.l.b16 %v2757
      %v3010 = vunpack.c.l.b16 %v2771
      %v3011 = vunpack.c.l.b16 %v2781
      %v3012 = vunpack.c.l.b16 %v2795
      %v3013 = vunpack.c.l.b16 %v2805
      %v3014 = vunpack.c.l.b16 %v2819
      %v3015 = vunpack.c.l.b16 %v2829
      %v3016 = vunpack.c.l.b16 %v2843
      %v3017 = vunpack.c.l.b16 %v2853
      %v3018 = vunpack.c.l.b16 %v2867
      %v3019 = vunpack.c.l.b16 %v2877
      %v3020 = vunpack.c.l.b16 %v2891
      %v3021 = vunpack.c.l.b16 %v2901
      %v3022 = vunpack.c.l.b16 %v2915
      %v3023 = vunpack.c.l.b16 %v2925
      %v3024 = vunpack.c.l.b16 %v2939
      %v3025 = vunpack.c.l.b16 %v2949
      %v3026 = vunpack.c.l.b16 %v2963
      %v3027 = vunpack.c.l.b16 %v2973
      %v3028 = vunpack.c.l.b16 %v2987
      %v3029 = vunpack.c.l.b16 %v2997
      %v3030 = vpack.c.b16 %v2999, %v2998
      %v3031 = vpack.c.b16 %v3001, %v3000
      %v3032 = vpack.c.b16 %v3003, %v3002
      %v3033 = vpack.c.b16 %v3005, %v3004
      %v3034 = vpack.c.b16 %v3007, %v3006
      %v3035 = vpack.c.b16 %v3009, %v3008
      %v3036 = vpack.c.b16 %v3011, %v3010
      %v3037 = vpack.c.b16 %v3013, %v3012
      %v3038 = vpack.c.b16 %v3015, %v3014
      %v3039 = vpack.c.b16 %v3017, %v3016
      %v3040 = vpack.c.b16 %v3019, %v3018
      %v3041 = vpack.c.b16 %v3021, %v3020
      %v3042 = vpack.c.b16 %v3023, %v3022
      %v3043 = vpack.c.b16 %v3025, %v3024
      %v3044 = vpack.c.b16 %v3027, %v3026
      %v3045 = vpack.c.b16 %v3029, %v3028
      %3046 = vrot.lane.b32.xlu0 %v3030, 20
      %v3047 = vpop.permute.xlu0 %3046
      %3048 = vrot.lane.b32.xlu0 %v3031, 20
      %v3049 = vpop.permute.xlu0 %3048
      %3050 = vrot.lane.b32.xlu0 %v3032, 20
      %v3051 = vpop.permute.xlu0 %3050
      %3052 = vrot.lane.b32.xlu0 %v3033, 20
      %v3053 = vpop.permute.xlu0 %3052
      %3054 = vrot.lane.b32.xlu0 %v3034, 20
      %v3055 = vpop.permute.xlu0 %3054
      %3056 = vrot.lane.b32.xlu0 %v3035, 20
      %v3057 = vpop.permute.xlu0 %3056
      %3058 = vrot.lane.b32.xlu0 %v3036, 20
      %v3059 = vpop.permute.xlu0 %3058
      %3060 = vrot.lane.b32.xlu0 %v3037, 20
      %v3061 = vpop.permute.xlu0 %3060
      %3062 = vrot.lane.b32.xlu0 %v3038, 20
      %v3063 = vpop.permute.xlu0 %3062
      %3064 = vrot.lane.b32.xlu0 %v3039, 20
      %v3065 = vpop.permute.xlu0 %3064
      %3066 = vrot.lane.b32.xlu0 %v3040, 20
      %v3067 = vpop.permute.xlu0 %3066
      %3068 = vrot.lane.b32.xlu0 %v3041, 20
      %v3069 = vpop.permute.xlu0 %3068
      %3070 = vrot.lane.b32.xlu0 %v3042, 20
      %v3071 = vpop.permute.xlu0 %3070
      %3072 = vrot.lane.b32.xlu0 %v3043, 20
      %v3073 = vpop.permute.xlu0 %3072
      %3074 = vrot.lane.b32.xlu0 %v3044, 20
      %v3075 = vpop.permute.xlu0 %3074
      %3076 = vrot.lane.b32.xlu0 %v3045, 20
      %v3077 = vpop.permute.xlu0 %3076
      %vm3094 = vcmask 195744
      %3095 = vst.msk [vmem:[#allocation4] sm:$0xff] %vm3094, %v3047
      %3096 = vst.msk [vmem:[#allocation4 + $0x8] sm:$0xff] %vm3094, %v3049
      %3097 = vst.msk [vmem:[#allocation4 + $0x10] sm:$0xff] %vm3094, %v3051
      %3098 = vst.msk [vmem:[#allocation4 + $0x18] sm:$0xff] %vm3094, %v3053
      %3099 = vst.msk [vmem:[#allocation4 + $0x20] sm:$0xff] %vm3094, %v3055
      %3100 = vst.msk [vmem:[#allocation4 + $0x28] sm:$0xff] %vm3094, %v3057
      %3101 = vst.msk [vmem:[#allocation4 + $0x30] sm:$0xff] %vm3094, %v3059
      %3102 = vst.msk [vmem:[#allocation4 + $0x38] sm:$0xff] %vm3094, %v3061
      %3103 = vst.msk [vmem:[#allocation4 + $0x40] sm:$0xff] %vm3094, %v3063
      %3104 = vst.msk [vmem:[#allocation4 + $0x48] sm:$0xff] %vm3094, %v3065
      %3105 = vst.msk [vmem:[#allocation4 + $0x50] sm:$0xff] %vm3094, %v3067
      %3106 = vst.msk [vmem:[#allocation4 + $0x58] sm:$0xff] %vm3094, %v3069
      %3107 = vst.msk [vmem:[#allocation4 + $0x60] sm:$0xff] %vm3094, %v3071
      %3108 = vst.msk [vmem:[#allocation4 + $0x68] sm:$0xff] %vm3094, %v3073
      %3109 = vst.msk [vmem:[#allocation4 + $0x70] sm:$0xff] %vm3094, %v3075
      %3110 = vst.msk [vmem:[#allocation4 + $0x78] sm:$0xff] %vm3094, %v3077
      %s3111 = scalar_lea.vmem [#allocation2], 32
      %v3112 = vld [vmem:[%s3111] sm:$0x8]
      %v3113 = vld [vmem:[%s3111 + $0x4] sm:$0xf]
      %v3114 = vld [vmem:[%s3111 + $0x8] sm:$0xf]
      %v3115 = vld [vmem:[%s3111 + $0x10] sm:$0x8]
      %v3116 = vld [vmem:[%s3111 + $0x14] sm:$0xf]
      %v3117 = vld [vmem:[%s3111 + $0x18] sm:$0xf]
      %v3118 = vld [vmem:[%s3111 + $0x20] sm:$0x8]
      %v3119 = vld [vmem:[%s3111 + $0x24] sm:$0xf]
      %v3120 = vld [vmem:[%s3111 + $0x28] sm:$0xf]
      %v3121 = vld [vmem:[%s3111 + $0x30] sm:$0x8]
      %v3122 = vld [vmem:[%s3111 + $0x34] sm:$0xf]
      %v3123 = vld [vmem:[%s3111 + $0x38] sm:$0xf]
      %v3124 = vld [vmem:[%s3111 + $0x40] sm:$0x8]
      %v3125 = vld [vmem:[%s3111 + $0x44] sm:$0xf]
      %v3126 = vld [vmem:[%s3111 + $0x48] sm:$0xf]
      %v3127 = vld [vmem:[%s3111 + $0x50] sm:$0x8]
      %v3128 = vld [vmem:[%s3111 + $0x54] sm:$0xf]
      %v3129 = vld [vmem:[%s3111 + $0x58] sm:$0xf]
      %v3130 = vld [vmem:[%s3111 + $0x60] sm:$0x8]
      %v3131 = vld [vmem:[%s3111 + $0x64] sm:$0xf]
      %v3132 = vld [vmem:[%s3111 + $0x68] sm:$0xf]
      %v3133 = vld [vmem:[%s3111 + $0x70] sm:$0x8]
      %v3134 = vld [vmem:[%s3111 + $0x74] sm:$0xf]
      %v3135 = vld [vmem:[%s3111 + $0x78] sm:$0xf]
      %v3136 = vld [vmem:[%s3111 + $0x80] sm:$0x8]
      %v3137 = vld [vmem:[%s3111 + $0x84] sm:$0xf]
      %v3138 = vld [vmem:[%s3111 + $0x88] sm:$0xf]
      %v3139 = vld [vmem:[%s3111 + $0x90] sm:$0x8]
      %v3140 = vld [vmem:[%s3111 + $0x94] sm:$0xf]
      %v3141 = vld [vmem:[%s3111 + $0x98] sm:$0xf]
      %v3142 = vld [vmem:[%s3111 + $0xa0] sm:$0x8]
      %v3143 = vld [vmem:[%s3111 + $0xa4] sm:$0xf]
      %v3144 = vld [vmem:[%s3111 + $0xa8] sm:$0xf]
      %v3145 = vld [vmem:[%s3111 + $0xb0] sm:$0x8]
      %v3146 = vld [vmem:[%s3111 + $0xb4] sm:$0xf]
      %v3147 = vld [vmem:[%s3111 + $0xb8] sm:$0xf]
      %v3148 = vld [vmem:[%s3111 + $0xc0] sm:$0x8]
      %v3149 = vld [vmem:[%s3111 + $0xc4] sm:$0xf]
      %v3150 = vld [vmem:[%s3111 + $0xc8] sm:$0xf]
      %v3151 = vld [vmem:[%s3111 + $0xd0] sm:$0x8]
      %v3152 = vld [vmem:[%s3111 + $0xd4] sm:$0xf]
      %v3153 = vld [vmem:[%s3111 + $0xd8] sm:$0xf]
      %v3154 = vld [vmem:[%s3111 + $0xe0] sm:$0x8]
      %v3155 = vld [vmem:[%s3111 + $0xe4] sm:$0xf]
      %v3156 = vld [vmem:[%s3111 + $0xe8] sm:$0xf]
      %v3157 = vld [vmem:[%s3111 + $0xf0] sm:$0x8]
      %v3158 = vld [vmem:[%s3111 + $0xf4] sm:$0xf]
      %v3159 = vld [vmem:[%s3111 + $0xf8] sm:$0xf]
      %v3161 = vshrl.u32 %v3112, 16
      %v3163 = vrot.slane %v3161, 7
      %v3164 = vrot.slane %v3163, 4
      %v3166 = vshrl.u32 %v3113, 16
      %v3168 = vrot.slane %v3166, 7
      %v3169 = vshll.u32 %v3113, 16
      %v3171 = vor.u32 %v3168, %v3169
      %v3172 = vsel %vm717, %v3164, %v3171
      %v3173 = vrot.slane %v3168, 4
      %v3175 = vshrl.u32 %v3114, 16
      %v3177 = vrot.slane %v3175, 7
      %v3178 = vshll.u32 %v3114, 16
      %v3180 = vor.u32 %v3177, %v3178
      %v3181 = vsel %vm717, %v3173, %v3180
      %v3183 = vshrl.u32 %v3115, 16
      %v3185 = vrot.slane %v3183, 7
      %v3186 = vrot.slane %v3185, 4
      %v3188 = vshrl.u32 %v3116, 16
      %v3190 = vrot.slane %v3188, 7
      %v3191 = vshll.u32 %v3116, 16
      %v3193 = vor.u32 %v3190, %v3191
      %v3194 = vsel %vm717, %v3186, %v3193
      %v3195 = vrot.slane %v3190, 4
      %v3197 = vshrl.u32 %v3117, 16
      %v3199 = vrot.slane %v3197, 7
      %v3200 = vshll.u32 %v3117, 16
      %v3202 = vor.u32 %v3199, %v3200
      %v3203 = vsel %vm717, %v3195, %v3202
      %v3205 = vshrl.u32 %v3118, 16
      %v3207 = vrot.slane %v3205, 7
      %v3208 = vrot.slane %v3207, 4
      %v3210 = vshrl.u32 %v3119, 16
      %v3212 = vrot.slane %v3210, 7
      %v3213 = vshll.u32 %v3119, 16
      %v3215 = vor.u32 %v3212, %v3213
      %v3216 = vsel %vm717, %v3208, %v3215
      %v3217 = vrot.slane %v3212, 4
      %v3219 = vshrl.u32 %v3120, 16
      %v3221 = vrot.slane %v3219, 7
      %v3222 = vshll.u32 %v3120, 16
      %v3224 = vor.u32 %v3221, %v3222
      %v3225 = vsel %vm717, %v3217, %v3224
      %v3227 = vshrl.u32 %v3121, 16
      %v3229 = vrot.slane %v3227, 7
      %v3230 = vrot.slane %v3229, 4
      %v3232 = vshrl.u32 %v3122, 16
      %v3234 = vrot.slane %v3232, 7
      %v3235 = vshll.u32 %v3122, 16
      %v3237 = vor.u32 %v3234, %v3235
      %v3238 = vsel %vm717, %v3230, %v3237
      %v3239 = vrot.slane %v3234, 4
      %v3241 = vshrl.u32 %v3123, 16
      %v3243 = vrot.slane %v3241, 7
      %v3244 = vshll.u32 %v3123, 16
      %v3246 = vor.u32 %v3243, %v3244
      %v3247 = vsel %vm717, %v3239, %v3246
      %v3249 = vshrl.u32 %v3124, 16
      %v3251 = vrot.slane %v3249, 7
      %v3252 = vrot.slane %v3251, 4
      %v3254 = vshrl.u32 %v3125, 16
      %v3256 = vrot.slane %v3254, 7
      %v3257 = vshll.u32 %v3125, 16
      %v3259 = vor.u32 %v3256, %v3257
      %v3260 = vsel %vm717, %v3252, %v3259
      %v3261 = vrot.slane %v3256, 4
      %v3263 = vshrl.u32 %v3126, 16
      %v3265 = vrot.slane %v3263, 7
      %v3266 = vshll.u32 %v3126, 16
      %v3268 = vor.u32 %v3265, %v3266
      %v3269 = vsel %vm717, %v3261, %v3268
      %v3271 = vshrl.u32 %v3127, 16
      %v3273 = vrot.slane %v3271, 7
      %v3274 = vrot.slane %v3273, 4
      %v3276 = vshrl.u32 %v3128, 16
      %v3278 = vrot.slane %v3276, 7
      %v3279 = vshll.u32 %v3128, 16
      %v3281 = vor.u32 %v3278, %v3279
      %v3282 = vsel %vm717, %v3274, %v3281
      %v3283 = vrot.slane %v3278, 4
      %v3285 = vshrl.u32 %v3129, 16
      %v3287 = vrot.slane %v3285, 7
      %v3288 = vshll.u32 %v3129, 16
      %v3290 = vor.u32 %v3287, %v3288
      %v3291 = vsel %vm717, %v3283, %v3290
      %v3293 = vshrl.u32 %v3130, 16
      %v3295 = vrot.slane %v3293, 7
      %v3296 = vrot.slane %v3295, 4
      %v3298 = vshrl.u32 %v3131, 16
      %v3300 = vrot.slane %v3298, 7
      %v3301 = vshll.u32 %v3131, 16
      %v3303 = vor.u32 %v3300, %v3301
      %v3304 = vsel %vm717, %v3296, %v3303
      %v3305 = vrot.slane %v3300, 4
      %v3307 = vshrl.u32 %v3132, 16
      %v3309 = vrot.slane %v3307, 7
      %v3310 = vshll.u32 %v3132, 16
      %v3312 = vor.u32 %v3309, %v3310
      %v3313 = vsel %vm717, %v3305, %v3312
      %v3315 = vshrl.u32 %v3133, 16
      %v3317 = vrot.slane %v3315, 7
      %v3318 = vrot.slane %v3317, 4
      %v3320 = vshrl.u32 %v3134, 16
      %v3322 = vrot.slane %v3320, 7
      %v3323 = vshll.u32 %v3134, 16
      %v3325 = vor.u32 %v3322, %v3323
      %v3326 = vsel %vm717, %v3318, %v3325
      %v3327 = vrot.slane %v3322, 4
      %v3329 = vshrl.u32 %v3135, 16
      %v3331 = vrot.slane %v3329, 7
      %v3332 = vshll.u32 %v3135, 16
      %v3334 = vor.u32 %v3331, %v3332
      %v3335 = vsel %vm717, %v3327, %v3334
      %v3337 = vshrl.u32 %v3136, 16
      %v3339 = vrot.slane %v3337, 7
      %v3340 = vrot.slane %v3339, 4
      %v3342 = vshrl.u32 %v3137, 16
      %v3344 = vrot.slane %v3342, 7
      %v3345 = vshll.u32 %v3137, 16
      %v3347 = vor.u32 %v3344, %v3345
      %v3348 = vsel %vm717, %v3340, %v3347
      %v3349 = vrot.slane %v3344, 4
      %v3351 = vshrl.u32 %v3138, 16
      %v3353 = vrot.slane %v3351, 7
      %v3354 = vshll.u32 %v3138, 16
      %v3356 = vor.u32 %v3353, %v3354
      %v3357 = vsel %vm717, %v3349, %v3356
      %v3359 = vshrl.u32 %v3139, 16
      %v3361 = vrot.slane %v3359, 7
      %v3362 = vrot.slane %v3361, 4
      %v3364 = vshrl.u32 %v3140, 16
      %v3366 = vrot.slane %v3364, 7
      %v3367 = vshll.u32 %v3140, 16
      %v3369 = vor.u32 %v3366, %v3367
      %v3370 = vsel %vm717, %v3362, %v3369
      %v3371 = vrot.slane %v3366, 4
      %v3373 = vshrl.u32 %v3141, 16
      %v3375 = vrot.slane %v3373, 7
      %v3376 = vshll.u32 %v3141, 16
      %v3378 = vor.u32 %v3375, %v3376
      %v3379 = vsel %vm717, %v3371, %v3378
      %v3381 = vshrl.u32 %v3142, 16
      %v3383 = vrot.slane %v3381, 7
      %v3384 = vrot.slane %v3383, 4
      %v3386 = vshrl.u32 %v3143, 16
      %v3388 = vrot.slane %v3386, 7
      %v3389 = vshll.u32 %v3143, 16
      %v3391 = vor.u32 %v3388, %v3389
      %v3392 = vsel %vm717, %v3384, %v3391
      %v3393 = vrot.slane %v3388, 4
      %v3395 = vshrl.u32 %v3144, 16
      %v3397 = vrot.slane %v3395, 7
      %v3398 = vshll.u32 %v3144, 16
      %v3400 = vor.u32 %v3397, %v3398
      %v3401 = vsel %vm717, %v3393, %v3400
      %v3403 = vshrl.u32 %v3145, 16
      %v3405 = vrot.slane %v3403, 7
      %v3406 = vrot.slane %v3405, 4
      %v3408 = vshrl.u32 %v3146, 16
      %v3410 = vrot.slane %v3408, 7
      %v3411 = vshll.u32 %v3146, 16
      %v3413 = vor.u32 %v3410, %v3411
      %v3414 = vsel %vm717, %v3406, %v3413
      %v3415 = vrot.slane %v3410, 4
      %v3417 = vshrl.u32 %v3147, 16
      %v3419 = vrot.slane %v3417, 7
      %v3420 = vshll.u32 %v3147, 16
      %v3422 = vor.u32 %v3419, %v3420
      %v3423 = vsel %vm717, %v3415, %v3422
      %v3425 = vshrl.u32 %v3148, 16
      %v3427 = vrot.slane %v3425, 7
      %v3428 = vrot.slane %v3427, 4
      %v3430 = vshrl.u32 %v3149, 16
      %v3432 = vrot.slane %v3430, 7
      %v3433 = vshll.u32 %v3149, 16
      %v3435 = vor.u32 %v3432, %v3433
      %v3436 = vsel %vm717, %v3428, %v3435
      %v3437 = vrot.slane %v3432, 4
      %v3439 = vshrl.u32 %v3150, 16
      %v3441 = vrot.slane %v3439, 7
      %v3442 = vshll.u32 %v3150, 16
      %v3444 = vor.u32 %v3441, %v3442
      %v3445 = vsel %vm717, %v3437, %v3444
      %v3447 = vshrl.u32 %v3151, 16
      %v3449 = vrot.slane %v3447, 7
      %v3450 = vrot.slane %v3449, 4
      %v3452 = vshrl.u32 %v3152, 16
      %v3454 = vrot.slane %v3452, 7
      %v3455 = vshll.u32 %v3152, 16
      %v3457 = vor.u32 %v3454, %v3455
      %v3458 = vsel %vm717, %v3450, %v3457
      %v3459 = vrot.slane %v3454, 4
      %v3461 = vshrl.u32 %v3153, 16
      %v3463 = vrot.slane %v3461, 7
      %v3464 = vshll.u32 %v3153, 16
      %v3466 = vor.u32 %v3463, %v3464
      %v3467 = vsel %vm717, %v3459, %v3466
      %v3469 = vshrl.u32 %v3154, 16
      %v3471 = vrot.slane %v3469, 7
      %v3472 = vrot.slane %v3471, 4
      %v3474 = vshrl.u32 %v3155, 16
      %v3476 = vrot.slane %v3474, 7
      %v3477 = vshll.u32 %v3155, 16
      %v3479 = vor.u32 %v3476, %v3477
      %v3480 = vsel %vm717, %v3472, %v3479
      %v3481 = vrot.slane %v3476, 4
      %v3483 = vshrl.u32 %v3156, 16
      %v3485 = vrot.slane %v3483, 7
      %v3486 = vshll.u32 %v3156, 16
      %v3488 = vor.u32 %v3485, %v3486
      %v3489 = vsel %vm717, %v3481, %v3488
      %v3491 = vshrl.u32 %v3157, 16
      %v3493 = vrot.slane %v3491, 7
      %v3494 = vrot.slane %v3493, 4
      %v3496 = vshrl.u32 %v3158, 16
      %v3498 = vrot.slane %v3496, 7
      %v3499 = vshll.u32 %v3158, 16
      %v3501 = vor.u32 %v3498, %v3499
      %v3502 = vsel %vm717, %v3494, %v3501
      %v3503 = vrot.slane %v3498, 4
      %v3505 = vshrl.u32 %v3159, 16
      %v3507 = vrot.slane %v3505, 7
      %v3508 = vshll.u32 %v3159, 16
      %v3510 = vor.u32 %v3507, %v3508
      %v3511 = vsel %vm717, %v3503, %v3510
      %v3512 = vunpack.c.l.b16 %v3172
      %v3513 = vunpack.c.l.b16 %v3181
      %v3514 = vunpack.c.l.b16 %v3194
      %v3515 = vunpack.c.l.b16 %v3203
      %v3516 = vunpack.c.l.b16 %v3216
      %v3517 = vunpack.c.l.b16 %v3225
      %v3518 = vunpack.c.l.b16 %v3238
      %v3519 = vunpack.c.l.b16 %v3247
      %v3520 = vunpack.c.l.b16 %v3260
      %v3521 = vunpack.c.l.b16 %v3269
      %v3522 = vunpack.c.l.b16 %v3282
      %v3523 = vunpack.c.l.b16 %v3291
      %v3524 = vunpack.c.l.b16 %v3304
      %v3525 = vunpack.c.l.b16 %v3313
      %v3526 = vunpack.c.l.b16 %v3326
      %v3527 = vunpack.c.l.b16 %v3335
      %v3528 = vunpack.c.l.b16 %v3348
      %v3529 = vunpack.c.l.b16 %v3357
      %v3530 = vunpack.c.l.b16 %v3370
      %v3531 = vunpack.c.l.b16 %v3379
      %v3532 = vunpack.c.l.b16 %v3392
      %v3533 = vunpack.c.l.b16 %v3401
      %v3534 = vunpack.c.l.b16 %v3414
      %v3535 = vunpack.c.l.b16 %v3423
      %v3536 = vunpack.c.l.b16 %v3436
      %v3537 = vunpack.c.l.b16 %v3445
      %v3538 = vunpack.c.l.b16 %v3458
      %v3539 = vunpack.c.l.b16 %v3467
      %v3540 = vunpack.c.l.b16 %v3480
      %v3541 = vunpack.c.l.b16 %v3489
      %v3542 = vunpack.c.l.b16 %v3502
      %v3543 = vunpack.c.l.b16 %v3511
      %v3544 = vpack.c.b16 %v3513, %v3512
      %v3545 = vpack.c.b16 %v3515, %v3514
      %v3546 = vpack.c.b16 %v3517, %v3516
      %v3547 = vpack.c.b16 %v3519, %v3518
      %v3548 = vpack.c.b16 %v3521, %v3520
      %v3549 = vpack.c.b16 %v3523, %v3522
      %v3550 = vpack.c.b16 %v3525, %v3524
      %v3551 = vpack.c.b16 %v3527, %v3526
      %v3552 = vpack.c.b16 %v3529, %v3528
      %v3553 = vpack.c.b16 %v3531, %v3530
      %v3554 = vpack.c.b16 %v3533, %v3532
      %v3555 = vpack.c.b16 %v3535, %v3534
      %v3556 = vpack.c.b16 %v3537, %v3536
      %v3557 = vpack.c.b16 %v3539, %v3538
      %v3558 = vpack.c.b16 %v3541, %v3540
      %v3559 = vpack.c.b16 %v3543, %v3542
      %3560 = vrot.lane.b32.xlu0 %v3544, 24
      %v3561 = vpop.permute.xlu0 %3560
      %3562 = vrot.lane.b32.xlu0 %v3545, 24
      %v3563 = vpop.permute.xlu0 %3562
      %3564 = vrot.lane.b32.xlu0 %v3546, 24
      %v3565 = vpop.permute.xlu0 %3564
      %3566 = vrot.lane.b32.xlu0 %v3547, 24
      %v3567 = vpop.permute.xlu0 %3566
      %3568 = vrot.lane.b32.xlu0 %v3548, 24
      %v3569 = vpop.permute.xlu0 %3568
      %3570 = vrot.lane.b32.xlu0 %v3549, 24
      %v3571 = vpop.permute.xlu0 %3570
      %3572 = vrot.lane.b32.xlu0 %v3550, 24
      %v3573 = vpop.permute.xlu0 %3572
      %3574 = vrot.lane.b32.xlu0 %v3551, 24
      %v3575 = vpop.permute.xlu0 %3574
      %3576 = vrot.lane.b32.xlu0 %v3552, 24
      %v3577 = vpop.permute.xlu0 %3576
      %3578 = vrot.lane.b32.xlu0 %v3553, 24
      %v3579 = vpop.permute.xlu0 %3578
      %3580 = vrot.lane.b32.xlu0 %v3554, 24
      %v3581 = vpop.permute.xlu0 %3580
      %3582 = vrot.lane.b32.xlu0 %v3555, 24
      %v3583 = vpop.permute.xlu0 %3582
      %3584 = vrot.lane.b32.xlu0 %v3556, 24
      %v3585 = vpop.permute.xlu0 %3584
      %3586 = vrot.lane.b32.xlu0 %v3557, 24
      %v3587 = vpop.permute.xlu0 %3586
      %3588 = vrot.lane.b32.xlu0 %v3558, 24
      %v3589 = vpop.permute.xlu0 %3588
      %3590 = vrot.lane.b32.xlu0 %v3559, 24
      %v3591 = vpop.permute.xlu0 %3590
      %vm3608 = vcmask 228544
      %3609 = vst.msk [vmem:[#allocation4] sm:$0xff] %vm3608, %v3561
      %3610 = vst.msk [vmem:[#allocation4 + $0x8] sm:$0xff] %vm3608, %v3563
      %3611 = vst.msk [vmem:[#allocation4 + $0x10] sm:$0xff] %vm3608, %v3565
      %3612 = vst.msk [vmem:[#allocation4 + $0x18] sm:$0xff] %vm3608, %v3567
      %3613 = vst.msk [vmem:[#allocation4 + $0x20] sm:$0xff] %vm3608, %v3569
      %3614 = vst.msk [vmem:[#allocation4 + $0x28] sm:$0xff] %vm3608, %v3571
      %3615 = vst.msk [vmem:[#allocation4 + $0x30] sm:$0xff] %vm3608, %v3573
      %3616 = vst.msk [vmem:[#allocation4 + $0x38] sm:$0xff] %vm3608, %v3575
      %3617 = vst.msk [vmem:[#allocation4 + $0x40] sm:$0xff] %vm3608, %v3577
      %3618 = vst.msk [vmem:[#allocation4 + $0x48] sm:$0xff] %vm3608, %v3579
      %3619 = vst.msk [vmem:[#allocation4 + $0x50] sm:$0xff] %vm3608, %v3581
      %3620 = vst.msk [vmem:[#allocation4 + $0x58] sm:$0xff] %vm3608, %v3583
      %3621 = vst.msk [vmem:[#allocation4 + $0x60] sm:$0xff] %vm3608, %v3585
      %3622 = vst.msk [vmem:[#allocation4 + $0x68] sm:$0xff] %vm3608, %v3587
      %3623 = vst.msk [vmem:[#allocation4 + $0x70] sm:$0xff] %vm3608, %v3589
      %3624 = vst.msk [vmem:[#allocation4 + $0x78] sm:$0xff] %vm3608, %v3591
      %v3625 = vld [vmem:[%s3111 + $0x4] sm:$0xf]
      %v3626 = vld [vmem:[%s3111 + $0x8] sm:$0xf]
      %v3627 = vld [vmem:[%s3111 + $0x14] sm:$0xf]
      %v3628 = vld [vmem:[%s3111 + $0x18] sm:$0xf]
      %v3629 = vld [vmem:[%s3111 + $0x24] sm:$0xf]
      %v3630 = vld [vmem:[%s3111 + $0x28] sm:$0xf]
      %v3631 = vld [vmem:[%s3111 + $0x34] sm:$0xf]
      %v3632 = vld [vmem:[%s3111 + $0x38] sm:$0xf]
      %v3633 = vld [vmem:[%s3111 + $0x44] sm:$0xf]
      %v3634 = vld [vmem:[%s3111 + $0x48] sm:$0xf]
      %v3635 = vld [vmem:[%s3111 + $0x54] sm:$0xf]
      %v3636 = vld [vmem:[%s3111 + $0x58] sm:$0xf]
      %v3637 = vld [vmem:[%s3111 + $0x64] sm:$0xf]
      %v3638 = vld [vmem:[%s3111 + $0x68] sm:$0xf]
      %v3639 = vld [vmem:[%s3111 + $0x74] sm:$0xf]
      %v3640 = vld [vmem:[%s3111 + $0x78] sm:$0xf]
      %v3641 = vld [vmem:[%s3111 + $0x84] sm:$0xf]
      %v3642 = vld [vmem:[%s3111 + $0x88] sm:$0xf]
      %v3643 = vld [vmem:[%s3111 + $0x94] sm:$0xf]
      %v3644 = vld [vmem:[%s3111 + $0x98] sm:$0xf]
      %v3645 = vld [vmem:[%s3111 + $0xa4] sm:$0xf]
      %v3646 = vld [vmem:[%s3111 + $0xa8] sm:$0xf]
      %v3647 = vld [vmem:[%s3111 + $0xb4] sm:$0xf]
      %v3648 = vld [vmem:[%s3111 + $0xb8] sm:$0xf]
      %v3649 = vld [vmem:[%s3111 + $0xc4] sm:$0xf]
      %v3650 = vld [vmem:[%s3111 + $0xc8] sm:$0xf]
      %v3651 = vld [vmem:[%s3111 + $0xd4] sm:$0xf]
      %v3652 = vld [vmem:[%s3111 + $0xd8] sm:$0xf]
      %v3653 = vld [vmem:[%s3111 + $0xe4] sm:$0xf]
      %v3654 = vld [vmem:[%s3111 + $0xe8] sm:$0xf]
      %v3655 = vld [vmem:[%s3111 + $0xf4] sm:$0xf]
      %v3656 = vld [vmem:[%s3111 + $0xf8] sm:$0xf]
      %v3689 = vunpack.c.l.b16 %v3625
      %v3690 = vunpack.c.l.b16 %v3626
      %v3691 = vunpack.c.l.b16 %v3627
      %v3692 = vunpack.c.l.b16 %v3628
      %v3693 = vunpack.c.l.b16 %v3629
      %v3694 = vunpack.c.l.b16 %v3630
      %v3695 = vunpack.c.l.b16 %v3631
      %v3696 = vunpack.c.l.b16 %v3632
      %v3697 = vunpack.c.l.b16 %v3633
      %v3698 = vunpack.c.l.b16 %v3634
      %v3699 = vunpack.c.l.b16 %v3635
      %v3700 = vunpack.c.l.b16 %v3636
      %v3701 = vunpack.c.l.b16 %v3637
      %v3702 = vunpack.c.l.b16 %v3638
      %v3703 = vunpack.c.l.b16 %v3639
      %v3704 = vunpack.c.l.b16 %v3640
      %v3705 = vunpack.c.l.b16 %v3641
      %v3706 = vunpack.c.l.b16 %v3642
      %v3707 = vunpack.c.l.b16 %v3643
      %v3708 = vunpack.c.l.b16 %v3644
      %v3709 = vunpack.c.l.b16 %v3645
      %v3710 = vunpack.c.l.b16 %v3646
      %v3711 = vunpack.c.l.b16 %v3647
      %v3712 = vunpack.c.l.b16 %v3648
      %v3713 = vunpack.c.l.b16 %v3649
      %v3714 = vunpack.c.l.b16 %v3650
      %v3715 = vunpack.c.l.b16 %v3651
      %v3716 = vunpack.c.l.b16 %v3652
      %v3717 = vunpack.c.l.b16 %v3653
      %v3718 = vunpack.c.l.b16 %v3654
      %v3719 = vunpack.c.l.b16 %v3655
      %v3720 = vunpack.c.l.b16 %v3656
      %v3721 = vpack.c.b16 %v3690, %v3689
      %v3722 = vpack.c.b16 %v3692, %v3691
      %v3723 = vpack.c.b16 %v3694, %v3693
      %v3724 = vpack.c.b16 %v3696, %v3695
      %v3725 = vpack.c.b16 %v3698, %v3697
      %v3726 = vpack.c.b16 %v3700, %v3699
      %v3727 = vpack.c.b16 %v3702, %v3701
      %v3728 = vpack.c.b16 %v3704, %v3703
      %v3729 = vpack.c.b16 %v3706, %v3705
      %v3730 = vpack.c.b16 %v3708, %v3707
      %v3731 = vpack.c.b16 %v3710, %v3709
      %v3732 = vpack.c.b16 %v3712, %v3711
      %v3733 = vpack.c.b16 %v3714, %v3713
      %v3734 = vpack.c.b16 %v3716, %v3715
      %v3735 = vpack.c.b16 %v3718, %v3717
      %v3736 = vpack.c.b16 %v3720, %v3719
      %3737 = vrot.lane.b32.xlu0 %v3721, 28
      %v3738 = vpop.permute.xlu0 %3737
      %3739 = vrot.lane.b32.xlu0 %v3722, 28
      %v3740 = vpop.permute.xlu0 %3739
      %3741 = vrot.lane.b32.xlu0 %v3723, 28
      %v3742 = vpop.permute.xlu0 %3741
      %3743 = vrot.lane.b32.xlu0 %v3724, 28
      %v3744 = vpop.permute.xlu0 %3743
      %3745 = vrot.lane.b32.xlu0 %v3725, 28
      %v3746 = vpop.permute.xlu0 %3745
      %3747 = vrot.lane.b32.xlu0 %v3726, 28
      %v3748 = vpop.permute.xlu0 %3747
      %3749 = vrot.lane.b32.xlu0 %v3727, 28
      %v3750 = vpop.permute.xlu0 %3749
      %3751 = vrot.lane.b32.xlu0 %v3728, 28
      %v3752 = vpop.permute.xlu0 %3751
      %3753 = vrot.lane.b32.xlu0 %v3729, 28
      %v3754 = vpop.permute.xlu0 %3753
      %3755 = vrot.lane.b32.xlu0 %v3730, 28
      %v3756 = vpop.permute.xlu0 %3755
      %3757 = vrot.lane.b32.xlu0 %v3731, 28
      %v3758 = vpop.permute.xlu0 %3757
      %3759 = vrot.lane.b32.xlu0 %v3732, 28
      %v3760 = vpop.permute.xlu0 %3759
      %3761 = vrot.lane.b32.xlu0 %v3733, 28
      %v3762 = vpop.permute.xlu0 %3761
      %3763 = vrot.lane.b32.xlu0 %v3734, 28
      %v3764 = vpop.permute.xlu0 %3763
      %3765 = vrot.lane.b32.xlu0 %v3735, 28
      %v3766 = vpop.permute.xlu0 %3765
      %3767 = vrot.lane.b32.xlu0 %v3736, 28
      %v3768 = vpop.permute.xlu0 %3767
      %vm3785 = vcmask 261344
      %3786 = vst.msk [vmem:[#allocation4] sm:$0xff] %vm3785, %v3738
      %3787 = vst.msk [vmem:[#allocation4 + $0x8] sm:$0xff] %vm3785, %v3740
      %3788 = vst.msk [vmem:[#allocation4 + $0x10] sm:$0xff] %vm3785, %v3742
      %3789 = vst.msk [vmem:[#allocation4 + $0x18] sm:$0xff] %vm3785, %v3744
      %3790 = vst.msk [vmem:[#allocation4 + $0x20] sm:$0xff] %vm3785, %v3746
      %3791 = vst.msk [vmem:[#allocation4 + $0x28] sm:$0xff] %vm3785, %v3748
      %3792 = vst.msk [vmem:[#allocation4 + $0x30] sm:$0xff] %vm3785, %v3750
      %3793 = vst.msk [vmem:[#allocation4 + $0x38] sm:$0xff] %vm3785, %v3752
      %3794 = vst.msk [vmem:[#allocation4 + $0x40] sm:$0xff] %vm3785, %v3754
      %3795 = vst.msk [vmem:[#allocation4 + $0x48] sm:$0xff] %vm3785, %v3756
      %3796 = vst.msk [vmem:[#allocation4 + $0x50] sm:$0xff] %vm3785, %v3758
      %3797 = vst.msk [vmem:[#allocation4 + $0x58] sm:$0xff] %vm3785, %v3760
      %3798 = vst.msk [vmem:[#allocation4 + $0x60] sm:$0xff] %vm3785, %v3762
      %3799 = vst.msk [vmem:[#allocation4 + $0x68] sm:$0xff] %vm3785, %v3764
      %3800 = vst.msk [vmem:[#allocation4 + $0x70] sm:$0xff] %vm3785, %v3766
      %3801 = vst.msk [vmem:[#allocation4 + $0x78] sm:$0xff] %vm3785, %v3768
      %v3802 = vld [vmem:[%s3111 + $0x4] sm:$0xf]
      %v3803 = vld [vmem:[%s3111 + $0x8] sm:$0xf]
      %v3804 = vld [vmem:[%s3111 + $0xc] sm:$0x1]
      %v3805 = vld [vmem:[%s3111 + $0x14] sm:$0xf]
      %v3806 = vld [vmem:[%s3111 + $0x18] sm:$0xf]
      %v3807 = vld [vmem:[%s3111 + $0x1c] sm:$0x1]
      %v3808 = vld [vmem:[%s3111 + $0x24] sm:$0xf]
      %v3809 = vld [vmem:[%s3111 + $0x28] sm:$0xf]
      %v3810 = vld [vmem:[%s3111 + $0x2c] sm:$0x1]
      %v3811 = vld [vmem:[%s3111 + $0x34] sm:$0xf]
      %v3812 = vld [vmem:[%s3111 + $0x38] sm:$0xf]
      %v3813 = vld [vmem:[%s3111 + $0x3c] sm:$0x1]
      %v3814 = vld [vmem:[%s3111 + $0x44] sm:$0xf]
      %v3815 = vld [vmem:[%s3111 + $0x48] sm:$0xf]
      %v3816 = vld [vmem:[%s3111 + $0x4c] sm:$0x1]
      %v3817 = vld [vmem:[%s3111 + $0x54] sm:$0xf]
      %v3818 = vld [vmem:[%s3111 + $0x58] sm:$0xf]
      %v3819 = vld [vmem:[%s3111 + $0x5c] sm:$0x1]
      %v3820 = vld [vmem:[%s3111 + $0x64] sm:$0xf]
      %v3821 = vld [vmem:[%s3111 + $0x68] sm:$0xf]
      %v3822 = vld [vmem:[%s3111 + $0x6c] sm:$0x1]
      %v3823 = vld [vmem:[%s3111 + $0x74] sm:$0xf]
      %v3824 = vld [vmem:[%s3111 + $0x78] sm:$0xf]
      %v3825 = vld [vmem:[%s3111 + $0x7c] sm:$0x1]
      %v3826 = vld [vmem:[%s3111 + $0x84] sm:$0xf]
      %v3827 = vld [vmem:[%s3111 + $0x88] sm:$0xf]
      %v3828 = vld [vmem:[%s3111 + $0x8c] sm:$0x1]
      %v3829 = vld [vmem:[%s3111 + $0x94] sm:$0xf]
      %v3830 = vld [vmem:[%s3111 + $0x98] sm:$0xf]
      %v3831 = vld [vmem:[%s3111 + $0x9c] sm:$0x1]
      %v3832 = vld [vmem:[%s3111 + $0xa4] sm:$0xf]
      %v3833 = vld [vmem:[%s3111 + $0xa8] sm:$0xf]
      %v3834 = vld [vmem:[%s3111 + $0xac] sm:$0x1]
      %v3835 = vld [vmem:[%s3111 + $0xb4] sm:$0xf]
      %v3836 = vld [vmem:[%s3111 + $0xb8] sm:$0xf]
      %v3837 = vld [vmem:[%s3111 + $0xbc] sm:$0x1]
      %v3838 = vld [vmem:[%s3111 + $0xc4] sm:$0xf]
      %v3839 = vld [vmem:[%s3111 + $0xc8] sm:$0xf]
      %v3840 = vld [vmem:[%s3111 + $0xcc] sm:$0x1]
      %v3841 = vld [vmem:[%s3111 + $0xd4] sm:$0xf]
      %v3842 = vld [vmem:[%s3111 + $0xd8] sm:$0xf]
      %v3843 = vld [vmem:[%s3111 + $0xdc] sm:$0x1]
      %v3844 = vld [vmem:[%s3111 + $0xe4] sm:$0xf]
      %v3845 = vld [vmem:[%s3111 + $0xe8] sm:$0xf]
      %v3846 = vld [vmem:[%s3111 + $0xec] sm:$0x1]
      %v3847 = vld [vmem:[%s3111 + $0xf4] sm:$0xf]
      %v3848 = vld [vmem:[%s3111 + $0xf8] sm:$0xf]
      %v3849 = vld [vmem:[%s3111 + $0xfc] sm:$0x1]
      %v3851 = vshrl.u32 %v3802, 16
      %v3853 = vrot.slane %v3851, 4
      %v3854 = vshll.u32 %v3802, 16
      %v3856 = vrot.slane %v3854, 5
      %v3857 = vor.u32 %v3853, %v3856
      %v3858 = vrot.slane %v3857, 4
      %v3860 = vshll.u32 %v3803, 16
      %v3862 = vrot.slane %v3860, 5
      %v3863 = vsel %vm1378, %v3858, %v3862
      %v3864 = vshrl.u32 %v3803, 16
      %v3866 = vrot.slane %v3864, 4
      %v3867 = vor.u32 %v3866, %v3862
      %v3868 = vrot.slane %v3867, 4
      %v3870 = vshll.u32 %v3804, 16
      %v3872 = vrot.slane %v3870, 5
      %v3873 = vsel %vm1378, %v3868, %v3872
      %v3875 = vshrl.u32 %v3805, 16
      %v3877 = vrot.slane %v3875, 4
      %v3878 = vshll.u32 %v3805, 16
      %v3880 = vrot.slane %v3878, 5
      %v3881 = vor.u32 %v3877, %v3880
      %v3882 = vrot.slane %v3881, 4
      %v3884 = vshll.u32 %v3806, 16
      %v3886 = vrot.slane %v3884, 5
      %v3887 = vsel %vm1378, %v3882, %v3886
      %v3888 = vshrl.u32 %v3806, 16
      %v3890 = vrot.slane %v3888, 4
      %v3891 = vor.u32 %v3890, %v3886
      %v3892 = vrot.slane %v3891, 4
      %v3894 = vshll.u32 %v3807, 16
      %v3896 = vrot.slane %v3894, 5
      %v3897 = vsel %vm1378, %v3892, %v3896
      %v3899 = vshrl.u32 %v3808, 16
      %v3901 = vrot.slane %v3899, 4
      %v3902 = vshll.u32 %v3808, 16
      %v3904 = vrot.slane %v3902, 5
      %v3905 = vor.u32 %v3901, %v3904
      %v3906 = vrot.slane %v3905, 4
      %v3908 = vshll.u32 %v3809, 16
      %v3910 = vrot.slane %v3908, 5
      %v3911 = vsel %vm1378, %v3906, %v3910
      %v3912 = vshrl.u32 %v3809, 16
      %v3914 = vrot.slane %v3912, 4
      %v3915 = vor.u32 %v3914, %v3910
      %v3916 = vrot.slane %v3915, 4
      %v3918 = vshll.u32 %v3810, 16
      %v3920 = vrot.slane %v3918, 5
      %v3921 = vsel %vm1378, %v3916, %v3920
      %v3923 = vshrl.u32 %v3811, 16
      %v3925 = vrot.slane %v3923, 4
      %v3926 = vshll.u32 %v3811, 16
      %v3928 = vrot.slane %v3926, 5
      %v3929 = vor.u32 %v3925, %v3928
      %v3930 = vrot.slane %v3929, 4
      %v3932 = vshll.u32 %v3812, 16
      %v3934 = vrot.slane %v3932, 5
      %v3935 = vsel %vm1378, %v3930, %v3934
      %v3936 = vshrl.u32 %v3812, 16
      %v3938 = vrot.slane %v3936, 4
      %v3939 = vor.u32 %v3938, %v3934
      %v3940 = vrot.slane %v3939, 4
      %v3942 = vshll.u32 %v3813, 16
      %v3944 = vrot.slane %v3942, 5
      %v3945 = vsel %vm1378, %v3940, %v3944
      %v3947 = vshrl.u32 %v3814, 16
      %v3949 = vrot.slane %v3947, 4
      %v3950 = vshll.u32 %v3814, 16
      %v3952 = vrot.slane %v3950, 5
      %v3953 = vor.u32 %v3949, %v3952
      %v3954 = vrot.slane %v3953, 4
      %v3956 = vshll.u32 %v3815, 16
      %v3958 = vrot.slane %v3956, 5
      %v3959 = vsel %vm1378, %v3954, %v3958
      %v3960 = vshrl.u32 %v3815, 16
      %v3962 = vrot.slane %v3960, 4
      %v3963 = vor.u32 %v3962, %v3958
      %v3964 = vrot.slane %v3963, 4
      %v3966 = vshll.u32 %v3816, 16
      %v3968 = vrot.slane %v3966, 5
      %v3969 = vsel %vm1378, %v3964, %v3968
      %v3971 = vshrl.u32 %v3817, 16
      %v3973 = vrot.slane %v3971, 4
      %v3974 = vshll.u32 %v3817, 16
      %v3976 = vrot.slane %v3974, 5
      %v3977 = vor.u32 %v3973, %v3976
      %v3978 = vrot.slane %v3977, 4
      %v3980 = vshll.u32 %v3818, 16
      %v3982 = vrot.slane %v3980, 5
      %v3983 = vsel %vm1378, %v3978, %v3982
      %v3984 = vshrl.u32 %v3818, 16
      %v3986 = vrot.slane %v3984, 4
      %v3987 = vor.u32 %v3986, %v3982
      %v3988 = vrot.slane %v3987, 4
      %v3990 = vshll.u32 %v3819, 16
      %v3992 = vrot.slane %v3990, 5
      %v3993 = vsel %vm1378, %v3988, %v3992
      %v3995 = vshrl.u32 %v3820, 16
      %v3997 = vrot.slane %v3995, 4
      %v3998 = vshll.u32 %v3820, 16
      %v4000 = vrot.slane %v3998, 5
      %v4001 = vor.u32 %v3997, %v4000
      %v4002 = vrot.slane %v4001, 4
      %v4004 = vshll.u32 %v3821, 16
      %v4006 = vrot.slane %v4004, 5
      %v4007 = vsel %vm1378, %v4002, %v4006
      %v4008 = vshrl.u32 %v3821, 16
      %v4010 = vrot.slane %v4008, 4
      %v4011 = vor.u32 %v4010, %v4006
      %v4012 = vrot.slane %v4011, 4
      %v4014 = vshll.u32 %v3822, 16
      %v4016 = vrot.slane %v4014, 5
      %v4017 = vsel %vm1378, %v4012, %v4016
      %v4019 = vshrl.u32 %v3823, 16
      %v4021 = vrot.slane %v4019, 4
      %v4022 = vshll.u32 %v3823, 16
      %v4024 = vrot.slane %v4022, 5
      %v4025 = vor.u32 %v4021, %v4024
      %v4026 = vrot.slane %v4025, 4
      %v4028 = vshll.u32 %v3824, 16
      %v4030 = vrot.slane %v4028, 5
      %v4031 = vsel %vm1378, %v4026, %v4030
      %v4032 = vshrl.u32 %v3824, 16
      %v4034 = vrot.slane %v4032, 4
      %v4035 = vor.u32 %v4034, %v4030
      %v4036 = vrot.slane %v4035, 4
      %v4038 = vshll.u32 %v3825, 16
      %v4040 = vrot.slane %v4038, 5
      %v4041 = vsel %vm1378, %v4036, %v4040
      %v4043 = vshrl.u32 %v3826, 16
      %v4045 = vrot.slane %v4043, 4
      %v4046 = vshll.u32 %v3826, 16
      %v4048 = vrot.slane %v4046, 5
      %v4049 = vor.u32 %v4045, %v4048
      %v4050 = vrot.slane %v4049, 4
      %v4052 = vshll.u32 %v3827, 16
      %v4054 = vrot.slane %v4052, 5
      %v4055 = vsel %vm1378, %v4050, %v4054
      %v4056 = vshrl.u32 %v3827, 16
      %v4058 = vrot.slane %v4056, 4
      %v4059 = vor.u32 %v4058, %v4054
      %v4060 = vrot.slane %v4059, 4
      %v4062 = vshll.u32 %v3828, 16
      %v4064 = vrot.slane %v4062, 5
      %v4065 = vsel %vm1378, %v4060, %v4064
      %v4067 = vshrl.u32 %v3829, 16
      %v4069 = vrot.slane %v4067, 4
      %v4070 = vshll.u32 %v3829, 16
      %v4072 = vrot.slane %v4070, 5
      %v4073 = vor.u32 %v4069, %v4072
      %v4074 = vrot.slane %v4073, 4
      %v4076 = vshll.u32 %v3830, 16
      %v4078 = vrot.slane %v4076, 5
      %v4079 = vsel %vm1378, %v4074, %v4078
      %v4080 = vshrl.u32 %v3830, 16
      %v4082 = vrot.slane %v4080, 4
      %v4083 = vor.u32 %v4082, %v4078
      %v4084 = vrot.slane %v4083, 4
      %v4086 = vshll.u32 %v3831, 16
      %v4088 = vrot.slane %v4086, 5
      %v4089 = vsel %vm1378, %v4084, %v4088
      %v4091 = vshrl.u32 %v3832, 16
      %v4093 = vrot.slane %v4091, 4
      %v4094 = vshll.u32 %v3832, 16
      %v4096 = vrot.slane %v4094, 5
      %v4097 = vor.u32 %v4093, %v4096
      %v4098 = vrot.slane %v4097, 4
      %v4100 = vshll.u32 %v3833, 16
      %v4102 = vrot.slane %v4100, 5
      %v4103 = vsel %vm1378, %v4098, %v4102
      %v4104 = vshrl.u32 %v3833, 16
      %v4106 = vrot.slane %v4104, 4
      %v4107 = vor.u32 %v4106, %v4102
      %v4108 = vrot.slane %v4107, 4
      %v4110 = vshll.u32 %v3834, 16
      %v4112 = vrot.slane %v4110, 5
      %v4113 = vsel %vm1378, %v4108, %v4112
      %v4115 = vshrl.u32 %v3835, 16
      %v4117 = vrot.slane %v4115, 4
      %v4118 = vshll.u32 %v3835, 16
      %v4120 = vrot.slane %v4118, 5
      %v4121 = vor.u32 %v4117, %v4120
      %v4122 = vrot.slane %v4121, 4
      %v4124 = vshll.u32 %v3836, 16
      %v4126 = vrot.slane %v4124, 5
      %v4127 = vsel %vm1378, %v4122, %v4126
      %v4128 = vshrl.u32 %v3836, 16
      %v4130 = vrot.slane %v4128, 4
      %v4131 = vor.u32 %v4130, %v4126
      %v4132 = vrot.slane %v4131, 4
      %v4134 = vshll.u32 %v3837, 16
      %v4136 = vrot.slane %v4134, 5
      %v4137 = vsel %vm1378, %v4132, %v4136
      %v4139 = vshrl.u32 %v3838, 16
      %v4141 = vrot.slane %v4139, 4
      %v4142 = vshll.u32 %v3838, 16
      %v4144 = vrot.slane %v4142, 5
      %v4145 = vor.u32 %v4141, %v4144
      %v4146 = vrot.slane %v4145, 4
      %v4148 = vshll.u32 %v3839, 16
      %v4150 = vrot.slane %v4148, 5
      %v4151 = vsel %vm1378, %v4146, %v4150
      %v4152 = vshrl.u32 %v3839, 16
      %v4154 = vrot.slane %v4152, 4
      %v4155 = vor.u32 %v4154, %v4150
      %v4156 = vrot.slane %v4155, 4
      %v4158 = vshll.u32 %v3840, 16
      %v4160 = vrot.slane %v4158, 5
      %v4161 = vsel %vm1378, %v4156, %v4160
      %v4163 = vshrl.u32 %v3841, 16
      %v4165 = vrot.slane %v4163, 4
      %v4166 = vshll.u32 %v3841, 16
      %v4168 = vrot.slane %v4166, 5
      %v4169 = vor.u32 %v4165, %v4168
      %v4170 = vrot.slane %v4169, 4
      %v4172 = vshll.u32 %v3842, 16
      %v4174 = vrot.slane %v4172, 5
      %v4175 = vsel %vm1378, %v4170, %v4174
      %v4176 = vshrl.u32 %v3842, 16
      %v4178 = vrot.slane %v4176, 4
      %v4179 = vor.u32 %v4178, %v4174
      %v4180 = vrot.slane %v4179, 4
      %v4182 = vshll.u32 %v3843, 16
      %v4184 = vrot.slane %v4182, 5
      %v4185 = vsel %vm1378, %v4180, %v4184
      %v4187 = vshrl.u32 %v3844, 16
      %v4189 = vrot.slane %v4187, 4
      %v4190 = vshll.u32 %v3844, 16
      %v4192 = vrot.slane %v4190, 5
      %v4193 = vor.u32 %v4189, %v4192
      %v4194 = vrot.slane %v4193, 4
      %v4196 = vshll.u32 %v3845, 16
      %v4198 = vrot.slane %v4196, 5
      %v4199 = vsel %vm1378, %v4194, %v4198
      %v4200 = vshrl.u32 %v3845, 16
      %v4202 = vrot.slane %v4200, 4
      %v4203 = vor.u32 %v4202, %v4198
      %v4204 = vrot.slane %v4203, 4
      %v4206 = vshll.u32 %v3846, 16
      %v4208 = vrot.slane %v4206, 5
      %v4209 = vsel %vm1378, %v4204, %v4208
      %v4211 = vshrl.u32 %v3847, 16
      %v4213 = vrot.slane %v4211, 4
      %v4214 = vshll.u32 %v3847, 16
      %v4216 = vrot.slane %v4214, 5
      %v4217 = vor.u32 %v4213, %v4216
      %v4218 = vrot.slane %v4217, 4
      %v4220 = vshll.u32 %v3848, 16
      %v4222 = vrot.slane %v4220, 5
      %v4223 = vsel %vm1378, %v4218, %v4222
      %v4224 = vshrl.u32 %v3848, 16
      %v4226 = vrot.slane %v4224, 4
      %v4227 = vor.u32 %v4226, %v4222
      %v4228 = vrot.slane %v4227, 4
      %v4230 = vshll.u32 %v3849, 16
      %v4232 = vrot.slane %v4230, 5
      %v4233 = vsel %vm1378, %v4228, %v4232
      %v4234 = vunpack.c.l.b16 %v3863
      %v4235 = vunpack.c.l.b16 %v3873
      %v4236 = vunpack.c.l.b16 %v3887
      %v4237 = vunpack.c.l.b16 %v3897
      %v4238 = vunpack.c.l.b16 %v3911
      %v4239 = vunpack.c.l.b16 %v3921
      %v4240 = vunpack.c.l.b16 %v3935
      %v4241 = vunpack.c.l.b16 %v3945
      %v4242 = vunpack.c.l.b16 %v3959
      %v4243 = vunpack.c.l.b16 %v3969
      %v4244 = vunpack.c.l.b16 %v3983
      %v4245 = vunpack.c.l.b16 %v3993
      %v4246 = vunpack.c.l.b16 %v4007
      %v4247 = vunpack.c.l.b16 %v4017
      %v4248 = vunpack.c.l.b16 %v4031
      %v4249 = vunpack.c.l.b16 %v4041
      %v4250 = vunpack.c.l.b16 %v4055
      %v4251 = vunpack.c.l.b16 %v4065
      %v4252 = vunpack.c.l.b16 %v4079
      %v4253 = vunpack.c.l.b16 %v4089
      %v4254 = vunpack.c.l.b16 %v4103
      %v4255 = vunpack.c.l.b16 %v4113
      %v4256 = vunpack.c.l.b16 %v4127
      %v4257 = vunpack.c.l.b16 %v4137
      %v4258 = vunpack.c.l.b16 %v4151
      %v4259 = vunpack.c.l.b16 %v4161
      %v4260 = vunpack.c.l.b16 %v4175
      %v4261 = vunpack.c.l.b16 %v4185
      %v4262 = vunpack.c.l.b16 %v4199
      %v4263 = vunpack.c.l.b16 %v4209
      %v4264 = vunpack.c.l.b16 %v4223
      %v4265 = vunpack.c.l.b16 %v4233
      %v4266 = vpack.c.b16 %v4235, %v4234
      %v4267 = vpack.c.b16 %v4237, %v4236
      %v4268 = vpack.c.b16 %v4239, %v4238
      %v4269 = vpack.c.b16 %v4241, %v4240
      %v4270 = vpack.c.b16 %v4243, %v4242
      %v4271 = vpack.c.b16 %v4245, %v4244
      %v4272 = vpack.c.b16 %v4247, %v4246
      %v4273 = vpack.c.b16 %v4249, %v4248
      %v4274 = vpack.c.b16 %v4251, %v4250
      %v4275 = vpack.c.b16 %v4253, %v4252
      %v4276 = vpack.c.b16 %v4255, %v4254
      %v4277 = vpack.c.b16 %v4257, %v4256
      %v4278 = vpack.c.b16 %v4259, %v4258
      %v4279 = vpack.c.b16 %v4261, %v4260
      %v4280 = vpack.c.b16 %v4263, %v4262
      %v4281 = vpack.c.b16 %v4265, %v4264
      %4282 = vrot.lane.b32.xlu0 %v4266, 32
      %v4283 = vpop.permute.xlu0 %4282
      %4284 = vrot.lane.b32.xlu0 %v4267, 32
      %v4285 = vpop.permute.xlu0 %4284
      %4286 = vrot.lane.b32.xlu0 %v4268, 32
      %v4287 = vpop.permute.xlu0 %4286
      %4288 = vrot.lane.b32.xlu0 %v4269, 32
      %v4289 = vpop.permute.xlu0 %4288
      %4290 = vrot.lane.b32.xlu0 %v4270, 32
      %v4291 = vpop.permute.xlu0 %4290
      %4292 = vrot.lane.b32.xlu0 %v4271, 32
      %v4293 = vpop.permute.xlu0 %4292
      %4294 = vrot.lane.b32.xlu0 %v4272, 32
      %v4295 = vpop.permute.xlu0 %4294
      %4296 = vrot.lane.b32.xlu0 %v4273, 32
      %v4297 = vpop.permute.xlu0 %4296
      %4298 = vrot.lane.b32.xlu0 %v4274, 32
      %v4299 = vpop.permute.xlu0 %4298
      %4300 = vrot.lane.b32.xlu0 %v4275, 32
      %v4301 = vpop.permute.xlu0 %4300
      %4302 = vrot.lane.b32.xlu0 %v4276, 32
      %v4303 = vpop.permute.xlu0 %4302
      %4304 = vrot.lane.b32.xlu0 %v4277, 32
      %v4305 = vpop.permute.xlu0 %4304
      %4306 = vrot.lane.b32.xlu0 %v4278, 32
      %v4307 = vpop.permute.xlu0 %4306
      %4308 = vrot.lane.b32.xlu0 %v4279, 32
      %v4309 = vpop.permute.xlu0 %4308
      %4310 = vrot.lane.b32.xlu0 %v4280, 32
      %v4311 = vpop.permute.xlu0 %4310
      %4312 = vrot.lane.b32.xlu0 %v4281, 32
      %v4313 = vpop.permute.xlu0 %4312
      %vm4330 = vcmask 294144
      %4331 = vst.msk [vmem:[#allocation4] sm:$0xff] %vm4330, %v4283
      %4332 = vst.msk [vmem:[#allocation4 + $0x8] sm:$0xff] %vm4330, %v4285
      %4333 = vst.msk [vmem:[#allocation4 + $0x10] sm:$0xff] %vm4330, %v4287
      %4334 = vst.msk [vmem:[#allocation4 + $0x18] sm:$0xff] %vm4330, %v4289
      %4335 = vst.msk [vmem:[#allocation4 + $0x20] sm:$0xff] %vm4330, %v4291
      %4336 = vst.msk [vmem:[#allocation4 + $0x28] sm:$0xff] %vm4330, %v4293
      %4337 = vst.msk [vmem:[#allocation4 + $0x30] sm:$0xff] %vm4330, %v4295
      %4338 = vst.msk [vmem:[#allocation4 + $0x38] sm:$0xff] %vm4330, %v4297
      %4339 = vst.msk [vmem:[#allocation4 + $0x40] sm:$0xff] %vm4330, %v4299
      %4340 = vst.msk [vmem:[#allocation4 + $0x48] sm:$0xff] %vm4330, %v4301
      %4341 = vst.msk [vmem:[#allocation4 + $0x50] sm:$0xff] %vm4330, %v4303
      %4342 = vst.msk [vmem:[#allocation4 + $0x58] sm:$0xff] %vm4330, %v4305
      %4343 = vst.msk [vmem:[#allocation4 + $0x60] sm:$0xff] %vm4330, %v4307
      %4344 = vst.msk [vmem:[#allocation4 + $0x68] sm:$0xff] %vm4330, %v4309
      %4345 = vst.msk [vmem:[#allocation4 + $0x70] sm:$0xff] %vm4330, %v4311
      %4346 = vst.msk [vmem:[#allocation4 + $0x78] sm:$0xff] %vm4330, %v4313
      %v4347 = vld [vmem:[#allocation4] sm:$0xff]
      %v4348 = vld [vmem:[#allocation4 + $0x8] sm:$0xff]
      %v4349 = vld [vmem:[#allocation4 + $0x10] sm:$0xff]
      %v4350 = vld [vmem:[#allocation4 + $0x18] sm:$0xff]
      %v4351 = vld [vmem:[#allocation4 + $0x20] sm:$0xff]
      %v4352 = vld [vmem:[#allocation4 + $0x28] sm:$0xff]
      %v4353 = vld [vmem:[#allocation4 + $0x30] sm:$0xff]
      %v4354 = vld [vmem:[#allocation4 + $0x38] sm:$0xff]
      %v4355 = vld [vmem:[#allocation4 + $0x40] sm:$0xff]
      %v4356 = vld [vmem:[#allocation4 + $0x48] sm:$0xff]
      %v4357 = vld [vmem:[#allocation4 + $0x50] sm:$0xff]
      %v4358 = vld [vmem:[#allocation4 + $0x58] sm:$0xff]
      %v4359 = vld [vmem:[#allocation4 + $0x60] sm:$0xff]
      %v4360 = vld [vmem:[#allocation4 + $0x68] sm:$0xff]
      %v4361 = vld [vmem:[#allocation4 + $0x70] sm:$0xff]
      %v4362 = vld [vmem:[#allocation4 + $0x78] sm:$0xff]
      %v4363 = vld [vmem:[%s1] sm:$0xf]
      %v4364 = vld [vmem:[%s1 + $0x4] sm:$0xf]
      %v4365 = vld [vmem:[%s1 + $0x8] sm:$0xf]
      %v4366 = vld [vmem:[%s1 + $0xc] sm:$0xf]
      %v4367 = vld [vmem:[%s1 + $0x10] sm:$0x3]
      %v4368 = vld [vmem:[%s2] sm:$0x1]
      %v4370 = vlaneseq
      %v4371 = vshrl.u32 %v4370, 7
      %v4372 = vsub.s32 0, %v4371
      %v4373 = vrot.slane %v4368, %v4372
      %v4380 = vunpack.c.l.b16 %v4363
      %v4381 = vunpack.c.l.b16 %v4364
      %v4382 = vunpack.c.l.b16 %v4365
      %v4383 = vunpack.c.l.b16 %v4366
      %v4384 = vunpack.c.l.b16 %v4367
      %v4385 = vpack.c.b16 %v4381, %v4380
      %v4386 = vpack.c.b16 %v4383, %v4382
      %v4387 = vpack.c.b16 %v4384, %v4384
      %vm4390 = vcmask 293888
      %v4392 = vsel %vm4390, %v4347, 0
      %v4395 = vsel %vm4390, %v4348, 0
      %v4398 = vsel %vm4390, %v4349, 0
      %v4401 = vsel %vm4390, %v4350, 0
      %v4404 = vsel %vm4390, %v4351, 0
      %v4407 = vsel %vm4390, %v4352, 0
      %v4410 = vsel %vm4390, %v4353, 0
      %v4413 = vsel %vm4390, %v4354, 0
      %v4416 = vsel %vm4390, %v4355, 0
      %v4419 = vsel %vm4390, %v4356, 0
      %v4422 = vsel %vm4390, %v4357, 0
      %v4425 = vsel %vm4390, %v4358, 0
      %v4428 = vsel %vm4390, %v4359, 0
      %v4431 = vsel %vm4390, %v4360, 0
      %v4434 = vsel %vm4390, %v4361, 0
      %v4437 = vsel %vm4390, %v4362, 0
      %vm4439 = vcmask 1041408
      %v4441 = vsel %vm4439, %v4387, 0
      %4443 = vmatprep.subr.bf16.mxu0 0
      %4444 = vmatpush1.bf16.msra.mxu0 %v4385
      %4445 = vmatprep.subr.bf16.mxu0 0
      %4446 = vmatpush1.bf16.msra.mxu0 %v4386
      %4447 = vmatprep.subr.bf16.mxu0 0
      %4448 = vmatpush1.bf16.msra.mxu0 %v4441
      %4449 = vmatprep.subr.bf16.mxu0 0
      %4450 = vmatpush1.bf16.msra.mxu0 0
      %4451 = vmatprep.subr.bf16.mxu0 0
      %4452 = vmatpush1.bf16.msra.mxu0 0
      %4453 = vmatprep.subr.bf16.mxu0 0
      %4454 = vmatpush1.bf16.msra.mxu0 0
      %4455 = vmatprep.subr.bf16.mxu0 0
      %4456 = vmatpush1.bf16.msra.mxu0 0
      %4457 = vmatprep.subr.bf16.mxu0 0
      %4458 = vmatpush1.bf16.msra.mxu0 0
      %4459 = vmatprep.subr.bf16.mxu0 0
      %4460 = vmatpush1.bf16.msra.mxu0 0
      %4461 = vmatprep.subr.bf16.mxu0 0
      %4462 = vmatpush1.bf16.msra.mxu0 0
      %4463 = vmatprep.subr.bf16.mxu0 0
      %4464 = vmatpush1.bf16.msra.mxu0 0
      %4465 = vmatprep.subr.bf16.mxu0 0
      %4466 = vmatpush1.bf16.msra.mxu0 0
      %4467 = vmatprep.subr.bf16.mxu0 0
      %4468 = vmatpush1.bf16.msra.mxu0 0
      %4469 = vmatprep.subr.bf16.mxu0 0
      %4470 = vmatpush1.bf16.msra.mxu0 0
      %4471 = vmatprep.subr.bf16.mxu0 0
      %4472 = vmatpush1.bf16.msra.mxu0 0
      %4473 = vmatprep.subr.bf16.mxu0 0
      %4474 = vmatpush1.bf16.msra.mxu0 0
      %4475 = vmatprep.mubr.bf16.mxu0 0
      %4476 = vmatmul.mubr.bf16.gmra.mrb[0].mxu0 %v4392
      %v4477 = vpop.f32.mrb[0].mxu0
      %v4478 = vadd.f32 %v4373, %v4477
      %v4479 = vpop.f32.mrb[0].mxu0
      %v4480 = vpop.f32.mrb[0].mxu0
      %v4481 = vadd.f32 %v4373, %v4480
      %v4482 = vpop.f32.mrb[0].mxu0
      %4483 = vmatprep.mubr.bf16.mxu0 0
      %4484 = vmatmul.mubr.bf16.gmra.mrb[0].mxu0 %v4395
      %v4485 = vpop.f32.mrb[0].mxu0
      %v4486 = vadd.f32 %v4373, %v4485
      %v4487 = vpop.f32.mrb[0].mxu0
      %v4488 = vpop.f32.mrb[0].mxu0
      %v4489 = vadd.f32 %v4373, %v4488
      %v4490 = vpop.f32.mrb[0].mxu0
      %4491 = vmatprep.mubr.bf16.mxu0 0
      %4492 = vmatmul.mubr.bf16.gmra.mrb[0].mxu0 %v4398
      %v4493 = vpop.f32.mrb[0].mxu0
      %v4494 = vadd.f32 %v4373, %v4493
      %v4495 = vpop.f32.mrb[0].mxu0
      %v4496 = vpop.f32.mrb[0].mxu0
      %v4497 = vadd.f32 %v4373, %v4496
      %v4498 = vpop.f32.mrb[0].mxu0
      %4499 = vmatprep.mubr.bf16.mxu0 0
      %4500 = vmatmul.mubr.bf16.gmra.mrb[0].mxu0 %v4401
      %v4501 = vpop.f32.mrb[0].mxu0
      %v4502 = vadd.f32 %v4373, %v4501
      %v4503 = vpop.f32.mrb[0].mxu0
      %v4504 = vpop.f32.mrb[0].mxu0
      %v4505 = vadd.f32 %v4373, %v4504
      %v4506 = vpop.f32.mrb[0].mxu0
      %4507 = vmatprep.mubr.bf16.mxu0 0
      %4508 = vmatmul.mubr.bf16.gmra.mrb[0].mxu0 %v4404
      %v4509 = vpop.f32.mrb[0].mxu0
      %v4510 = vadd.f32 %v4373, %v4509
      %v4511 = vpop.f32.mrb[0].mxu0
      %v4512 = vpop.f32.mrb[0].mxu0
      %v4513 = vadd.f32 %v4373, %v4512
      %v4514 = vpop.f32.mrb[0].mxu0
      %4515 = vmatprep.mubr.bf16.mxu0 0
      %4516 = vmatmul.mubr.bf16.gmra.mrb[0].mxu0 %v4407
      %v4517 = vpop.f32.mrb[0].mxu0
      %v4518 = vadd.f32 %v4373, %v4517
      %v4519 = vpop.f32.mrb[0].mxu0
      %v4520 = vpop.f32.mrb[0].mxu0
      %v4521 = vadd.f32 %v4373, %v4520
      %v4522 = vpop.f32.mrb[0].mxu0
      %4523 = vmatprep.mubr.bf16.mxu0 0
      %4524 = vmatmul.mubr.bf16.gmra.mrb[0].mxu0 %v4410
      %v4525 = vpop.f32.mrb[0].mxu0
      %v4526 = vadd.f32 %v4373, %v4525
      %v4527 = vpop.f32.mrb[0].mxu0
      %v4528 = vpop.f32.mrb[0].mxu0
      %v4529 = vadd.f32 %v4373, %v4528
      %v4530 = vpop.f32.mrb[0].mxu0
      %4531 = vmatprep.mubr.bf16.mxu0 0
      %4532 = vmatmul.mubr.bf16.gmra.mrb[0].mxu0 %v4413
      %v4533 = vpop.f32.mrb[0].mxu0
      %v4534 = vadd.f32 %v4373, %v4533
      %v4535 = vpop.f32.mrb[0].mxu0
      %v4536 = vpop.f32.mrb[0].mxu0
      %v4537 = vadd.f32 %v4373, %v4536
      %v4538 = vpop.f32.mrb[0].mxu0
      %4539 = vmatprep.mubr.bf16.mxu0 0
      %4540 = vmatmul.mubr.bf16.gmra.mrb[0].mxu0 %v4416
      %v4541 = vpop.f32.mrb[0].mxu0
      %v4542 = vadd.f32 %v4373, %v4541
      %v4543 = vpop.f32.mrb[0].mxu0
      %v4544 = vpop.f32.mrb[0].mxu0
      %v4545 = vadd.f32 %v4373, %v4544
      %v4546 = vpop.f32.mrb[0].mxu0
      %4547 = vmatprep.mubr.bf16.mxu0 0
      %4548 = vmatmul.mubr.bf16.gmra.mrb[0].mxu0 %v4419
      %v4549 = vpop.f32.mrb[0].mxu0
      %v4550 = vadd.f32 %v4373, %v4549
      %v4551 = vpop.f32.mrb[0].mxu0
      %v4552 = vpop.f32.mrb[0].mxu0
      %v4553 = vadd.f32 %v4373, %v4552
      %v4554 = vpop.f32.mrb[0].mxu0
      %4555 = vmatprep.mubr.bf16.mxu0 0
      %4556 = vmatmul.mubr.bf16.gmra.mrb[0].mxu0 %v4422
      %v4557 = vpop.f32.mrb[0].mxu0
      %v4558 = vadd.f32 %v4373, %v4557
      %v4559 = vpop.f32.mrb[0].mxu0
      %v4560 = vpop.f32.mrb[0].mxu0
      %v4561 = vadd.f32 %v4373, %v4560
      %v4562 = vpop.f32.mrb[0].mxu0
      %4563 = vmatprep.mubr.bf16.mxu0 0
      %4564 = vmatmul.mubr.bf16.gmra.mrb[0].mxu0 %v4425
      %v4565 = vpop.f32.mrb[0].mxu0
      %v4566 = vadd.f32 %v4373, %v4565
      %v4567 = vpop.f32.mrb[0].mxu0
      %v4568 = vpop.f32.mrb[0].mxu0
      %v4569 = vadd.f32 %v4373, %v4568
      %v4570 = vpop.f32.mrb[0].mxu0
      %4571 = vmatprep.mubr.bf16.mxu0 0
      %4572 = vmatmul.mubr.bf16.gmra.mrb[0].mxu0 %v4428
      %v4573 = vpop.f32.mrb[0].mxu0
      %v4574 = vadd.f32 %v4373, %v4573
      %v4575 = vpop.f32.mrb[0].mxu0
      %v4576 = vpop.f32.mrb[0].mxu0
      %v4577 = vadd.f32 %v4373, %v4576
      %v4578 = vpop.f32.mrb[0].mxu0
      %4579 = vmatprep.mubr.bf16.mxu0 0
      %4580 = vmatmul.mubr.bf16.gmra.mrb[0].mxu0 %v4431
      %v4581 = vpop.f32.mrb[0].mxu0
      %v4582 = vadd.f32 %v4373, %v4581
      %v4583 = vpop.f32.mrb[0].mxu0
      %v4584 = vpop.f32.mrb[0].mxu0
      %v4585 = vadd.f32 %v4373, %v4584
      %v4586 = vpop.f32.mrb[0].mxu0
      %4587 = vmatprep.mubr.bf16.mxu0 0
      %4588 = vmatmul.mubr.bf16.gmra.mrb[0].mxu0 %v4434
      %v4589 = vpop.f32.mrb[0].mxu0
      %v4590 = vadd.f32 %v4373, %v4589
      %v4591 = vpop.f32.mrb[0].mxu0
      %v4592 = vpop.f32.mrb[0].mxu0
      %v4593 = vadd.f32 %v4373, %v4592
      %v4594 = vpop.f32.mrb[0].mxu0
      %4595 = vmatprep.mubr.bf16.mxu0 0
      %4596 = vmatmul.mubr.bf16.gmra.mrb[0].mxu0 %v4437
      %v4597 = vpop.f32.mrb[0].mxu0
      %v4598 = vadd.f32 %v4373, %v4597
      %v4599 = vpop.f32.mrb[0].mxu0
      %v4600 = vpop.f32.mrb[0].mxu0
      %v4601 = vadd.f32 %v4373, %v4600
      %v4602 = vpop.f32.mrb[0].mxu0
      %4603 = vdwg.mxu0
      %v4604 = vmax.f32 %v4478, 0.0
      %v4605 = vmax.f32 %v4481, 0.0
      %v4606 = vmax.f32 %v4486, 0.0
      %v4607 = vmax.f32 %v4489, 0.0
      %v4608 = vmax.f32 %v4494, 0.0
      %v4609 = vmax.f32 %v4497, 0.0
      %v4610 = vmax.f32 %v4502, 0.0
      %v4611 = vmax.f32 %v4505, 0.0
      %v4612 = vmax.f32 %v4510, 0.0
      %v4613 = vmax.f32 %v4513, 0.0
      %v4614 = vmax.f32 %v4518, 0.0
      %v4615 = vmax.f32 %v4521, 0.0
      %v4616 = vmax.f32 %v4526, 0.0
      %v4617 = vmax.f32 %v4529, 0.0
      %v4618 = vmax.f32 %v4534, 0.0
      %v4619 = vmax.f32 %v4537, 0.0
      %v4620 = vmax.f32 %v4542, 0.0
      %v4621 = vmax.f32 %v4545, 0.0
      %v4622 = vmax.f32 %v4550, 0.0
      %v4623 = vmax.f32 %v4553, 0.0
      %v4624 = vmax.f32 %v4558, 0.0
      %v4625 = vmax.f32 %v4561, 0.0
      %v4626 = vmax.f32 %v4566, 0.0
      %v4627 = vmax.f32 %v4569, 0.0
      %v4628 = vmax.f32 %v4574, 0.0
      %v4629 = vmax.f32 %v4577, 0.0
      %v4630 = vmax.f32 %v4582, 0.0
      %v4631 = vmax.f32 %v4585, 0.0
      %v4632 = vmax.f32 %v4590, 0.0
      %v4633 = vmax.f32 %v4593, 0.0
      %v4634 = vmax.f32 %v4598, 0.0
      %v4635 = vmax.f32 %v4601, 0.0
      %v4636 = vpack.c.bf16 %v4605, %v4604
      %v4637 = vpack.c.bf16 %v4607, %v4606
      %v4638 = vpack.c.bf16 %v4609, %v4608
      %v4639 = vpack.c.bf16 %v4611, %v4610
      %v4640 = vpack.c.bf16 %v4613, %v4612
      %v4641 = vpack.c.bf16 %v4615, %v4614
      %v4642 = vpack.c.bf16 %v4617, %v4616
      %v4643 = vpack.c.bf16 %v4619, %v4618
      %v4644 = vpack.c.bf16 %v4621, %v4620
      %v4645 = vpack.c.bf16 %v4623, %v4622
      %v4646 = vpack.c.bf16 %v4625, %v4624
      %v4647 = vpack.c.bf16 %v4627, %v4626
      %v4648 = vpack.c.bf16 %v4629, %v4628
      %v4649 = vpack.c.bf16 %v4631, %v4630
      %v4650 = vpack.c.bf16 %v4633, %v4632
      %v4651 = vpack.c.bf16 %v4635, %v4634
      %v4668 = vunpack.c.l.b16 %v4636
      %v4669 = vunpack.c.h.b16 %v4636
      %v4670 = vunpack.c.l.b16 %v4637
      %v4671 = vunpack.c.h.b16 %v4637
      %v4672 = vunpack.c.l.b16 %v4638
      %v4673 = vunpack.c.h.b16 %v4638
      %v4674 = vunpack.c.l.b16 %v4639
      %v4675 = vunpack.c.h.b16 %v4639
      %v4676 = vunpack.c.l.b16 %v4640
      %v4677 = vunpack.c.h.b16 %v4640
      %v4678 = vunpack.c.l.b16 %v4641
      %v4679 = vunpack.c.h.b16 %v4641
      %v4680 = vunpack.c.l.b16 %v4642
      %v4681 = vunpack.c.h.b16 %v4642
      %v4682 = vunpack.c.l.b16 %v4643
      %v4683 = vunpack.c.h.b16 %v4643
      %v4684 = vunpack.c.l.b16 %v4644
      %v4685 = vunpack.c.h.b16 %v4644
      %v4686 = vunpack.c.l.b16 %v4645
      %v4687 = vunpack.c.h.b16 %v4645
      %v4688 = vunpack.c.l.b16 %v4646
      %v4689 = vunpack.c.h.b16 %v4646
      %v4690 = vunpack.c.l.b16 %v4647
      %v4691 = vunpack.c.h.b16 %v4647
      %v4692 = vunpack.c.l.b16 %v4648
      %v4693 = vunpack.c.h.b16 %v4648
      %v4694 = vunpack.c.l.b16 %v4649
      %v4695 = vunpack.c.h.b16 %v4649
      %v4696 = vunpack.c.l.b16 %v4650
      %v4697 = vunpack.c.h.b16 %v4650
      %v4698 = vunpack.c.l.b16 %v4651
      %v4699 = vunpack.c.h.b16 %v4651
      %v4700 = vpack.c.b16 %v4668, %v4668
      %v4701 = vpack.c.b16 %v4669, %v4669
      %v4702 = vpack.c.b16 %v4670, %v4670
      %v4703 = vpack.c.b16 %v4671, %v4671
      %v4704 = vpack.c.b16 %v4672, %v4672
      %v4705 = vpack.c.b16 %v4673, %v4673
      %v4706 = vpack.c.b16 %v4674, %v4674
      %v4707 = vpack.c.b16 %v4675, %v4675
      %v4708 = vpack.c.b16 %v4676, %v4676
      %v4709 = vpack.c.b16 %v4677, %v4677
      %v4710 = vpack.c.b16 %v4678, %v4678
      %v4711 = vpack.c.b16 %v4679, %v4679
      %v4712 = vpack.c.b16 %v4680, %v4680
      %v4713 = vpack.c.b16 %v4681, %v4681
      %v4714 = vpack.c.b16 %v4682, %v4682
      %v4715 = vpack.c.b16 %v4683, %v4683
      %v4716 = vpack.c.b16 %v4684, %v4684
      %v4717 = vpack.c.b16 %v4685, %v4685
      %v4718 = vpack.c.b16 %v4686, %v4686
      %v4719 = vpack.c.b16 %v4687, %v4687
      %v4720 = vpack.c.b16 %v4688, %v4688
      %v4721 = vpack.c.b16 %v4689, %v4689
      %v4722 = vpack.c.b16 %v4690, %v4690
      %v4723 = vpack.c.b16 %v4691, %v4691
      %v4724 = vpack.c.b16 %v4692, %v4692
      %v4725 = vpack.c.b16 %v4693, %v4693
      %v4726 = vpack.c.b16 %v4694, %v4694
      %v4727 = vpack.c.b16 %v4695, %v4695
      %v4728 = vpack.c.b16 %v4696, %v4696
      %v4729 = vpack.c.b16 %v4697, %v4697
      %v4730 = vpack.c.b16 %v4698, %v4698
      %v4731 = vpack.c.b16 %v4699, %v4699
      %s4764 = scalar_lea.vmem [#allocation3], 16
      %4765 = vst.msk [vmem:[%s4764 + $0x4] sm:$0xf] %vm226, %v4700
      %4766 = vst.msk [vmem:[%s4764 + $0x8] sm:$0xf] %vm226, %v4701
      %4767 = vst.msk [vmem:[%s4764 + $0x14] sm:$0xf] %vm226, %v4702
      %4768 = vst.msk [vmem:[%s4764 + $0x18] sm:$0xf] %vm226, %v4703
      %4769 = vst.msk [vmem:[%s4764 + $0x24] sm:$0xf] %vm226, %v4704
      %4770 = vst.msk [vmem:[%s4764 + $0x28] sm:$0xf] %vm226, %v4705
      %4771 = vst.msk [vmem:[%s4764 + $0x34] sm:$0xf] %vm226, %v4706
      %4772 = vst.msk [vmem:[%s4764 + $0x38] sm:$0xf] %vm226, %v4707
      %4773 = vst.msk [vmem:[%s4764 + $0x44] sm:$0xf] %vm226, %v4708
      %4774 = vst.msk [vmem:[%s4764 + $0x48] sm:$0xf] %vm226, %v4709
      %4775 = vst.msk [vmem:[%s4764 + $0x54] sm:$0xf] %vm226, %v4710
      %4776 = vst.msk [vmem:[%s4764 + $0x58] sm:$0xf] %vm226, %v4711
      %4777 = vst.msk [vmem:[%s4764 + $0x64] sm:$0xf] %vm226, %v4712
      %4778 = vst.msk [vmem:[%s4764 + $0x68] sm:$0xf] %vm226, %v4713
      %4779 = vst.msk [vmem:[%s4764 + $0x74] sm:$0xf] %vm226, %v4714
      %4780 = vst.msk [vmem:[%s4764 + $0x78] sm:$0xf] %vm226, %v4715
      %4781 = vst.msk [vmem:[%s4764 + $0x84] sm:$0xf] %vm226, %v4716
      %4782 = vst.msk [vmem:[%s4764 + $0x88] sm:$0xf] %vm226, %v4717
      %4783 = vst.msk [vmem:[%s4764 + $0x94] sm:$0xf] %vm226, %v4718
      %4784 = vst.msk [vmem:[%s4764 + $0x98] sm:$0xf] %vm226, %v4719
      %4785 = vst.msk [vmem:[%s4764 + $0xa4] sm:$0xf] %vm226, %v4720
      %4786 = vst.msk [vmem:[%s4764 + $0xa8] sm:$0xf] %vm226, %v4721
      %4787 = vst.msk [vmem:[%s4764 + $0xb4] sm:$0xf] %vm226, %v4722
      %4788 = vst.msk [vmem:[%s4764 + $0xb8] sm:$0xf] %vm226, %v4723
      %4789 = vst.msk [vmem:[%s4764 + $0xc4] sm:$0xf] %vm226, %v4724
      %4790 = vst.msk [vmem:[%s4764 + $0xc8] sm:$0xf] %vm226, %v4725
      %4791 = vst.msk [vmem:[%s4764 + $0xd4] sm:$0xf] %vm226, %v4726
      %4792 = vst.msk [vmem:[%s4764 + $0xd8] sm:$0xf] %vm226, %v4727
      %4793 = vst.msk [vmem:[%s4764 + $0xe4] sm:$0xf] %vm226, %v4728
      %4794 = vst.msk [vmem:[%s4764 + $0xe8] sm:$0xf] %vm226, %v4729
      %4795 = vst.msk [vmem:[%s4764 + $0xf4] sm:$0xf] %vm226, %v4730
      %4796 = vst.msk [vmem:[%s4764 + $0xf8] sm:$0xf] %vm226, %v4731
      %v4797 = vld [vmem:[#allocation3] sm:$0x8]
      %v4798 = vld [vmem:[#allocation3 + $0x4] sm:$0xf]
      %v4799 = vld [vmem:[#allocation3 + $0x8] sm:$0xf]
      %v4800 = vld [vmem:[#allocation3 + $0x10] sm:$0x8]
      %v4801 = vld [vmem:[#allocation3 + $0x14] sm:$0xf]
      %v4802 = vld [vmem:[#allocation3 + $0x18] sm:$0xf]
      %v4803 = vld [vmem:[#allocation3 + $0x20] sm:$0x8]
      %v4804 = vld [vmem:[#allocation3 + $0x24] sm:$0xf]
      %v4805 = vld [vmem:[#allocation3 + $0x28] sm:$0xf]
      %v4806 = vld [vmem:[#allocation3 + $0x30] sm:$0x8]
      %v4807 = vld [vmem:[#allocation3 + $0x34] sm:$0xf]
      %v4808 = vld [vmem:[#allocation3 + $0x38] sm:$0xf]
      %v4809 = vld [vmem:[#allocation3 + $0x40] sm:$0x8]
      %v4810 = vld [vmem:[#allocation3 + $0x44] sm:$0xf]
      %v4811 = vld [vmem:[#allocation3 + $0x48] sm:$0xf]
      %v4812 = vld [vmem:[#allocation3 + $0x50] sm:$0x8]
      %v4813 = vld [vmem:[#allocation3 + $0x54] sm:$0xf]
      %v4814 = vld [vmem:[#allocation3 + $0x58] sm:$0xf]
      %v4815 = vld [vmem:[#allocation3 + $0x60] sm:$0x8]
      %v4816 = vld [vmem:[#allocation3 + $0x64] sm:$0xf]
      %v4817 = vld [vmem:[#allocation3 + $0x68] sm:$0xf]
      %v4818 = vld [vmem:[#allocation3 + $0x70] sm:$0x8]
      %v4819 = vld [vmem:[#allocation3 + $0x74] sm:$0xf]
      %v4820 = vld [vmem:[#allocation3 + $0x78] sm:$0xf]
      %v4821 = vld [vmem:[#allocation3 + $0x80] sm:$0x8]
      %v4822 = vld [vmem:[#allocation3 + $0x84] sm:$0xf]
      %v4823 = vld [vmem:[#allocation3 + $0x88] sm:$0xf]
      %v4824 = vld [vmem:[#allocation3 + $0x90] sm:$0x8]
      %v4825 = vld [vmem:[#allocation3 + $0x94] sm:$0xf]
      %v4826 = vld [vmem:[#allocation3 + $0x98] sm:$0xf]
      %v4827 = vld [vmem:[#allocation3 + $0xa0] sm:$0x8]
      %v4828 = vld [vmem:[#allocation3 + $0xa4] sm:$0xf]
      %v4829 = vld [vmem:[#allocation3 + $0xa8] sm:$0xf]
      %v4830 = vld [vmem:[#allocation3 + $0xb0] sm:$0x8]
      %v4831 = vld [vmem:[#allocation3 + $0xb4] sm:$0xf]
      %v4832 = vld [vmem:[#allocation3 + $0xb8] sm:$0xf]
      %v4833 = vld [vmem:[#allocation3 + $0xc0] sm:$0x8]
      %v4834 = vld [vmem:[#allocation3 + $0xc4] sm:$0xf]
      %v4835 = vld [vmem:[#allocation3 + $0xc8] sm:$0xf]
      %v4836 = vld [vmem:[#allocation3 + $0xd0] sm:$0x8]
      %v4837 = vld [vmem:[#allocation3 + $0xd4] sm:$0xf]
      %v4838 = vld [vmem:[#allocation3 + $0xd8] sm:$0xf]
      %v4839 = vld [vmem:[#allocation3 + $0xe0] sm:$0x8]
      %v4840 = vld [vmem:[#allocation3 + $0xe4] sm:$0xf]
      %v4841 = vld [vmem:[#allocation3 + $0xe8] sm:$0xf]
      %v4842 = vld [vmem:[#allocation3 + $0xf0] sm:$0x8]
      %v4843 = vld [vmem:[#allocation3 + $0xf4] sm:$0xf]
      %v4844 = vld [vmem:[#allocation3 + $0xf8] sm:$0xf]
      %v4846 = vshrl.u32 %v4797, 16
      %v4848 = vrot.slane %v4846, 7
      %v4849 = vrot.slane %v4848, 4
      %v4851 = vshrl.u32 %v4798, 16
      %v4853 = vrot.slane %v4851, 7
      %v4854 = vshll.u32 %v4798, 16
      %v4856 = vor.u32 %v4853, %v4854
      %v4857 = vsel %vm717, %v4849, %v4856
      %v4858 = vrot.slane %v4853, 4
      %v4860 = vshrl.u32 %v4799, 16
      %v4862 = vrot.slane %v4860, 7
      %v4863 = vshll.u32 %v4799, 16
      %v4865 = vor.u32 %v4862, %v4863
      %v4866 = vsel %vm717, %v4858, %v4865
      %v4868 = vshrl.u32 %v4800, 16
      %v4870 = vrot.slane %v4868, 7
      %v4871 = vrot.slane %v4870, 4
      %v4873 = vshrl.u32 %v4801, 16
      %v4875 = vrot.slane %v4873, 7
      %v4876 = vshll.u32 %v4801, 16
      %v4878 = vor.u32 %v4875, %v4876
      %v4879 = vsel %vm717, %v4871, %v4878
      %v4880 = vrot.slane %v4875, 4
      %v4882 = vshrl.u32 %v4802, 16
      %v4884 = vrot.slane %v4882, 7
      %v4885 = vshll.u32 %v4802, 16
      %v4887 = vor.u32 %v4884, %v4885
      %v4888 = vsel %vm717, %v4880, %v4887
      %v4890 = vshrl.u32 %v4803, 16
      %v4892 = vrot.slane %v4890, 7
      %v4893 = vrot.slane %v4892, 4
      %v4895 = vshrl.u32 %v4804, 16
      %v4897 = vrot.slane %v4895, 7
      %v4898 = vshll.u32 %v4804, 16
      %v4900 = vor.u32 %v4897, %v4898
      %v4901 = vsel %vm717, %v4893, %v4900
      %v4902 = vrot.slane %v4897, 4
      %v4904 = vshrl.u32 %v4805, 16
      %v4906 = vrot.slane %v4904, 7
      %v4907 = vshll.u32 %v4805, 16
      %v4909 = vor.u32 %v4906, %v4907
      %v4910 = vsel %vm717, %v4902, %v4909
      %v4912 = vshrl.u32 %v4806, 16
      %v4914 = vrot.slane %v4912, 7
      %v4915 = vrot.slane %v4914, 4
      %v4917 = vshrl.u32 %v4807, 16
      %v4919 = vrot.slane %v4917, 7
      %v4920 = vshll.u32 %v4807, 16
      %v4922 = vor.u32 %v4919, %v4920
      %v4923 = vsel %vm717, %v4915, %v4922
      %v4924 = vrot.slane %v4919, 4
      %v4926 = vshrl.u32 %v4808, 16
      %v4928 = vrot.slane %v4926, 7
      %v4929 = vshll.u32 %v4808, 16
      %v4931 = vor.u32 %v4928, %v4929
      %v4932 = vsel %vm717, %v4924, %v4931
      %v4934 = vshrl.u32 %v4809, 16
      %v4936 = vrot.slane %v4934, 7
      %v4937 = vrot.slane %v4936, 4
      %v4939 = vshrl.u32 %v4810, 16
      %v4941 = vrot.slane %v4939, 7
      %v4942 = vshll.u32 %v4810, 16
      %v4944 = vor.u32 %v4941, %v4942
      %v4945 = vsel %vm717, %v4937, %v4944
      %v4946 = vrot.slane %v4941, 4
      %v4948 = vshrl.u32 %v4811, 16
      %v4950 = vrot.slane %v4948, 7
      %v4951 = vshll.u32 %v4811, 16
      %v4953 = vor.u32 %v4950, %v4951
      %v4954 = vsel %vm717, %v4946, %v4953
      %v4956 = vshrl.u32 %v4812, 16
      %v4958 = vrot.slane %v4956, 7
      %v4959 = vrot.slane %v4958, 4
      %v4961 = vshrl.u32 %v4813, 16
      %v4963 = vrot.slane %v4961, 7
      %v4964 = vshll.u32 %v4813, 16
      %v4966 = vor.u32 %v4963, %v4964
      %v4967 = vsel %vm717, %v4959, %v4966
      %v4968 = vrot.slane %v4963, 4
      %v4970 = vshrl.u32 %v4814, 16
      %v4972 = vrot.slane %v4970, 7
      %v4973 = vshll.u32 %v4814, 16
      %v4975 = vor.u32 %v4972, %v4973
      %v4976 = vsel %vm717, %v4968, %v4975
      %v4978 = vshrl.u32 %v4815, 16
      %v4980 = vrot.slane %v4978, 7
      %v4981 = vrot.slane %v4980, 4
      %v4983 = vshrl.u32 %v4816, 16
      %v4985 = vrot.slane %v4983, 7
      %v4986 = vshll.u32 %v4816, 16
      %v4988 = vor.u32 %v4985, %v4986
      %v4989 = vsel %vm717, %v4981, %v4988
      %v4990 = vrot.slane %v4985, 4
      %v4992 = vshrl.u32 %v4817, 16
      %v4994 = vrot.slane %v4992, 7
      %v4995 = vshll.u32 %v4817, 16
      %v4997 = vor.u32 %v4994, %v4995
      %v4998 = vsel %vm717, %v4990, %v4997
      %v5000 = vshrl.u32 %v4818, 16
      %v5002 = vrot.slane %v5000, 7
      %v5003 = vrot.slane %v5002, 4
      %v5005 = vshrl.u32 %v4819, 16
      %v5007 = vrot.slane %v5005, 7
      %v5008 = vshll.u32 %v4819, 16
      %v5010 = vor.u32 %v5007, %v5008
      %v5011 = vsel %vm717, %v5003, %v5010
      %v5012 = vrot.slane %v5007, 4
      %v5014 = vshrl.u32 %v4820, 16
      %v5016 = vrot.slane %v5014, 7
      %v5017 = vshll.u32 %v4820, 16
      %v5019 = vor.u32 %v5016, %v5017
      %v5020 = vsel %vm717, %v5012, %v5019
      %v5022 = vshrl.u32 %v4821, 16
      %v5024 = vrot.slane %v5022, 7
      %v5025 = vrot.slane %v5024, 4
      %v5027 = vshrl.u32 %v4822, 16
      %v5029 = vrot.slane %v5027, 7
      %v5030 = vshll.u32 %v4822, 16
      %v5032 = vor.u32 %v5029, %v5030
      %v5033 = vsel %vm717, %v5025, %v5032
      %v5034 = vrot.slane %v5029, 4
      %v5036 = vshrl.u32 %v4823, 16
      %v5038 = vrot.slane %v5036, 7
      %v5039 = vshll.u32 %v4823, 16
      %v5041 = vor.u32 %v5038, %v5039
      %v5042 = vsel %vm717, %v5034, %v5041
      %v5044 = vshrl.u32 %v4824, 16
      %v5046 = vrot.slane %v5044, 7
      %v5047 = vrot.slane %v5046, 4
      %v5049 = vshrl.u32 %v4825, 16
      %v5051 = vrot.slane %v5049, 7
      %v5052 = vshll.u32 %v4825, 16
      %v5054 = vor.u32 %v5051, %v5052
      %v5055 = vsel %vm717, %v5047, %v5054
      %v5056 = vrot.slane %v5051, 4
      %v5058 = vshrl.u32 %v4826, 16
      %v5060 = vrot.slane %v5058, 7
      %v5061 = vshll.u32 %v4826, 16
      %v5063 = vor.u32 %v5060, %v5061
      %v5064 = vsel %vm717, %v5056, %v5063
      %v5066 = vshrl.u32 %v4827, 16
      %v5068 = vrot.slane %v5066, 7
      %v5069 = vrot.slane %v5068, 4
      %v5071 = vshrl.u32 %v4828, 16
      %v5073 = vrot.slane %v5071, 7
      %v5074 = vshll.u32 %v4828, 16
      %v5076 = vor.u32 %v5073, %v5074
      %v5077 = vsel %vm717, %v5069, %v5076
      %v5078 = vrot.slane %v5073, 4
      %v5080 = vshrl.u32 %v4829, 16
      %v5082 = vrot.slane %v5080, 7
      %v5083 = vshll.u32 %v4829, 16
      %v5085 = vor.u32 %v5082, %v5083
      %v5086 = vsel %vm717, %v5078, %v5085
      %v5088 = vshrl.u32 %v4830, 16
      %v5090 = vrot.slane %v5088, 7
      %v5091 = vrot.slane %v5090, 4
      %v5093 = vshrl.u32 %v4831, 16
      %v5095 = vrot.slane %v5093, 7
      %v5096 = vshll.u32 %v4831, 16
      %v5098 = vor.u32 %v5095, %v5096
      %v5099 = vsel %vm717, %v5091, %v5098
      %v5100 = vrot.slane %v5095, 4
      %v5102 = vshrl.u32 %v4832, 16
      %v5104 = vrot.slane %v5102, 7
      %v5105 = vshll.u32 %v4832, 16
      %v5107 = vor.u32 %v5104, %v5105
      %v5108 = vsel %vm717, %v5100, %v5107
      %v5110 = vshrl.u32 %v4833, 16
      %v5112 = vrot.slane %v5110, 7
      %v5113 = vrot.slane %v5112, 4
      %v5115 = vshrl.u32 %v4834, 16
      %v5117 = vrot.slane %v5115, 7
      %v5118 = vshll.u32 %v4834, 16
      %v5120 = vor.u32 %v5117, %v5118
      %v5121 = vsel %vm717, %v5113, %v5120
      %v5122 = vrot.slane %v5117, 4
      %v5124 = vshrl.u32 %v4835, 16
      %v5126 = vrot.slane %v5124, 7
      %v5127 = vshll.u32 %v4835, 16
      %v5129 = vor.u32 %v5126, %v5127
      %v5130 = vsel %vm717, %v5122, %v5129
      %v5132 = vshrl.u32 %v4836, 16
      %v5134 = vrot.slane %v5132, 7
      %v5135 = vrot.slane %v5134, 4
      %v5137 = vshrl.u32 %v4837, 16
      %v5139 = vrot.slane %v5137, 7
      %v5140 = vshll.u32 %v4837, 16
      %v5142 = vor.u32 %v5139, %v5140
      %v5143 = vsel %vm717, %v5135, %v5142
      %v5144 = vrot.slane %v5139, 4
      %v5146 = vshrl.u32 %v4838, 16
      %v5148 = vrot.slane %v5146, 7
      %v5149 = vshll.u32 %v4838, 16
      %v5151 = vor.u32 %v5148, %v5149
      %v5152 = vsel %vm717, %v5144, %v5151
      %v5154 = vshrl.u32 %v4839, 16
      %v5156 = vrot.slane %v5154, 7
      %v5157 = vrot.slane %v5156, 4
      %v5159 = vshrl.u32 %v4840, 16
      %v5161 = vrot.slane %v5159, 7
      %v5162 = vshll.u32 %v4840, 16
      %v5164 = vor.u32 %v5161, %v5162
      %v5165 = vsel %vm717, %v5157, %v5164
      %v5166 = vrot.slane %v5161, 4
      %v5168 = vshrl.u32 %v4841, 16
      %v5170 = vrot.slane %v5168, 7
      %v5171 = vshll.u32 %v4841, 16
      %v5173 = vor.u32 %v5170, %v5171
      %v5174 = vsel %vm717, %v5166, %v5173
      %v5176 = vshrl.u32 %v4842, 16
      %v5178 = vrot.slane %v5176, 7
      %v5179 = vrot.slane %v5178, 4
      %v5181 = vshrl.u32 %v4843, 16
      %v5183 = vrot.slane %v5181, 7
      %v5184 = vshll.u32 %v4843, 16
      %v5186 = vor.u32 %v5183, %v5184
      %v5187 = vsel %vm717, %v5179, %v5186
      %v5188 = vrot.slane %v5183, 4
      %v5190 = vshrl.u32 %v4844, 16
      %v5192 = vrot.slane %v5190, 7
      %v5193 = vshll.u32 %v4844, 16
      %v5195 = vor.u32 %v5192, %v5193
      %v5196 = vsel %vm717, %v5188, %v5195
      %v5197 = vunpack.c.l.b16 %v4857
      %v5198 = vunpack.c.l.b16 %v4866
      %v5199 = vunpack.c.l.b16 %v4879
      %v5200 = vunpack.c.l.b16 %v4888
      %v5201 = vunpack.c.l.b16 %v4901
      %v5202 = vunpack.c.l.b16 %v4910
      %v5203 = vunpack.c.l.b16 %v4923
      %v5204 = vunpack.c.l.b16 %v4932
      %v5205 = vunpack.c.l.b16 %v4945
      %v5206 = vunpack.c.l.b16 %v4954
      %v5207 = vunpack.c.l.b16 %v4967
      %v5208 = vunpack.c.l.b16 %v4976
      %v5209 = vunpack.c.l.b16 %v4989
      %v5210 = vunpack.c.l.b16 %v4998
      %v5211 = vunpack.c.l.b16 %v5011
      %v5212 = vunpack.c.l.b16 %v5020
      %v5213 = vunpack.c.l.b16 %v5033
      %v5214 = vunpack.c.l.b16 %v5042
      %v5215 = vunpack.c.l.b16 %v5055
      %v5216 = vunpack.c.l.b16 %v5064
      %v5217 = vunpack.c.l.b16 %v5077
      %v5218 = vunpack.c.l.b16 %v5086
      %v5219 = vunpack.c.l.b16 %v5099
      %v5220 = vunpack.c.l.b16 %v5108
      %v5221 = vunpack.c.l.b16 %v5121
      %v5222 = vunpack.c.l.b16 %v5130
      %v5223 = vunpack.c.l.b16 %v5143
      %v5224 = vunpack.c.l.b16 %v5152
      %v5225 = vunpack.c.l.b16 %v5165
      %v5226 = vunpack.c.l.b16 %v5174
      %v5227 = vunpack.c.l.b16 %v5187
      %v5228 = vunpack.c.l.b16 %v5196
      %v5229 = vpack.c.b16 %v5198, %v5197
      %v5230 = vpack.c.b16 %v5200, %v5199
      %v5231 = vpack.c.b16 %v5202, %v5201
      %v5232 = vpack.c.b16 %v5204, %v5203
      %v5233 = vpack.c.b16 %v5206, %v5205
      %v5234 = vpack.c.b16 %v5208, %v5207
      %v5235 = vpack.c.b16 %v5210, %v5209
      %v5236 = vpack.c.b16 %v5212, %v5211
      %v5237 = vpack.c.b16 %v5214, %v5213
      %v5238 = vpack.c.b16 %v5216, %v5215
      %v5239 = vpack.c.b16 %v5218, %v5217
      %v5240 = vpack.c.b16 %v5220, %v5219
      %v5241 = vpack.c.b16 %v5222, %v5221
      %v5242 = vpack.c.b16 %v5224, %v5223
      %v5243 = vpack.c.b16 %v5226, %v5225
      %v5244 = vpack.c.b16 %v5228, %v5227
      %5261 = vst.msk [vmem:[#allocation4] sm:$0xff] %vm1134, %v5229
      %5262 = vst.msk [vmem:[#allocation4 + $0x8] sm:$0xff] %vm1134, %v5230
      %5263 = vst.msk [vmem:[#allocation4 + $0x10] sm:$0xff] %vm1134, %v5231
      %5264 = vst.msk [vmem:[#allocation4 + $0x18] sm:$0xff] %vm1134, %v5232
      %5265 = vst.msk [vmem:[#allocation4 + $0x20] sm:$0xff] %vm1134, %v5233
      %5266 = vst.msk [vmem:[#allocation4 + $0x28] sm:$0xff] %vm1134, %v5234
      %5267 = vst.msk [vmem:[#allocation4 + $0x30] sm:$0xff] %vm1134, %v5235
      %5268 = vst.msk [vmem:[#allocation4 + $0x38] sm:$0xff] %vm1134, %v5236
      %5269 = vst.msk [vmem:[#allocation4 + $0x40] sm:$0xff] %vm1134, %v5237
      %5270 = vst.msk [vmem:[#allocation4 + $0x48] sm:$0xff] %vm1134, %v5238
      %5271 = vst.msk [vmem:[#allocation4 + $0x50] sm:$0xff] %vm1134, %v5239
      %5272 = vst.msk [vmem:[#allocation4 + $0x58] sm:$0xff] %vm1134, %v5240
      %5273 = vst.msk [vmem:[#allocation4 + $0x60] sm:$0xff] %vm1134, %v5241
      %5274 = vst.msk [vmem:[#allocation4 + $0x68] sm:$0xff] %vm1134, %v5242
      %5275 = vst.msk [vmem:[#allocation4 + $0x70] sm:$0xff] %vm1134, %v5243
      %5276 = vst.msk [vmem:[#allocation4 + $0x78] sm:$0xff] %vm1134, %v5244
      %v5277 = vld [vmem:[#allocation3 + $0x4] sm:$0xf]
      %v5278 = vld [vmem:[#allocation3 + $0x8] sm:$0xf]
      %v5279 = vld [vmem:[#allocation3 + $0x14] sm:$0xf]
      %v5280 = vld [vmem:[#allocation3 + $0x18] sm:$0xf]
      %v5281 = vld [vmem:[#allocation3 + $0x24] sm:$0xf]
      %v5282 = vld [vmem:[#allocation3 + $0x28] sm:$0xf]
      %v5283 = vld [vmem:[#allocation3 + $0x34] sm:$0xf]
      %v5284 = vld [vmem:[#allocation3 + $0x38] sm:$0xf]
      %v5285 = vld [vmem:[#allocation3 + $0x44] sm:$0xf]
      %v5286 = vld [vmem:[#allocation3 + $0x48] sm:$0xf]
      %v5287 = vld [vmem:[#allocation3 + $0x54] sm:$0xf]
      %v5288 = vld [vmem:[#allocation3 + $0x58] sm:$0xf]
      %v5289 = vld [vmem:[#allocation3 + $0x64] sm:$0xf]
      %v5290 = vld [vmem:[#allocation3 + $0x68] sm:$0xf]
      %v5291 = vld [vmem:[#allocation3 + $0x74] sm:$0xf]
      %v5292 = vld [vmem:[#allocation3 + $0x78] sm:$0xf]
      %v5293 = vld [vmem:[#allocation3 + $0x84] sm:$0xf]
      %v5294 = vld [vmem:[#allocation3 + $0x88] sm:$0xf]
      %v5295 = vld [vmem:[#allocation3 + $0x94] sm:$0xf]
      %v5296 = vld [vmem:[#allocation3 + $0x98] sm:$0xf]
      %v5297 = vld [vmem:[#allocation3 + $0xa4] sm:$0xf]
      %v5298 = vld [vmem:[#allocation3 + $0xa8] sm:$0xf]
      %v5299 = vld [vmem:[#allocation3 + $0xb4] sm:$0xf]
      %v5300 = vld [vmem:[#allocation3 + $0xb8] sm:$0xf]
      %v5301 = vld [vmem:[#allocation3 + $0xc4] sm:$0xf]
      %v5302 = vld [vmem:[#allocation3 + $0xc8] sm:$0xf]
      %v5303 = vld [vmem:[#allocation3 + $0xd4] sm:$0xf]
      %v5304 = vld [vmem:[#allocation3 + $0xd8] sm:$0xf]
      %v5305 = vld [vmem:[#allocation3 + $0xe4] sm:$0xf]
      %v5306 = vld [vmem:[#allocation3 + $0xe8] sm:$0xf]
      %v5307 = vld [vmem:[#allocation3 + $0xf4] sm:$0xf]
      %v5308 = vld [vmem:[#allocation3 + $0xf8] sm:$0xf]
      %v5341 = vunpack.c.l.b16 %v5277
      %v5342 = vunpack.c.l.b16 %v5278
      %v5343 = vunpack.c.l.b16 %v5279
      %v5344 = vunpack.c.l.b16 %v5280
      %v5345 = vunpack.c.l.b16 %v5281
      %v5346 = vunpack.c.l.b16 %v5282
      %v5347 = vunpack.c.l.b16 %v5283
      %v5348 = vunpack.c.l.b16 %v5284
      %v5349 = vunpack.c.l.b16 %v5285
      %v5350 = vunpack.c.l.b16 %v5286
      %v5351 = vunpack.c.l.b16 %v5287
      %v5352 = vunpack.c.l.b16 %v5288
      %v5353 = vunpack.c.l.b16 %v5289
      %v5354 = vunpack.c.l.b16 %v5290
      %v5355 = vunpack.c.l.b16 %v5291
      %v5356 = vunpack.c.l.b16 %v5292
      %v5357 = vunpack.c.l.b16 %v5293
      %v5358 = vunpack.c.l.b16 %v5294
      %v5359 = vunpack.c.l.b16 %v5295
      %v5360 = vunpack.c.l.b16 %v5296
      %v5361 = vunpack.c.l.b16 %v5297
      %v5362 = vunpack.c.l.b16 %v5298
      %v5363 = vunpack.c.l.b16 %v5299
      %v5364 = vunpack.c.l.b16 %v5300
      %v5365 = vunpack.c.l.b16 %v5301
      %v5366 = vunpack.c.l.b16 %v5302
      %v5367 = vunpack.c.l.b16 %v5303
      %v5368 = vunpack.c.l.b16 %v5304
      %v5369 = vunpack.c.l.b16 %v5305
      %v5370 = vunpack.c.l.b16 %v5306
      %v5371 = vunpack.c.l.b16 %v5307
      %v5372 = vunpack.c.l.b16 %v5308
      %v5373 = vpack.c.b16 %v5342, %v5341
      %v5374 = vpack.c.b16 %v5344, %v5343
      %v5375 = vpack.c.b16 %v5346, %v5345
      %v5376 = vpack.c.b16 %v5348, %v5347
      %v5377 = vpack.c.b16 %v5350, %v5349
      %v5378 = vpack.c.b16 %v5352, %v5351
      %v5379 = vpack.c.b16 %v5354, %v5353
      %v5380 = vpack.c.b16 %v5356, %v5355
      %v5381 = vpack.c.b16 %v5358, %v5357
      %v5382 = vpack.c.b16 %v5360, %v5359
      %v5383 = vpack.c.b16 %v5362, %v5361
      %v5384 = vpack.c.b16 %v5364, %v5363
      %v5385 = vpack.c.b16 %v5366, %v5365
      %v5386 = vpack.c.b16 %v5368, %v5367
      %v5387 = vpack.c.b16 %v5370, %v5369
      %v5388 = vpack.c.b16 %v5372, %v5371
      %5389 = vrot.lane.b32.xlu0 %v5373, 4
      %v5390 = vpop.permute.xlu0 %5389
      %5391 = vrot.lane.b32.xlu0 %v5374, 4
      %v5392 = vpop.permute.xlu0 %5391
      %5393 = vrot.lane.b32.xlu0 %v5375, 4
      %v5394 = vpop.permute.xlu0 %5393
      %5395 = vrot.lane.b32.xlu0 %v5376, 4
      %v5396 = vpop.permute.xlu0 %5395
      %5397 = vrot.lane.b32.xlu0 %v5377, 4
      %v5398 = vpop.permute.xlu0 %5397
      %5399 = vrot.lane.b32.xlu0 %v5378, 4
      %v5400 = vpop.permute.xlu0 %5399
      %5401 = vrot.lane.b32.xlu0 %v5379, 4
      %v5402 = vpop.permute.xlu0 %5401
      %5403 = vrot.lane.b32.xlu0 %v5380, 4
      %v5404 = vpop.permute.xlu0 %5403
      %5405 = vrot.lane.b32.xlu0 %v5381, 4
      %v5406 = vpop.permute.xlu0 %5405
      %5407 = vrot.lane.b32.xlu0 %v5382, 4
      %v5408 = vpop.permute.xlu0 %5407
      %5409 = vrot.lane.b32.xlu0 %v5383, 4
      %v5410 = vpop.permute.xlu0 %5409
      %5411 = vrot.lane.b32.xlu0 %v5384, 4
      %v5412 = vpop.permute.xlu0 %5411
      %5413 = vrot.lane.b32.xlu0 %v5385, 4
      %v5414 = vpop.permute.xlu0 %5413
      %5415 = vrot.lane.b32.xlu0 %v5386, 4
      %v5416 = vpop.permute.xlu0 %5415
      %5417 = vrot.lane.b32.xlu0 %v5387, 4
      %v5418 = vpop.permute.xlu0 %5417
      %5419 = vrot.lane.b32.xlu0 %v5388, 4
      %v5420 = vpop.permute.xlu0 %5419
      %5437 = vst.msk [vmem:[#allocation4] sm:$0xff] %vm1311, %v5390
      %5438 = vst.msk [vmem:[#allocation4 + $0x8] sm:$0xff] %vm1311, %v5392
      %5439 = vst.msk [vmem:[#allocation4 + $0x10] sm:$0xff] %vm1311, %v5394
      %5440 = vst.msk [vmem:[#allocation4 + $0x18] sm:$0xff] %vm1311, %v5396
      %5441 = vst.msk [vmem:[#allocation4 + $0x20] sm:$0xff] %vm1311, %v5398
      %5442 = vst.msk [vmem:[#allocation4 + $0x28] sm:$0xff] %vm1311, %v5400
      %5443 = vst.msk [vmem:[#allocation4 + $0x30] sm:$0xff] %vm1311, %v5402
      %5444 = vst.msk [vmem:[#allocation4 + $0x38] sm:$0xff] %vm1311, %v5404
      %5445 = vst.msk [vmem:[#allocation4 + $0x40] sm:$0xff] %vm1311, %v5406
      %5446 = vst.msk [vmem:[#allocation4 + $0x48] sm:$0xff] %vm1311, %v5408
      %5447 = vst.msk [vmem:[#allocation4 + $0x50] sm:$0xff] %vm1311, %v5410
      %5448 = vst.msk [vmem:[#allocation4 + $0x58] sm:$0xff] %vm1311, %v5412
      %5449 = vst.msk [vmem:[#allocation4 + $0x60] sm:$0xff] %vm1311, %v5414
      %5450 = vst.msk [vmem:[#allocation4 + $0x68] sm:$0xff] %vm1311, %v5416
      %5451 = vst.msk [vmem:[#allocation4 + $0x70] sm:$0xff] %vm1311, %v5418
      %5452 = vst.msk [vmem:[#allocation4 + $0x78] sm:$0xff] %vm1311, %v5420
      %v5453 = vld [vmem:[#allocation3 + $0x4] sm:$0xf]
      %v5454 = vld [vmem:[#allocation3 + $0x8] sm:$0xf]
      %v5455 = vld [vmem:[#allocation3 + $0xc] sm:$0x1]
      %v5456 = vld [vmem:[#allocation3 + $0x14] sm:$0xf]
      %v5457 = vld [vmem:[#allocation3 + $0x18] sm:$0xf]
      %v5458 = vld [vmem:[#allocation3 + $0x1c] sm:$0x1]
      %v5459 = vld [vmem:[#allocation3 + $0x24] sm:$0xf]
      %v5460 = vld [vmem:[#allocation3 + $0x28] sm:$0xf]
      %v5461 = vld [vmem:[#allocation3 + $0x2c] sm:$0x1]
      %v5462 = vld [vmem:[#allocation3 + $0x34] sm:$0xf]
      %v5463 = vld [vmem:[#allocation3 + $0x38] sm:$0xf]
      %v5464 = vld [vmem:[#allocation3 + $0x3c] sm:$0x1]
      %v5465 = vld [vmem:[#allocation3 + $0x44] sm:$0xf]
      %v5466 = vld [vmem:[#allocation3 + $0x48] sm:$0xf]
      %v5467 = vld [vmem:[#allocation3 + $0x4c] sm:$0x1]
      %v5468 = vld [vmem:[#allocation3 + $0x54] sm:$0xf]
      %v5469 = vld [vmem:[#allocation3 + $0x58] sm:$0xf]
      %v5470 = vld [vmem:[#allocation3 + $0x5c] sm:$0x1]
      %v5471 = vld [vmem:[#allocation3 + $0x64] sm:$0xf]
      %v5472 = vld [vmem:[#allocation3 + $0x68] sm:$0xf]
      %v5473 = vld [vmem:[#allocation3 + $0x6c] sm:$0x1]
      %v5474 = vld [vmem:[#allocation3 + $0x74] sm:$0xf]
      %v5475 = vld [vmem:[#allocation3 + $0x78] sm:$0xf]
      %v5476 = vld [vmem:[#allocation3 + $0x7c] sm:$0x1]
      %v5477 = vld [vmem:[#allocation3 + $0x84] sm:$0xf]
      %v5478 = vld [vmem:[#allocation3 + $0x88] sm:$0xf]
      %v5479 = vld [vmem:[#allocation3 + $0x8c] sm:$0x1]
      %v5480 = vld [vmem:[#allocation3 + $0x94] sm:$0xf]
      %v5481 = vld [vmem:[#allocation3 + $0x98] sm:$0xf]
      %v5482 = vld [vmem:[#allocation3 + $0x9c] sm:$0x1]
      %v5483 = vld [vmem:[#allocation3 + $0xa4] sm:$0xf]
      %v5484 = vld [vmem:[#allocation3 + $0xa8] sm:$0xf]
      %v5485 = vld [vmem:[#allocation3 + $0xac] sm:$0x1]
      %v5486 = vld [vmem:[#allocation3 + $0xb4] sm:$0xf]
      %v5487 = vld [vmem:[#allocation3 + $0xb8] sm:$0xf]
      %v5488 = vld [vmem:[#allocation3 + $0xbc] sm:$0x1]
      %v5489 = vld [vmem:[#allocation3 + $0xc4] sm:$0xf]
      %v5490 = vld [vmem:[#allocation3 + $0xc8] sm:$0xf]
      %v5491 = vld [vmem:[#allocation3 + $0xcc] sm:$0x1]
      %v5492 = vld [vmem:[#allocation3 + $0xd4] sm:$0xf]
      %v5493 = vld [vmem:[#allocation3 + $0xd8] sm:$0xf]
      %v5494 = vld [vmem:[#allocation3 + $0xdc] sm:$0x1]
      %v5495 = vld [vmem:[#allocation3 + $0xe4] sm:$0xf]
      %v5496 = vld [vmem:[#allocation3 + $0xe8] sm:$0xf]
      %v5497 = vld [vmem:[#allocation3 + $0xec] sm:$0x1]
      %v5498 = vld [vmem:[#allocation3 + $0xf4] sm:$0xf]
      %v5499 = vld [vmem:[#allocation3 + $0xf8] sm:$0xf]
      %v5500 = vld [vmem:[#allocation3 + $0xfc] sm:$0x1]
      %v5502 = vshrl.u32 %v5453, 16
      %v5504 = vrot.slane %v5502, 4
      %v5505 = vshll.u32 %v5453, 16
      %v5507 = vrot.slane %v5505, 5
      %v5508 = vor.u32 %v5504, %v5507
      %v5509 = vrot.slane %v5508, 4
      %v5511 = vshll.u32 %v5454, 16
      %v5513 = vrot.slane %v5511, 5
      %v5514 = vsel %vm1378, %v5509, %v5513
      %v5515 = vshrl.u32 %v5454, 16
      %v5517 = vrot.slane %v5515, 4
      %v5518 = vor.u32 %v5517, %v5513
      %v5519 = vrot.slane %v5518, 4
      %v5521 = vshll.u32 %v5455, 16
      %v5523 = vrot.slane %v5521, 5
      %v5524 = vsel %vm1378, %v5519, %v5523
      %v5526 = vshrl.u32 %v5456, 16
      %v5528 = vrot.slane %v5526, 4
      %v5529 = vshll.u32 %v5456, 16
      %v5531 = vrot.slane %v5529, 5
      %v5532 = vor.u32 %v5528, %v5531
      %v5533 = vrot.slane %v5532, 4
      %v5535 = vshll.u32 %v5457, 16
      %v5537 = vrot.slane %v5535, 5
      %v5538 = vsel %vm1378, %v5533, %v5537
      %v5539 = vshrl.u32 %v5457, 16
      %v5541 = vrot.slane %v5539, 4
      %v5542 = vor.u32 %v5541, %v5537
      %v5543 = vrot.slane %v5542, 4
      %v5545 = vshll.u32 %v5458, 16
      %v5547 = vrot.slane %v5545, 5
      %v5548 = vsel %vm1378, %v5543, %v5547
      %v5550 = vshrl.u32 %v5459, 16
      %v5552 = vrot.slane %v5550, 4
      %v5553 = vshll.u32 %v5459, 16
      %v5555 = vrot.slane %v5553, 5
      %v5556 = vor.u32 %v5552, %v5555
      %v5557 = vrot.slane %v5556, 4
      %v5559 = vshll.u32 %v5460, 16
      %v5561 = vrot.slane %v5559, 5
      %v5562 = vsel %vm1378, %v5557, %v5561
      %v5563 = vshrl.u32 %v5460, 16
      %v5565 = vrot.slane %v5563, 4
      %v5566 = vor.u32 %v5565, %v5561
      %v5567 = vrot.slane %v5566, 4
      %v5569 = vshll.u32 %v5461, 16
      %v5571 = vrot.slane %v5569, 5
      %v5572 = vsel %vm1378, %v5567, %v5571
      %v5574 = vshrl.u32 %v5462, 16
      %v5576 = vrot.slane %v5574, 4
      %v5577 = vshll.u32 %v5462, 16
      %v5579 = vrot.slane %v5577, 5
      %v5580 = vor.u32 %v5576, %v5579
      %v5581 = vrot.slane %v5580, 4
      %v5583 = vshll.u32 %v5463, 16
      %v5585 = vrot.slane %v5583, 5
      %v5586 = vsel %vm1378, %v5581, %v5585
      %v5587 = vshrl.u32 %v5463, 16
      %v5589 = vrot.slane %v5587, 4
      %v5590 = vor.u32 %v5589, %v5585
      %v5591 = vrot.slane %v5590, 4
      %v5593 = vshll.u32 %v5464, 16
      %v5595 = vrot.slane %v5593, 5
      %v5596 = vsel %vm1378, %v5591, %v5595
      %v5598 = vshrl.u32 %v5465, 16
      %v5600 = vrot.slane %v5598, 4
      %v5601 = vshll.u32 %v5465, 16
      %v5603 = vrot.slane %v5601, 5
      %v5604 = vor.u32 %v5600, %v5603
      %v5605 = vrot.slane %v5604, 4
      %v5607 = vshll.u32 %v5466, 16
      %v5609 = vrot.slane %v5607, 5
      %v5610 = vsel %vm1378, %v5605, %v5609
      %v5611 = vshrl.u32 %v5466, 16
      %v5613 = vrot.slane %v5611, 4
      %v5614 = vor.u32 %v5613, %v5609
      %v5615 = vrot.slane %v5614, 4
      %v5617 = vshll.u32 %v5467, 16
      %v5619 = vrot.slane %v5617, 5
      %v5620 = vsel %vm1378, %v5615, %v5619
      %v5622 = vshrl.u32 %v5468, 16
      %v5624 = vrot.slane %v5622, 4
      %v5625 = vshll.u32 %v5468, 16
      %v5627 = vrot.slane %v5625, 5
      %v5628 = vor.u32 %v5624, %v5627
      %v5629 = vrot.slane %v5628, 4
      %v5631 = vshll.u32 %v5469, 16
      %v5633 = vrot.slane %v5631, 5
      %v5634 = vsel %vm1378, %v5629, %v5633
      %v5635 = vshrl.u32 %v5469, 16
      %v5637 = vrot.slane %v5635, 4
      %v5638 = vor.u32 %v5637, %v5633
      %v5639 = vrot.slane %v5638, 4
      %v5641 = vshll.u32 %v5470, 16
      %v5643 = vrot.slane %v5641, 5
      %v5644 = vsel %vm1378, %v5639, %v5643
      %v5646 = vshrl.u32 %v5471, 16
      %v5648 = vrot.slane %v5646, 4
      %v5649 = vshll.u32 %v5471, 16
      %v5651 = vrot.slane %v5649, 5
      %v5652 = vor.u32 %v5648, %v5651
      %v5653 = vrot.slane %v5652, 4
      %v5655 = vshll.u32 %v5472, 16
      %v5657 = vrot.slane %v5655, 5
      %v5658 = vsel %vm1378, %v5653, %v5657
      %v5659 = vshrl.u32 %v5472, 16
      %v5661 = vrot.slane %v5659, 4
      %v5662 = vor.u32 %v5661, %v5657
      %v5663 = vrot.slane %v5662, 4
      %v5665 = vshll.u32 %v5473, 16
      %v5667 = vrot.slane %v5665, 5
      %v5668 = vsel %vm1378, %v5663, %v5667
      %v5670 = vshrl.u32 %v5474, 16
      %v5672 = vrot.slane %v5670, 4
      %v5673 = vshll.u32 %v5474, 16
      %v5675 = vrot.slane %v5673, 5
      %v5676 = vor.u32 %v5672, %v5675
      %v5677 = vrot.slane %v5676, 4
      %v5679 = vshll.u32 %v5475, 16
      %v5681 = vrot.slane %v5679, 5
      %v5682 = vsel %vm1378, %v5677, %v5681
      %v5683 = vshrl.u32 %v5475, 16
      %v5685 = vrot.slane %v5683, 4
      %v5686 = vor.u32 %v5685, %v5681
      %v5687 = vrot.slane %v5686, 4
      %v5689 = vshll.u32 %v5476, 16
      %v5691 = vrot.slane %v5689, 5
      %v5692 = vsel %vm1378, %v5687, %v5691
      %v5694 = vshrl.u32 %v5477, 16
      %v5696 = vrot.slane %v5694, 4
      %v5697 = vshll.u32 %v5477, 16
      %v5699 = vrot.slane %v5697, 5
      %v5700 = vor.u32 %v5696, %v5699
      %v5701 = vrot.slane %v5700, 4
      %v5703 = vshll.u32 %v5478, 16
      %v5705 = vrot.slane %v5703, 5
      %v5706 = vsel %vm1378, %v5701, %v5705
      %v5707 = vshrl.u32 %v5478, 16
      %v5709 = vrot.slane %v5707, 4
      %v5710 = vor.u32 %v5709, %v5705
      %v5711 = vrot.slane %v5710, 4
      %v5713 = vshll.u32 %v5479, 16
      %v5715 = vrot.slane %v5713, 5
      %v5716 = vsel %vm1378, %v5711, %v5715
      %v5718 = vshrl.u32 %v5480, 16
      %v5720 = vrot.slane %v5718, 4
      %v5721 = vshll.u32 %v5480, 16
      %v5723 = vrot.slane %v5721, 5
      %v5724 = vor.u32 %v5720, %v5723
      %v5725 = vrot.slane %v5724, 4
      %v5727 = vshll.u32 %v5481, 16
      %v5729 = vrot.slane %v5727, 5
      %v5730 = vsel %vm1378, %v5725, %v5729
      %v5731 = vshrl.u32 %v5481, 16
      %v5733 = vrot.slane %v5731, 4
      %v5734 = vor.u32 %v5733, %v5729
      %v5735 = vrot.slane %v5734, 4
      %v5737 = vshll.u32 %v5482, 16
      %v5739 = vrot.slane %v5737, 5
      %v5740 = vsel %vm1378, %v5735, %v5739
      %v5742 = vshrl.u32 %v5483, 16
      %v5744 = vrot.slane %v5742, 4
      %v5745 = vshll.u32 %v5483, 16
      %v5747 = vrot.slane %v5745, 5
      %v5748 = vor.u32 %v5744, %v5747
      %v5749 = vrot.slane %v5748, 4
      %v5751 = vshll.u32 %v5484, 16
      %v5753 = vrot.slane %v5751, 5
      %v5754 = vsel %vm1378, %v5749, %v5753
      %v5755 = vshrl.u32 %v5484, 16
      %v5757 = vrot.slane %v5755, 4
      %v5758 = vor.u32 %v5757, %v5753
      %v5759 = vrot.slane %v5758, 4
      %v5761 = vshll.u32 %v5485, 16
      %v5763 = vrot.slane %v5761, 5
      %v5764 = vsel %vm1378, %v5759, %v5763
      %v5766 = vshrl.u32 %v5486, 16
      %v5768 = vrot.slane %v5766, 4
      %v5769 = vshll.u32 %v5486, 16
      %v5771 = vrot.slane %v5769, 5
      %v5772 = vor.u32 %v5768, %v5771
      %v5773 = vrot.slane %v5772, 4
      %v5775 = vshll.u32 %v5487, 16
      %v5777 = vrot.slane %v5775, 5
      %v5778 = vsel %vm1378, %v5773, %v5777
      %v5779 = vshrl.u32 %v5487, 16
      %v5781 = vrot.slane %v5779, 4
      %v5782 = vor.u32 %v5781, %v5777
      %v5783 = vrot.slane %v5782, 4
      %v5785 = vshll.u32 %v5488, 16
      %v5787 = vrot.slane %v5785, 5
      %v5788 = vsel %vm1378, %v5783, %v5787
      %v5790 = vshrl.u32 %v5489, 16
      %v5792 = vrot.slane %v5790, 4
      %v5793 = vshll.u32 %v5489, 16
      %v5795 = vrot.slane %v5793, 5
      %v5796 = vor.u32 %v5792, %v5795
      %v5797 = vrot.slane %v5796, 4
      %v5799 = vshll.u32 %v5490, 16
      %v5801 = vrot.slane %v5799, 5
      %v5802 = vsel %vm1378, %v5797, %v5801
      %v5803 = vshrl.u32 %v5490, 16
      %v5805 = vrot.slane %v5803, 4
      %v5806 = vor.u32 %v5805, %v5801
      %v5807 = vrot.slane %v5806, 4
      %v5809 = vshll.u32 %v5491, 16
      %v5811 = vrot.slane %v5809, 5
      %v5812 = vsel %vm1378, %v5807, %v5811
      %v5814 = vshrl.u32 %v5492, 16
      %v5816 = vrot.slane %v5814, 4
      %v5817 = vshll.u32 %v5492, 16
      %v5819 = vrot.slane %v5817, 5
      %v5820 = vor.u32 %v5816, %v5819
      %v5821 = vrot.slane %v5820, 4
      %v5823 = vshll.u32 %v5493, 16
      %v5825 = vrot.slane %v5823, 5
      %v5826 = vsel %vm1378, %v5821, %v5825
      %v5827 = vshrl.u32 %v5493, 16
      %v5829 = vrot.slane %v5827, 4
      %v5830 = vor.u32 %v5829, %v5825
      %v5831 = vrot.slane %v5830, 4
      %v5833 = vshll.u32 %v5494, 16
      %v5835 = vrot.slane %v5833, 5
      %v5836 = vsel %vm1378, %v5831, %v5835
      %v5838 = vshrl.u32 %v5495, 16
      %v5840 = vrot.slane %v5838, 4
      %v5841 = vshll.u32 %v5495, 16
      %v5843 = vrot.slane %v5841, 5
      %v5844 = vor.u32 %v5840, %v5843
      %v5845 = vrot.slane %v5844, 4
      %v5847 = vshll.u32 %v5496, 16
      %v5849 = vrot.slane %v5847, 5
      %v5850 = vsel %vm1378, %v5845, %v5849
      %v5851 = vshrl.u32 %v5496, 16
      %v5853 = vrot.slane %v5851, 4
      %v5854 = vor.u32 %v5853, %v5849
      %v5855 = vrot.slane %v5854, 4
      %v5857 = vshll.u32 %v5497, 16
      %v5859 = vrot.slane %v5857, 5
      %v5860 = vsel %vm1378, %v5855, %v5859
      %v5862 = vshrl.u32 %v5498, 16
      %v5864 = vrot.slane %v5862, 4
      %v5865 = vshll.u32 %v5498, 16
      %v5867 = vrot.slane %v5865, 5
      %v5868 = vor.u32 %v5864, %v5867
      %v5869 = vrot.slane %v5868, 4
      %v5871 = vshll.u32 %v5499, 16
      %v5873 = vrot.slane %v5871, 5
      %v5874 = vsel %vm1378, %v5869, %v5873
      %v5875 = vshrl.u32 %v5499, 16
      %v5877 = vrot.slane %v5875, 4
      %v5878 = vor.u32 %v5877, %v5873
      %v5879 = vrot.slane %v5878, 4
      %v5881 = vshll.u32 %v5500, 16
      %v5883 = vrot.slane %v5881, 5
      %v5884 = vsel %vm1378, %v5879, %v5883
      %v5885 = vunpack.c.l.b16 %v5514
      %v5886 = vunpack.c.l.b16 %v5524
      %v5887 = vunpack.c.l.b16 %v5538
      %v5888 = vunpack.c.l.b16 %v5548
      %v5889 = vunpack.c.l.b16 %v5562
      %v5890 = vunpack.c.l.b16 %v5572
      %v5891 = vunpack.c.l.b16 %v5586
      %v5892 = vunpack.c.l.b16 %v5596
      %v5893 = vunpack.c.l.b16 %v5610
      %v5894 = vunpack.c.l.b16 %v5620
      %v5895 = vunpack.c.l.b16 %v5634
      %v5896 = vunpack.c.l.b16 %v5644
      %v5897 = vunpack.c.l.b16 %v5658
      %v5898 = vunpack.c.l.b16 %v5668
      %v5899 = vunpack.c.l.b16 %v5682
      %v5900 = vunpack.c.l.b16 %v5692
      %v5901 = vunpack.c.l.b16 %v5706
      %v5902 = vunpack.c.l.b16 %v5716
      %v5903 = vunpack.c.l.b16 %v5730
      %v5904 = vunpack.c.l.b16 %v5740
      %v5905 = vunpack.c.l.b16 %v5754
      %v5906 = vunpack.c.l.b16 %v5764
      %v5907 = vunpack.c.l.b16 %v5778
      %v5908 = vunpack.c.l.b16 %v5788
      %v5909 = vunpack.c.l.b16 %v5802
      %v5910 = vunpack.c.l.b16 %v5812
      %v5911 = vunpack.c.l.b16 %v5826
      %v5912 = vunpack.c.l.b16 %v5836
      %v5913 = vunpack.c.l.b16 %v5850
      %v5914 = vunpack.c.l.b16 %v5860
      %v5915 = vunpack.c.l.b16 %v5874
      %v5916 = vunpack.c.l.b16 %v5884
      %v5917 = vpack.c.b16 %v5886, %v5885
      %v5918 = vpack.c.b16 %v5888, %v5887
      %v5919 = vpack.c.b16 %v5890, %v5889
      %v5920 = vpack.c.b16 %v5892, %v5891
      %v5921 = vpack.c.b16 %v5894, %v5893
      %v5922 = vpack.c.b16 %v5896, %v5895
      %v5923 = vpack.c.b16 %v5898, %v5897
      %v5924 = vpack.c.b16 %v5900, %v5899
      %v5925 = vpack.c.b16 %v5902, %v5901
      %v5926 = vpack.c.b16 %v5904, %v5903
      %v5927 = vpack.c.b16 %v5906, %v5905
      %v5928 = vpack.c.b16 %v5908, %v5907
      %v5929 = vpack.c.b16 %v5910, %v5909
      %v5930 = vpack.c.b16 %v5912, %v5911
      %v5931 = vpack.c.b16 %v5914, %v5913
      %v5932 = vpack.c.b16 %v5916, %v5915
      %5933 = vrot.lane.b32.xlu0 %v5917, 8
      %v5934 = vpop.permute.xlu0 %5933
      %5935 = vrot.lane.b32.xlu0 %v5918, 8
      %v5936 = vpop.permute.xlu0 %5935
      %5937 = vrot.lane.b32.xlu0 %v5919, 8
      %v5938 = vpop.permute.xlu0 %5937
      %5939 = vrot.lane.b32.xlu0 %v5920, 8
      %v5940 = vpop.permute.xlu0 %5939
      %5941 = vrot.lane.b32.xlu0 %v5921, 8
      %v5942 = vpop.permute.xlu0 %5941
      %5943 = vrot.lane.b32.xlu0 %v5922, 8
      %v5944 = vpop.permute.xlu0 %5943
      %5945 = vrot.lane.b32.xlu0 %v5923, 8
      %v5946 = vpop.permute.xlu0 %5945
      %5947 = vrot.lane.b32.xlu0 %v5924, 8
      %v5948 = vpop.permute.xlu0 %5947
      %5949 = vrot.lane.b32.xlu0 %v5925, 8
      %v5950 = vpop.permute.xlu0 %5949
      %5951 = vrot.lane.b32.xlu0 %v5926, 8
      %v5952 = vpop.permute.xlu0 %5951
      %5953 = vrot.lane.b32.xlu0 %v5927, 8
      %v5954 = vpop.permute.xlu0 %5953
      %5955 = vrot.lane.b32.xlu0 %v5928, 8
      %v5956 = vpop.permute.xlu0 %5955
      %5957 = vrot.lane.b32.xlu0 %v5929, 8
      %v5958 = vpop.permute.xlu0 %5957
      %5959 = vrot.lane.b32.xlu0 %v5930, 8
      %v5960 = vpop.permute.xlu0 %5959
      %5961 = vrot.lane.b32.xlu0 %v5931, 8
      %v5962 = vpop.permute.xlu0 %5961
      %5963 = vrot.lane.b32.xlu0 %v5932, 8
      %v5964 = vpop.permute.xlu0 %5963
      %5981 = vst.msk [vmem:[#allocation4] sm:$0xff] %vm1859, %v5934
      %5982 = vst.msk [vmem:[#allocation4 + $0x8] sm:$0xff] %vm1859, %v5936
      %5983 = vst.msk [vmem:[#allocation4 + $0x10] sm:$0xff] %vm1859, %v5938
      %5984 = vst.msk [vmem:[#allocation4 + $0x18] sm:$0xff] %vm1859, %v5940
      %5985 = vst.msk [vmem:[#allocation4 + $0x20] sm:$0xff] %vm1859, %v5942
      %5986 = vst.msk [vmem:[#allocation4 + $0x28] sm:$0xff] %vm1859, %v5944
      %5987 = vst.msk [vmem:[#allocation4 + $0x30] sm:$0xff] %vm1859, %v5946
      %5988 = vst.msk [vmem:[#allocation4 + $0x38] sm:$0xff] %vm1859, %v5948
      %5989 = vst.msk [vmem:[#allocation4 + $0x40] sm:$0xff] %vm1859, %v5950
      %5990 = vst.msk [vmem:[#allocation4 + $0x48] sm:$0xff] %vm1859, %v5952
      %5991 = vst.msk [vmem:[#allocation4 + $0x50] sm:$0xff] %vm1859, %v5954
      %5992 = vst.msk [vmem:[#allocation4 + $0x58] sm:$0xff] %vm1859, %v5956
      %5993 = vst.msk [vmem:[#allocation4 + $0x60] sm:$0xff] %vm1859, %v5958
      %5994 = vst.msk [vmem:[#allocation4 + $0x68] sm:$0xff] %vm1859, %v5960
      %5995 = vst.msk [vmem:[#allocation4 + $0x70] sm:$0xff] %vm1859, %v5962
      %5996 = vst.msk [vmem:[#allocation4 + $0x78] sm:$0xff] %vm1859, %v5964
      %v5997 = vld [vmem:[%s4764] sm:$0x8]
      %v5998 = vld [vmem:[%s4764 + $0x4] sm:$0xf]
      %v5999 = vld [vmem:[%s4764 + $0x8] sm:$0xf]
      %v6000 = vld [vmem:[%s4764 + $0x10] sm:$0x8]
      %v6001 = vld [vmem:[%s4764 + $0x14] sm:$0xf]
      %v6002 = vld [vmem:[%s4764 + $0x18] sm:$0xf]
      %v6003 = vld [vmem:[%s4764 + $0x20] sm:$0x8]
      %v6004 = vld [vmem:[%s4764 + $0x24] sm:$0xf]
      %v6005 = vld [vmem:[%s4764 + $0x28] sm:$0xf]
      %v6006 = vld [vmem:[%s4764 + $0x30] sm:$0x8]
      %v6007 = vld [vmem:[%s4764 + $0x34] sm:$0xf]
      %v6008 = vld [vmem:[%s4764 + $0x38] sm:$0xf]
      %v6009 = vld [vmem:[%s4764 + $0x40] sm:$0x8]
      %v6010 = vld [vmem:[%s4764 + $0x44] sm:$0xf]
      %v6011 = vld [vmem:[%s4764 + $0x48] sm:$0xf]
      %v6012 = vld [vmem:[%s4764 + $0x50] sm:$0x8]
      %v6013 = vld [vmem:[%s4764 + $0x54] sm:$0xf]
      %v6014 = vld [vmem:[%s4764 + $0x58] sm:$0xf]
      %v6015 = vld [vmem:[%s4764 + $0x60] sm:$0x8]
      %v6016 = vld [vmem:[%s4764 + $0x64] sm:$0xf]
      %v6017 = vld [vmem:[%s4764 + $0x68] sm:$0xf]
      %v6018 = vld [vmem:[%s4764 + $0x70] sm:$0x8]
      %v6019 = vld [vmem:[%s4764 + $0x74] sm:$0xf]
      %v6020 = vld [vmem:[%s4764 + $0x78] sm:$0xf]
      %v6021 = vld [vmem:[%s4764 + $0x80] sm:$0x8]
      %v6022 = vld [vmem:[%s4764 + $0x84] sm:$0xf]
      %v6023 = vld [vmem:[%s4764 + $0x88] sm:$0xf]
      %v6024 = vld [vmem:[%s4764 + $0x90] sm:$0x8]
      %v6025 = vld [vmem:[%s4764 + $0x94] sm:$0xf]
      %v6026 = vld [vmem:[%s4764 + $0x98] sm:$0xf]
      %v6027 = vld [vmem:[%s4764 + $0xa0] sm:$0x8]
      %v6028 = vld [vmem:[%s4764 + $0xa4] sm:$0xf]
      %v6029 = vld [vmem:[%s4764 + $0xa8] sm:$0xf]
      %v6030 = vld [vmem:[%s4764 + $0xb0] sm:$0x8]
      %v6031 = vld [vmem:[%s4764 + $0xb4] sm:$0xf]
      %v6032 = vld [vmem:[%s4764 + $0xb8] sm:$0xf]
      %v6033 = vld [vmem:[%s4764 + $0xc0] sm:$0x8]
      %v6034 = vld [vmem:[%s4764 + $0xc4] sm:$0xf]
      %v6035 = vld [vmem:[%s4764 + $0xc8] sm:$0xf]
      %v6036 = vld [vmem:[%s4764 + $0xd0] sm:$0x8]
      %v6037 = vld [vmem:[%s4764 + $0xd4] sm:$0xf]
      %v6038 = vld [vmem:[%s4764 + $0xd8] sm:$0xf]
      %v6039 = vld [vmem:[%s4764 + $0xe0] sm:$0x8]
      %v6040 = vld [vmem:[%s4764 + $0xe4] sm:$0xf]
      %v6041 = vld [vmem:[%s4764 + $0xe8] sm:$0xf]
      %v6042 = vld [vmem:[%s4764 + $0xf0] sm:$0x8]
      %v6043 = vld [vmem:[%s4764 + $0xf4] sm:$0xf]
      %v6044 = vld [vmem:[%s4764 + $0xf8] sm:$0xf]
      %v6046 = vshrl.u32 %v5997, 16
      %v6048 = vrot.slane %v6046, 7
      %v6049 = vrot.slane %v6048, 4
      %v6051 = vshrl.u32 %v5998, 16
      %v6053 = vrot.slane %v6051, 7
      %v6054 = vshll.u32 %v5998, 16
      %v6056 = vor.u32 %v6053, %v6054
      %v6057 = vsel %vm717, %v6049, %v6056
      %v6058 = vrot.slane %v6053, 4
      %v6060 = vshrl.u32 %v5999, 16
      %v6062 = vrot.slane %v6060, 7
      %v6063 = vshll.u32 %v5999, 16
      %v6065 = vor.u32 %v6062, %v6063
      %v6066 = vsel %vm717, %v6058, %v6065
      %v6068 = vshrl.u32 %v6000, 16
      %v6070 = vrot.slane %v6068, 7
      %v6071 = vrot.slane %v6070, 4
      %v6073 = vshrl.u32 %v6001, 16
      %v6075 = vrot.slane %v6073, 7
      %v6076 = vshll.u32 %v6001, 16
      %v6078 = vor.u32 %v6075, %v6076
      %v6079 = vsel %vm717, %v6071, %v6078
      %v6080 = vrot.slane %v6075, 4
      %v6082 = vshrl.u32 %v6002, 16
      %v6084 = vrot.slane %v6082, 7
      %v6085 = vshll.u32 %v6002, 16
      %v6087 = vor.u32 %v6084, %v6085
      %v6088 = vsel %vm717, %v6080, %v6087
      %v6090 = vshrl.u32 %v6003, 16
      %v6092 = vrot.slane %v6090, 7
      %v6093 = vrot.slane %v6092, 4
      %v6095 = vshrl.u32 %v6004, 16
      %v6097 = vrot.slane %v6095, 7
      %v6098 = vshll.u32 %v6004, 16
      %v6100 = vor.u32 %v6097, %v6098
      %v6101 = vsel %vm717, %v6093, %v6100
      %v6102 = vrot.slane %v6097, 4
      %v6104 = vshrl.u32 %v6005, 16
      %v6106 = vrot.slane %v6104, 7
      %v6107 = vshll.u32 %v6005, 16
      %v6109 = vor.u32 %v6106, %v6107
      %v6110 = vsel %vm717, %v6102, %v6109
      %v6112 = vshrl.u32 %v6006, 16
      %v6114 = vrot.slane %v6112, 7
      %v6115 = vrot.slane %v6114, 4
      %v6117 = vshrl.u32 %v6007, 16
      %v6119 = vrot.slane %v6117, 7
      %v6120 = vshll.u32 %v6007, 16
      %v6122 = vor.u32 %v6119, %v6120
      %v6123 = vsel %vm717, %v6115, %v6122
      %v6124 = vrot.slane %v6119, 4
      %v6126 = vshrl.u32 %v6008, 16
      %v6128 = vrot.slane %v6126, 7
      %v6129 = vshll.u32 %v6008, 16
      %v6131 = vor.u32 %v6128, %v6129
      %v6132 = vsel %vm717, %v6124, %v6131
      %v6134 = vshrl.u32 %v6009, 16
      %v6136 = vrot.slane %v6134, 7
      %v6137 = vrot.slane %v6136, 4
      %v6139 = vshrl.u32 %v6010, 16
      %v6141 = vrot.slane %v6139, 7
      %v6142 = vshll.u32 %v6010, 16
      %v6144 = vor.u32 %v6141, %v6142
      %v6145 = vsel %vm717, %v6137, %v6144
      %v6146 = vrot.slane %v6141, 4
      %v6148 = vshrl.u32 %v6011, 16
      %v6150 = vrot.slane %v6148, 7
      %v6151 = vshll.u32 %v6011, 16
      %v6153 = vor.u32 %v6150, %v6151
      %v6154 = vsel %vm717, %v6146, %v6153
      %v6156 = vshrl.u32 %v6012, 16
      %v6158 = vrot.slane %v6156, 7
      %v6159 = vrot.slane %v6158, 4
      %v6161 = vshrl.u32 %v6013, 16
      %v6163 = vrot.slane %v6161, 7
      %v6164 = vshll.u32 %v6013, 16
      %v6166 = vor.u32 %v6163, %v6164
      %v6167 = vsel %vm717, %v6159, %v6166
      %v6168 = vrot.slane %v6163, 4
      %v6170 = vshrl.u32 %v6014, 16
      %v6172 = vrot.slane %v6170, 7
      %v6173 = vshll.u32 %v6014, 16
      %v6175 = vor.u32 %v6172, %v6173
      %v6176 = vsel %vm717, %v6168, %v6175
      %v6178 = vshrl.u32 %v6015, 16
      %v6180 = vrot.slane %v6178, 7
      %v6181 = vrot.slane %v6180, 4
      %v6183 = vshrl.u32 %v6016, 16
      %v6185 = vrot.slane %v6183, 7
      %v6186 = vshll.u32 %v6016, 16
      %v6188 = vor.u32 %v6185, %v6186
      %v6189 = vsel %vm717, %v6181, %v6188
      %v6190 = vrot.slane %v6185, 4
      %v6192 = vshrl.u32 %v6017, 16
      %v6194 = vrot.slane %v6192, 7
      %v6195 = vshll.u32 %v6017, 16
      %v6197 = vor.u32 %v6194, %v6195
      %v6198 = vsel %vm717, %v6190, %v6197
      %v6200 = vshrl.u32 %v6018, 16
      %v6202 = vrot.slane %v6200, 7
      %v6203 = vrot.slane %v6202, 4
      %v6205 = vshrl.u32 %v6019, 16
      %v6207 = vrot.slane %v6205, 7
      %v6208 = vshll.u32 %v6019, 16
      %v6210 = vor.u32 %v6207, %v6208
      %v6211 = vsel %vm717, %v6203, %v6210
      %v6212 = vrot.slane %v6207, 4
      %v6214 = vshrl.u32 %v6020, 16
      %v6216 = vrot.slane %v6214, 7
      %v6217 = vshll.u32 %v6020, 16
      %v6219 = vor.u32 %v6216, %v6217
      %v6220 = vsel %vm717, %v6212, %v6219
      %v6222 = vshrl.u32 %v6021, 16
      %v6224 = vrot.slane %v6222, 7
      %v6225 = vrot.slane %v6224, 4
      %v6227 = vshrl.u32 %v6022, 16
      %v6229 = vrot.slane %v6227, 7
      %v6230 = vshll.u32 %v6022, 16
      %v6232 = vor.u32 %v6229, %v6230
      %v6233 = vsel %vm717, %v6225, %v6232
      %v6234 = vrot.slane %v6229, 4
      %v6236 = vshrl.u32 %v6023, 16
      %v6238 = vrot.slane %v6236, 7
      %v6239 = vshll.u32 %v6023, 16
      %v6241 = vor.u32 %v6238, %v6239
      %v6242 = vsel %vm717, %v6234, %v6241
      %v6244 = vshrl.u32 %v6024, 16
      %v6246 = vrot.slane %v6244, 7
      %v6247 = vrot.slane %v6246, 4
      %v6249 = vshrl.u32 %v6025, 16
      %v6251 = vrot.slane %v6249, 7
      %v6252 = vshll.u32 %v6025, 16
      %v6254 = vor.u32 %v6251, %v6252
      %v6255 = vsel %vm717, %v6247, %v6254
      %v6256 = vrot.slane %v6251, 4
      %v6258 = vshrl.u32 %v6026, 16
      %v6260 = vrot.slane %v6258, 7
      %v6261 = vshll.u32 %v6026, 16
      %v6263 = vor.u32 %v6260, %v6261
      %v6264 = vsel %vm717, %v6256, %v6263
      %v6266 = vshrl.u32 %v6027, 16
      %v6268 = vrot.slane %v6266, 7
      %v6269 = vrot.slane %v6268, 4
      %v6271 = vshrl.u32 %v6028, 16
      %v6273 = vrot.slane %v6271, 7
      %v6274 = vshll.u32 %v6028, 16
      %v6276 = vor.u32 %v6273, %v6274
      %v6277 = vsel %vm717, %v6269, %v6276
      %v6278 = vrot.slane %v6273, 4
      %v6280 = vshrl.u32 %v6029, 16
      %v6282 = vrot.slane %v6280, 7
      %v6283 = vshll.u32 %v6029, 16
      %v6285 = vor.u32 %v6282, %v6283
      %v6286 = vsel %vm717, %v6278, %v6285
      %v6288 = vshrl.u32 %v6030, 16
      %v6290 = vrot.slane %v6288, 7
      %v6291 = vrot.slane %v6290, 4
      %v6293 = vshrl.u32 %v6031, 16
      %v6295 = vrot.slane %v6293, 7
      %v6296 = vshll.u32 %v6031, 16
      %v6298 = vor.u32 %v6295, %v6296
      %v6299 = vsel %vm717, %v6291, %v6298
      %v6300 = vrot.slane %v6295, 4
      %v6302 = vshrl.u32 %v6032, 16
      %v6304 = vrot.slane %v6302, 7
      %v6305 = vshll.u32 %v6032, 16
      %v6307 = vor.u32 %v6304, %v6305
      %v6308 = vsel %vm717, %v6300, %v6307
      %v6310 = vshrl.u32 %v6033, 16
      %v6312 = vrot.slane %v6310, 7
      %v6313 = vrot.slane %v6312, 4
      %v6315 = vshrl.u32 %v6034, 16
      %v6317 = vrot.slane %v6315, 7
      %v6318 = vshll.u32 %v6034, 16
      %v6320 = vor.u32 %v6317, %v6318
      %v6321 = vsel %vm717, %v6313, %v6320
      %v6322 = vrot.slane %v6317, 4
      %v6324 = vshrl.u32 %v6035, 16
      %v6326 = vrot.slane %v6324, 7
      %v6327 = vshll.u32 %v6035, 16
      %v6329 = vor.u32 %v6326, %v6327
      %v6330 = vsel %vm717, %v6322, %v6329
      %v6332 = vshrl.u32 %v6036, 16
      %v6334 = vrot.slane %v6332, 7
      %v6335 = vrot.slane %v6334, 4
      %v6337 = vshrl.u32 %v6037, 16
      %v6339 = vrot.slane %v6337, 7
      %v6340 = vshll.u32 %v6037, 16
      %v6342 = vor.u32 %v6339, %v6340
      %v6343 = vsel %vm717, %v6335, %v6342
      %v6344 = vrot.slane %v6339, 4
      %v6346 = vshrl.u32 %v6038, 16
      %v6348 = vrot.slane %v6346, 7
      %v6349 = vshll.u32 %v6038, 16
      %v6351 = vor.u32 %v6348, %v6349
      %v6352 = vsel %vm717, %v6344, %v6351
      %v6354 = vshrl.u32 %v6039, 16
      %v6356 = vrot.slane %v6354, 7
      %v6357 = vrot.slane %v6356, 4
      %v6359 = vshrl.u32 %v6040, 16
      %v6361 = vrot.slane %v6359, 7
      %v6362 = vshll.u32 %v6040, 16
      %v6364 = vor.u32 %v6361, %v6362
      %v6365 = vsel %vm717, %v6357, %v6364
      %v6366 = vrot.slane %v6361, 4
      %v6368 = vshrl.u32 %v6041, 16
      %v6370 = vrot.slane %v6368, 7
      %v6371 = vshll.u32 %v6041, 16
      %v6373 = vor.u32 %v6370, %v6371
      %v6374 = vsel %vm717, %v6366, %v6373
      %v6376 = vshrl.u32 %v6042, 16
      %v6378 = vrot.slane %v6376, 7
      %v6379 = vrot.slane %v6378, 4
      %v6381 = vshrl.u32 %v6043, 16
      %v6383 = vrot.slane %v6381, 7
      %v6384 = vshll.u32 %v6043, 16
      %v6386 = vor.u32 %v6383, %v6384
      %v6387 = vsel %vm717, %v6379, %v6386
      %v6388 = vrot.slane %v6383, 4
      %v6390 = vshrl.u32 %v6044, 16
      %v6392 = vrot.slane %v6390, 7
      %v6393 = vshll.u32 %v6044, 16
      %v6395 = vor.u32 %v6392, %v6393
      %v6396 = vsel %vm717, %v6388, %v6395
      %v6397 = vunpack.c.l.b16 %v6057
      %v6398 = vunpack.c.l.b16 %v6066
      %v6399 = vunpack.c.l.b16 %v6079
      %v6400 = vunpack.c.l.b16 %v6088
      %v6401 = vunpack.c.l.b16 %v6101
      %v6402 = vunpack.c.l.b16 %v6110
      %v6403 = vunpack.c.l.b16 %v6123
      %v6404 = vunpack.c.l.b16 %v6132
      %v6405 = vunpack.c.l.b16 %v6145
      %v6406 = vunpack.c.l.b16 %v6154
      %v6407 = vunpack.c.l.b16 %v6167
      %v6408 = vunpack.c.l.b16 %v6176
      %v6409 = vunpack.c.l.b16 %v6189
      %v6410 = vunpack.c.l.b16 %v6198
      %v6411 = vunpack.c.l.b16 %v6211
      %v6412 = vunpack.c.l.b16 %v6220
      %v6413 = vunpack.c.l.b16 %v6233
      %v6414 = vunpack.c.l.b16 %v6242
      %v6415 = vunpack.c.l.b16 %v6255
      %v6416 = vunpack.c.l.b16 %v6264
      %v6417 = vunpack.c.l.b16 %v6277
      %v6418 = vunpack.c.l.b16 %v6286
      %v6419 = vunpack.c.l.b16 %v6299
      %v6420 = vunpack.c.l.b16 %v6308
      %v6421 = vunpack.c.l.b16 %v6321
      %v6422 = vunpack.c.l.b16 %v6330
      %v6423 = vunpack.c.l.b16 %v6343
      %v6424 = vunpack.c.l.b16 %v6352
      %v6425 = vunpack.c.l.b16 %v6365
      %v6426 = vunpack.c.l.b16 %v6374
      %v6427 = vunpack.c.l.b16 %v6387
      %v6428 = vunpack.c.l.b16 %v6396
      %v6429 = vpack.c.b16 %v6398, %v6397
      %v6430 = vpack.c.b16 %v6400, %v6399
      %v6431 = vpack.c.b16 %v6402, %v6401
      %v6432 = vpack.c.b16 %v6404, %v6403
      %v6433 = vpack.c.b16 %v6406, %v6405
      %v6434 = vpack.c.b16 %v6408, %v6407
      %v6435 = vpack.c.b16 %v6410, %v6409
      %v6436 = vpack.c.b16 %v6412, %v6411
      %v6437 = vpack.c.b16 %v6414, %v6413
      %v6438 = vpack.c.b16 %v6416, %v6415
      %v6439 = vpack.c.b16 %v6418, %v6417
      %v6440 = vpack.c.b16 %v6420, %v6419
      %v6441 = vpack.c.b16 %v6422, %v6421
      %v6442 = vpack.c.b16 %v6424, %v6423
      %v6443 = vpack.c.b16 %v6426, %v6425
      %v6444 = vpack.c.b16 %v6428, %v6427
      %6445 = vrot.lane.b32.xlu0 %v6429, 12
      %v6446 = vpop.permute.xlu0 %6445
      %6447 = vrot.lane.b32.xlu0 %v6430, 12
      %v6448 = vpop.permute.xlu0 %6447
      %6449 = vrot.lane.b32.xlu0 %v6431, 12
      %v6450 = vpop.permute.xlu0 %6449
      %6451 = vrot.lane.b32.xlu0 %v6432, 12
      %v6452 = vpop.permute.xlu0 %6451
      %6453 = vrot.lane.b32.xlu0 %v6433, 12
      %v6454 = vpop.permute.xlu0 %6453
      %6455 = vrot.lane.b32.xlu0 %v6434, 12
      %v6456 = vpop.permute.xlu0 %6455
      %6457 = vrot.lane.b32.xlu0 %v6435, 12
      %v6458 = vpop.permute.xlu0 %6457
      %6459 = vrot.lane.b32.xlu0 %v6436, 12
      %v6460 = vpop.permute.xlu0 %6459
      %6461 = vrot.lane.b32.xlu0 %v6437, 12
      %v6462 = vpop.permute.xlu0 %6461
      %6463 = vrot.lane.b32.xlu0 %v6438, 12
      %v6464 = vpop.permute.xlu0 %6463
      %6465 = vrot.lane.b32.xlu0 %v6439, 12
      %v6466 = vpop.permute.xlu0 %6465
      %6467 = vrot.lane.b32.xlu0 %v6440, 12
      %v6468 = vpop.permute.xlu0 %6467
      %6469 = vrot.lane.b32.xlu0 %v6441, 12
      %v6470 = vpop.permute.xlu0 %6469
      %6471 = vrot.lane.b32.xlu0 %v6442, 12
      %v6472 = vpop.permute.xlu0 %6471
      %6473 = vrot.lane.b32.xlu0 %v6443, 12
      %v6474 = vpop.permute.xlu0 %6473
      %6475 = vrot.lane.b32.xlu0 %v6444, 12
      %v6476 = vpop.permute.xlu0 %6475
      %6493 = vst.msk [vmem:[#allocation4] sm:$0xff] %vm2372, %v6446
      %6494 = vst.msk [vmem:[#allocation4 + $0x8] sm:$0xff] %vm2372, %v6448
      %6495 = vst.msk [vmem:[#allocation4 + $0x10] sm:$0xff] %vm2372, %v6450
      %6496 = vst.msk [vmem:[#allocation4 + $0x18] sm:$0xff] %vm2372, %v6452
      %6497 = vst.msk [vmem:[#allocation4 + $0x20] sm:$0xff] %vm2372, %v6454
      %6498 = vst.msk [vmem:[#allocation4 + $0x28] sm:$0xff] %vm2372, %v6456
      %6499 = vst.msk [vmem:[#allocation4 + $0x30] sm:$0xff] %vm2372, %v6458
      %6500 = vst.msk [vmem:[#allocation4 + $0x38] sm:$0xff] %vm2372, %v6460
      %6501 = vst.msk [vmem:[#allocation4 + $0x40] sm:$0xff] %vm2372, %v6462
      %6502 = vst.msk [vmem:[#allocation4 + $0x48] sm:$0xff] %vm2372, %v6464
      %6503 = vst.msk [vmem:[#allocation4 + $0x50] sm:$0xff] %vm2372, %v6466
      %6504 = vst.msk [vmem:[#allocation4 + $0x58] sm:$0xff] %vm2372, %v6468
      %6505 = vst.msk [vmem:[#allocation4 + $0x60] sm:$0xff] %vm2372, %v6470
      %6506 = vst.msk [vmem:[#allocation4 + $0x68] sm:$0xff] %vm2372, %v6472
      %6507 = vst.msk [vmem:[#allocation4 + $0x70] sm:$0xff] %vm2372, %v6474
      %6508 = vst.msk [vmem:[#allocation4 + $0x78] sm:$0xff] %vm2372, %v6476
      %v6509 = vld [vmem:[%s4764 + $0x4] sm:$0xf]
      %v6510 = vld [vmem:[%s4764 + $0x8] sm:$0xf]
      %v6511 = vld [vmem:[%s4764 + $0x14] sm:$0xf]
      %v6512 = vld [vmem:[%s4764 + $0x18] sm:$0xf]
      %v6513 = vld [vmem:[%s4764 + $0x24] sm:$0xf]
      %v6514 = vld [vmem:[%s4764 + $0x28] sm:$0xf]
      %v6515 = vld [vmem:[%s4764 + $0x34] sm:$0xf]
      %v6516 = vld [vmem:[%s4764 + $0x38] sm:$0xf]
      %v6517 = vld [vmem:[%s4764 + $0x44] sm:$0xf]
      %v6518 = vld [vmem:[%s4764 + $0x48] sm:$0xf]
      %v6519 = vld [vmem:[%s4764 + $0x54] sm:$0xf]
      %v6520 = vld [vmem:[%s4764 + $0x58] sm:$0xf]
      %v6521 = vld [vmem:[%s4764 + $0x64] sm:$0xf]
      %v6522 = vld [vmem:[%s4764 + $0x68] sm:$0xf]
      %v6523 = vld [vmem:[%s4764 + $0x74] sm:$0xf]
      %v6524 = vld [vmem:[%s4764 + $0x78] sm:$0xf]
      %v6525 = vld [vmem:[%s4764 + $0x84] sm:$0xf]
      %v6526 = vld [vmem:[%s4764 + $0x88] sm:$0xf]
      %v6527 = vld [vmem:[%s4764 + $0x94] sm:$0xf]
      %v6528 = vld [vmem:[%s4764 + $0x98] sm:$0xf]
      %v6529 = vld [vmem:[%s4764 + $0xa4] sm:$0xf]
      %v6530 = vld [vmem:[%s4764 + $0xa8] sm:$0xf]
      %v6531 = vld [vmem:[%s4764 + $0xb4] sm:$0xf]
      %v6532 = vld [vmem:[%s4764 + $0xb8] sm:$0xf]
      %v6533 = vld [vmem:[%s4764 + $0xc4] sm:$0xf]
      %v6534 = vld [vmem:[%s4764 + $0xc8] sm:$0xf]
      %v6535 = vld [vmem:[%s4764 + $0xd4] sm:$0xf]
      %v6536 = vld [vmem:[%s4764 + $0xd8] sm:$0xf]
      %v6537 = vld [vmem:[%s4764 + $0xe4] sm:$0xf]
      %v6538 = vld [vmem:[%s4764 + $0xe8] sm:$0xf]
      %v6539 = vld [vmem:[%s4764 + $0xf4] sm:$0xf]
      %v6540 = vld [vmem:[%s4764 + $0xf8] sm:$0xf]
      %v6573 = vunpack.c.l.b16 %v6509
      %v6574 = vunpack.c.l.b16 %v6510
      %v6575 = vunpack.c.l.b16 %v6511
      %v6576 = vunpack.c.l.b16 %v6512
      %v6577 = vunpack.c.l.b16 %v6513
      %v6578 = vunpack.c.l.b16 %v6514
      %v6579 = vunpack.c.l.b16 %v6515
      %v6580 = vunpack.c.l.b16 %v6516
      %v6581 = vunpack.c.l.b16 %v6517
      %v6582 = vunpack.c.l.b16 %v6518
      %v6583 = vunpack.c.l.b16 %v6519
      %v6584 = vunpack.c.l.b16 %v6520
      %v6585 = vunpack.c.l.b16 %v6521
      %v6586 = vunpack.c.l.b16 %v6522
      %v6587 = vunpack.c.l.b16 %v6523
      %v6588 = vunpack.c.l.b16 %v6524
      %v6589 = vunpack.c.l.b16 %v6525
      %v6590 = vunpack.c.l.b16 %v6526
      %v6591 = vunpack.c.l.b16 %v6527
      %v6592 = vunpack.c.l.b16 %v6528
      %v6593 = vunpack.c.l.b16 %v6529
      %v6594 = vunpack.c.l.b16 %v6530
      %v6595 = vunpack.c.l.b16 %v6531
      %v6596 = vunpack.c.l.b16 %v6532
      %v6597 = vunpack.c.l.b16 %v6533
      %v6598 = vunpack.c.l.b16 %v6534
      %v6599 = vunpack.c.l.b16 %v6535
      %v6600 = vunpack.c.l.b16 %v6536
      %v6601 = vunpack.c.l.b16 %v6537
      %v6602 = vunpack.c.l.b16 %v6538
      %v6603 = vunpack.c.l.b16 %v6539
      %v6604 = vunpack.c.l.b16 %v6540
      %v6605 = vpack.c.b16 %v6574, %v6573
      %v6606 = vpack.c.b16 %v6576, %v6575
      %v6607 = vpack.c.b16 %v6578, %v6577
      %v6608 = vpack.c.b16 %v6580, %v6579
      %v6609 = vpack.c.b16 %v6582, %v6581
      %v6610 = vpack.c.b16 %v6584, %v6583
      %v6611 = vpack.c.b16 %v6586, %v6585
      %v6612 = vpack.c.b16 %v6588, %v6587
      %v6613 = vpack.c.b16 %v6590, %v6589
      %v6614 = vpack.c.b16 %v6592, %v6591
      %v6615 = vpack.c.b16 %v6594, %v6593
      %v6616 = vpack.c.b16 %v6596, %v6595
      %v6617 = vpack.c.b16 %v6598, %v6597
      %v6618 = vpack.c.b16 %v6600, %v6599
      %v6619 = vpack.c.b16 %v6602, %v6601
      %v6620 = vpack.c.b16 %v6604, %v6603
      %6621 = vrot.lane.b32.xlu0 %v6605, 16
      %v6622 = vpop.permute.xlu0 %6621
      %6623 = vrot.lane.b32.xlu0 %v6606, 16
      %v6624 = vpop.permute.xlu0 %6623
      %6625 = vrot.lane.b32.xlu0 %v6607, 16
      %v6626 = vpop.permute.xlu0 %6625
      %6627 = vrot.lane.b32.xlu0 %v6608, 16
      %v6628 = vpop.permute.xlu0 %6627
      %6629 = vrot.lane.b32.xlu0 %v6609, 16
      %v6630 = vpop.permute.xlu0 %6629
      %6631 = vrot.lane.b32.xlu0 %v6610, 16
      %v6632 = vpop.permute.xlu0 %6631
      %6633 = vrot.lane.b32.xlu0 %v6611, 16
      %v6634 = vpop.permute.xlu0 %6633
      %6635 = vrot.lane.b32.xlu0 %v6612, 16
      %v6636 = vpop.permute.xlu0 %6635
      %6637 = vrot.lane.b32.xlu0 %v6613, 16
      %v6638 = vpop.permute.xlu0 %6637
      %6639 = vrot.lane.b32.xlu0 %v6614, 16
      %v6640 = vpop.permute.xlu0 %6639
      %6641 = vrot.lane.b32.xlu0 %v6615, 16
      %v6642 = vpop.permute.xlu0 %6641
      %6643 = vrot.lane.b32.xlu0 %v6616, 16
      %v6644 = vpop.permute.xlu0 %6643
      %6645 = vrot.lane.b32.xlu0 %v6617, 16
      %v6646 = vpop.permute.xlu0 %6645
      %6647 = vrot.lane.b32.xlu0 %v6618, 16
      %v6648 = vpop.permute.xlu0 %6647
      %6649 = vrot.lane.b32.xlu0 %v6619, 16
      %v6650 = vpop.permute.xlu0 %6649
      %6651 = vrot.lane.b32.xlu0 %v6620, 16
      %v6652 = vpop.permute.xlu0 %6651
      %6669 = vst.msk [vmem:[#allocation4] sm:$0xff] %vm2549, %v6622
      %6670 = vst.msk [vmem:[#allocation4 + $0x8] sm:$0xff] %vm2549, %v6624
      %6671 = vst.msk [vmem:[#allocation4 + $0x10] sm:$0xff] %vm2549, %v6626
      %6672 = vst.msk [vmem:[#allocation4 + $0x18] sm:$0xff] %vm2549, %v6628
      %6673 = vst.msk [vmem:[#allocation4 + $0x20] sm:$0xff] %vm2549, %v6630
      %6674 = vst.msk [vmem:[#allocation4 + $0x28] sm:$0xff] %vm2549, %v6632
      %6675 = vst.msk [vmem:[#allocation4 + $0x30] sm:$0xff] %vm2549, %v6634
      %6676 = vst.msk [vmem:[#allocation4 + $0x38] sm:$0xff] %vm2549, %v6636
      %6677 = vst.msk [vmem:[#allocation4 + $0x40] sm:$0xff] %vm2549, %v6638
      %6678 = vst.msk [vmem:[#allocation4 + $0x48] sm:$0xff] %vm2549, %v6640
      %6679 = vst.msk [vmem:[#allocation4 + $0x50] sm:$0xff] %vm2549, %v6642
      %6680 = vst.msk [vmem:[#allocation4 + $0x58] sm:$0xff] %vm2549, %v6644
      %6681 = vst.msk [vmem:[#allocation4 + $0x60] sm:$0xff] %vm2549, %v6646
      %6682 = vst.msk [vmem:[#allocation4 + $0x68] sm:$0xff] %vm2549, %v6648
      %6683 = vst.msk [vmem:[#allocation4 + $0x70] sm:$0xff] %vm2549, %v6650
      %6684 = vst.msk [vmem:[#allocation4 + $0x78] sm:$0xff] %vm2549, %v6652
      %v6685 = vld [vmem:[%s4764 + $0x4] sm:$0xf]
      %v6686 = vld [vmem:[%s4764 + $0x8] sm:$0xf]
      %v6687 = vld [vmem:[%s4764 + $0xc] sm:$0x1]
      %v6688 = vld [vmem:[%s4764 + $0x14] sm:$0xf]
      %v6689 = vld [vmem:[%s4764 + $0x18] sm:$0xf]
      %v6690 = vld [vmem:[%s4764 + $0x1c] sm:$0x1]
      %v6691 = vld [vmem:[%s4764 + $0x24] sm:$0xf]
      %v6692 = vld [vmem:[%s4764 + $0x28] sm:$0xf]
      %v6693 = vld [vmem:[%s4764 + $0x2c] sm:$0x1]
      %v6694 = vld [vmem:[%s4764 + $0x34] sm:$0xf]
      %v6695 = vld [vmem:[%s4764 + $0x38] sm:$0xf]
      %v6696 = vld [vmem:[%s4764 + $0x3c] sm:$0x1]
      %v6697 = vld [vmem:[%s4764 + $0x44] sm:$0xf]
      %v6698 = vld [vmem:[%s4764 + $0x48] sm:$0xf]
      %v6699 = vld [vmem:[%s4764 + $0x4c] sm:$0x1]
      %v6700 = vld [vmem:[%s4764 + $0x54] sm:$0xf]
      %v6701 = vld [vmem:[%s4764 + $0x58] sm:$0xf]
      %v6702 = vld [vmem:[%s4764 + $0x5c] sm:$0x1]
      %v6703 = vld [vmem:[%s4764 + $0x64] sm:$0xf]
      %v6704 = vld [vmem:[%s4764 + $0x68] sm:$0xf]
      %v6705 = vld [vmem:[%s4764 + $0x6c] sm:$0x1]
      %v6706 = vld [vmem:[%s4764 + $0x74] sm:$0xf]
      %v6707 = vld [vmem:[%s4764 + $0x78] sm:$0xf]
      %v6708 = vld [vmem:[%s4764 + $0x7c] sm:$0x1]
      %v6709 = vld [vmem:[%s4764 + $0x84] sm:$0xf]
      %v6710 = vld [vmem:[%s4764 + $0x88] sm:$0xf]
      %v6711 = vld [vmem:[%s4764 + $0x8c] sm:$0x1]
      %v6712 = vld [vmem:[%s4764 + $0x94] sm:$0xf]
      %v6713 = vld [vmem:[%s4764 + $0x98] sm:$0xf]
      %v6714 = vld [vmem:[%s4764 + $0x9c] sm:$0x1]
      %v6715 = vld [vmem:[%s4764 + $0xa4] sm:$0xf]
      %v6716 = vld [vmem:[%s4764 + $0xa8] sm:$0xf]
      %v6717 = vld [vmem:[%s4764 + $0xac] sm:$0x1]
      %v6718 = vld [vmem:[%s4764 + $0xb4] sm:$0xf]
      %v6719 = vld [vmem:[%s4764 + $0xb8] sm:$0xf]
      %v6720 = vld [vmem:[%s4764 + $0xbc] sm:$0x1]
      %v6721 = vld [vmem:[%s4764 + $0xc4] sm:$0xf]
      %v6722 = vld [vmem:[%s4764 + $0xc8] sm:$0xf]
      %v6723 = vld [vmem:[%s4764 + $0xcc] sm:$0x1]
      %v6724 = vld [vmem:[%s4764 + $0xd4] sm:$0xf]
      %v6725 = vld [vmem:[%s4764 + $0xd8] sm:$0xf]
      %v6726 = vld [vmem:[%s4764 + $0xdc] sm:$0x1]
      %v6727 = vld [vmem:[%s4764 + $0xe4] sm:$0xf]
      %v6728 = vld [vmem:[%s4764 + $0xe8] sm:$0xf]
      %v6729 = vld [vmem:[%s4764 + $0xec] sm:$0x1]
      %v6730 = vld [vmem:[%s4764 + $0xf4] sm:$0xf]
      %v6731 = vld [vmem:[%s4764 + $0xf8] sm:$0xf]
      %v6732 = vld [vmem:[%s4764 + $0xfc] sm:$0x1]
      %v6734 = vshrl.u32 %v6685, 16
      %v6736 = vrot.slane %v6734, 4
      %v6737 = vshll.u32 %v6685, 16
      %v6739 = vrot.slane %v6737, 5
      %v6740 = vor.u32 %v6736, %v6739
      %v6741 = vrot.slane %v6740, 4
      %v6743 = vshll.u32 %v6686, 16
      %v6745 = vrot.slane %v6743, 5
      %v6746 = vsel %vm1378, %v6741, %v6745
      %v6747 = vshrl.u32 %v6686, 16
      %v6749 = vrot.slane %v6747, 4
      %v6750 = vor.u32 %v6749, %v6745
      %v6751 = vrot.slane %v6750, 4
      %v6753 = vshll.u32 %v6687, 16
      %v6755 = vrot.slane %v6753, 5
      %v6756 = vsel %vm1378, %v6751, %v6755
      %v6758 = vshrl.u32 %v6688, 16
      %v6760 = vrot.slane %v6758, 4
      %v6761 = vshll.u32 %v6688, 16
      %v6763 = vrot.slane %v6761, 5
      %v6764 = vor.u32 %v6760, %v6763
      %v6765 = vrot.slane %v6764, 4
      %v6767 = vshll.u32 %v6689, 16
      %v6769 = vrot.slane %v6767, 5
      %v6770 = vsel %vm1378, %v6765, %v6769
      %v6771 = vshrl.u32 %v6689, 16
      %v6773 = vrot.slane %v6771, 4
      %v6774 = vor.u32 %v6773, %v6769
      %v6775 = vrot.slane %v6774, 4
      %v6777 = vshll.u32 %v6690, 16
      %v6779 = vrot.slane %v6777, 5
      %v6780 = vsel %vm1378, %v6775, %v6779
      %v6782 = vshrl.u32 %v6691, 16
      %v6784 = vrot.slane %v6782, 4
      %v6785 = vshll.u32 %v6691, 16
      %v6787 = vrot.slane %v6785, 5
      %v6788 = vor.u32 %v6784, %v6787
      %v6789 = vrot.slane %v6788, 4
      %v6791 = vshll.u32 %v6692, 16
      %v6793 = vrot.slane %v6791, 5
      %v6794 = vsel %vm1378, %v6789, %v6793
      %v6795 = vshrl.u32 %v6692, 16
      %v6797 = vrot.slane %v6795, 4
      %v6798 = vor.u32 %v6797, %v6793
      %v6799 = vrot.slane %v6798, 4
      %v6801 = vshll.u32 %v6693, 16
      %v6803 = vrot.slane %v6801, 5
      %v6804 = vsel %vm1378, %v6799, %v6803
      %v6806 = vshrl.u32 %v6694, 16
      %v6808 = vrot.slane %v6806, 4
      %v6809 = vshll.u32 %v6694, 16
      %v6811 = vrot.slane %v6809, 5
      %v6812 = vor.u32 %v6808, %v6811
      %v6813 = vrot.slane %v6812, 4
      %v6815 = vshll.u32 %v6695, 16
      %v6817 = vrot.slane %v6815, 5
      %v6818 = vsel %vm1378, %v6813, %v6817
      %v6819 = vshrl.u32 %v6695, 16
      %v6821 = vrot.slane %v6819, 4
      %v6822 = vor.u32 %v6821, %v6817
      %v6823 = vrot.slane %v6822, 4
      %v6825 = vshll.u32 %v6696, 16
      %v6827 = vrot.slane %v6825, 5
      %v6828 = vsel %vm1378, %v6823, %v6827
      %v6830 = vshrl.u32 %v6697, 16
      %v6832 = vrot.slane %v6830, 4
      %v6833 = vshll.u32 %v6697, 16
      %v6835 = vrot.slane %v6833, 5
      %v6836 = vor.u32 %v6832, %v6835
      %v6837 = vrot.slane %v6836, 4
      %v6839 = vshll.u32 %v6698, 16
      %v6841 = vrot.slane %v6839, 5
      %v6842 = vsel %vm1378, %v6837, %v6841
      %v6843 = vshrl.u32 %v6698, 16
      %v6845 = vrot.slane %v6843, 4
      %v6846 = vor.u32 %v6845, %v6841
      %v6847 = vrot.slane %v6846, 4
      %v6849 = vshll.u32 %v6699, 16
      %v6851 = vrot.slane %v6849, 5
      %v6852 = vsel %vm1378, %v6847, %v6851
      %v6854 = vshrl.u32 %v6700, 16
      %v6856 = vrot.slane %v6854, 4
      %v6857 = vshll.u32 %v6700, 16
      %v6859 = vrot.slane %v6857, 5
      %v6860 = vor.u32 %v6856, %v6859
      %v6861 = vrot.slane %v6860, 4
      %v6863 = vshll.u32 %v6701, 16
      %v6865 = vrot.slane %v6863, 5
      %v6866 = vsel %vm1378, %v6861, %v6865
      %v6867 = vshrl.u32 %v6701, 16
      %v6869 = vrot.slane %v6867, 4
      %v6870 = vor.u32 %v6869, %v6865
      %v6871 = vrot.slane %v6870, 4
      %v6873 = vshll.u32 %v6702, 16
      %v6875 = vrot.slane %v6873, 5
      %v6876 = vsel %vm1378, %v6871, %v6875
      %v6878 = vshrl.u32 %v6703, 16
      %v6880 = vrot.slane %v6878, 4
      %v6881 = vshll.u32 %v6703, 16
      %v6883 = vrot.slane %v6881, 5
      %v6884 = vor.u32 %v6880, %v6883
      %v6885 = vrot.slane %v6884, 4
      %v6887 = vshll.u32 %v6704, 16
      %v6889 = vrot.slane %v6887, 5
      %v6890 = vsel %vm1378, %v6885, %v6889
      %v6891 = vshrl.u32 %v6704, 16
      %v6893 = vrot.slane %v6891, 4
      %v6894 = vor.u32 %v6893, %v6889
      %v6895 = vrot.slane %v6894, 4
      %v6897 = vshll.u32 %v6705, 16
      %v6899 = vrot.slane %v6897, 5
      %v6900 = vsel %vm1378, %v6895, %v6899
      %v6902 = vshrl.u32 %v6706, 16
      %v6904 = vrot.slane %v6902, 4
      %v6905 = vshll.u32 %v6706, 16
      %v6907 = vrot.slane %v6905, 5
      %v6908 = vor.u32 %v6904, %v6907
      %v6909 = vrot.slane %v6908, 4
      %v6911 = vshll.u32 %v6707, 16
      %v6913 = vrot.slane %v6911, 5
      %v6914 = vsel %vm1378, %v6909, %v6913
      %v6915 = vshrl.u32 %v6707, 16
      %v6917 = vrot.slane %v6915, 4
      %v6918 = vor.u32 %v6917, %v6913
      %v6919 = vrot.slane %v6918, 4
      %v6921 = vshll.u32 %v6708, 16
      %v6923 = vrot.slane %v6921, 5
      %v6924 = vsel %vm1378, %v6919, %v6923
      %v6926 = vshrl.u32 %v6709, 16
      %v6928 = vrot.slane %v6926, 4
      %v6929 = vshll.u32 %v6709, 16
      %v6931 = vrot.slane %v6929, 5
      %v6932 = vor.u32 %v6928, %v6931
      %v6933 = vrot.slane %v6932, 4
      %v6935 = vshll.u32 %v6710, 16
      %v6937 = vrot.slane %v6935, 5
      %v6938 = vsel %vm1378, %v6933, %v6937
      %v6939 = vshrl.u32 %v6710, 16
      %v6941 = vrot.slane %v6939, 4
      %v6942 = vor.u32 %v6941, %v6937
      %v6943 = vrot.slane %v6942, 4
      %v6945 = vshll.u32 %v6711, 16
      %v6947 = vrot.slane %v6945, 5
      %v6948 = vsel %vm1378, %v6943, %v6947
      %v6950 = vshrl.u32 %v6712, 16
      %v6952 = vrot.slane %v6950, 4
      %v6953 = vshll.u32 %v6712, 16
      %v6955 = vrot.slane %v6953, 5
      %v6956 = vor.u32 %v6952, %v6955
      %v6957 = vrot.slane %v6956, 4
      %v6959 = vshll.u32 %v6713, 16
      %v6961 = vrot.slane %v6959, 5
      %v6962 = vsel %vm1378, %v6957, %v6961
      %v6963 = vshrl.u32 %v6713, 16
      %v6965 = vrot.slane %v6963, 4
      %v6966 = vor.u32 %v6965, %v6961
      %v6967 = vrot.slane %v6966, 4
      %v6969 = vshll.u32 %v6714, 16
      %v6971 = vrot.slane %v6969, 5
      %v6972 = vsel %vm1378, %v6967, %v6971
      %v6974 = vshrl.u32 %v6715, 16
      %v6976 = vrot.slane %v6974, 4
      %v6977 = vshll.u32 %v6715, 16
      %v6979 = vrot.slane %v6977, 5
      %v6980 = vor.u32 %v6976, %v6979
      %v6981 = vrot.slane %v6980, 4
      %v6983 = vshll.u32 %v6716, 16
      %v6985 = vrot.slane %v6983, 5
      %v6986 = vsel %vm1378, %v6981, %v6985
      %v6987 = vshrl.u32 %v6716, 16
      %v6989 = vrot.slane %v6987, 4
      %v6990 = vor.u32 %v6989, %v6985
      %v6991 = vrot.slane %v6990, 4
      %v6993 = vshll.u32 %v6717, 16
      %v6995 = vrot.slane %v6993, 5
      %v6996 = vsel %vm1378, %v6991, %v6995
      %v6998 = vshrl.u32 %v6718, 16
      %v7000 = vrot.slane %v6998, 4
      %v7001 = vshll.u32 %v6718, 16
      %v7003 = vrot.slane %v7001, 5
      %v7004 = vor.u32 %v7000, %v7003
      %v7005 = vrot.slane %v7004, 4
      %v7007 = vshll.u32 %v6719, 16
      %v7009 = vrot.slane %v7007, 5
      %v7010 = vsel %vm1378, %v7005, %v7009
      %v7011 = vshrl.u32 %v6719, 16
      %v7013 = vrot.slane %v7011, 4
      %v7014 = vor.u32 %v7013, %v7009
      %v7015 = vrot.slane %v7014, 4
      %v7017 = vshll.u32 %v6720, 16
      %v7019 = vrot.slane %v7017, 5
      %v7020 = vsel %vm1378, %v7015, %v7019
      %v7022 = vshrl.u32 %v6721, 16
      %v7024 = vrot.slane %v7022, 4
      %v7025 = vshll.u32 %v6721, 16
      %v7027 = vrot.slane %v7025, 5
      %v7028 = vor.u32 %v7024, %v7027
      %v7029 = vrot.slane %v7028, 4
      %v7031 = vshll.u32 %v6722, 16
      %v7033 = vrot.slane %v7031, 5
      %v7034 = vsel %vm1378, %v7029, %v7033
      %v7035 = vshrl.u32 %v6722, 16
      %v7037 = vrot.slane %v7035, 4
      %v7038 = vor.u32 %v7037, %v7033
      %v7039 = vrot.slane %v7038, 4
      %v7041 = vshll.u32 %v6723, 16
      %v7043 = vrot.slane %v7041, 5
      %v7044 = vsel %vm1378, %v7039, %v7043
      %v7046 = vshrl.u32 %v6724, 16
      %v7048 = vrot.slane %v7046, 4
      %v7049 = vshll.u32 %v6724, 16
      %v7051 = vrot.slane %v7049, 5
      %v7052 = vor.u32 %v7048, %v7051
      %v7053 = vrot.slane %v7052, 4
      %v7055 = vshll.u32 %v6725, 16
      %v7057 = vrot.slane %v7055, 5
      %v7058 = vsel %vm1378, %v7053, %v7057
      %v7059 = vshrl.u32 %v6725, 16
      %v7061 = vrot.slane %v7059, 4
      %v7062 = vor.u32 %v7061, %v7057
      %v7063 = vrot.slane %v7062, 4
      %v7065 = vshll.u32 %v6726, 16
      %v7067 = vrot.slane %v7065, 5
      %v7068 = vsel %vm1378, %v7063, %v7067
      %v7070 = vshrl.u32 %v6727, 16
      %v7072 = vrot.slane %v7070, 4
      %v7073 = vshll.u32 %v6727, 16
      %v7075 = vrot.slane %v7073, 5
      %v7076 = vor.u32 %v7072, %v7075
      %v7077 = vrot.slane %v7076, 4
      %v7079 = vshll.u32 %v6728, 16
      %v7081 = vrot.slane %v7079, 5
      %v7082 = vsel %vm1378, %v7077, %v7081
      %v7083 = vshrl.u32 %v6728, 16
      %v7085 = vrot.slane %v7083, 4
      %v7086 = vor.u32 %v7085, %v7081
      %v7087 = vrot.slane %v7086, 4
      %v7089 = vshll.u32 %v6729, 16
      %v7091 = vrot.slane %v7089, 5
      %v7092 = vsel %vm1378, %v7087, %v7091
      %v7094 = vshrl.u32 %v6730, 16
      %v7096 = vrot.slane %v7094, 4
      %v7097 = vshll.u32 %v6730, 16
      %v7099 = vrot.slane %v7097, 5
      %v7100 = vor.u32 %v7096, %v7099
      %v7101 = vrot.slane %v7100, 4
      %v7103 = vshll.u32 %v6731, 16
      %v7105 = vrot.slane %v7103, 5
      %v7106 = vsel %vm1378, %v7101, %v7105
      %v7107 = vshrl.u32 %v6731, 16
      %v7109 = vrot.slane %v7107, 4
      %v7110 = vor.u32 %v7109, %v7105
      %v7111 = vrot.slane %v7110, 4
      %v7113 = vshll.u32 %v6732, 16
      %v7115 = vrot.slane %v7113, 5
      %v7116 = vsel %vm1378, %v7111, %v7115
      %v7117 = vunpack.c.l.b16 %v6746
      %v7118 = vunpack.c.l.b16 %v6756
      %v7119 = vunpack.c.l.b16 %v6770
      %v7120 = vunpack.c.l.b16 %v6780
      %v7121 = vunpack.c.l.b16 %v6794
      %v7122 = vunpack.c.l.b16 %v6804
      %v7123 = vunpack.c.l.b16 %v6818
      %v7124 = vunpack.c.l.b16 %v6828
      %v7125 = vunpack.c.l.b16 %v6842
      %v7126 = vunpack.c.l.b16 %v6852
      %v7127 = vunpack.c.l.b16 %v6866
      %v7128 = vunpack.c.l.b16 %v6876
      %v7129 = vunpack.c.l.b16 %v6890
      %v7130 = vunpack.c.l.b16 %v6900
      %v7131 = vunpack.c.l.b16 %v6914
      %v7132 = vunpack.c.l.b16 %v6924
      %v7133 = vunpack.c.l.b16 %v6938
      %v7134 = vunpack.c.l.b16 %v6948
      %v7135 = vunpack.c.l.b16 %v6962
      %v7136 = vunpack.c.l.b16 %v6972
      %v7137 = vunpack.c.l.b16 %v6986
      %v7138 = vunpack.c.l.b16 %v6996
      %v7139 = vunpack.c.l.b16 %v7010
      %v7140 = vunpack.c.l.b16 %v7020
      %v7141 = vunpack.c.l.b16 %v7034
      %v7142 = vunpack.c.l.b16 %v7044
      %v7143 = vunpack.c.l.b16 %v7058
      %v7144 = vunpack.c.l.b16 %v7068
      %v7145 = vunpack.c.l.b16 %v7082
      %v7146 = vunpack.c.l.b16 %v7092
      %v7147 = vunpack.c.l.b16 %v7106
      %v7148 = vunpack.c.l.b16 %v7116
      %v7149 = vpack.c.b16 %v7118, %v7117
      %v7150 = vpack.c.b16 %v7120, %v7119
      %v7151 = vpack.c.b16 %v7122, %v7121
      %v7152 = vpack.c.b16 %v7124, %v7123
      %v7153 = vpack.c.b16 %v7126, %v7125
      %v7154 = vpack.c.b16 %v7128, %v7127
      %v7155 = vpack.c.b16 %v7130, %v7129
      %v7156 = vpack.c.b16 %v7132, %v7131
      %v7157 = vpack.c.b16 %v7134, %v7133
      %v7158 = vpack.c.b16 %v7136, %v7135
      %v7159 = vpack.c.b16 %v7138, %v7137
      %v7160 = vpack.c.b16 %v7140, %v7139
      %v7161 = vpack.c.b16 %v7142, %v7141
      %v7162 = vpack.c.b16 %v7144, %v7143
      %v7163 = vpack.c.b16 %v7146, %v7145
      %v7164 = vpack.c.b16 %v7148, %v7147
      %7165 = vrot.lane.b32.xlu0 %v7149, 20
      %v7166 = vpop.permute.xlu0 %7165
      %7167 = vrot.lane.b32.xlu0 %v7150, 20
      %v7168 = vpop.permute.xlu0 %7167
      %7169 = vrot.lane.b32.xlu0 %v7151, 20
      %v7170 = vpop.permute.xlu0 %7169
      %7171 = vrot.lane.b32.xlu0 %v7152, 20
      %v7172 = vpop.permute.xlu0 %7171
      %7173 = vrot.lane.b32.xlu0 %v7153, 20
      %v7174 = vpop.permute.xlu0 %7173
      %7175 = vrot.lane.b32.xlu0 %v7154, 20
      %v7176 = vpop.permute.xlu0 %7175
      %7177 = vrot.lane.b32.xlu0 %v7155, 20
      %v7178 = vpop.permute.xlu0 %7177
      %7179 = vrot.lane.b32.xlu0 %v7156, 20
      %v7180 = vpop.permute.xlu0 %7179
      %7181 = vrot.lane.b32.xlu0 %v7157, 20
      %v7182 = vpop.permute.xlu0 %7181
      %7183 = vrot.lane.b32.xlu0 %v7158, 20
      %v7184 = vpop.permute.xlu0 %7183
      %7185 = vrot.lane.b32.xlu0 %v7159, 20
      %v7186 = vpop.permute.xlu0 %7185
      %7187 = vrot.lane.b32.xlu0 %v7160, 20
      %v7188 = vpop.permute.xlu0 %7187
      %7189 = vrot.lane.b32.xlu0 %v7161, 20
      %v7190 = vpop.permute.xlu0 %7189
      %7191 = vrot.lane.b32.xlu0 %v7162, 20
      %v7192 = vpop.permute.xlu0 %7191
      %7193 = vrot.lane.b32.xlu0 %v7163, 20
      %v7194 = vpop.permute.xlu0 %7193
      %7195 = vrot.lane.b32.xlu0 %v7164, 20
      %v7196 = vpop.permute.xlu0 %7195
      %7213 = vst.msk [vmem:[#allocation4] sm:$0xff] %vm3094, %v7166
      %7214 = vst.msk [vmem:[#allocation4 + $0x8] sm:$0xff] %vm3094, %v7168
      %7215 = vst.msk [vmem:[#allocation4 + $0x10] sm:$0xff] %vm3094, %v7170
      %7216 = vst.msk [vmem:[#allocation4 + $0x18] sm:$0xff] %vm3094, %v7172
      %7217 = vst.msk [vmem:[#allocation4 + $0x20] sm:$0xff] %vm3094, %v7174
      %7218 = vst.msk [vmem:[#allocation4 + $0x28] sm:$0xff] %vm3094, %v7176
      %7219 = vst.msk [vmem:[#allocation4 + $0x30] sm:$0xff] %vm3094, %v7178
      %7220 = vst.msk [vmem:[#allocation4 + $0x38] sm:$0xff] %vm3094, %v7180
      %7221 = vst.msk [vmem:[#allocation4 + $0x40] sm:$0xff] %vm3094, %v7182
      %7222 = vst.msk [vmem:[#allocation4 + $0x48] sm:$0xff] %vm3094, %v7184
      %7223 = vst.msk [vmem:[#allocation4 + $0x50] sm:$0xff] %vm3094, %v7186
      %7224 = vst.msk [vmem:[#allocation4 + $0x58] sm:$0xff] %vm3094, %v7188
      %7225 = vst.msk [vmem:[#allocation4 + $0x60] sm:$0xff] %vm3094, %v7190
      %7226 = vst.msk [vmem:[#allocation4 + $0x68] sm:$0xff] %vm3094, %v7192
      %7227 = vst.msk [vmem:[#allocation4 + $0x70] sm:$0xff] %vm3094, %v7194
      %7228 = vst.msk [vmem:[#allocation4 + $0x78] sm:$0xff] %vm3094, %v7196
      %s7229 = scalar_lea.vmem [#allocation3], 32
      %v7230 = vld [vmem:[%s7229] sm:$0x8]
      %v7231 = vld [vmem:[%s7229 + $0x4] sm:$0xf]
      %v7232 = vld [vmem:[%s7229 + $0x8] sm:$0xf]
      %v7233 = vld [vmem:[%s7229 + $0x10] sm:$0x8]
      %v7234 = vld [vmem:[%s7229 + $0x14] sm:$0xf]
      %v7235 = vld [vmem:[%s7229 + $0x18] sm:$0xf]
      %v7236 = vld [vmem:[%s7229 + $0x20] sm:$0x8]
      %v7237 = vld [vmem:[%s7229 + $0x24] sm:$0xf]
      %v7238 = vld [vmem:[%s7229 + $0x28] sm:$0xf]
      %v7239 = vld [vmem:[%s7229 + $0x30] sm:$0x8]
      %v7240 = vld [vmem:[%s7229 + $0x34] sm:$0xf]
      %v7241 = vld [vmem:[%s7229 + $0x38] sm:$0xf]
      %v7242 = vld [vmem:[%s7229 + $0x40] sm:$0x8]
      %v7243 = vld [vmem:[%s7229 + $0x44] sm:$0xf]
      %v7244 = vld [vmem:[%s7229 + $0x48] sm:$0xf]
      %v7245 = vld [vmem:[%s7229 + $0x50] sm:$0x8]
      %v7246 = vld [vmem:[%s7229 + $0x54] sm:$0xf]
      %v7247 = vld [vmem:[%s7229 + $0x58] sm:$0xf]
      %v7248 = vld [vmem:[%s7229 + $0x60] sm:$0x8]
      %v7249 = vld [vmem:[%s7229 + $0x64] sm:$0xf]
      %v7250 = vld [vmem:[%s7229 + $0x68] sm:$0xf]
      %v7251 = vld [vmem:[%s7229 + $0x70] sm:$0x8]
      %v7252 = vld [vmem:[%s7229 + $0x74] sm:$0xf]
      %v7253 = vld [vmem:[%s7229 + $0x78] sm:$0xf]
      %v7254 = vld [vmem:[%s7229 + $0x80] sm:$0x8]
      %v7255 = vld [vmem:[%s7229 + $0x84] sm:$0xf]
      %v7256 = vld [vmem:[%s7229 + $0x88] sm:$0xf]
      %v7257 = vld [vmem:[%s7229 + $0x90] sm:$0x8]
      %v7258 = vld [vmem:[%s7229 + $0x94] sm:$0xf]
      %v7259 = vld [vmem:[%s7229 + $0x98] sm:$0xf]
      %v7260 = vld [vmem:[%s7229 + $0xa0] sm:$0x8]
      %v7261 = vld [vmem:[%s7229 + $0xa4] sm:$0xf]
      %v7262 = vld [vmem:[%s7229 + $0xa8] sm:$0xf]
      %v7263 = vld [vmem:[%s7229 + $0xb0] sm:$0x8]
      %v7264 = vld [vmem:[%s7229 + $0xb4] sm:$0xf]
      %v7265 = vld [vmem:[%s7229 + $0xb8] sm:$0xf]
      %v7266 = vld [vmem:[%s7229 + $0xc0] sm:$0x8]
      %v7267 = vld [vmem:[%s7229 + $0xc4] sm:$0xf]
      %v7268 = vld [vmem:[%s7229 + $0xc8] sm:$0xf]
      %v7269 = vld [vmem:[%s7229 + $0xd0] sm:$0x8]
      %v7270 = vld [vmem:[%s7229 + $0xd4] sm:$0xf]
      %v7271 = vld [vmem:[%s7229 + $0xd8] sm:$0xf]
      %v7272 = vld [vmem:[%s7229 + $0xe0] sm:$0x8]
      %v7273 = vld [vmem:[%s7229 + $0xe4] sm:$0xf]
      %v7274 = vld [vmem:[%s7229 + $0xe8] sm:$0xf]
      %v7275 = vld [vmem:[%s7229 + $0xf0] sm:$0x8]
      %v7276 = vld [vmem:[%s7229 + $0xf4] sm:$0xf]
      %v7277 = vld [vmem:[%s7229 + $0xf8] sm:$0xf]
      %v7279 = vshrl.u32 %v7230, 16
      %v7281 = vrot.slane %v7279, 7
      %v7282 = vrot.slane %v7281, 4
      %v7284 = vshrl.u32 %v7231, 16
      %v7286 = vrot.slane %v7284, 7
      %v7287 = vshll.u32 %v7231, 16
      %v7289 = vor.u32 %v7286, %v7287
      %v7290 = vsel %vm717, %v7282, %v7289
      %v7291 = vrot.slane %v7286, 4
      %v7293 = vshrl.u32 %v7232, 16
      %v7295 = vrot.slane %v7293, 7
      %v7296 = vshll.u32 %v7232, 16
      %v7298 = vor.u32 %v7295, %v7296
      %v7299 = vsel %vm717, %v7291, %v7298
      %v7301 = vshrl.u32 %v7233, 16
      %v7303 = vrot.slane %v7301, 7
      %v7304 = vrot.slane %v7303, 4
      %v7306 = vshrl.u32 %v7234, 16
      %v7308 = vrot.slane %v7306, 7
      %v7309 = vshll.u32 %v7234, 16
      %v7311 = vor.u32 %v7308, %v7309
      %v7312 = vsel %vm717, %v7304, %v7311
      %v7313 = vrot.slane %v7308, 4
      %v7315 = vshrl.u32 %v7235, 16
      %v7317 = vrot.slane %v7315, 7
      %v7318 = vshll.u32 %v7235, 16
      %v7320 = vor.u32 %v7317, %v7318
      %v7321 = vsel %vm717, %v7313, %v7320
      %v7323 = vshrl.u32 %v7236, 16
      %v7325 = vrot.slane %v7323, 7
      %v7326 = vrot.slane %v7325, 4
      %v7328 = vshrl.u32 %v7237, 16
      %v7330 = vrot.slane %v7328, 7
      %v7331 = vshll.u32 %v7237, 16
      %v7333 = vor.u32 %v7330, %v7331
      %v7334 = vsel %vm717, %v7326, %v7333
      %v7335 = vrot.slane %v7330, 4
      %v7337 = vshrl.u32 %v7238, 16
      %v7339 = vrot.slane %v7337, 7
      %v7340 = vshll.u32 %v7238, 16
      %v7342 = vor.u32 %v7339, %v7340
      %v7343 = vsel %vm717, %v7335, %v7342
      %v7345 = vshrl.u32 %v7239, 16
      %v7347 = vrot.slane %v7345, 7
      %v7348 = vrot.slane %v7347, 4
      %v7350 = vshrl.u32 %v7240, 16
      %v7352 = vrot.slane %v7350, 7
      %v7353 = vshll.u32 %v7240, 16
      %v7355 = vor.u32 %v7352, %v7353
      %v7356 = vsel %vm717, %v7348, %v7355
      %v7357 = vrot.slane %v7352, 4
      %v7359 = vshrl.u32 %v7241, 16
      %v7361 = vrot.slane %v7359, 7
      %v7362 = vshll.u32 %v7241, 16
      %v7364 = vor.u32 %v7361, %v7362
      %v7365 = vsel %vm717, %v7357, %v7364
      %v7367 = vshrl.u32 %v7242, 16
      %v7369 = vrot.slane %v7367, 7
      %v7370 = vrot.slane %v7369, 4
      %v7372 = vshrl.u32 %v7243, 16
      %v7374 = vrot.slane %v7372, 7
      %v7375 = vshll.u32 %v7243, 16
      %v7377 = vor.u32 %v7374, %v7375
      %v7378 = vsel %vm717, %v7370, %v7377
      %v7379 = vrot.slane %v7374, 4
      %v7381 = vshrl.u32 %v7244, 16
      %v7383 = vrot.slane %v7381, 7
      %v7384 = vshll.u32 %v7244, 16
      %v7386 = vor.u32 %v7383, %v7384
      %v7387 = vsel %vm717, %v7379, %v7386
      %v7389 = vshrl.u32 %v7245, 16
      %v7391 = vrot.slane %v7389, 7
      %v7392 = vrot.slane %v7391, 4
      %v7394 = vshrl.u32 %v7246, 16
      %v7396 = vrot.slane %v7394, 7
      %v7397 = vshll.u32 %v7246, 16
      %v7399 = vor.u32 %v7396, %v7397
      %v7400 = vsel %vm717, %v7392, %v7399
      %v7401 = vrot.slane %v7396, 4
      %v7403 = vshrl.u32 %v7247, 16
      %v7405 = vrot.slane %v7403, 7
      %v7406 = vshll.u32 %v7247, 16
      %v7408 = vor.u32 %v7405, %v7406
      %v7409 = vsel %vm717, %v7401, %v7408
      %v7411 = vshrl.u32 %v7248, 16
      %v7413 = vrot.slane %v7411, 7
      %v7414 = vrot.slane %v7413, 4
      %v7416 = vshrl.u32 %v7249, 16
      %v7418 = vrot.slane %v7416, 7
      %v7419 = vshll.u32 %v7249, 16
      %v7421 = vor.u32 %v7418, %v7419
      %v7422 = vsel %vm717, %v7414, %v7421
      %v7423 = vrot.slane %v7418, 4
      %v7425 = vshrl.u32 %v7250, 16
      %v7427 = vrot.slane %v7425, 7
      %v7428 = vshll.u32 %v7250, 16
      %v7430 = vor.u32 %v7427, %v7428
      %v7431 = vsel %vm717, %v7423, %v7430
      %v7433 = vshrl.u32 %v7251, 16
      %v7435 = vrot.slane %v7433, 7
      %v7436 = vrot.slane %v7435, 4
      %v7438 = vshrl.u32 %v7252, 16
      %v7440 = vrot.slane %v7438, 7
      %v7441 = vshll.u32 %v7252, 16
      %v7443 = vor.u32 %v7440, %v7441
      %v7444 = vsel %vm717, %v7436, %v7443
      %v7445 = vrot.slane %v7440, 4
      %v7447 = vshrl.u32 %v7253, 16
      %v7449 = vrot.slane %v7447, 7
      %v7450 = vshll.u32 %v7253, 16
      %v7452 = vor.u32 %v7449, %v7450
      %v7453 = vsel %vm717, %v7445, %v7452
      %v7455 = vshrl.u32 %v7254, 16
      %v7457 = vrot.slane %v7455, 7
      %v7458 = vrot.slane %v7457, 4
      %v7460 = vshrl.u32 %v7255, 16
      %v7462 = vrot.slane %v7460, 7
      %v7463 = vshll.u32 %v7255, 16
      %v7465 = vor.u32 %v7462, %v7463
      %v7466 = vsel %vm717, %v7458, %v7465
      %v7467 = vrot.slane %v7462, 4
      %v7469 = vshrl.u32 %v7256, 16
      %v7471 = vrot.slane %v7469, 7
      %v7472 = vshll.u32 %v7256, 16
      %v7474 = vor.u32 %v7471, %v7472
      %v7475 = vsel %vm717, %v7467, %v7474
      %v7477 = vshrl.u32 %v7257, 16
      %v7479 = vrot.slane %v7477, 7
      %v7480 = vrot.slane %v7479, 4
      %v7482 = vshrl.u32 %v7258, 16
      %v7484 = vrot.slane %v7482, 7
      %v7485 = vshll.u32 %v7258, 16
      %v7487 = vor.u32 %v7484, %v7485
      %v7488 = vsel %vm717, %v7480, %v7487
      %v7489 = vrot.slane %v7484, 4
      %v7491 = vshrl.u32 %v7259, 16
      %v7493 = vrot.slane %v7491, 7
      %v7494 = vshll.u32 %v7259, 16
      %v7496 = vor.u32 %v7493, %v7494
      %v7497 = vsel %vm717, %v7489, %v7496
      %v7499 = vshrl.u32 %v7260, 16
      %v7501 = vrot.slane %v7499, 7
      %v7502 = vrot.slane %v7501, 4
      %v7504 = vshrl.u32 %v7261, 16
      %v7506 = vrot.slane %v7504, 7
      %v7507 = vshll.u32 %v7261, 16
      %v7509 = vor.u32 %v7506, %v7507
      %v7510 = vsel %vm717, %v7502, %v7509
      %v7511 = vrot.slane %v7506, 4
      %v7513 = vshrl.u32 %v7262, 16
      %v7515 = vrot.slane %v7513, 7
      %v7516 = vshll.u32 %v7262, 16
      %v7518 = vor.u32 %v7515, %v7516
      %v7519 = vsel %vm717, %v7511, %v7518
      %v7521 = vshrl.u32 %v7263, 16
      %v7523 = vrot.slane %v7521, 7
      %v7524 = vrot.slane %v7523, 4
      %v7526 = vshrl.u32 %v7264, 16
      %v7528 = vrot.slane %v7526, 7
      %v7529 = vshll.u32 %v7264, 16
      %v7531 = vor.u32 %v7528, %v7529
      %v7532 = vsel %vm717, %v7524, %v7531
      %v7533 = vrot.slane %v7528, 4
      %v7535 = vshrl.u32 %v7265, 16
      %v7537 = vrot.slane %v7535, 7
      %v7538 = vshll.u32 %v7265, 16
      %v7540 = vor.u32 %v7537, %v7538
      %v7541 = vsel %vm717, %v7533, %v7540
      %v7543 = vshrl.u32 %v7266, 16
      %v7545 = vrot.slane %v7543, 7
      %v7546 = vrot.slane %v7545, 4
      %v7548 = vshrl.u32 %v7267, 16
      %v7550 = vrot.slane %v7548, 7
      %v7551 = vshll.u32 %v7267, 16
      %v7553 = vor.u32 %v7550, %v7551
      %v7554 = vsel %vm717, %v7546, %v7553
      %v7555 = vrot.slane %v7550, 4
      %v7557 = vshrl.u32 %v7268, 16
      %v7559 = vrot.slane %v7557, 7
      %v7560 = vshll.u32 %v7268, 16
      %v7562 = vor.u32 %v7559, %v7560
      %v7563 = vsel %vm717, %v7555, %v7562
      %v7565 = vshrl.u32 %v7269, 16
      %v7567 = vrot.slane %v7565, 7
      %v7568 = vrot.slane %v7567, 4
      %v7570 = vshrl.u32 %v7270, 16
      %v7572 = vrot.slane %v7570, 7
      %v7573 = vshll.u32 %v7270, 16
      %v7575 = vor.u32 %v7572, %v7573
      %v7576 = vsel %vm717, %v7568, %v7575
      %v7577 = vrot.slane %v7572, 4
      %v7579 = vshrl.u32 %v7271, 16
      %v7581 = vrot.slane %v7579, 7
      %v7582 = vshll.u32 %v7271, 16
      %v7584 = vor.u32 %v7581, %v7582
      %v7585 = vsel %vm717, %v7577, %v7584
      %v7587 = vshrl.u32 %v7272, 16
      %v7589 = vrot.slane %v7587, 7
      %v7590 = vrot.slane %v7589, 4
      %v7592 = vshrl.u32 %v7273, 16
      %v7594 = vrot.slane %v7592, 7
      %v7595 = vshll.u32 %v7273, 16
      %v7597 = vor.u32 %v7594, %v7595
      %v7598 = vsel %vm717, %v7590, %v7597
      %v7599 = vrot.slane %v7594, 4
      %v7601 = vshrl.u32 %v7274, 16
      %v7603 = vrot.slane %v7601, 7
      %v7604 = vshll.u32 %v7274, 16
      %v7606 = vor.u32 %v7603, %v7604
      %v7607 = vsel %vm717, %v7599, %v7606
      %v7609 = vshrl.u32 %v7275, 16
      %v7611 = vrot.slane %v7609, 7
      %v7612 = vrot.slane %v7611, 4
      %v7614 = vshrl.u32 %v7276, 16
      %v7616 = vrot.slane %v7614, 7
      %v7617 = vshll.u32 %v7276, 16
      %v7619 = vor.u32 %v7616, %v7617
      %v7620 = vsel %vm717, %v7612, %v7619
      %v7621 = vrot.slane %v7616, 4
      %v7623 = vshrl.u32 %v7277, 16
      %v7625 = vrot.slane %v7623, 7
      %v7626 = vshll.u32 %v7277, 16
      %v7628 = vor.u32 %v7625, %v7626
      %v7629 = vsel %vm717, %v7621, %v7628
      %v7630 = vunpack.c.l.b16 %v7290
      %v7631 = vunpack.c.l.b16 %v7299
      %v7632 = vunpack.c.l.b16 %v7312
      %v7633 = vunpack.c.l.b16 %v7321
      %v7634 = vunpack.c.l.b16 %v7334
      %v7635 = vunpack.c.l.b16 %v7343
      %v7636 = vunpack.c.l.b16 %v7356
      %v7637 = vunpack.c.l.b16 %v7365
      %v7638 = vunpack.c.l.b16 %v7378
      %v7639 = vunpack.c.l.b16 %v7387
      %v7640 = vunpack.c.l.b16 %v7400
      %v7641 = vunpack.c.l.b16 %v7409
      %v7642 = vunpack.c.l.b16 %v7422
      %v7643 = vunpack.c.l.b16 %v7431
      %v7644 = vunpack.c.l.b16 %v7444
      %v7645 = vunpack.c.l.b16 %v7453
      %v7646 = vunpack.c.l.b16 %v7466
      %v7647 = vunpack.c.l.b16 %v7475
      %v7648 = vunpack.c.l.b16 %v7488
      %v7649 = vunpack.c.l.b16 %v7497
      %v7650 = vunpack.c.l.b16 %v7510
      %v7651 = vunpack.c.l.b16 %v7519
      %v7652 = vunpack.c.l.b16 %v7532
      %v7653 = vunpack.c.l.b16 %v7541
      %v7654 = vunpack.c.l.b16 %v7554
      %v7655 = vunpack.c.l.b16 %v7563
      %v7656 = vunpack.c.l.b16 %v7576
      %v7657 = vunpack.c.l.b16 %v7585
      %v7658 = vunpack.c.l.b16 %v7598
      %v7659 = vunpack.c.l.b16 %v7607
      %v7660 = vunpack.c.l.b16 %v7620
      %v7661 = vunpack.c.l.b16 %v7629
      %v7662 = vpack.c.b16 %v7631, %v7630
      %v7663 = vpack.c.b16 %v7633, %v7632
      %v7664 = vpack.c.b16 %v7635, %v7634
      %v7665 = vpack.c.b16 %v7637, %v7636
      %v7666 = vpack.c.b16 %v7639, %v7638
      %v7667 = vpack.c.b16 %v7641, %v7640
      %v7668 = vpack.c.b16 %v7643, %v7642
      %v7669 = vpack.c.b16 %v7645, %v7644
      %v7670 = vpack.c.b16 %v7647, %v7646
      %v7671 = vpack.c.b16 %v7649, %v7648
      %v7672 = vpack.c.b16 %v7651, %v7650
      %v7673 = vpack.c.b16 %v7653, %v7652
      %v7674 = vpack.c.b16 %v7655, %v7654
      %v7675 = vpack.c.b16 %v7657, %v7656
      %v7676 = vpack.c.b16 %v7659, %v7658
      %v7677 = vpack.c.b16 %v7661, %v7660
      %7678 = vrot.lane.b32.xlu0 %v7662, 24
      %v7679 = vpop.permute.xlu0 %7678
      %7680 = vrot.lane.b32.xlu0 %v7663, 24
      %v7681 = vpop.permute.xlu0 %7680
      %7682 = vrot.lane.b32.xlu0 %v7664, 24
      %v7683 = vpop.permute.xlu0 %7682
      %7684 = vrot.lane.b32.xlu0 %v7665, 24
      %v7685 = vpop.permute.xlu0 %7684
      %7686 = vrot.lane.b32.xlu0 %v7666, 24
      %v7687 = vpop.permute.xlu0 %7686
      %7688 = vrot.lane.b32.xlu0 %v7667, 24
      %v7689 = vpop.permute.xlu0 %7688
      %7690 = vrot.lane.b32.xlu0 %v7668, 24
      %v7691 = vpop.permute.xlu0 %7690
      %7692 = vrot.lane.b32.xlu0 %v7669, 24
      %v7693 = vpop.permute.xlu0 %7692
      %7694 = vrot.lane.b32.xlu0 %v7670, 24
      %v7695 = vpop.permute.xlu0 %7694
      %7696 = vrot.lane.b32.xlu0 %v7671, 24
      %v7697 = vpop.permute.xlu0 %7696
      %7698 = vrot.lane.b32.xlu0 %v7672, 24
      %v7699 = vpop.permute.xlu0 %7698
      %7700 = vrot.lane.b32.xlu0 %v7673, 24
      %v7701 = vpop.permute.xlu0 %7700
      %7702 = vrot.lane.b32.xlu0 %v7674, 24
      %v7703 = vpop.permute.xlu0 %7702
      %7704 = vrot.lane.b32.xlu0 %v7675, 24
      %v7705 = vpop.permute.xlu0 %7704
      %7706 = vrot.lane.b32.xlu0 %v7676, 24
      %v7707 = vpop.permute.xlu0 %7706
      %7708 = vrot.lane.b32.xlu0 %v7677, 24
      %v7709 = vpop.permute.xlu0 %7708
      %7726 = vst.msk [vmem:[#allocation4] sm:$0xff] %vm3608, %v7679
      %7727 = vst.msk [vmem:[#allocation4 + $0x8] sm:$0xff] %vm3608, %v7681
      %7728 = vst.msk [vmem:[#allocation4 + $0x10] sm:$0xff] %vm3608, %v7683
      %7729 = vst.msk [vmem:[#allocation4 + $0x18] sm:$0xff] %vm3608, %v7685
      %7730 = vst.msk [vmem:[#allocation4 + $0x20] sm:$0xff] %vm3608, %v7687
      %7731 = vst.msk [vmem:[#allocation4 + $0x28] sm:$0xff] %vm3608, %v7689
      %7732 = vst.msk [vmem:[#allocation4 + $0x30] sm:$0xff] %vm3608, %v7691
      %7733 = vst.msk [vmem:[#allocation4 + $0x38] sm:$0xff] %vm3608, %v7693
      %7734 = vst.msk [vmem:[#allocation4 + $0x40] sm:$0xff] %vm3608, %v7695
      %7735 = vst.msk [vmem:[#allocation4 + $0x48] sm:$0xff] %vm3608, %v7697
      %7736 = vst.msk [vmem:[#allocation4 + $0x50] sm:$0xff] %vm3608, %v7699
      %7737 = vst.msk [vmem:[#allocation4 + $0x58] sm:$0xff] %vm3608, %v7701
      %7738 = vst.msk [vmem:[#allocation4 + $0x60] sm:$0xff] %vm3608, %v7703
      %7739 = vst.msk [vmem:[#allocation4 + $0x68] sm:$0xff] %vm3608, %v7705
      %7740 = vst.msk [vmem:[#allocation4 + $0x70] sm:$0xff] %vm3608, %v7707
      %7741 = vst.msk [vmem:[#allocation4 + $0x78] sm:$0xff] %vm3608, %v7709
      %v7742 = vld [vmem:[%s7229 + $0x4] sm:$0xf]
      %v7743 = vld [vmem:[%s7229 + $0x8] sm:$0xf]
      %v7744 = vld [vmem:[%s7229 + $0x14] sm:$0xf]
      %v7745 = vld [vmem:[%s7229 + $0x18] sm:$0xf]
      %v7746 = vld [vmem:[%s7229 + $0x24] sm:$0xf]
      %v7747 = vld [vmem:[%s7229 + $0x28] sm:$0xf]
      %v7748 = vld [vmem:[%s7229 + $0x34] sm:$0xf]
      %v7749 = vld [vmem:[%s7229 + $0x38] sm:$0xf]
      %v7750 = vld [vmem:[%s7229 + $0x44] sm:$0xf]
      %v7751 = vld [vmem:[%s7229 + $0x48] sm:$0xf]
      %v7752 = vld [vmem:[%s7229 + $0x54] sm:$0xf]
      %v7753 = vld [vmem:[%s7229 + $0x58] sm:$0xf]
      %v7754 = vld [vmem:[%s7229 + $0x64] sm:$0xf]
      %v7755 = vld [vmem:[%s7229 + $0x68] sm:$0xf]
      %v7756 = vld [vmem:[%s7229 + $0x74] sm:$0xf]
      %v7757 = vld [vmem:[%s7229 + $0x78] sm:$0xf]
      %v7758 = vld [vmem:[%s7229 + $0x84] sm:$0xf]
      %v7759 = vld [vmem:[%s7229 + $0x88] sm:$0xf]
      %v7760 = vld [vmem:[%s7229 + $0x94] sm:$0xf]
      %v7761 = vld [vmem:[%s7229 + $0x98] sm:$0xf]
      %v7762 = vld [vmem:[%s7229 + $0xa4] sm:$0xf]
      %v7763 = vld [vmem:[%s7229 + $0xa8] sm:$0xf]
      %v7764 = vld [vmem:[%s7229 + $0xb4] sm:$0xf]
      %v7765 = vld [vmem:[%s7229 + $0xb8] sm:$0xf]
      %v7766 = vld [vmem:[%s7229 + $0xc4] sm:$0xf]
      %v7767 = vld [vmem:[%s7229 + $0xc8] sm:$0xf]
      %v7768 = vld [vmem:[%s7229 + $0xd4] sm:$0xf]
      %v7769 = vld [vmem:[%s7229 + $0xd8] sm:$0xf]
      %v7770 = vld [vmem:[%s7229 + $0xe4] sm:$0xf]
      %v7771 = vld [vmem:[%s7229 + $0xe8] sm:$0xf]
      %v7772 = vld [vmem:[%s7229 + $0xf4] sm:$0xf]
      %v7773 = vld [vmem:[%s7229 + $0xf8] sm:$0xf]
      %v7806 = vunpack.c.l.b16 %v7742
      %v7807 = vunpack.c.l.b16 %v7743
      %v7808 = vunpack.c.l.b16 %v7744
      %v7809 = vunpack.c.l.b16 %v7745
      %v7810 = vunpack.c.l.b16 %v7746
      %v7811 = vunpack.c.l.b16 %v7747
      %v7812 = vunpack.c.l.b16 %v7748
      %v7813 = vunpack.c.l.b16 %v7749
      %v7814 = vunpack.c.l.b16 %v7750
      %v7815 = vunpack.c.l.b16 %v7751
      %v7816 = vunpack.c.l.b16 %v7752
      %v7817 = vunpack.c.l.b16 %v7753
      %v7818 = vunpack.c.l.b16 %v7754
      %v7819 = vunpack.c.l.b16 %v7755
      %v7820 = vunpack.c.l.b16 %v7756
      %v7821 = vunpack.c.l.b16 %v7757
      %v7822 = vunpack.c.l.b16 %v7758
      %v7823 = vunpack.c.l.b16 %v7759
      %v7824 = vunpack.c.l.b16 %v7760
      %v7825 = vunpack.c.l.b16 %v7761
      %v7826 = vunpack.c.l.b16 %v7762
      %v7827 = vunpack.c.l.b16 %v7763
      %v7828 = vunpack.c.l.b16 %v7764
      %v7829 = vunpack.c.l.b16 %v7765
      %v7830 = vunpack.c.l.b16 %v7766
      %v7831 = vunpack.c.l.b16 %v7767
      %v7832 = vunpack.c.l.b16 %v7768
      %v7833 = vunpack.c.l.b16 %v7769
      %v7834 = vunpack.c.l.b16 %v7770
      %v7835 = vunpack.c.l.b16 %v7771
      %v7836 = vunpack.c.l.b16 %v7772
      %v7837 = vunpack.c.l.b16 %v7773
      %v7838 = vpack.c.b16 %v7807, %v7806
      %v7839 = vpack.c.b16 %v7809, %v7808
      %v7840 = vpack.c.b16 %v7811, %v7810
      %v7841 = vpack.c.b16 %v7813, %v7812
      %v7842 = vpack.c.b16 %v7815, %v7814
      %v7843 = vpack.c.b16 %v7817, %v7816
      %v7844 = vpack.c.b16 %v7819, %v7818
      %v7845 = vpack.c.b16 %v7821, %v7820
      %v7846 = vpack.c.b16 %v7823, %v7822
      %v7847 = vpack.c.b16 %v7825, %v7824
      %v7848 = vpack.c.b16 %v7827, %v7826
      %v7849 = vpack.c.b16 %v7829, %v7828
      %v7850 = vpack.c.b16 %v7831, %v7830
      %v7851 = vpack.c.b16 %v7833, %v7832
      %v7852 = vpack.c.b16 %v7835, %v7834
      %v7853 = vpack.c.b16 %v7837, %v7836
      %7854 = vrot.lane.b32.xlu0 %v7838, 28
      %v7855 = vpop.permute.xlu0 %7854
      %7856 = vrot.lane.b32.xlu0 %v7839, 28
      %v7857 = vpop.permute.xlu0 %7856
      %7858 = vrot.lane.b32.xlu0 %v7840, 28
      %v7859 = vpop.permute.xlu0 %7858
      %7860 = vrot.lane.b32.xlu0 %v7841, 28
      %v7861 = vpop.permute.xlu0 %7860
      %7862 = vrot.lane.b32.xlu0 %v7842, 28
      %v7863 = vpop.permute.xlu0 %7862
      %7864 = vrot.lane.b32.xlu0 %v7843, 28
      %v7865 = vpop.permute.xlu0 %7864
      %7866 = vrot.lane.b32.xlu0 %v7844, 28
      %v7867 = vpop.permute.xlu0 %7866
      %7868 = vrot.lane.b32.xlu0 %v7845, 28
      %v7869 = vpop.permute.xlu0 %7868
      %7870 = vrot.lane.b32.xlu0 %v7846, 28
      %v7871 = vpop.permute.xlu0 %7870
      %7872 = vrot.lane.b32.xlu0 %v7847, 28
      %v7873 = vpop.permute.xlu0 %7872
      %7874 = vrot.lane.b32.xlu0 %v7848, 28
      %v7875 = vpop.permute.xlu0 %7874
      %7876 = vrot.lane.b32.xlu0 %v7849, 28
      %v7877 = vpop.permute.xlu0 %7876
      %7878 = vrot.lane.b32.xlu0 %v7850, 28
      %v7879 = vpop.permute.xlu0 %7878
      %7880 = vrot.lane.b32.xlu0 %v7851, 28
      %v7881 = vpop.permute.xlu0 %7880
      %7882 = vrot.lane.b32.xlu0 %v7852, 28
      %v7883 = vpop.permute.xlu0 %7882
      %7884 = vrot.lane.b32.xlu0 %v7853, 28
      %v7885 = vpop.permute.xlu0 %7884
      %7902 = vst.msk [vmem:[#allocation4] sm:$0xff] %vm3785, %v7855
      %7903 = vst.msk [vmem:[#allocation4 + $0x8] sm:$0xff] %vm3785, %v7857
      %7904 = vst.msk [vmem:[#allocation4 + $0x10] sm:$0xff] %vm3785, %v7859
      %7905 = vst.msk [vmem:[#allocation4 + $0x18] sm:$0xff] %vm3785, %v7861
      %7906 = vst.msk [vmem:[#allocation4 + $0x20] sm:$0xff] %vm3785, %v7863
      %7907 = vst.msk [vmem:[#allocation4 + $0x28] sm:$0xff] %vm3785, %v7865
      %7908 = vst.msk [vmem:[#allocation4 + $0x30] sm:$0xff] %vm3785, %v7867
      %7909 = vst.msk [vmem:[#allocation4 + $0x38] sm:$0xff] %vm3785, %v7869
      %7910 = vst.msk [vmem:[#allocation4 + $0x40] sm:$0xff] %vm3785, %v7871
      %7911 = vst.msk [vmem:[#allocation4 + $0x48] sm:$0xff] %vm3785, %v7873
      %7912 = vst.msk [vmem:[#allocation4 + $0x50] sm:$0xff] %vm3785, %v7875
      %7913 = vst.msk [vmem:[#allocation4 + $0x58] sm:$0xff] %vm3785, %v7877
      %7914 = vst.msk [vmem:[#allocation4 + $0x60] sm:$0xff] %vm3785, %v7879
      %7915 = vst.msk [vmem:[#allocation4 + $0x68] sm:$0xff] %vm3785, %v7881
      %7916 = vst.msk [vmem:[#allocation4 + $0x70] sm:$0xff] %vm3785, %v7883
      %7917 = vst.msk [vmem:[#allocation4 + $0x78] sm:$0xff] %vm3785, %v7885
      %v7918 = vld [vmem:[%s7229 + $0x4] sm:$0xf]
      %v7919 = vld [vmem:[%s7229 + $0x8] sm:$0xf]
      %v7920 = vld [vmem:[%s7229 + $0xc] sm:$0x1]
      %v7921 = vld [vmem:[%s7229 + $0x14] sm:$0xf]
      %v7922 = vld [vmem:[%s7229 + $0x18] sm:$0xf]
      %v7923 = vld [vmem:[%s7229 + $0x1c] sm:$0x1]
      %v7924 = vld [vmem:[%s7229 + $0x24] sm:$0xf]
      %v7925 = vld [vmem:[%s7229 + $0x28] sm:$0xf]
      %v7926 = vld [vmem:[%s7229 + $0x2c] sm:$0x1]
      %v7927 = vld [vmem:[%s7229 + $0x34] sm:$0xf]
      %v7928 = vld [vmem:[%s7229 + $0x38] sm:$0xf]
      %v7929 = vld [vmem:[%s7229 + $0x3c] sm:$0x1]
      %v7930 = vld [vmem:[%s7229 + $0x44] sm:$0xf]
      %v7931 = vld [vmem:[%s7229 + $0x48] sm:$0xf]
      %v7932 = vld [vmem:[%s7229 + $0x4c] sm:$0x1]
      %v7933 = vld [vmem:[%s7229 + $0x54] sm:$0xf]
      %v7934 = vld [vmem:[%s7229 + $0x58] sm:$0xf]
      %v7935 = vld [vmem:[%s7229 + $0x5c] sm:$0x1]
      %v7936 = vld [vmem:[%s7229 + $0x64] sm:$0xf]
      %v7937 = vld [vmem:[%s7229 + $0x68] sm:$0xf]
      %v7938 = vld [vmem:[%s7229 + $0x6c] sm:$0x1]
      %v7939 = vld [vmem:[%s7229 + $0x74] sm:$0xf]
      %v7940 = vld [vmem:[%s7229 + $0x78] sm:$0xf]
      %v7941 = vld [vmem:[%s7229 + $0x7c] sm:$0x1]
      %v7942 = vld [vmem:[%s7229 + $0x84] sm:$0xf]
      %v7943 = vld [vmem:[%s7229 + $0x88] sm:$0xf]
      %v7944 = vld [vmem:[%s7229 + $0x8c] sm:$0x1]
      %v7945 = vld [vmem:[%s7229 + $0x94] sm:$0xf]
      %v7946 = vld [vmem:[%s7229 + $0x98] sm:$0xf]
      %v7947 = vld [vmem:[%s7229 + $0x9c] sm:$0x1]
      %v7948 = vld [vmem:[%s7229 + $0xa4] sm:$0xf]
      %v7949 = vld [vmem:[%s7229 + $0xa8] sm:$0xf]
      %v7950 = vld [vmem:[%s7229 + $0xac] sm:$0x1]
      %v7951 = vld [vmem:[%s7229 + $0xb4] sm:$0xf]
      %v7952 = vld [vmem:[%s7229 + $0xb8] sm:$0xf]
      %v7953 = vld [vmem:[%s7229 + $0xbc] sm:$0x1]
      %v7954 = vld [vmem:[%s7229 + $0xc4] sm:$0xf]
      %v7955 = vld [vmem:[%s7229 + $0xc8] sm:$0xf]
      %v7956 = vld [vmem:[%s7229 + $0xcc] sm:$0x1]
      %v7957 = vld [vmem:[%s7229 + $0xd4] sm:$0xf]
      %v7958 = vld [vmem:[%s7229 + $0xd8] sm:$0xf]
      %v7959 = vld [vmem:[%s7229 + $0xdc] sm:$0x1]
      %v7960 = vld [vmem:[%s7229 + $0xe4] sm:$0xf]
      %v7961 = vld [vmem:[%s7229 + $0xe8] sm:$0xf]
      %v7962 = vld [vmem:[%s7229 + $0xec] sm:$0x1]
      %v7963 = vld [vmem:[%s7229 + $0xf4] sm:$0xf]
      %v7964 = vld [vmem:[%s7229 + $0xf8] sm:$0xf]
      %v7965 = vld [vmem:[%s7229 + $0xfc] sm:$0x1]
      %v7967 = vshrl.u32 %v7918, 16
      %v7969 = vrot.slane %v7967, 4
      %v7970 = vshll.u32 %v7918, 16
      %v7972 = vrot.slane %v7970, 5
      %v7973 = vor.u32 %v7969, %v7972
      %v7974 = vrot.slane %v7973, 4
      %v7976 = vshll.u32 %v7919, 16
      %v7978 = vrot.slane %v7976, 5
      %v7979 = vsel %vm1378, %v7974, %v7978
      %v7980 = vshrl.u32 %v7919, 16
      %v7982 = vrot.slane %v7980, 4
      %v7983 = vor.u32 %v7982, %v7978
      %v7984 = vrot.slane %v7983, 4
      %v7986 = vshll.u32 %v7920, 16
      %v7988 = vrot.slane %v7986, 5
      %v7989 = vsel %vm1378, %v7984, %v7988
      %v7991 = vshrl.u32 %v7921, 16
      %v7993 = vrot.slane %v7991, 4
      %v7994 = vshll.u32 %v7921, 16
      %v7996 = vrot.slane %v7994, 5
      %v7997 = vor.u32 %v7993, %v7996
      %v7998 = vrot.slane %v7997, 4
      %v8000 = vshll.u32 %v7922, 16
      %v8002 = vrot.slane %v8000, 5
      %v8003 = vsel %vm1378, %v7998, %v8002
      %v8004 = vshrl.u32 %v7922, 16
      %v8006 = vrot.slane %v8004, 4
      %v8007 = vor.u32 %v8006, %v8002
      %v8008 = vrot.slane %v8007, 4
      %v8010 = vshll.u32 %v7923, 16
      %v8012 = vrot.slane %v8010, 5
      %v8013 = vsel %vm1378, %v8008, %v8012
      %v8015 = vshrl.u32 %v7924, 16
      %v8017 = vrot.slane %v8015, 4
      %v8018 = vshll.u32 %v7924, 16
      %v8020 = vrot.slane %v8018, 5
      %v8021 = vor.u32 %v8017, %v8020
      %v8022 = vrot.slane %v8021, 4
      %v8024 = vshll.u32 %v7925, 16
      %v8026 = vrot.slane %v8024, 5
      %v8027 = vsel %vm1378, %v8022, %v8026
      %v8028 = vshrl.u32 %v7925, 16
      %v8030 = vrot.slane %v8028, 4
      %v8031 = vor.u32 %v8030, %v8026
      %v8032 = vrot.slane %v8031, 4
      %v8034 = vshll.u32 %v7926, 16
      %v8036 = vrot.slane %v8034, 5
      %v8037 = vsel %vm1378, %v8032, %v8036
      %v8039 = vshrl.u32 %v7927, 16
      %v8041 = vrot.slane %v8039, 4
      %v8042 = vshll.u32 %v7927, 16
      %v8044 = vrot.slane %v8042, 5
      %v8045 = vor.u32 %v8041, %v8044
      %v8046 = vrot.slane %v8045, 4
      %v8048 = vshll.u32 %v7928, 16
      %v8050 = vrot.slane %v8048, 5
      %v8051 = vsel %vm1378, %v8046, %v8050
      %v8052 = vshrl.u32 %v7928, 16
      %v8054 = vrot.slane %v8052, 4
      %v8055 = vor.u32 %v8054, %v8050
      %v8056 = vrot.slane %v8055, 4
      %v8058 = vshll.u32 %v7929, 16
      %v8060 = vrot.slane %v8058, 5
      %v8061 = vsel %vm1378, %v8056, %v8060
      %v8063 = vshrl.u32 %v7930, 16
      %v8065 = vrot.slane %v8063, 4
      %v8066 = vshll.u32 %v7930, 16
      %v8068 = vrot.slane %v8066, 5
      %v8069 = vor.u32 %v8065, %v8068
      %v8070 = vrot.slane %v8069, 4
      %v8072 = vshll.u32 %v7931, 16
      %v8074 = vrot.slane %v8072, 5
      %v8075 = vsel %vm1378, %v8070, %v8074
      %v8076 = vshrl.u32 %v7931, 16
      %v8078 = vrot.slane %v8076, 4
      %v8079 = vor.u32 %v8078, %v8074
      %v8080 = vrot.slane %v8079, 4
      %v8082 = vshll.u32 %v7932, 16
      %v8084 = vrot.slane %v8082, 5
      %v8085 = vsel %vm1378, %v8080, %v8084
      %v8087 = vshrl.u32 %v7933, 16
      %v8089 = vrot.slane %v8087, 4
      %v8090 = vshll.u32 %v7933, 16
      %v8092 = vrot.slane %v8090, 5
      %v8093 = vor.u32 %v8089, %v8092
      %v8094 = vrot.slane %v8093, 4
      %v8096 = vshll.u32 %v7934, 16
      %v8098 = vrot.slane %v8096, 5
      %v8099 = vsel %vm1378, %v8094, %v8098
      %v8100 = vshrl.u32 %v7934, 16
      %v8102 = vrot.slane %v8100, 4
      %v8103 = vor.u32 %v8102, %v8098
      %v8104 = vrot.slane %v8103, 4
      %v8106 = vshll.u32 %v7935, 16
      %v8108 = vrot.slane %v8106, 5
      %v8109 = vsel %vm1378, %v8104, %v8108
      %v8111 = vshrl.u32 %v7936, 16
      %v8113 = vrot.slane %v8111, 4
      %v8114 = vshll.u32 %v7936, 16
      %v8116 = vrot.slane %v8114, 5
      %v8117 = vor.u32 %v8113, %v8116
      %v8118 = vrot.slane %v8117, 4
      %v8120 = vshll.u32 %v7937, 16
      %v8122 = vrot.slane %v8120, 5
      %v8123 = vsel %vm1378, %v8118, %v8122
      %v8124 = vshrl.u32 %v7937, 16
      %v8126 = vrot.slane %v8124, 4
      %v8127 = vor.u32 %v8126, %v8122
      %v8128 = vrot.slane %v8127, 4
      %v8130 = vshll.u32 %v7938, 16
      %v8132 = vrot.slane %v8130, 5
      %v8133 = vsel %vm1378, %v8128, %v8132
      %v8135 = vshrl.u32 %v7939, 16
      %v8137 = vrot.slane %v8135, 4
      %v8138 = vshll.u32 %v7939, 16
      %v8140 = vrot.slane %v8138, 5
      %v8141 = vor.u32 %v8137, %v8140
      %v8142 = vrot.slane %v8141, 4
      %v8144 = vshll.u32 %v7940, 16
      %v8146 = vrot.slane %v8144, 5
      %v8147 = vsel %vm1378, %v8142, %v8146
      %v8148 = vshrl.u32 %v7940, 16
      %v8150 = vrot.slane %v8148, 4
      %v8151 = vor.u32 %v8150, %v8146
      %v8152 = vrot.slane %v8151, 4
      %v8154 = vshll.u32 %v7941, 16
      %v8156 = vrot.slane %v8154, 5
      %v8157 = vsel %vm1378, %v8152, %v8156
      %v8159 = vshrl.u32 %v7942, 16
      %v8161 = vrot.slane %v8159, 4
      %v8162 = vshll.u32 %v7942, 16
      %v8164 = vrot.slane %v8162, 5
      %v8165 = vor.u32 %v8161, %v8164
      %v8166 = vrot.slane %v8165, 4
      %v8168 = vshll.u32 %v7943, 16
      %v8170 = vrot.slane %v8168, 5
      %v8171 = vsel %vm1378, %v8166, %v8170
      %v8172 = vshrl.u32 %v7943, 16
      %v8174 = vrot.slane %v8172, 4
      %v8175 = vor.u32 %v8174, %v8170
      %v8176 = vrot.slane %v8175, 4
      %v8178 = vshll.u32 %v7944, 16
      %v8180 = vrot.slane %v8178, 5
      %v8181 = vsel %vm1378, %v8176, %v8180
      %v8183 = vshrl.u32 %v7945, 16
      %v8185 = vrot.slane %v8183, 4
      %v8186 = vshll.u32 %v7945, 16
      %v8188 = vrot.slane %v8186, 5
      %v8189 = vor.u32 %v8185, %v8188
      %v8190 = vrot.slane %v8189, 4
      %v8192 = vshll.u32 %v7946, 16
      %v8194 = vrot.slane %v8192, 5
      %v8195 = vsel %vm1378, %v8190, %v8194
      %v8196 = vshrl.u32 %v7946, 16
      %v8198 = vrot.slane %v8196, 4
      %v8199 = vor.u32 %v8198, %v8194
      %v8200 = vrot.slane %v8199, 4
      %v8202 = vshll.u32 %v7947, 16
      %v8204 = vrot.slane %v8202, 5
      %v8205 = vsel %vm1378, %v8200, %v8204
      %v8207 = vshrl.u32 %v7948, 16
      %v8209 = vrot.slane %v8207, 4
      %v8210 = vshll.u32 %v7948, 16
      %v8212 = vrot.slane %v8210, 5
      %v8213 = vor.u32 %v8209, %v8212
      %v8214 = vrot.slane %v8213, 4
      %v8216 = vshll.u32 %v7949, 16
      %v8218 = vrot.slane %v8216, 5
      %v8219 = vsel %vm1378, %v8214, %v8218
      %v8220 = vshrl.u32 %v7949, 16
      %v8222 = vrot.slane %v8220, 4
      %v8223 = vor.u32 %v8222, %v8218
      %v8224 = vrot.slane %v8223, 4
      %v8226 = vshll.u32 %v7950, 16
      %v8228 = vrot.slane %v8226, 5
      %v8229 = vsel %vm1378, %v8224, %v8228
      %v8231 = vshrl.u32 %v7951, 16
      %v8233 = vrot.slane %v8231, 4
      %v8234 = vshll.u32 %v7951, 16
      %v8236 = vrot.slane %v8234, 5
      %v8237 = vor.u32 %v8233, %v8236
      %v8238 = vrot.slane %v8237, 4
      %v8240 = vshll.u32 %v7952, 16
      %v8242 = vrot.slane %v8240, 5
      %v8243 = vsel %vm1378, %v8238, %v8242
      %v8244 = vshrl.u32 %v7952, 16
      %v8246 = vrot.slane %v8244, 4
      %v8247 = vor.u32 %v8246, %v8242
      %v8248 = vrot.slane %v8247, 4
      %v8250 = vshll.u32 %v7953, 16
      %v8252 = vrot.slane %v8250, 5
      %v8253 = vsel %vm1378, %v8248, %v8252
      %v8255 = vshrl.u32 %v7954, 16
      %v8257 = vrot.slane %v8255, 4
      %v8258 = vshll.u32 %v7954, 16
      %v8260 = vrot.slane %v8258, 5
      %v8261 = vor.u32 %v8257, %v8260
      %v8262 = vrot.slane %v8261, 4
      %v8264 = vshll.u32 %v7955, 16
      %v8266 = vrot.slane %v8264, 5
      %v8267 = vsel %vm1378, %v8262, %v8266
      %v8268 = vshrl.u32 %v7955, 16
      %v8270 = vrot.slane %v8268, 4
      %v8271 = vor.u32 %v8270, %v8266
      %v8272 = vrot.slane %v8271, 4
      %v8274 = vshll.u32 %v7956, 16
      %v8276 = vrot.slane %v8274, 5
      %v8277 = vsel %vm1378, %v8272, %v8276
      %v8279 = vshrl.u32 %v7957, 16
      %v8281 = vrot.slane %v8279, 4
      %v8282 = vshll.u32 %v7957, 16
      %v8284 = vrot.slane %v8282, 5
      %v8285 = vor.u32 %v8281, %v8284
      %v8286 = vrot.slane %v8285, 4
      %v8288 = vshll.u32 %v7958, 16
      %v8290 = vrot.slane %v8288, 5
      %v8291 = vsel %vm1378, %v8286, %v8290
      %v8292 = vshrl.u32 %v7958, 16
      %v8294 = vrot.slane %v8292, 4
      %v8295 = vor.u32 %v8294, %v8290
      %v8296 = vrot.slane %v8295, 4
      %v8298 = vshll.u32 %v7959, 16
      %v8300 = vrot.slane %v8298, 5
      %v8301 = vsel %vm1378, %v8296, %v8300
      %v8303 = vshrl.u32 %v7960, 16
      %v8305 = vrot.slane %v8303, 4
      %v8306 = vshll.u32 %v7960, 16
      %v8308 = vrot.slane %v8306, 5
      %v8309 = vor.u32 %v8305, %v8308
      %v8310 = vrot.slane %v8309, 4
      %v8312 = vshll.u32 %v7961, 16
      %v8314 = vrot.slane %v8312, 5
      %v8315 = vsel %vm1378, %v8310, %v8314
      %v8316 = vshrl.u32 %v7961, 16
      %v8318 = vrot.slane %v8316, 4
      %v8319 = vor.u32 %v8318, %v8314
      %v8320 = vrot.slane %v8319, 4
      %v8322 = vshll.u32 %v7962, 16
      %v8324 = vrot.slane %v8322, 5
      %v8325 = vsel %vm1378, %v8320, %v8324
      %v8327 = vshrl.u32 %v7963, 16
      %v8329 = vrot.slane %v8327, 4
      %v8330 = vshll.u32 %v7963, 16
      %v8332 = vrot.slane %v8330, 5
      %v8333 = vor.u32 %v8329, %v8332
      %v8334 = vrot.slane %v8333, 4
      %v8336 = vshll.u32 %v7964, 16
      %v8338 = vrot.slane %v8336, 5
      %v8339 = vsel %vm1378, %v8334, %v8338
      %v8340 = vshrl.u32 %v7964, 16
      %v8342 = vrot.slane %v8340, 4
      %v8343 = vor.u32 %v8342, %v8338
      %v8344 = vrot.slane %v8343, 4
      %v8346 = vshll.u32 %v7965, 16
      %v8348 = vrot.slane %v8346, 5
      %v8349 = vsel %vm1378, %v8344, %v8348
      %v8350 = vunpack.c.l.b16 %v7979
      %v8351 = vunpack.c.l.b16 %v7989
      %v8352 = vunpack.c.l.b16 %v8003
      %v8353 = vunpack.c.l.b16 %v8013
      %v8354 = vunpack.c.l.b16 %v8027
      %v8355 = vunpack.c.l.b16 %v8037
      %v8356 = vunpack.c.l.b16 %v8051
      %v8357 = vunpack.c.l.b16 %v8061
      %v8358 = vunpack.c.l.b16 %v8075
      %v8359 = vunpack.c.l.b16 %v8085
      %v8360 = vunpack.c.l.b16 %v8099
      %v8361 = vunpack.c.l.b16 %v8109
      %v8362 = vunpack.c.l.b16 %v8123
      %v8363 = vunpack.c.l.b16 %v8133
      %v8364 = vunpack.c.l.b16 %v8147
      %v8365 = vunpack.c.l.b16 %v8157
      %v8366 = vunpack.c.l.b16 %v8171
      %v8367 = vunpack.c.l.b16 %v8181
      %v8368 = vunpack.c.l.b16 %v8195
      %v8369 = vunpack.c.l.b16 %v8205
      %v8370 = vunpack.c.l.b16 %v8219
      %v8371 = vunpack.c.l.b16 %v8229
      %v8372 = vunpack.c.l.b16 %v8243
      %v8373 = vunpack.c.l.b16 %v8253
      %v8374 = vunpack.c.l.b16 %v8267
      %v8375 = vunpack.c.l.b16 %v8277
      %v8376 = vunpack.c.l.b16 %v8291
      %v8377 = vunpack.c.l.b16 %v8301
      %v8378 = vunpack.c.l.b16 %v8315
      %v8379 = vunpack.c.l.b16 %v8325
      %v8380 = vunpack.c.l.b16 %v8339
      %v8381 = vunpack.c.l.b16 %v8349
      %v8382 = vpack.c.b16 %v8351, %v8350
      %v8383 = vpack.c.b16 %v8353, %v8352
      %v8384 = vpack.c.b16 %v8355, %v8354
      %v8385 = vpack.c.b16 %v8357, %v8356
      %v8386 = vpack.c.b16 %v8359, %v8358
      %v8387 = vpack.c.b16 %v8361, %v8360
      %v8388 = vpack.c.b16 %v8363, %v8362
      %v8389 = vpack.c.b16 %v8365, %v8364
      %v8390 = vpack.c.b16 %v8367, %v8366
      %v8391 = vpack.c.b16 %v8369, %v8368
      %v8392 = vpack.c.b16 %v8371, %v8370
      %v8393 = vpack.c.b16 %v8373, %v8372
      %v8394 = vpack.c.b16 %v8375, %v8374
      %v8395 = vpack.c.b16 %v8377, %v8376
      %v8396 = vpack.c.b16 %v8379, %v8378
      %v8397 = vpack.c.b16 %v8381, %v8380
      %8398 = vrot.lane.b32.xlu0 %v8382, 32
      %v8399 = vpop.permute.xlu0 %8398
      %8400 = vrot.lane.b32.xlu0 %v8383, 32
      %v8401 = vpop.permute.xlu0 %8400
      %8402 = vrot.lane.b32.xlu0 %v8384, 32
      %v8403 = vpop.permute.xlu0 %8402
      %8404 = vrot.lane.b32.xlu0 %v8385, 32
      %v8405 = vpop.permute.xlu0 %8404
      %8406 = vrot.lane.b32.xlu0 %v8386, 32
      %v8407 = vpop.permute.xlu0 %8406
      %8408 = vrot.lane.b32.xlu0 %v8387, 32
      %v8409 = vpop.permute.xlu0 %8408
      %8410 = vrot.lane.b32.xlu0 %v8388, 32
      %v8411 = vpop.permute.xlu0 %8410
      %8412 = vrot.lane.b32.xlu0 %v8389, 32
      %v8413 = vpop.permute.xlu0 %8412
      %8414 = vrot.lane.b32.xlu0 %v8390, 32
      %v8415 = vpop.permute.xlu0 %8414
      %8416 = vrot.lane.b32.xlu0 %v8391, 32
      %v8417 = vpop.permute.xlu0 %8416
      %8418 = vrot.lane.b32.xlu0 %v8392, 32
      %v8419 = vpop.permute.xlu0 %8418
      %8420 = vrot.lane.b32.xlu0 %v8393, 32
      %v8421 = vpop.permute.xlu0 %8420
      %8422 = vrot.lane.b32.xlu0 %v8394, 32
      %v8423 = vpop.permute.xlu0 %8422
      %8424 = vrot.lane.b32.xlu0 %v8395, 32
      %v8425 = vpop.permute.xlu0 %8424
      %8426 = vrot.lane.b32.xlu0 %v8396, 32
      %v8427 = vpop.permute.xlu0 %8426
      %8428 = vrot.lane.b32.xlu0 %v8397, 32
      %v8429 = vpop.permute.xlu0 %8428
      %8446 = vst.msk [vmem:[#allocation4] sm:$0xff] %vm4330, %v8399
      %8447 = vst.msk [vmem:[#allocation4 + $0x8] sm:$0xff] %vm4330, %v8401
      %8448 = vst.msk [vmem:[#allocation4 + $0x10] sm:$0xff] %vm4330, %v8403
      %8449 = vst.msk [vmem:[#allocation4 + $0x18] sm:$0xff] %vm4330, %v8405
      %8450 = vst.msk [vmem:[#allocation4 + $0x20] sm:$0xff] %vm4330, %v8407
      %8451 = vst.msk [vmem:[#allocation4 + $0x28] sm:$0xff] %vm4330, %v8409
      %8452 = vst.msk [vmem:[#allocation4 + $0x30] sm:$0xff] %vm4330, %v8411
      %8453 = vst.msk [vmem:[#allocation4 + $0x38] sm:$0xff] %vm4330, %v8413
      %8454 = vst.msk [vmem:[#allocation4 + $0x40] sm:$0xff] %vm4330, %v8415
      %8455 = vst.msk [vmem:[#allocation4 + $0x48] sm:$0xff] %vm4330, %v8417
      %8456 = vst.msk [vmem:[#allocation4 + $0x50] sm:$0xff] %vm4330, %v8419
      %8457 = vst.msk [vmem:[#allocation4 + $0x58] sm:$0xff] %vm4330, %v8421
      %8458 = vst.msk [vmem:[#allocation4 + $0x60] sm:$0xff] %vm4330, %v8423
      %8459 = vst.msk [vmem:[#allocation4 + $0x68] sm:$0xff] %vm4330, %v8425
      %8460 = vst.msk [vmem:[#allocation4 + $0x70] sm:$0xff] %vm4330, %v8427
      %8461 = vst.msk [vmem:[#allocation4 + $0x78] sm:$0xff] %vm4330, %v8429
      %v8462 = vld [vmem:[#allocation4] sm:$0xff]
      %v8463 = vld [vmem:[#allocation4 + $0x8] sm:$0xff]
      %v8464 = vld [vmem:[#allocation4 + $0x10] sm:$0xff]
      %v8465 = vld [vmem:[#allocation4 + $0x18] sm:$0xff]
      %v8466 = vld [vmem:[#allocation4 + $0x20] sm:$0xff]
      %v8467 = vld [vmem:[#allocation4 + $0x28] sm:$0xff]
      %v8468 = vld [vmem:[#allocation4 + $0x30] sm:$0xff]
      %v8469 = vld [vmem:[#allocation4 + $0x38] sm:$0xff]
      %v8470 = vld [vmem:[#allocation4 + $0x40] sm:$0xff]
      %v8471 = vld [vmem:[#allocation4 + $0x48] sm:$0xff]
      %v8472 = vld [vmem:[#allocation4 + $0x50] sm:$0xff]
      %v8473 = vld [vmem:[#allocation4 + $0x58] sm:$0xff]
      %v8474 = vld [vmem:[#allocation4 + $0x60] sm:$0xff]
      %v8475 = vld [vmem:[#allocation4 + $0x68] sm:$0xff]
      %v8476 = vld [vmem:[#allocation4 + $0x70] sm:$0xff]
      %v8477 = vld [vmem:[#allocation4 + $0x78] sm:$0xff]
      %v8478 = vld [vmem:[%s3] sm:$0xf]
      %v8479 = vld [vmem:[%s3 + $0x4] sm:$0xf]
      %v8480 = vld [vmem:[%s3 + $0x8] sm:$0xf]
      %v8481 = vld [vmem:[%s3 + $0xc] sm:$0xf]
      %v8482 = vld [vmem:[%s3 + $0x10] sm:$0x3]
      %v8483 = vld [vmem:[%s4] sm:$0x1]
      %v8485 = vlaneseq
      %v8486 = vshrl.u32 %v8485, 7
      %v8487 = vsub.s32 0, %v8486
      %v8488 = vrot.slane %v8483, %v8487
      %v8495 = vunpack.c.l.b16 %v8478
      %v8496 = vunpack.c.l.b16 %v8479
      %v8497 = vunpack.c.l.b16 %v8480
      %v8498 = vunpack.c.l.b16 %v8481
      %v8499 = vunpack.c.l.b16 %v8482
      %v8500 = vpack.c.b16 %v8496, %v8495
      %v8501 = vpack.c.b16 %v8498, %v8497
      %v8502 = vpack.c.b16 %v8499, %v8499
      %v8506 = vsel %vm4390, %v8462, 0
      %v8509 = vsel %vm4390, %v8463, 0
      %v8512 = vsel %vm4390, %v8464, 0
      %v8515 = vsel %vm4390, %v8465, 0
      %v8518 = vsel %vm4390, %v8466, 0
      %v8521 = vsel %vm4390, %v8467, 0
      %v8524 = vsel %vm4390, %v8468, 0
      %v8527 = vsel %vm4390, %v8469, 0
      %v8530 = vsel %vm4390, %v8470, 0
      %v8533 = vsel %vm4390, %v8471, 0
      %v8536 = vsel %vm4390, %v8472, 0
      %v8539 = vsel %vm4390, %v8473, 0
      %v8542 = vsel %vm4390, %v8474, 0
      %v8545 = vsel %vm4390, %v8475, 0
      %v8548 = vsel %vm4390, %v8476, 0
      %v8551 = vsel %vm4390, %v8477, 0
      %v8554 = vsel %vm4439, %v8502, 0
      %8556 = vmatprep.subr.bf16.mxu0 0
      %8557 = vmatpush1.bf16.msra.mxu0 %v8500
      %8558 = vmatprep.subr.bf16.mxu0 0
      %8559 = vmatpush1.bf16.msra.mxu0 %v8501
      %8560 = vmatprep.subr.bf16.mxu0 0
      %8561 = vmatpush1.bf16.msra.mxu0 %v8554
      %8562 = vmatprep.subr.bf16.mxu0 0
      %8563 = vmatpush1.bf16.msra.mxu0 0
      %8564 = vmatprep.subr.bf16.mxu0 0
      %8565 = vmatpush1.bf16.msra.mxu0 0
      %8566 = vmatprep.subr.bf16.mxu0 0
      %8567 = vmatpush1.bf16.msra.mxu0 0
      %8568 = vmatprep.subr.bf16.mxu0 0
      %8569 = vmatpush1.bf16.msra.mxu0 0
      %8570 = vmatprep.subr.bf16.mxu0 0
      %8571 = vmatpush1.bf16.msra.mxu0 0
      %8572 = vmatprep.subr.bf16.mxu0 0
      %8573 = vmatpush1.bf16.msra.mxu0 0
      %8574 = vmatprep.subr.bf16.mxu0 0
      %8575 = vmatpush1.bf16.msra.mxu0 0
      %8576 = vmatprep.subr.bf16.mxu0 0
      %8577 = vmatpush1.bf16.msra.mxu0 0
      %8578 = vmatprep.subr.bf16.mxu0 0
      %8579 = vmatpush1.bf16.msra.mxu0 0
      %8580 = vmatprep.subr.bf16.mxu0 0
      %8581 = vmatpush1.bf16.msra.mxu0 0
      %8582 = vmatprep.subr.bf16.mxu0 0
      %8583 = vmatpush1.bf16.msra.mxu0 0
      %8584 = vmatprep.subr.bf16.mxu0 0
      %8585 = vmatpush1.bf16.msra.mxu0 0
      %8586 = vmatprep.subr.bf16.mxu0 0
      %8587 = vmatpush1.bf16.msra.mxu0 0
      %8588 = vmatprep.mubr.bf16.mxu0 0
      %8589 = vmatmul.mubr.bf16.gmra.mrb[0].mxu0 %v8506
      %v8590 = vpop.f32.mrb[0].mxu0
      %v8591 = vadd.f32 %v8488, %v8590
      %v8592 = vpop.f32.mrb[0].mxu0
      %v8593 = vpop.f32.mrb[0].mxu0
      %v8594 = vadd.f32 %v8488, %v8593
      %v8595 = vpop.f32.mrb[0].mxu0
      %8596 = vmatprep.mubr.bf16.mxu0 0
      %8597 = vmatmul.mubr.bf16.gmra.mrb[0].mxu0 %v8509
      %v8598 = vpop.f32.mrb[0].mxu0
      %v8599 = vadd.f32 %v8488, %v8598
      %v8600 = vpop.f32.mrb[0].mxu0
      %v8601 = vpop.f32.mrb[0].mxu0
      %v8602 = vadd.f32 %v8488, %v8601
      %v8603 = vpop.f32.mrb[0].mxu0
      %8604 = vmatprep.mubr.bf16.mxu0 0
      %8605 = vmatmul.mubr.bf16.gmra.mrb[0].mxu0 %v8512
      %v8606 = vpop.f32.mrb[0].mxu0
      %v8607 = vadd.f32 %v8488, %v8606
      %v8608 = vpop.f32.mrb[0].mxu0
      %v8609 = vpop.f32.mrb[0].mxu0
      %v8610 = vadd.f32 %v8488, %v8609
      %v8611 = vpop.f32.mrb[0].mxu0
      %8612 = vmatprep.mubr.bf16.mxu0 0
      %8613 = vmatmul.mubr.bf16.gmra.mrb[0].mxu0 %v8515
      %v8614 = vpop.f32.mrb[0].mxu0
      %v8615 = vadd.f32 %v8488, %v8614
      %v8616 = vpop.f32.mrb[0].mxu0
      %v8617 = vpop.f32.mrb[0].mxu0
      %v8618 = vadd.f32 %v8488, %v8617
      %v8619 = vpop.f32.mrb[0].mxu0
      %8620 = vmatprep.mubr.bf16.mxu0 0
      %8621 = vmatmul.mubr.bf16.gmra.mrb[0].mxu0 %v8518
      %v8622 = vpop.f32.mrb[0].mxu0
      %v8623 = vadd.f32 %v8488, %v8622
      %v8624 = vpop.f32.mrb[0].mxu0
      %v8625 = vpop.f32.mrb[0].mxu0
      %v8626 = vadd.f32 %v8488, %v8625
      %v8627 = vpop.f32.mrb[0].mxu0
      %8628 = vmatprep.mubr.bf16.mxu0 0
      %8629 = vmatmul.mubr.bf16.gmra.mrb[0].mxu0 %v8521
      %v8630 = vpop.f32.mrb[0].mxu0
      %v8631 = vadd.f32 %v8488, %v8630
      %v8632 = vpop.f32.mrb[0].mxu0
      %v8633 = vpop.f32.mrb[0].mxu0
      %v8634 = vadd.f32 %v8488, %v8633
      %v8635 = vpop.f32.mrb[0].mxu0
      %8636 = vmatprep.mubr.bf16.mxu0 0
      %8637 = vmatmul.mubr.bf16.gmra.mrb[0].mxu0 %v8524
      %v8638 = vpop.f32.mrb[0].mxu0
      %v8639 = vadd.f32 %v8488, %v8638
      %v8640 = vpop.f32.mrb[0].mxu0
      %v8641 = vpop.f32.mrb[0].mxu0
      %v8642 = vadd.f32 %v8488, %v8641
      %v8643 = vpop.f32.mrb[0].mxu0
      %8644 = vmatprep.mubr.bf16.mxu0 0
      %8645 = vmatmul.mubr.bf16.gmra.mrb[0].mxu0 %v8527
      %v8646 = vpop.f32.mrb[0].mxu0
      %v8647 = vadd.f32 %v8488, %v8646
      %v8648 = vpop.f32.mrb[0].mxu0
      %v8649 = vpop.f32.mrb[0].mxu0
      %v8650 = vadd.f32 %v8488, %v8649
      %v8651 = vpop.f32.mrb[0].mxu0
      %8652 = vmatprep.mubr.bf16.mxu0 0
      %8653 = vmatmul.mubr.bf16.gmra.mrb[0].mxu0 %v8530
      %v8654 = vpop.f32.mrb[0].mxu0
      %v8655 = vadd.f32 %v8488, %v8654
      %v8656 = vpop.f32.mrb[0].mxu0
      %v8657 = vpop.f32.mrb[0].mxu0
      %v8658 = vadd.f32 %v8488, %v8657
      %v8659 = vpop.f32.mrb[0].mxu0
      %8660 = vmatprep.mubr.bf16.mxu0 0
      %8661 = vmatmul.mubr.bf16.gmra.mrb[0].mxu0 %v8533
      %v8662 = vpop.f32.mrb[0].mxu0
      %v8663 = vadd.f32 %v8488, %v8662
      %v8664 = vpop.f32.mrb[0].mxu0
      %v8665 = vpop.f32.mrb[0].mxu0
      %v8666 = vadd.f32 %v8488, %v8665
      %v8667 = vpop.f32.mrb[0].mxu0
      %8668 = vmatprep.mubr.bf16.mxu0 0
      %8669 = vmatmul.mubr.bf16.gmra.mrb[0].mxu0 %v8536
      %v8670 = vpop.f32.mrb[0].mxu0
      %v8671 = vadd.f32 %v8488, %v8670
      %v8672 = vpop.f32.mrb[0].mxu0
      %v8673 = vpop.f32.mrb[0].mxu0
      %v8674 = vadd.f32 %v8488, %v8673
      %v8675 = vpop.f32.mrb[0].mxu0
      %8676 = vmatprep.mubr.bf16.mxu0 0
      %8677 = vmatmul.mubr.bf16.gmra.mrb[0].mxu0 %v8539
      %v8678 = vpop.f32.mrb[0].mxu0
      %v8679 = vadd.f32 %v8488, %v8678
      %v8680 = vpop.f32.mrb[0].mxu0
      %v8681 = vpop.f32.mrb[0].mxu0
      %v8682 = vadd.f32 %v8488, %v8681
      %v8683 = vpop.f32.mrb[0].mxu0
      %8684 = vmatprep.mubr.bf16.mxu0 0
      %8685 = vmatmul.mubr.bf16.gmra.mrb[0].mxu0 %v8542
      %v8686 = vpop.f32.mrb[0].mxu0
      %v8687 = vadd.f32 %v8488, %v8686
      %v8688 = vpop.f32.mrb[0].mxu0
      %v8689 = vpop.f32.mrb[0].mxu0
      %v8690 = vadd.f32 %v8488, %v8689
      %v8691 = vpop.f32.mrb[0].mxu0
      %8692 = vmatprep.mubr.bf16.mxu0 0
      %8693 = vmatmul.mubr.bf16.gmra.mrb[0].mxu0 %v8545
      %v8694 = vpop.f32.mrb[0].mxu0
      %v8695 = vadd.f32 %v8488, %v8694
      %v8696 = vpop.f32.mrb[0].mxu0
      %v8697 = vpop.f32.mrb[0].mxu0
      %v8698 = vadd.f32 %v8488, %v8697
      %v8699 = vpop.f32.mrb[0].mxu0
      %8700 = vmatprep.mubr.bf16.mxu0 0
      %8701 = vmatmul.mubr.bf16.gmra.mrb[0].mxu0 %v8548
      %v8702 = vpop.f32.mrb[0].mxu0
      %v8703 = vadd.f32 %v8488, %v8702
      %v8704 = vpop.f32.mrb[0].mxu0
      %v8705 = vpop.f32.mrb[0].mxu0
      %v8706 = vadd.f32 %v8488, %v8705
      %v8707 = vpop.f32.mrb[0].mxu0
      %8708 = vmatprep.mubr.bf16.mxu0 0
      %8709 = vmatmul.mubr.bf16.gmra.mrb[0].mxu0 %v8551
      %v8710 = vpop.f32.mrb[0].mxu0
      %v8711 = vadd.f32 %v8488, %v8710
      %v8712 = vpop.f32.mrb[0].mxu0
      %v8713 = vpop.f32.mrb[0].mxu0
      %v8714 = vadd.f32 %v8488, %v8713
      %v8715 = vpop.f32.mrb[0].mxu0
      %8716 = vdwg.mxu0
      %v8717 = vadd.f32 %v8591, %v475
      %v8718 = vadd.f32 %v8594, %v476
      %v8719 = vadd.f32 %v8599, %v477
      %v8720 = vadd.f32 %v8602, %v478
      %v8721 = vadd.f32 %v8607, %v479
      %v8722 = vadd.f32 %v8610, %v480
      %v8723 = vadd.f32 %v8615, %v481
      %v8724 = vadd.f32 %v8618, %v482
      %v8725 = vadd.f32 %v8623, %v483
      %v8726 = vadd.f32 %v8626, %v484
      %v8727 = vadd.f32 %v8631, %v485
      %v8728 = vadd.f32 %v8634, %v486
      %v8729 = vadd.f32 %v8639, %v487
      %v8730 = vadd.f32 %v8642, %v488
      %v8731 = vadd.f32 %v8647, %v489
      %v8732 = vadd.f32 %v8650, %v490
      %v8733 = vadd.f32 %v8655, %v491
      %v8734 = vadd.f32 %v8658, %v492
      %v8735 = vadd.f32 %v8663, %v493
      %v8736 = vadd.f32 %v8666, %v494
      %v8737 = vadd.f32 %v8671, %v495
      %v8738 = vadd.f32 %v8674, %v496
      %v8739 = vadd.f32 %v8679, %v497
      %v8740 = vadd.f32 %v8682, %v498
      %v8741 = vadd.f32 %v8687, %v499
      %v8742 = vadd.f32 %v8690, %v500
      %v8743 = vadd.f32 %v8695, %v501
      %v8744 = vadd.f32 %v8698, %v502
      %v8745 = vadd.f32 %v8703, %v503
      %v8746 = vadd.f32 %v8706, %v504
      %v8747 = vadd.f32 %v8711, %v505
      %v8748 = vadd.f32 %v8714, %v506
      %v8749 = vmax.f32 %v8717, 0.0
      %v8750 = vmax.f32 %v8718, 0.0
      %v8751 = vmax.f32 %v8719, 0.0
      %v8752 = vmax.f32 %v8720, 0.0
      %v8753 = vmax.f32 %v8721, 0.0
      %v8754 = vmax.f32 %v8722, 0.0
      %v8755 = vmax.f32 %v8723, 0.0
      %v8756 = vmax.f32 %v8724, 0.0
      %v8757 = vmax.f32 %v8725, 0.0
      %v8758 = vmax.f32 %v8726, 0.0
      %v8759 = vmax.f32 %v8727, 0.0
      %v8760 = vmax.f32 %v8728, 0.0
      %v8761 = vmax.f32 %v8729, 0.0
      %v8762 = vmax.f32 %v8730, 0.0
      %v8763 = vmax.f32 %v8731, 0.0
      %v8764 = vmax.f32 %v8732, 0.0
      %v8765 = vmax.f32 %v8733, 0.0
      %v8766 = vmax.f32 %v8734, 0.0
      %v8767 = vmax.f32 %v8735, 0.0
      %v8768 = vmax.f32 %v8736, 0.0
      %v8769 = vmax.f32 %v8737, 0.0
      %v8770 = vmax.f32 %v8738, 0.0
      %v8771 = vmax.f32 %v8739, 0.0
      %v8772 = vmax.f32 %v8740, 0.0
      %v8773 = vmax.f32 %v8741, 0.0
      %v8774 = vmax.f32 %v8742, 0.0
      %v8775 = vmax.f32 %v8743, 0.0
      %v8776 = vmax.f32 %v8744, 0.0
      %v8777 = vmax.f32 %v8745, 0.0
      %v8778 = vmax.f32 %v8746, 0.0
      %v8779 = vmax.f32 %v8747, 0.0
      %v8780 = vmax.f32 %v8748, 0.0
      %8781 = vst.msk [vmem:[%s224] sm:$0xff] %vm1134, %v8749
      %8782 = vst.msk [vmem:[%s224 + $0x8] sm:$0xff] %vm1134, %v8750
      %8783 = vst.msk [vmem:[%s224 + $0x10] sm:$0xff] %vm1134, %v8751
      %8784 = vst.msk [vmem:[%s224 + $0x18] sm:$0xff] %vm1134, %v8752
      %8785 = vst.msk [vmem:[%s224 + $0x20] sm:$0xff] %vm1134, %v8753
      %8786 = vst.msk [vmem:[%s224 + $0x28] sm:$0xff] %vm1134, %v8754
      %8787 = vst.msk [vmem:[%s224 + $0x30] sm:$0xff] %vm1134, %v8755
      %8788 = vst.msk [vmem:[%s224 + $0x38] sm:$0xff] %vm1134, %v8756
      %8789 = vst.msk [vmem:[%s224 + $0x40] sm:$0xff] %vm1134, %v8757
      %8790 = vst.msk [vmem:[%s224 + $0x48] sm:$0xff] %vm1134, %v8758
      %8791 = vst.msk [vmem:[%s224 + $0x50] sm:$0xff] %vm1134, %v8759
      %8792 = vst.msk [vmem:[%s224 + $0x58] sm:$0xff] %vm1134, %v8760
      %8793 = vst.msk [vmem:[%s224 + $0x60] sm:$0xff] %vm1134, %v8761
      %8794 = vst.msk [vmem:[%s224 + $0x68] sm:$0xff] %vm1134, %v8762
      %8795 = vst.msk [vmem:[%s224 + $0x70] sm:$0xff] %vm1134, %v8763
      %8796 = vst.msk [vmem:[%s224 + $0x78] sm:$0xff] %vm1134, %v8764
      %8797 = vst.msk [vmem:[%s224 + $0x80] sm:$0xff] %vm1134, %v8765
      %8798 = vst.msk [vmem:[%s224 + $0x88] sm:$0xff] %vm1134, %v8766
      %8799 = vst.msk [vmem:[%s224 + $0x90] sm:$0xff] %vm1134, %v8767
      %8800 = vst.msk [vmem:[%s224 + $0x98] sm:$0xff] %vm1134, %v8768
      %8801 = vst.msk [vmem:[%s224 + $0xa0] sm:$0xff] %vm1134, %v8769
      %8802 = vst.msk [vmem:[%s224 + $0xa8] sm:$0xff] %vm1134, %v8770
      %8803 = vst.msk [vmem:[%s224 + $0xb0] sm:$0xff] %vm1134, %v8771
      %8804 = vst.msk [vmem:[%s224 + $0xb8] sm:$0xff] %vm1134, %v8772
      %8805 = vst.msk [vmem:[%s224 + $0xc0] sm:$0xff] %vm1134, %v8773
      %8806 = vst.msk [vmem:[%s224 + $0xc8] sm:$0xff] %vm1134, %v8774
      %8807 = vst.msk [vmem:[%s224 + $0xd0] sm:$0xff] %vm1134, %v8775
      %8808 = vst.msk [vmem:[%s224 + $0xd8] sm:$0xff] %vm1134, %v8776
      %8809 = vst.msk [vmem:[%s224 + $0xe0] sm:$0xff] %vm1134, %v8777
      %8810 = vst.msk [vmem:[%s224 + $0xe8] sm:$0xff] %vm1134, %v8778
      %8811 = vst.msk [vmem:[%s224 + $0xf0] sm:$0xff] %vm1134, %v8779
      %8812 = vst.msk [vmem:[%s224 + $0xf8] sm:$0xff] %vm1134, %v8780
      %p8813 = scmp.lt.s32.totalorder %s16, 1
      %s8814 = scalar_select %p8813, %s16, 1
      %s8815 = smul.addr %s8814, 32
      %s8816 = smul.addr %s8815, 8
      %s8817 = scalar_lea.vmem %s5, %s8816
      // Predicated region
      $region41: #{basic_block_forward_nhwc.1} parent=39 // pred_check
        %p8818 = pneg %p144
      $region42: #{basic_block_forward_nhwc.1} parent=39 // pred_check_branch
        %8820 = sbr.rel (%p8818) target = $region44
      $region43: #{basic_block_forward_nhwc.1} parent=39 // pred_region
        _
      $region44: #{basic_block_forward_nhwc.1} parent=39 // pred_fallthru
        _
    $region40: #{basic_block_forward_nhwc.1} parent=5 // pred_fallthru
      _
    %p8821 = scmp.le.s32.totalorder 2, %s11
    // Predicated region
    $region45: #{basic_block_forward_nhwc.1} parent=5 // pred_check
      %p8822 = pneg %p8821
    $region46: #{basic_block_forward_nhwc.1} parent=5 // pred_check_branch
      %8824 = sbr.rel (%p8822) target = $region48
    $region47: #{basic_block_forward_nhwc.1} parent=5 // pred_region
      %s8825 = ssub.s32 %s11, 2
      // Predicated region
      $region49: #{basic_block_forward_nhwc.1} parent=47 // pred_check
        %p8826 = pneg %p150
      $region50: #{basic_block_forward_nhwc.1} parent=47 // pred_check_branch
        %8828 = sbr.rel (%p8826) target = $region52
      $region51: #{basic_block_forward_nhwc.1} parent=47 // pred_region
        %p8829 = scmp.lt.s32.totalorder %s17, 1
        %s8830 = scalar_select %p8829, %s17, 1
        %s8831 = smul.addr %s8830, 32
        %s8832 = smul.addr %s8831, 8
        %s8833 = scalar_lea.vmem %s5, %s8832
      $region52: #{basic_block_forward_nhwc.1} parent=47 // pred_fallthru
        _
    $region48: #{basic_block_forward_nhwc.1} parent=5 // pred_fallthru
      _
  $region6: #{basic_block_forward_nhwc.1} parent=0 // loop_footer
    %s15 = sadd.s32 1, %s11
  $region7: #{basic_block_forward_nhwc.1} parent=0 // loop_footer_branch
    %10 = sbr.rel target = $region3
  $region8: #{basic_block_forward_nhwc.1} parent=0 // loop_exit
    _

</llo_original>
